<compile_context>
chip_gen: v7x
topology: tpu7x:2x2x1
jax: 0.10.0
libtpu: 0.0.40
codegen_flags: <defaults>
</compile_context>

<pallas_src>
import math
import functools

import jax
import jax.numpy as jnp
import numpy as np
from jax import lax
from jax.experimental import pallas as pl
from jax.experimental.pallas import tpu as pltpu  # noqa: F401  (TPU backend)


# ----------------------------- in-kernel helpers -----------------------------

def _layer_norm(x, g, b, eps=1e-5):
    mu = jnp.mean(x, axis=-1, keepdims=True)
    var = jnp.mean((x - mu) ** 2, axis=-1, keepdims=True)
    return (x - mu) * lax.rsqrt(var + eps) * g + b


def _gelu_exact(x):
    # PyTorch nn.GELU() default (erf-based, exact)
    return 0.5 * x * (1.0 + lax.erf(x * (1.0 / math.sqrt(2.0))))


def _softmax_last(x):
    m = jnp.max(x, axis=-1, keepdims=True)
    e = jnp.exp(x - m)
    d = jnp.sum(e, axis=-1, keepdims=True)
    # EUP approx reciprocal + one Newton-Raphson refinement (keeps 1e-3 parity)
    r = pl.reciprocal(d, approx=True)
    r = r * (2.0 - d * r)
    return e * r


# ------------------------------ fused decoder kernel -------------------------

def fused_decoder_kernel(x_ref,
                         wqkv_ref, bqkv_ref, wo_ref, bo_ref,
                         ln_g_ref, ln_b_ref,
                         wu_ref, bu_ref, wd_ref, bd_ref,
                         ow_ref, ob_ref,
                         o_ref, *, layer_num, batch, seq_len, head_num, head_dim):
    B, S, H, hd = batch, seq_len, head_num, head_dim
    D = H * hd
    scale = 1.0 / math.sqrt(hd)

    x = x_ref[...]                                   # (B*S, D), VMEM-resident

    # Causal additive bias — built ONCE, (S, S); broadcast implicitly over the
    # (batch*head) axis of the scores (no materialized per-head copies).
    row = lax.broadcasted_iota(jnp.int32, (S, S), 0)
    col = lax.broadcasted_iota(jnp.int32, (S, S), 1)
    bias = jnp.where(col <= row, 0.0, -1e30).astype(jnp.float32)

    for l in range(layer_num):                       # static unroll over layers
        # ---- fused Q/K/V projection: ONE (B*S, D) @ (D, 3D) MXU matmul ----
        qkv = jnp.dot(x, wqkv_ref[l],
                      preferred_element_type=jnp.float32) + bqkv_ref[l]

        def head_view(off):
            # Per-head view only where the scores need it: static sublane/lane
            # slices stacked on a leading (B*H) batch axis -> (B*H, S, hd).
            return jnp.stack(
                [qkv[b * S:(b + 1) * S, off + h * hd: off + (h + 1) * hd]
                 for b in range(B) for h in range(H)], axis=0)

        q = head_view(0)
        k = head_view(D)
        v = head_view(2 * D)

        # ---- scaled dot-product attention, all (b, h) in two batched dots ----
        s = jnp.einsum('nqk,ntk->nqt', q, k,
                       preferred_element_type=jnp.float32) * scale + bias
        p = _softmax_last(s)                          # (B*H, S, S)
        ctx = jnp.einsum('nqt,ntk->nqk', p, v,
                         preferred_element_type=jnp.float32)       # (B*H, S, hd)

        # ---- reassemble context to (B*S, D) and do ONE (D, D) output proj ----
        ctx_rows = jnp.concatenate(
            [jnp.concatenate([ctx[b * H + h] for h in range(H)], axis=-1)
             for b in range(B)], axis=0)              # (B*S, D)
        attn = jnp.dot(ctx_rows, wo_ref[l],
                       preferred_element_type=jnp.float32) + bo_ref[l]

        x1 = _layer_norm(x + attn, ln_g_ref[l], ln_b_ref[l])

        # ---- feed-forward (single matmuls over the folded B*S rows) ----
        up = jnp.dot(x1, wu_ref[l], preferred_element_type=jnp.float32) + bu_ref[l]
        up = _gelu_exact(up)
        down = jnp.dot(up, wd_ref[l], preferred_element_type=jnp.float32) + bd_ref[l]
        # Same LayerNorm parameters as the attention sub-block (matches PyTorch).
        x = _layer_norm(x1 + down, ln_g_ref[l], ln_b_ref[l])

    # ---- fused output head: out_linear + softmax ----
    logits = jnp.dot(x, ow_ref[...], preferred_element_type=jnp.float32) + ob_ref[...]
    o_ref[...] = _softmax_last(logits)


# ------------------------------ weight preparation (hoisted) ------------------

def prepare_weights(params):
    """Stack per-layer weights once, OUTSIDE the per-call path.

    Q/K/V weights and biases are fused along the output dim so the kernel does
    one (D, 3D) projection per layer; everything else keeps its natural (D, .)
    layout so the kernel never reshapes/transposes activations.
    """
    layers = params["layers"]
    stack = lambda fn: jnp.stack([fn(lp) for lp in layers])
    return (
        stack(lambda lp: jnp.concatenate([lp["wq"], lp["wk"], lp["wv"]], axis=1)),  # (L, D, 3D)
        stack(lambda lp: jnp.concatenate([lp["bq"], lp["bk"], lp["bv"]], axis=1)),  # (L, 1, 3D)
        stack(lambda lp: lp["wo"]),    # (L, D, D)
        stack(lambda lp: lp["bo"]),    # (L, 1, D)
        stack(lambda lp: lp["ln_g"]),  # (L, 1, D)
        stack(lambda lp: lp["ln_b"]),  # (L, 1, D)
        stack(lambda lp: lp["wu"]),    # (L, D, 4D)
        stack(lambda lp: lp["bu"]),    # (L, 1, 4D)
        stack(lambda lp: lp["wd"]),    # (L, 4D, D)
        stack(lambda lp: lp["bd"]),    # (L, 1, D)
        params["out_w"],               # (D, D)
        params["out_b"],               # (1, D)
    )


# ------------------------------ jitted forward ---------------------------------

@functools.partial(jax.jit, static_argnames=("head_num", "layer_num"))
def decoder_forward(tokens, embedding, weights, head_num, layer_num):
    # embedding lookup (plain-JAX gather glue feeding the fused kernel)
    x = embedding[tokens]                            # (B, S, D) f32
    B, S, D = x.shape
    x2d = x.reshape(B * S, D)                        # fold batch into rows

    kernel = functools.partial(
        fused_decoder_kernel,
        layer_num=layer_num, batch=B, seq_len=S,
        head_num=head_num, head_dim=D // head_num)

    # Single invocation (no grid): whole activation + all stacked weights are
    # VMEM-resident for the duration of the kernel (~0.3 MB total).
    out = pl.pallas_call(
        kernel,
        out_shape=jax.ShapeDtypeStruct((B * S, D), jnp.float32),
    )(x2d, *weights)
    return out.reshape(B, S, D)


# ------------------------------ parameter init -------------------------------

def init_params(key, vocab, hidden, layer_num):
    def lin(k, din, dout):
        k1, k2 = jax.random.split(k)
        bound = 1.0 / math.sqrt(din)
        w = jax.random.uniform(k1, (din, dout), jnp.float32, -bound, bound)
        b = jax.random.uniform(k2, (1, dout), jnp.float32, -bound, bound)
        return w, b

    keys = jax.random.split(key, 2 + layer_num)
    params = {
        "embedding": jax.random.normal(keys[0], (vocab, hidden), jnp.float32),
        "layers": [],
    }
    ow, ob = lin(keys[1], hidden, hidden)
    params["out_w"], params["out_b"] = ow, ob
    for li in range(layer_num):
        lk = jax.random.split(keys[2 + li], 7)
        wq, bq = lin(lk[0], hidden, hidden)
        wk, bk = lin(lk[1], hidden, hidden)
        wv, bv = lin(lk[2], hidden, hidden)
        wo, bo = lin(lk[3], hidden, hidden)
        wu, bu = lin(lk[4], hidden, 4 * hidden)
        wd, bd = lin(lk[5], 4 * hidden, hidden)
        params["layers"].append(dict(
            wq=wq, bq=bq, wk=wk, bk=bk, wv=wv, bv=bv, wo=wo, bo=bo,
            ln_g=jnp.ones((1, hidden), jnp.float32),
            ln_b=jnp.zeros((1, hidden), jnp.float32),
            wu=wu, bu=bu, wd=wd, bd=bd))
    return params


# ------------------------------ pure-JAX reference ---------------------------

def _ref_layer(x, lp, head_num):
    B, S, D = x.shape
    hd = D // head_num

    def split_heads(t):
        return t.reshape(B, S, head_num, hd).transpose(0, 2, 1, 3)

    q = split_heads(x @ lp["wq"] + lp["bq"][0])
    k = split_heads(x @ lp["wk"] + lp["bk"][0])
    v = split_heads(x @ lp["wv"] + lp["bv"][0])
    s = jnp.einsum("bhqd,bhkd->bhqk", q, k) / math.sqrt(hd)
    mask = jnp.tril(jnp.ones((S, S), bool))
    s = jnp.where(mask, s, -jnp.inf)
    p = jax.nn.softmax(s, axis=-1)
    ctx = jnp.einsum("bhqk,bhkd->bhqd", p, v).transpose(0, 2, 1, 3).reshape(B, S, D)
    attn = ctx @ lp["wo"] + lp["bo"][0]

    def ln(t):
        mu = jnp.mean(t, -1, keepdims=True)
        var = jnp.mean((t - mu) ** 2, -1, keepdims=True)
        return (t - mu) / jnp.sqrt(var + 1e-5) * lp["ln_g"][0] + lp["ln_b"][0]

    x1 = ln(x + attn)
    up = jax.nn.gelu(x1 @ lp["wu"] + lp["bu"][0], approximate=False)
    down = up @ lp["wd"] + lp["bd"][0]
    return ln(x1 + down)


def _ref_forward(tokens, params, head_num):
    x = params["embedding"][tokens]
    for lp in params["layers"]:
        x = _ref_layer(x, lp, head_num)
    logits = x @ params["out_w"] + params["out_b"][0]
    return jax.nn.softmax(logits, axis=-1)


# ----------------------------------- main -------------------------------------

if __name__ == "__main__":
    B, S, D, H, LAYERS = 2, 8, 32, 4, 5
    VOCAB = S  # nn.Embedding(seq_len, hidden_dim)

    key = jax.random.PRNGKey(0)
    pkey, tkey = jax.random.split(key)
    params = init_params(pkey, VOCAB, D, LAYERS)
    tokens = jax.random.randint(tkey, (B, S), 0, VOCAB, dtype=jnp.int32)

    # Weight stacking/fusion is done ONCE here (hoisted out of the call path).
    embedding = params["embedding"]
    weights = jax.block_until_ready(prepare_weights(params))

    out = decoder_forward(tokens, embedding, weights, head_num=H, layer_num=LAYERS)
    out = jax.block_until_ready(out)

    ref = _ref_forward(tokens, params, H)
    np.testing.assert_allclose(np.asarray(out), np.asarray(ref),
                               rtol=1e-3, atol=1e-3)
    assert out.shape == (B, S, D)
    assert np.allclose(np.asarray(out).sum(-1), 1.0, atol=1e-3)

    print("KERNEL_OK")
</pallas_src>

<mosaic_0001>
module attributes {stable_mosaic.version = 11 : i64} {
  func.func @fused_decoder_kernel(%arg0: memref<16x32xf32, #tpu.memory_space<vmem>>, %arg1: memref<5x32x96xf32, #tpu.memory_space<vmem>>, %arg2: memref<5x1x96xf32, #tpu.memory_space<vmem>>, %arg3: memref<5x32x32xf32, #tpu.memory_space<vmem>>, %arg4: memref<5x1x32xf32, #tpu.memory_space<vmem>>, %arg5: memref<5x1x32xf32, #tpu.memory_space<vmem>>, %arg6: memref<5x1x32xf32, #tpu.memory_space<vmem>>, %arg7: memref<5x32x128xf32, #tpu.memory_space<vmem>>, %arg8: memref<5x1x128xf32, #tpu.memory_space<vmem>>, %arg9: memref<5x128x32xf32, #tpu.memory_space<vmem>>, %arg10: memref<5x1x32xf32, #tpu.memory_space<vmem>>, %arg11: memref<32x32xf32, #tpu.memory_space<vmem>>, %arg12: memref<1x32xf32, #tpu.memory_space<vmem>>, %arg13: memref<16x32xf32, #tpu.memory_space<vmem>>) attributes {dimension_semantics = [], scalar_prefetch = 0 : i64, scratch_operands = 0 : i64, tpu.core_type = #tpu.core_type<tc>} {
    %c0 = arith.constant 0 : index
    %c0_0 = arith.constant 0 : index
    %0 = vector.load %arg0[%c0, %c0_0] : memref<16x32xf32, #tpu.memory_space<vmem>>, vector<16x32xf32>
    %1 = tpu.iota {dimensions = array<i32: 0>} : vector<8x8xi32>
    %2 = tpu.iota {dimensions = array<i32: 1>} : vector<8x8xi32>
    %3 = arith.cmpi sle, %2, %1 : vector<8x8xi32>
    %cst = arith.constant 0.000000e+00 : f32
    %cst_1 = arith.constant -1.000000e+30 : f32
    %4 = vector.broadcast %cst : f32 to vector<8x8xf32>
    %5 = vector.broadcast %cst_1 : f32 to vector<8x8xf32>
    %6 = arith.select %3, %4, %5 : vector<8x8xi1>, vector<8x8xf32>
    %c0_2 = arith.constant 0 : index
    %c0_3 = arith.constant 0 : index
    %c0_4 = arith.constant 0 : index
    %7 = vector.load %arg1[%c0_2, %c0_3, %c0_4] : memref<5x32x96xf32, #tpu.memory_space<vmem>>, vector<1x32x96xf32>
    %8 = vector.shape_cast %7 : vector<1x32x96xf32> to vector<32x96xf32>
    %cst_5 = arith.constant dense<0.000000e+00> : vector<16x96xf32>
    %9 = tpu.matmul %0, %8, %cst_5 {dimension_numbers = #tpu.dot_dimension_numbers<[1], [0], [0], [1], [0, 0, 1, 1], [], []>} : vector<16x32xf32>, vector<32x96xf32>, vector<16x96xf32> -> vector<16x96xf32>
    %c0_6 = arith.constant 0 : index
    %c0_7 = arith.constant 0 : index
    %c0_8 = arith.constant 0 : index
    %10 = vector.load %arg2[%c0_6, %c0_7, %c0_8] : memref<5x1x96xf32, #tpu.memory_space<vmem>>, vector<1x1x96xf32>
    %11 = vector.shape_cast %10 : vector<1x1x96xf32> to vector<1x96xf32>
    %12 = vector.broadcast %11 : vector<1x96xf32> to vector<16x96xf32>
    %13 = arith.addf %9, %12 : vector<16x96xf32>
    %14 = vector.extract_strided_slice %13 {offsets = [0, 0], sizes = [8, 8], strides = [1, 1]} : vector<16x96xf32> to vector<8x8xf32>
    %15 = vector.extract_strided_slice %13 {offsets = [0, 8], sizes = [8, 8], strides = [1, 1]} : vector<16x96xf32> to vector<8x8xf32>
    %16 = vector.extract_strided_slice %13 {offsets = [0, 16], sizes = [8, 8], strides = [1, 1]} : vector<16x96xf32> to vector<8x8xf32>
    %17 = vector.extract_strided_slice %13 {offsets = [0, 24], sizes = [8, 8], strides = [1, 1]} : vector<16x96xf32> to vector<8x8xf32>
    %18 = vector.extract_strided_slice %13 {offsets = [8, 0], sizes = [8, 8], strides = [1, 1]} : vector<16x96xf32> to vector<8x8xf32>
    %19 = vector.extract_strided_slice %13 {offsets = [8, 8], sizes = [8, 8], strides = [1, 1]} : vector<16x96xf32> to vector<8x8xf32>
    %20 = vector.extract_strided_slice %13 {offsets = [8, 16], sizes = [8, 8], strides = [1, 1]} : vector<16x96xf32> to vector<8x8xf32>
    %21 = vector.extract_strided_slice %13 {offsets = [8, 24], sizes = [8, 8], strides = [1, 1]} : vector<16x96xf32> to vector<8x8xf32>
    %22 = vector.shape_cast %14 : vector<8x8xf32> to vector<1x8x8xf32>
    %23 = vector.shape_cast %15 : vector<8x8xf32> to vector<1x8x8xf32>
    %24 = vector.shape_cast %16 : vector<8x8xf32> to vector<1x8x8xf32>
    %25 = vector.shape_cast %17 : vector<8x8xf32> to vector<1x8x8xf32>
    %26 = vector.shape_cast %18 : vector<8x8xf32> to vector<1x8x8xf32>
    %27 = vector.shape_cast %19 : vector<8x8xf32> to vector<1x8x8xf32>
    %28 = vector.shape_cast %20 : vector<8x8xf32> to vector<1x8x8xf32>
    %29 = vector.shape_cast %21 : vector<8x8xf32> to vector<1x8x8xf32>
    %30 = tpu.concatenate %22, %23, %24, %25, %26, %27, %28, %29 in 0 : vector<1x8x8xf32>, vector<1x8x8xf32>, vector<1x8x8xf32>, vector<1x8x8xf32>, vector<1x8x8xf32>, vector<1x8x8xf32>, vector<1x8x8xf32>, vector<1x8x8xf32> -> vector<8x8x8xf32>
    %31 = vector.extract_strided_slice %13 {offsets = [0, 32], sizes = [8, 8], strides = [1, 1]} : vector<16x96xf32> to vector<8x8xf32>
    %32 = vector.extract_strided_slice %13 {offsets = [0, 40], sizes = [8, 8], strides = [1, 1]} : vector<16x96xf32> to vector<8x8xf32>
    %33 = vector.extract_strided_slice %13 {offsets = [0, 48], sizes = [8, 8], strides = [1, 1]} : vector<16x96xf32> to vector<8x8xf32>
    %34 = vector.extract_strided_slice %13 {offsets = [0, 56], sizes = [8, 8], strides = [1, 1]} : vector<16x96xf32> to vector<8x8xf32>
    %35 = vector.extract_strided_slice %13 {offsets = [8, 32], sizes = [8, 8], strides = [1, 1]} : vector<16x96xf32> to vector<8x8xf32>
    %36 = vector.extract_strided_slice %13 {offsets = [8, 40], sizes = [8, 8], strides = [1, 1]} : vector<16x96xf32> to vector<8x8xf32>
    %37 = vector.extract_strided_slice %13 {offsets = [8, 48], sizes = [8, 8], strides = [1, 1]} : vector<16x96xf32> to vector<8x8xf32>
    %38 = vector.extract_strided_slice %13 {offsets = [8, 56], sizes = [8, 8], strides = [1, 1]} : vector<16x96xf32> to vector<8x8xf32>
    %39 = vector.shape_cast %31 : vector<8x8xf32> to vector<1x8x8xf32>
    %40 = vector.shape_cast %32 : vector<8x8xf32> to vector<1x8x8xf32>
    %41 = vector.shape_cast %33 : vector<8x8xf32> to vector<1x8x8xf32>
    %42 = vector.shape_cast %34 : vector<8x8xf32> to vector<1x8x8xf32>
    %43 = vector.shape_cast %35 : vector<8x8xf32> to vector<1x8x8xf32>
    %44 = vector.shape_cast %36 : vector<8x8xf32> to vector<1x8x8xf32>
    %45 = vector.shape_cast %37 : vector<8x8xf32> to vector<1x8x8xf32>
    %46 = vector.shape_cast %38 : vector<8x8xf32> to vector<1x8x8xf32>
    %47 = tpu.concatenate %39, %40, %41, %42, %43, %44, %45, %46 in 0 : vector<1x8x8xf32>, vector<1x8x8xf32>, vector<1x8x8xf32>, vector<1x8x8xf32>, vector<1x8x8xf32>, vector<1x8x8xf32>, vector<1x8x8xf32>, vector<1x8x8xf32> -> vector<8x8x8xf32>
    %48 = vector.extract_strided_slice %13 {offsets = [0, 64], sizes = [8, 8], strides = [1, 1]} : vector<16x96xf32> to vector<8x8xf32>
    %49 = vector.extract_strided_slice %13 {offsets = [0, 72], sizes = [8, 8], strides = [1, 1]} : vector<16x96xf32> to vector<8x8xf32>
    %50 = vector.extract_strided_slice %13 {offsets = [0, 80], sizes = [8, 8], strides = [1, 1]} : vector<16x96xf32> to vector<8x8xf32>
    %51 = vector.extract_strided_slice %13 {offsets = [0, 88], sizes = [8, 8], strides = [1, 1]} : vector<16x96xf32> to vector<8x8xf32>
    %52 = vector.extract_strided_slice %13 {offsets = [8, 64], sizes = [8, 8], strides = [1, 1]} : vector<16x96xf32> to vector<8x8xf32>
    %53 = vector.extract_strided_slice %13 {offsets = [8, 72], sizes = [8, 8], strides = [1, 1]} : vector<16x96xf32> to vector<8x8xf32>
    %54 = vector.extract_strided_slice %13 {offsets = [8, 80], sizes = [8, 8], strides = [1, 1]} : vector<16x96xf32> to vector<8x8xf32>
    %55 = vector.extract_strided_slice %13 {offsets = [8, 88], sizes = [8, 8], strides = [1, 1]} : vector<16x96xf32> to vector<8x8xf32>
    %56 = vector.shape_cast %48 : vector<8x8xf32> to vector<1x8x8xf32>
    %57 = vector.shape_cast %49 : vector<8x8xf32> to vector<1x8x8xf32>
    %58 = vector.shape_cast %50 : vector<8x8xf32> to vector<1x8x8xf32>
    %59 = vector.shape_cast %51 : vector<8x8xf32> to vector<1x8x8xf32>
    %60 = vector.shape_cast %52 : vector<8x8xf32> to vector<1x8x8xf32>
    %61 = vector.shape_cast %53 : vector<8x8xf32> to vector<1x8x8xf32>
    %62 = vector.shape_cast %54 : vector<8x8xf32> to vector<1x8x8xf32>
    %63 = vector.shape_cast %55 : vector<8x8xf32> to vector<1x8x8xf32>
    %64 = tpu.concatenate %56, %57, %58, %59, %60, %61, %62, %63 in 0 : vector<1x8x8xf32>, vector<1x8x8xf32>, vector<1x8x8xf32>, vector<1x8x8xf32>, vector<1x8x8xf32>, vector<1x8x8xf32>, vector<1x8x8xf32>, vector<1x8x8xf32> -> vector<8x8x8xf32>
    "tpu.trace_start"() <{level = 10 : i32, message = "nqk,ntk->nqt"}> : () -> ()
    %cst_9 = arith.constant dense<0.000000e+00> : vector<8x8x8xf32>
    %65 = tpu.matmul %30, %47, %cst_9 {dimension_numbers = #tpu.dot_dimension_numbers<[2], [2], [1], [1], [0, 0, 0, 1, 1, 1], [0], [0]>} : vector<8x8x8xf32>, vector<8x8x8xf32>, vector<8x8x8xf32> -> vector<8x8x8xf32>
    "tpu.trace_stop"() : () -> ()
    %cst_10 = arith.constant 0.353553385 : f32
    %66 = vector.broadcast %cst_10 : f32 to vector<8x8x8xf32>
    %67 = arith.mulf %65, %66 : vector<8x8x8xf32>
    %68 = vector.shape_cast %6 : vector<8x8xf32> to vector<1x8x8xf32>
    %69 = vector.broadcast %68 : vector<1x8x8xf32> to vector<8x8x8xf32>
    %70 = arith.addf %67, %69 : vector<8x8x8xf32>
    %cst_11 = arith.constant dense<0xFF800000> : vector<8x8xf32>
    %71 = vector.multi_reduction <maximumf>, %70, %cst_11 [2] : vector<8x8x8xf32> to vector<8x8xf32>
    %72 = vector.shape_cast %71 : vector<8x8xf32> to vector<8x8x1xf32>
    %73 = vector.broadcast %72 : vector<8x8x1xf32> to vector<8x8x8xf32>
    %74 = arith.subf %70, %73 : vector<8x8x8xf32>
    %75 = math.exp %74 : vector<8x8x8xf32>
    %cst_12 = arith.constant dense<0.000000e+00> : vector<8x8xf32>
    %76 = vector.multi_reduction <add>, %75, %cst_12 [2] : vector<8x8x8xf32> to vector<8x8xf32>
    %77 = vector.shape_cast %76 : vector<8x8xf32> to vector<8x8x1xf32>
    %78 = tpu.reciprocal %77 {approx = true} : vector<8x8x1xf32> -> vector<8x8x1xf32>
    %79 = arith.mulf %77, %78 : vector<8x8x1xf32>
    %cst_13 = arith.constant 2.000000e+00 : f32
    %80 = vector.broadcast %cst_13 : f32 to vector<8x8x1xf32>
    %81 = arith.subf %80, %79 : vector<8x8x1xf32>
    %82 = arith.mulf %78, %81 : vector<8x8x1xf32>
    %83 = vector.broadcast %82 : vector<8x8x1xf32> to vector<8x8x8xf32>
    %84 = arith.mulf %75, %83 : vector<8x8x8xf32>
    "tpu.trace_start"() <{level = 10 : i32, message = "nqt,ntk->nqk"}> : () -> ()
    %cst_14 = arith.constant dense<0.000000e+00> : vector<8x8x8xf32>
    %85 = tpu.matmul %84, %64, %cst_14 {dimension_numbers = #tpu.dot_dimension_numbers<[2], [1], [1], [2], [0, 0, 0, 1, 1, 2], [0], [0]>} : vector<8x8x8xf32>, vector<8x8x8xf32>, vector<8x8x8xf32> -> vector<8x8x8xf32>
    "tpu.trace_stop"() : () -> ()
    %86 = vector.extract_strided_slice %85 {offsets = [0, 0, 0], sizes = [1, 8, 8], strides = [1, 1, 1]} : vector<8x8x8xf32> to vector<1x8x8xf32>
    %87 = vector.shape_cast %86 : vector<1x8x8xf32> to vector<8x8xf32>
    %88 = vector.extract_strided_slice %85 {offsets = [1, 0, 0], sizes = [1, 8, 8], strides = [1, 1, 1]} : vector<8x8x8xf32> to vector<1x8x8xf32>
    %89 = vector.shape_cast %88 : vector<1x8x8xf32> to vector<8x8xf32>
    %90 = vector.extract_strided_slice %85 {offsets = [2, 0, 0], sizes = [1, 8, 8], strides = [1, 1, 1]} : vector<8x8x8xf32> to vector<1x8x8xf32>
    %91 = vector.shape_cast %90 : vector<1x8x8xf32> to vector<8x8xf32>
    %92 = vector.extract_strided_slice %85 {offsets = [3, 0, 0], sizes = [1, 8, 8], strides = [1, 1, 1]} : vector<8x8x8xf32> to vector<1x8x8xf32>
    %93 = vector.shape_cast %92 : vector<1x8x8xf32> to vector<8x8xf32>
    %94 = tpu.concatenate %87, %89, %91, %93 in 1 : vector<8x8xf32>, vector<8x8xf32>, vector<8x8xf32>, vector<8x8xf32> -> vector<8x32xf32>
    %95 = vector.extract_strided_slice %85 {offsets = [4, 0, 0], sizes = [1, 8, 8], strides = [1, 1, 1]} : vector<8x8x8xf32> to vector<1x8x8xf32>
    %96 = vector.shape_cast %95 : vector<1x8x8xf32> to vector<8x8xf32>
    %97 = vector.extract_strided_slice %85 {offsets = [5, 0, 0], sizes = [1, 8, 8], strides = [1, 1, 1]} : vector<8x8x8xf32> to vector<1x8x8xf32>
    %98 = vector.shape_cast %97 : vector<1x8x8xf32> to vector<8x8xf32>
    %99 = vector.extract_strided_slice %85 {offsets = [6, 0, 0], sizes = [1, 8, 8], strides = [1, 1, 1]} : vector<8x8x8xf32> to vector<1x8x8xf32>
    %100 = vector.shape_cast %99 : vector<1x8x8xf32> to vector<8x8xf32>
    %101 = vector.extract_strided_slice %85 {offsets = [7, 0, 0], sizes = [1, 8, 8], strides = [1, 1, 1]} : vector<8x8x8xf32> to vector<1x8x8xf32>
    %102 = vector.shape_cast %101 : vector<1x8x8xf32> to vector<8x8xf32>
    %103 = tpu.concatenate %96, %98, %100, %102 in 1 : vector<8x8xf32>, vector<8x8xf32>, vector<8x8xf32>, vector<8x8xf32> -> vector<8x32xf32>
    %104 = tpu.concatenate %94, %103 in 0 : vector<8x32xf32>, vector<8x32xf32> -> vector<16x32xf32>
    %c0_15 = arith.constant 0 : index
    %c0_16 = arith.constant 0 : index
    %c0_17 = arith.constant 0 : index
    %105 = vector.load %arg3[%c0_15, %c0_16, %c0_17] : memref<5x32x32xf32, #tpu.memory_space<vmem>>, vector<1x32x32xf32>
    %106 = vector.shape_cast %105 : vector<1x32x32xf32> to vector<32x32xf32>
    %cst_18 = arith.constant dense<0.000000e+00> : vector<16x32xf32>
    %107 = tpu.matmul %104, %106, %cst_18 {dimension_numbers = #tpu.dot_dimension_numbers<[1], [0], [0], [1], [0, 0, 1, 1], [], []>} : vector<16x32xf32>, vector<32x32xf32>, vector<16x32xf32> -> vector<16x32xf32>
    %c0_19 = arith.constant 0 : index
    %c0_20 = arith.constant 0 : index
    %c0_21 = arith.constant 0 : index
    %108 = vector.load %arg4[%c0_19, %c0_20, %c0_21] : memref<5x1x32xf32, #tpu.memory_space<vmem>>, vector<1x1x32xf32>
    %109 = vector.shape_cast %108 : vector<1x1x32xf32> to vector<1x32xf32>
    %110 = vector.broadcast %109 : vector<1x32xf32> to vector<16x32xf32>
    %111 = arith.addf %107, %110 : vector<16x32xf32>
    %112 = arith.addf %0, %111 : vector<16x32xf32>
    %c0_22 = arith.constant 0 : index
    %c0_23 = arith.constant 0 : index
    %c0_24 = arith.constant 0 : index
    %113 = vector.load %arg5[%c0_22, %c0_23, %c0_24] : memref<5x1x32xf32, #tpu.memory_space<vmem>>, vector<1x1x32xf32>
    %114 = vector.shape_cast %113 : vector<1x1x32xf32> to vector<1x32xf32>
    %c0_25 = arith.constant 0 : index
    %c0_26 = arith.constant 0 : index
    %c0_27 = arith.constant 0 : index
    %115 = vector.load %arg6[%c0_25, %c0_26, %c0_27] : memref<5x1x32xf32, #tpu.memory_space<vmem>>, vector<1x1x32xf32>
    %116 = vector.shape_cast %115 : vector<1x1x32xf32> to vector<1x32xf32>
    %cst_28 = arith.constant dense<0.000000e+00> : vector<16xf32>
    %117 = vector.multi_reduction <add>, %112, %cst_28 [1] : vector<16x32xf32> to vector<16xf32>
    %118 = vector.shape_cast %117 : vector<16xf32> to vector<16x1xf32>
    %cst_29 = arith.constant 3.200000e+01 : f32
    %119 = vector.broadcast %cst_29 : f32 to vector<16x1xf32>
    %120 = arith.divf %118, %119 : vector<16x1xf32>
    %121 = vector.broadcast %120 : vector<16x1xf32> to vector<16x32xf32>
    %122 = arith.subf %112, %121 : vector<16x32xf32>
    %123 = arith.mulf %122, %122 : vector<16x32xf32>
    %cst_30 = arith.constant dense<0.000000e+00> : vector<16xf32>
    %124 = vector.multi_reduction <add>, %123, %cst_30 [1] : vector<16x32xf32> to vector<16xf32>
    %125 = vector.shape_cast %124 : vector<16xf32> to vector<16x1xf32>
    %cst_31 = arith.constant 3.200000e+01 : f32
    %126 = vector.broadcast %cst_31 : f32 to vector<16x1xf32>
    %127 = arith.divf %125, %126 : vector<16x1xf32>
    %128 = vector.broadcast %120 : vector<16x1xf32> to vector<16x32xf32>
    %129 = arith.subf %112, %128 : vector<16x32xf32>
    %cst_32 = arith.constant 9.99999974E-6 : f32
    %130 = vector.broadcast %cst_32 : f32 to vector<16x1xf32>
    %131 = arith.addf %127, %130 : vector<16x1xf32>
    %132 = math.rsqrt %131 : vector<16x1xf32>
    %133 = vector.broadcast %132 : vector<16x1xf32> to vector<16x32xf32>
    %134 = arith.mulf %129, %133 : vector<16x32xf32>
    %135 = vector.broadcast %114 : vector<1x32xf32> to vector<16x32xf32>
    %136 = arith.mulf %134, %135 : vector<16x32xf32>
    %137 = vector.broadcast %116 : vector<1x32xf32> to vector<16x32xf32>
    %138 = arith.addf %136, %137 : vector<16x32xf32>
    %c0_33 = arith.constant 0 : index
    %c0_34 = arith.constant 0 : index
    %c0_35 = arith.constant 0 : index
    %139 = vector.load %arg7[%c0_33, %c0_34, %c0_35] : memref<5x32x128xf32, #tpu.memory_space<vmem>>, vector<1x32x128xf32>
    %140 = vector.shape_cast %139 : vector<1x32x128xf32> to vector<32x128xf32>
    %cst_36 = arith.constant dense<0.000000e+00> : vector<16x128xf32>
    %141 = tpu.matmul %138, %140, %cst_36 {dimension_numbers = #tpu.dot_dimension_numbers<[1], [0], [0], [1], [0, 0, 1, 1], [], []>} : vector<16x32xf32>, vector<32x128xf32>, vector<16x128xf32> -> vector<16x128xf32>
    %c0_37 = arith.constant 0 : index
    %c0_38 = arith.constant 0 : index
    %c0_39 = arith.constant 0 : index
    %142 = vector.load %arg8[%c0_37, %c0_38, %c0_39] : memref<5x1x128xf32, #tpu.memory_space<vmem>>, vector<1x1x128xf32>
    %143 = vector.shape_cast %142 : vector<1x1x128xf32> to vector<1x128xf32>
    %144 = vector.broadcast %143 : vector<1x128xf32> to vector<16x128xf32>
    %145 = arith.addf %141, %144 : vector<16x128xf32>
    %cst_40 = arith.constant 5.000000e-01 : f32
    %146 = vector.broadcast %cst_40 : f32 to vector<16x128xf32>
    %147 = arith.mulf %146, %145 : vector<16x128xf32>
    %cst_41 = arith.constant 0.707106769 : f32
    %148 = vector.broadcast %cst_41 : f32 to vector<16x128xf32>
    %149 = arith.mulf %145, %148 : vector<16x128xf32>
    %150 = math.erf %149 : vector<16x128xf32>
    %cst_42 = arith.constant 1.000000e+00 : f32
    %151 = vector.broadcast %cst_42 : f32 to vector<16x128xf32>
    %152 = arith.addf %151, %150 : vector<16x128xf32>
    %153 = arith.mulf %147, %152 : vector<16x128xf32>
    %c0_43 = arith.constant 0 : index
    %c0_44 = arith.constant 0 : index
    %c0_45 = arith.constant 0 : index
    %154 = vector.load %arg9[%c0_43, %c0_44, %c0_45] : memref<5x128x32xf32, #tpu.memory_space<vmem>>, vector<1x128x32xf32>
    %155 = vector.shape_cast %154 : vector<1x128x32xf32> to vector<128x32xf32>
    %cst_46 = arith.constant dense<0.000000e+00> : vector<16x32xf32>
    %156 = tpu.matmul %153, %155, %cst_46 {dimension_numbers = #tpu.dot_dimension_numbers<[1], [0], [0], [1], [0, 0, 1, 1], [], []>} : vector<16x128xf32>, vector<128x32xf32>, vector<16x32xf32> -> vector<16x32xf32>
    %c0_47 = arith.constant 0 : index
    %c0_48 = arith.constant 0 : index
    %c0_49 = arith.constant 0 : index
    %157 = vector.load %arg10[%c0_47, %c0_48, %c0_49] : memref<5x1x32xf32, #tpu.memory_space<vmem>>, vector<1x1x32xf32>
    %158 = vector.shape_cast %157 : vector<1x1x32xf32> to vector<1x32xf32>
    %159 = vector.broadcast %158 : vector<1x32xf32> to vector<16x32xf32>
    %160 = arith.addf %156, %159 : vector<16x32xf32>
    %161 = arith.addf %138, %160 : vector<16x32xf32>
    %c0_50 = arith.constant 0 : index
    %c0_51 = arith.constant 0 : index
    %c0_52 = arith.constant 0 : index
    %162 = vector.load %arg5[%c0_50, %c0_51, %c0_52] : memref<5x1x32xf32, #tpu.memory_space<vmem>>, vector<1x1x32xf32>
    %163 = vector.shape_cast %162 : vector<1x1x32xf32> to vector<1x32xf32>
    %c0_53 = arith.constant 0 : index
    %c0_54 = arith.constant 0 : index
    %c0_55 = arith.constant 0 : index
    %164 = vector.load %arg6[%c0_53, %c0_54, %c0_55] : memref<5x1x32xf32, #tpu.memory_space<vmem>>, vector<1x1x32xf32>
    %165 = vector.shape_cast %164 : vector<1x1x32xf32> to vector<1x32xf32>
    %cst_56 = arith.constant dense<0.000000e+00> : vector<16xf32>
    %166 = vector.multi_reduction <add>, %161, %cst_56 [1] : vector<16x32xf32> to vector<16xf32>
    %167 = vector.shape_cast %166 : vector<16xf32> to vector<16x1xf32>
    %cst_57 = arith.constant 3.200000e+01 : f32
    %168 = vector.broadcast %cst_57 : f32 to vector<16x1xf32>
    %169 = arith.divf %167, %168 : vector<16x1xf32>
    %170 = vector.broadcast %169 : vector<16x1xf32> to vector<16x32xf32>
    %171 = arith.subf %161, %170 : vector<16x32xf32>
    %172 = arith.mulf %171, %171 : vector<16x32xf32>
    %cst_58 = arith.constant dense<0.000000e+00> : vector<16xf32>
    %173 = vector.multi_reduction <add>, %172, %cst_58 [1] : vector<16x32xf32> to vector<16xf32>
    %174 = vector.shape_cast %173 : vector<16xf32> to vector<16x1xf32>
    %cst_59 = arith.constant 3.200000e+01 : f32
    %175 = vector.broadcast %cst_59 : f32 to vector<16x1xf32>
    %176 = arith.divf %174, %175 : vector<16x1xf32>
    %177 = vector.broadcast %169 : vector<16x1xf32> to vector<16x32xf32>
    %178 = arith.subf %161, %177 : vector<16x32xf32>
    %cst_60 = arith.constant 9.99999974E-6 : f32
    %179 = vector.broadcast %cst_60 : f32 to vector<16x1xf32>
    %180 = arith.addf %176, %179 : vector<16x1xf32>
    %181 = math.rsqrt %180 : vector<16x1xf32>
    %182 = vector.broadcast %181 : vector<16x1xf32> to vector<16x32xf32>
    %183 = arith.mulf %178, %182 : vector<16x32xf32>
    %184 = vector.broadcast %163 : vector<1x32xf32> to vector<16x32xf32>
    %185 = arith.mulf %183, %184 : vector<16x32xf32>
    %186 = vector.broadcast %165 : vector<1x32xf32> to vector<16x32xf32>
    %187 = arith.addf %185, %186 : vector<16x32xf32>
    %c1 = arith.constant 1 : index
    %c0_61 = arith.constant 0 : index
    %c0_62 = arith.constant 0 : index
    %188 = vector.load %arg1[%c1, %c0_61, %c0_62] : memref<5x32x96xf32, #tpu.memory_space<vmem>>, vector<1x32x96xf32>
    %189 = vector.shape_cast %188 : vector<1x32x96xf32> to vector<32x96xf32>
    %cst_63 = arith.constant dense<0.000000e+00> : vector<16x96xf32>
    %190 = tpu.matmul %187, %189, %cst_63 {dimension_numbers = #tpu.dot_dimension_numbers<[1], [0], [0], [1], [0, 0, 1, 1], [], []>} : vector<16x32xf32>, vector<32x96xf32>, vector<16x96xf32> -> vector<16x96xf32>
    %c1_64 = arith.constant 1 : index
    %c0_65 = arith.constant 0 : index
    %c0_66 = arith.constant 0 : index
    %191 = vector.load %arg2[%c1_64, %c0_65, %c0_66] : memref<5x1x96xf32, #tpu.memory_space<vmem>>, vector<1x1x96xf32>
    %192 = vector.shape_cast %191 : vector<1x1x96xf32> to vector<1x96xf32>
    %193 = vector.broadcast %192 : vector<1x96xf32> to vector<16x96xf32>
    %194 = arith.addf %190, %193 : vector<16x96xf32>
    %195 = vector.extract_strided_slice %194 {offsets = [0, 0], sizes = [8, 8], strides = [1, 1]} : vector<16x96xf32> to vector<8x8xf32>
    %196 = vector.extract_strided_slice %194 {offsets = [0, 8], sizes = [8, 8], strides = [1, 1]} : vector<16x96xf32> to vector<8x8xf32>
    %197 = vector.extract_strided_slice %194 {offsets = [0, 16], sizes = [8, 8], strides = [1, 1]} : vector<16x96xf32> to vector<8x8xf32>
    %198 = vector.extract_strided_slice %194 {offsets = [0, 24], sizes = [8, 8], strides = [1, 1]} : vector<16x96xf32> to vector<8x8xf32>
    %199 = vector.extract_strided_slice %194 {offsets = [8, 0], sizes = [8, 8], strides = [1, 1]} : vector<16x96xf32> to vector<8x8xf32>
    %200 = vector.extract_strided_slice %194 {offsets = [8, 8], sizes = [8, 8], strides = [1, 1]} : vector<16x96xf32> to vector<8x8xf32>
    %201 = vector.extract_strided_slice %194 {offsets = [8, 16], sizes = [8, 8], strides = [1, 1]} : vector<16x96xf32> to vector<8x8xf32>
    %202 = vector.extract_strided_slice %194 {offsets = [8, 24], sizes = [8, 8], strides = [1, 1]} : vector<16x96xf32> to vector<8x8xf32>
    %203 = vector.shape_cast %195 : vector<8x8xf32> to vector<1x8x8xf32>
    %204 = vector.shape_cast %196 : vector<8x8xf32> to vector<1x8x8xf32>
    %205 = vector.shape_cast %197 : vector<8x8xf32> to vector<1x8x8xf32>
    %206 = vector.shape_cast %198 : vector<8x8xf32> to vector<1x8x8xf32>
    %207 = vector.shape_cast %199 : vector<8x8xf32> to vector<1x8x8xf32>
    %208 = vector.shape_cast %200 : vector<8x8xf32> to vector<1x8x8xf32>
    %209 = vector.shape_cast %201 : vector<8x8xf32> to vector<1x8x8xf32>
    %210 = vector.shape_cast %202 : vector<8x8xf32> to vector<1x8x8xf32>
    %211 = tpu.concatenate %203, %204, %205, %206, %207, %208, %209, %210 in 0 : vector<1x8x8xf32>, vector<1x8x8xf32>, vector<1x8x8xf32>, vector<1x8x8xf32>, vector<1x8x8xf32>, vector<1x8x8xf32>, vector<1x8x8xf32>, vector<1x8x8xf32> -> vector<8x8x8xf32>
    %212 = vector.extract_strided_slice %194 {offsets = [0, 32], sizes = [8, 8], strides = [1, 1]} : vector<16x96xf32> to vector<8x8xf32>
    %213 = vector.extract_strided_slice %194 {offsets = [0, 40], sizes = [8, 8], strides = [1, 1]} : vector<16x96xf32> to vector<8x8xf32>
    %214 = vector.extract_strided_slice %194 {offsets = [0, 48], sizes = [8, 8], strides = [1, 1]} : vector<16x96xf32> to vector<8x8xf32>
    %215 = vector.extract_strided_slice %194 {offsets = [0, 56], sizes = [8, 8], strides = [1, 1]} : vector<16x96xf32> to vector<8x8xf32>
    %216 = vector.extract_strided_slice %194 {offsets = [8, 32], sizes = [8, 8], strides = [1, 1]} : vector<16x96xf32> to vector<8x8xf32>
    %217 = vector.extract_strided_slice %194 {offsets = [8, 40], sizes = [8, 8], strides = [1, 1]} : vector<16x96xf32> to vector<8x8xf32>
    %218 = vector.extract_strided_slice %194 {offsets = [8, 48], sizes = [8, 8], strides = [1, 1]} : vector<16x96xf32> to vector<8x8xf32>
    %219 = vector.extract_strided_slice %194 {offsets = [8, 56], sizes = [8, 8], strides = [1, 1]} : vector<16x96xf32> to vector<8x8xf32>
    %220 = vector.shape_cast %212 : vector<8x8xf32> to vector<1x8x8xf32>
    %221 = vector.shape_cast %213 : vector<8x8xf32> to vector<1x8x8xf32>
    %222 = vector.shape_cast %214 : vector<8x8xf32> to vector<1x8x8xf32>
    %223 = vector.shape_cast %215 : vector<8x8xf32> to vector<1x8x8xf32>
    %224 = vector.shape_cast %216 : vector<8x8xf32> to vector<1x8x8xf32>
    %225 = vector.shape_cast %217 : vector<8x8xf32> to vector<1x8x8xf32>
    %226 = vector.shape_cast %218 : vector<8x8xf32> to vector<1x8x8xf32>
    %227 = vector.shape_cast %219 : vector<8x8xf32> to vector<1x8x8xf32>
    %228 = tpu.concatenate %220, %221, %222, %223, %224, %225, %226, %227 in 0 : vector<1x8x8xf32>, vector<1x8x8xf32>, vector<1x8x8xf32>, vector<1x8x8xf32>, vector<1x8x8xf32>, vector<1x8x8xf32>, vector<1x8x8xf32>, vector<1x8x8xf32> -> vector<8x8x8xf32>
    %229 = vector.extract_strided_slice %194 {offsets = [0, 64], sizes = [8, 8], strides = [1, 1]} : vector<16x96xf32> to vector<8x8xf32>
    %230 = vector.extract_strided_slice %194 {offsets = [0, 72], sizes = [8, 8], strides = [1, 1]} : vector<16x96xf32> to vector<8x8xf32>
    %231 = vector.extract_strided_slice %194 {offsets = [0, 80], sizes = [8, 8], strides = [1, 1]} : vector<16x96xf32> to vector<8x8xf32>
    %232 = vector.extract_strided_slice %194 {offsets = [0, 88], sizes = [8, 8], strides = [1, 1]} : vector<16x96xf32> to vector<8x8xf32>
    %233 = vector.extract_strided_slice %194 {offsets = [8, 64], sizes = [8, 8], strides = [1, 1]} : vector<16x96xf32> to vector<8x8xf32>
    %234 = vector.extract_strided_slice %194 {offsets = [8, 72], sizes = [8, 8], strides = [1, 1]} : vector<16x96xf32> to vector<8x8xf32>
    %235 = vector.extract_strided_slice %194 {offsets = [8, 80], sizes = [8, 8], strides = [1, 1]} : vector<16x96xf32> to vector<8x8xf32>
    %236 = vector.extract_strided_slice %194 {offsets = [8, 88], sizes = [8, 8], strides = [1, 1]} : vector<16x96xf32> to vector<8x8xf32>
    %237 = vector.shape_cast %229 : vector<8x8xf32> to vector<1x8x8xf32>
    %238 = vector.shape_cast %230 : vector<8x8xf32> to vector<1x8x8xf32>
    %239 = vector.shape_cast %231 : vector<8x8xf32> to vector<1x8x8xf32>
    %240 = vector.shape_cast %232 : vector<8x8xf32> to vector<1x8x8xf32>
    %241 = vector.shape_cast %233 : vector<8x8xf32> to vector<1x8x8xf32>
    %242 = vector.shape_cast %234 : vector<8x8xf32> to vector<1x8x8xf32>
    %243 = vector.shape_cast %235 : vector<8x8xf32> to vector<1x8x8xf32>
    %244 = vector.shape_cast %236 : vector<8x8xf32> to vector<1x8x8xf32>
    %245 = tpu.concatenate %237, %238, %239, %240, %241, %242, %243, %244 in 0 : vector<1x8x8xf32>, vector<1x8x8xf32>, vector<1x8x8xf32>, vector<1x8x8xf32>, vector<1x8x8xf32>, vector<1x8x8xf32>, vector<1x8x8xf32>, vector<1x8x8xf32> -> vector<8x8x8xf32>
    "tpu.trace_start"() <{level = 10 : i32, message = "nqk,ntk->nqt"}> : () -> ()
    %cst_67 = arith.constant dense<0.000000e+00> : vector<8x8x8xf32>
    %246 = tpu.matmul %211, %228, %cst_67 {dimension_numbers = #tpu.dot_dimension_numbers<[2], [2], [1], [1], [0, 0, 0, 1, 1, 1], [0], [0]>} : vector<8x8x8xf32>, vector<8x8x8xf32>, vector<8x8x8xf32> -> vector<8x8x8xf32>
    "tpu.trace_stop"() : () -> ()
    %cst_68 = arith.constant 0.353553385 : f32
    %247 = vector.broadcast %cst_68 : f32 to vector<8x8x8xf32>
    %248 = arith.mulf %246, %247 : vector<8x8x8xf32>
    %249 = vector.shape_cast %6 : vector<8x8xf32> to vector<1x8x8xf32>
    %250 = vector.broadcast %249 : vector<1x8x8xf32> to vector<8x8x8xf32>
    %251 = arith.addf %248, %250 : vector<8x8x8xf32>
    %cst_69 = arith.constant dense<0xFF800000> : vector<8x8xf32>
    %252 = vector.multi_reduction <maximumf>, %251, %cst_69 [2] : vector<8x8x8xf32> to vector<8x8xf32>
    %253 = vector.shape_cast %252 : vector<8x8xf32> to vector<8x8x1xf32>
    %254 = vector.broadcast %253 : vector<8x8x1xf32> to vector<8x8x8xf32>
    %255 = arith.subf %251, %254 : vector<8x8x8xf32>
    %256 = math.exp %255 : vector<8x8x8xf32>
    %cst_70 = arith.constant dense<0.000000e+00> : vector<8x8xf32>
    %257 = vector.multi_reduction <add>, %256, %cst_70 [2] : vector<8x8x8xf32> to vector<8x8xf32>
    %258 = vector.shape_cast %257 : vector<8x8xf32> to vector<8x8x1xf32>
    %259 = tpu.reciprocal %258 {approx = true} : vector<8x8x1xf32> -> vector<8x8x1xf32>
    %260 = arith.mulf %258, %259 : vector<8x8x1xf32>
    %cst_71 = arith.constant 2.000000e+00 : f32
    %261 = vector.broadcast %cst_71 : f32 to vector<8x8x1xf32>
    %262 = arith.subf %261, %260 : vector<8x8x1xf32>
    %263 = arith.mulf %259, %262 : vector<8x8x1xf32>
    %264 = vector.broadcast %263 : vector<8x8x1xf32> to vector<8x8x8xf32>
    %265 = arith.mulf %256, %264 : vector<8x8x8xf32>
    "tpu.trace_start"() <{level = 10 : i32, message = "nqt,ntk->nqk"}> : () -> ()
    %cst_72 = arith.constant dense<0.000000e+00> : vector<8x8x8xf32>
    %266 = tpu.matmul %265, %245, %cst_72 {dimension_numbers = #tpu.dot_dimension_numbers<[2], [1], [1], [2], [0, 0, 0, 1, 1, 2], [0], [0]>} : vector<8x8x8xf32>, vector<8x8x8xf32>, vector<8x8x8xf32> -> vector<8x8x8xf32>
    "tpu.trace_stop"() : () -> ()
    %267 = vector.extract_strided_slice %266 {offsets = [0, 0, 0], sizes = [1, 8, 8], strides = [1, 1, 1]} : vector<8x8x8xf32> to vector<1x8x8xf32>
    %268 = vector.shape_cast %267 : vector<1x8x8xf32> to vector<8x8xf32>
    %269 = vector.extract_strided_slice %266 {offsets = [1, 0, 0], sizes = [1, 8, 8], strides = [1, 1, 1]} : vector<8x8x8xf32> to vector<1x8x8xf32>
    %270 = vector.shape_cast %269 : vector<1x8x8xf32> to vector<8x8xf32>
    %271 = vector.extract_strided_slice %266 {offsets = [2, 0, 0], sizes = [1, 8, 8], strides = [1, 1, 1]} : vector<8x8x8xf32> to vector<1x8x8xf32>
    %272 = vector.shape_cast %271 : vector<1x8x8xf32> to vector<8x8xf32>
    %273 = vector.extract_strided_slice %266 {offsets = [3, 0, 0], sizes = [1, 8, 8], strides = [1, 1, 1]} : vector<8x8x8xf32> to vector<1x8x8xf32>
    %274 = vector.shape_cast %273 : vector<1x8x8xf32> to vector<8x8xf32>
    %275 = tpu.concatenate %268, %270, %272, %274 in 1 : vector<8x8xf32>, vector<8x8xf32>, vector<8x8xf32>, vector<8x8xf32> -> vector<8x32xf32>
    %276 = vector.extract_strided_slice %266 {offsets = [4, 0, 0], sizes = [1, 8, 8], strides = [1, 1, 1]} : vector<8x8x8xf32> to vector<1x8x8xf32>
    %277 = vector.shape_cast %276 : vector<1x8x8xf32> to vector<8x8xf32>
    %278 = vector.extract_strided_slice %266 {offsets = [5, 0, 0], sizes = [1, 8, 8], strides = [1, 1, 1]} : vector<8x8x8xf32> to vector<1x8x8xf32>
    %279 = vector.shape_cast %278 : vector<1x8x8xf32> to vector<8x8xf32>
    %280 = vector.extract_strided_slice %266 {offsets = [6, 0, 0], sizes = [1, 8, 8], strides = [1, 1, 1]} : vector<8x8x8xf32> to vector<1x8x8xf32>
    %281 = vector.shape_cast %280 : vector<1x8x8xf32> to vector<8x8xf32>
    %282 = vector.extract_strided_slice %266 {offsets = [7, 0, 0], sizes = [1, 8, 8], strides = [1, 1, 1]} : vector<8x8x8xf32> to vector<1x8x8xf32>
    %283 = vector.shape_cast %282 : vector<1x8x8xf32> to vector<8x8xf32>
    %284 = tpu.concatenate %277, %279, %281, %283 in 1 : vector<8x8xf32>, vector<8x8xf32>, vector<8x8xf32>, vector<8x8xf32> -> vector<8x32xf32>
    %285 = tpu.concatenate %275, %284 in 0 : vector<8x32xf32>, vector<8x32xf32> -> vector<16x32xf32>
    %c1_73 = arith.constant 1 : index
    %c0_74 = arith.constant 0 : index
    %c0_75 = arith.constant 0 : index
    %286 = vector.load %arg3[%c1_73, %c0_74, %c0_75] : memref<5x32x32xf32, #tpu.memory_space<vmem>>, vector<1x32x32xf32>
    %287 = vector.shape_cast %286 : vector<1x32x32xf32> to vector<32x32xf32>
    %cst_76 = arith.constant dense<0.000000e+00> : vector<16x32xf32>
    %288 = tpu.matmul %285, %287, %cst_76 {dimension_numbers = #tpu.dot_dimension_numbers<[1], [0], [0], [1], [0, 0, 1, 1], [], []>} : vector<16x32xf32>, vector<32x32xf32>, vector<16x32xf32> -> vector<16x32xf32>
    %c1_77 = arith.constant 1 : index
    %c0_78 = arith.constant 0 : index
    %c0_79 = arith.constant 0 : index
    %289 = vector.load %arg4[%c1_77, %c0_78, %c0_79] : memref<5x1x32xf32, #tpu.memory_space<vmem>>, vector<1x1x32xf32>
    %290 = vector.shape_cast %289 : vector<1x1x32xf32> to vector<1x32xf32>
    %291 = vector.broadcast %290 : vector<1x32xf32> to vector<16x32xf32>
    %292 = arith.addf %288, %291 : vector<16x32xf32>
    %293 = arith.addf %187, %292 : vector<16x32xf32>
    %c1_80 = arith.constant 1 : index
    %c0_81 = arith.constant 0 : index
    %c0_82 = arith.constant 0 : index
    %294 = vector.load %arg5[%c1_80, %c0_81, %c0_82] : memref<5x1x32xf32, #tpu.memory_space<vmem>>, vector<1x1x32xf32>
    %295 = vector.shape_cast %294 : vector<1x1x32xf32> to vector<1x32xf32>
    %c1_83 = arith.constant 1 : index
    %c0_84 = arith.constant 0 : index
    %c0_85 = arith.constant 0 : index
    %296 = vector.load %arg6[%c1_83, %c0_84, %c0_85] : memref<5x1x32xf32, #tpu.memory_space<vmem>>, vector<1x1x32xf32>
    %297 = vector.shape_cast %296 : vector<1x1x32xf32> to vector<1x32xf32>
    %cst_86 = arith.constant dense<0.000000e+00> : vector<16xf32>
    %298 = vector.multi_reduction <add>, %293, %cst_86 [1] : vector<16x32xf32> to vector<16xf32>
    %299 = vector.shape_cast %298 : vector<16xf32> to vector<16x1xf32>
    %cst_87 = arith.constant 3.200000e+01 : f32
    %300 = vector.broadcast %cst_87 : f32 to vector<16x1xf32>
    %301 = arith.divf %299, %300 : vector<16x1xf32>
    %302 = vector.broadcast %301 : vector<16x1xf32> to vector<16x32xf32>
    %303 = arith.subf %293, %302 : vector<16x32xf32>
    %304 = arith.mulf %303, %303 : vector<16x32xf32>
    %cst_88 = arith.constant dense<0.000000e+00> : vector<16xf32>
    %305 = vector.multi_reduction <add>, %304, %cst_88 [1] : vector<16x32xf32> to vector<16xf32>
    %306 = vector.shape_cast %305 : vector<16xf32> to vector<16x1xf32>
    %cst_89 = arith.constant 3.200000e+01 : f32
    %307 = vector.broadcast %cst_89 : f32 to vector<16x1xf32>
    %308 = arith.divf %306, %307 : vector<16x1xf32>
    %309 = vector.broadcast %301 : vector<16x1xf32> to vector<16x32xf32>
    %310 = arith.subf %293, %309 : vector<16x32xf32>
    %cst_90 = arith.constant 9.99999974E-6 : f32
    %311 = vector.broadcast %cst_90 : f32 to vector<16x1xf32>
    %312 = arith.addf %308, %311 : vector<16x1xf32>
    %313 = math.rsqrt %312 : vector<16x1xf32>
    %314 = vector.broadcast %313 : vector<16x1xf32> to vector<16x32xf32>
    %315 = arith.mulf %310, %314 : vector<16x32xf32>
    %316 = vector.broadcast %295 : vector<1x32xf32> to vector<16x32xf32>
    %317 = arith.mulf %315, %316 : vector<16x32xf32>
    %318 = vector.broadcast %297 : vector<1x32xf32> to vector<16x32xf32>
    %319 = arith.addf %317, %318 : vector<16x32xf32>
    %c1_91 = arith.constant 1 : index
    %c0_92 = arith.constant 0 : index
    %c0_93 = arith.constant 0 : index
    %320 = vector.load %arg7[%c1_91, %c0_92, %c0_93] : memref<5x32x128xf32, #tpu.memory_space<vmem>>, vector<1x32x128xf32>
    %321 = vector.shape_cast %320 : vector<1x32x128xf32> to vector<32x128xf32>
    %cst_94 = arith.constant dense<0.000000e+00> : vector<16x128xf32>
    %322 = tpu.matmul %319, %321, %cst_94 {dimension_numbers = #tpu.dot_dimension_numbers<[1], [0], [0], [1], [0, 0, 1, 1], [], []>} : vector<16x32xf32>, vector<32x128xf32>, vector<16x128xf32> -> vector<16x128xf32>
    %c1_95 = arith.constant 1 : index
    %c0_96 = arith.constant 0 : index
    %c0_97 = arith.constant 0 : index
    %323 = vector.load %arg8[%c1_95, %c0_96, %c0_97] : memref<5x1x128xf32, #tpu.memory_space<vmem>>, vector<1x1x128xf32>
    %324 = vector.shape_cast %323 : vector<1x1x128xf32> to vector<1x128xf32>
    %325 = vector.broadcast %324 : vector<1x128xf32> to vector<16x128xf32>
    %326 = arith.addf %322, %325 : vector<16x128xf32>
    %cst_98 = arith.constant 5.000000e-01 : f32
    %327 = vector.broadcast %cst_98 : f32 to vector<16x128xf32>
    %328 = arith.mulf %327, %326 : vector<16x128xf32>
    %cst_99 = arith.constant 0.707106769 : f32
    %329 = vector.broadcast %cst_99 : f32 to vector<16x128xf32>
    %330 = arith.mulf %326, %329 : vector<16x128xf32>
    %331 = math.erf %330 : vector<16x128xf32>
    %cst_100 = arith.constant 1.000000e+00 : f32
    %332 = vector.broadcast %cst_100 : f32 to vector<16x128xf32>
    %333 = arith.addf %332, %331 : vector<16x128xf32>
    %334 = arith.mulf %328, %333 : vector<16x128xf32>
    %c1_101 = arith.constant 1 : index
    %c0_102 = arith.constant 0 : index
    %c0_103 = arith.constant 0 : index
    %335 = vector.load %arg9[%c1_101, %c0_102, %c0_103] : memref<5x128x32xf32, #tpu.memory_space<vmem>>, vector<1x128x32xf32>
    %336 = vector.shape_cast %335 : vector<1x128x32xf32> to vector<128x32xf32>
    %cst_104 = arith.constant dense<0.000000e+00> : vector<16x32xf32>
    %337 = tpu.matmul %334, %336, %cst_104 {dimension_numbers = #tpu.dot_dimension_numbers<[1], [0], [0], [1], [0, 0, 1, 1], [], []>} : vector<16x128xf32>, vector<128x32xf32>, vector<16x32xf32> -> vector<16x32xf32>
    %c1_105 = arith.constant 1 : index
    %c0_106 = arith.constant 0 : index
    %c0_107 = arith.constant 0 : index
    %338 = vector.load %arg10[%c1_105, %c0_106, %c0_107] : memref<5x1x32xf32, #tpu.memory_space<vmem>>, vector<1x1x32xf32>
    %339 = vector.shape_cast %338 : vector<1x1x32xf32> to vector<1x32xf32>
    %340 = vector.broadcast %339 : vector<1x32xf32> to vector<16x32xf32>
    %341 = arith.addf %337, %340 : vector<16x32xf32>
    %342 = arith.addf %319, %341 : vector<16x32xf32>
    %c1_108 = arith.constant 1 : index
    %c0_109 = arith.constant 0 : index
    %c0_110 = arith.constant 0 : index
    %343 = vector.load %arg5[%c1_108, %c0_109, %c0_110] : memref<5x1x32xf32, #tpu.memory_space<vmem>>, vector<1x1x32xf32>
    %344 = vector.shape_cast %343 : vector<1x1x32xf32> to vector<1x32xf32>
    %c1_111 = arith.constant 1 : index
    %c0_112 = arith.constant 0 : index
    %c0_113 = arith.constant 0 : index
    %345 = vector.load %arg6[%c1_111, %c0_112, %c0_113] : memref<5x1x32xf32, #tpu.memory_space<vmem>>, vector<1x1x32xf32>
    %346 = vector.shape_cast %345 : vector<1x1x32xf32> to vector<1x32xf32>
    %cst_114 = arith.constant dense<0.000000e+00> : vector<16xf32>
    %347 = vector.multi_reduction <add>, %342, %cst_114 [1] : vector<16x32xf32> to vector<16xf32>
    %348 = vector.shape_cast %347 : vector<16xf32> to vector<16x1xf32>
    %cst_115 = arith.constant 3.200000e+01 : f32
    %349 = vector.broadcast %cst_115 : f32 to vector<16x1xf32>
    %350 = arith.divf %348, %349 : vector<16x1xf32>
    %351 = vector.broadcast %350 : vector<16x1xf32> to vector<16x32xf32>
    %352 = arith.subf %342, %351 : vector<16x32xf32>
    %353 = arith.mulf %352, %352 : vector<16x32xf32>
    %cst_116 = arith.constant dense<0.000000e+00> : vector<16xf32>
    %354 = vector.multi_reduction <add>, %353, %cst_116 [1] : vector<16x32xf32> to vector<16xf32>
    %355 = vector.shape_cast %354 : vector<16xf32> to vector<16x1xf32>
    %cst_117 = arith.constant 3.200000e+01 : f32
    %356 = vector.broadcast %cst_117 : f32 to vector<16x1xf32>
    %357 = arith.divf %355, %356 : vector<16x1xf32>
    %358 = vector.broadcast %350 : vector<16x1xf32> to vector<16x32xf32>
    %359 = arith.subf %342, %358 : vector<16x32xf32>
    %cst_118 = arith.constant 9.99999974E-6 : f32
    %360 = vector.broadcast %cst_118 : f32 to vector<16x1xf32>
    %361 = arith.addf %357, %360 : vector<16x1xf32>
    %362 = math.rsqrt %361 : vector<16x1xf32>
    %363 = vector.broadcast %362 : vector<16x1xf32> to vector<16x32xf32>
    %364 = arith.mulf %359, %363 : vector<16x32xf32>
    %365 = vector.broadcast %344 : vector<1x32xf32> to vector<16x32xf32>
    %366 = arith.mulf %364, %365 : vector<16x32xf32>
    %367 = vector.broadcast %346 : vector<1x32xf32> to vector<16x32xf32>
    %368 = arith.addf %366, %367 : vector<16x32xf32>
    %c2 = arith.constant 2 : index
    %c0_119 = arith.constant 0 : index
    %c0_120 = arith.constant 0 : index
    %369 = vector.load %arg1[%c2, %c0_119, %c0_120] : memref<5x32x96xf32, #tpu.memory_space<vmem>>, vector<1x32x96xf32>
    %370 = vector.shape_cast %369 : vector<1x32x96xf32> to vector<32x96xf32>
    %cst_121 = arith.constant dense<0.000000e+00> : vector<16x96xf32>
    %371 = tpu.matmul %368, %370, %cst_121 {dimension_numbers = #tpu.dot_dimension_numbers<[1], [0], [0], [1], [0, 0, 1, 1], [], []>} : vector<16x32xf32>, vector<32x96xf32>, vector<16x96xf32> -> vector<16x96xf32>
    %c2_122 = arith.constant 2 : index
    %c0_123 = arith.constant 0 : index
    %c0_124 = arith.constant 0 : index
    %372 = vector.load %arg2[%c2_122, %c0_123, %c0_124] : memref<5x1x96xf32, #tpu.memory_space<vmem>>, vector<1x1x96xf32>
    %373 = vector.shape_cast %372 : vector<1x1x96xf32> to vector<1x96xf32>
    %374 = vector.broadcast %373 : vector<1x96xf32> to vector<16x96xf32>
    %375 = arith.addf %371, %374 : vector<16x96xf32>
    %376 = vector.extract_strided_slice %375 {offsets = [0, 0], sizes = [8, 8], strides = [1, 1]} : vector<16x96xf32> to vector<8x8xf32>
    %377 = vector.extract_strided_slice %375 {offsets = [0, 8], sizes = [8, 8], strides = [1, 1]} : vector<16x96xf32> to vector<8x8xf32>
    %378 = vector.extract_strided_slice %375 {offsets = [0, 16], sizes = [8, 8], strides = [1, 1]} : vector<16x96xf32> to vector<8x8xf32>
    %379 = vector.extract_strided_slice %375 {offsets = [0, 24], sizes = [8, 8], strides = [1, 1]} : vector<16x96xf32> to vector<8x8xf32>
    %380 = vector.extract_strided_slice %375 {offsets = [8, 0], sizes = [8, 8], strides = [1, 1]} : vector<16x96xf32> to vector<8x8xf32>
    %381 = vector.extract_strided_slice %375 {offsets = [8, 8], sizes = [8, 8], strides = [1, 1]} : vector<16x96xf32> to vector<8x8xf32>
    %382 = vector.extract_strided_slice %375 {offsets = [8, 16], sizes = [8, 8], strides = [1, 1]} : vector<16x96xf32> to vector<8x8xf32>
    %383 = vector.extract_strided_slice %375 {offsets = [8, 24], sizes = [8, 8], strides = [1, 1]} : vector<16x96xf32> to vector<8x8xf32>
    %384 = vector.shape_cast %376 : vector<8x8xf32> to vector<1x8x8xf32>
    %385 = vector.shape_cast %377 : vector<8x8xf32> to vector<1x8x8xf32>
    %386 = vector.shape_cast %378 : vector<8x8xf32> to vector<1x8x8xf32>
    %387 = vector.shape_cast %379 : vector<8x8xf32> to vector<1x8x8xf32>
    %388 = vector.shape_cast %380 : vector<8x8xf32> to vector<1x8x8xf32>
    %389 = vector.shape_cast %381 : vector<8x8xf32> to vector<1x8x8xf32>
    %390 = vector.shape_cast %382 : vector<8x8xf32> to vector<1x8x8xf32>
    %391 = vector.shape_cast %383 : vector<8x8xf32> to vector<1x8x8xf32>
    %392 = tpu.concatenate %384, %385, %386, %387, %388, %389, %390, %391 in 0 : vector<1x8x8xf32>, vector<1x8x8xf32>, vector<1x8x8xf32>, vector<1x8x8xf32>, vector<1x8x8xf32>, vector<1x8x8xf32>, vector<1x8x8xf32>, vector<1x8x8xf32> -> vector<8x8x8xf32>
    %393 = vector.extract_strided_slice %375 {offsets = [0, 32], sizes = [8, 8], strides = [1, 1]} : vector<16x96xf32> to vector<8x8xf32>
    %394 = vector.extract_strided_slice %375 {offsets = [0, 40], sizes = [8, 8], strides = [1, 1]} : vector<16x96xf32> to vector<8x8xf32>
    %395 = vector.extract_strided_slice %375 {offsets = [0, 48], sizes = [8, 8], strides = [1, 1]} : vector<16x96xf32> to vector<8x8xf32>
    %396 = vector.extract_strided_slice %375 {offsets = [0, 56], sizes = [8, 8], strides = [1, 1]} : vector<16x96xf32> to vector<8x8xf32>
    %397 = vector.extract_strided_slice %375 {offsets = [8, 32], sizes = [8, 8], strides = [1, 1]} : vector<16x96xf32> to vector<8x8xf32>
    %398 = vector.extract_strided_slice %375 {offsets = [8, 40], sizes = [8, 8], strides = [1, 1]} : vector<16x96xf32> to vector<8x8xf32>
    %399 = vector.extract_strided_slice %375 {offsets = [8, 48], sizes = [8, 8], strides = [1, 1]} : vector<16x96xf32> to vector<8x8xf32>
    %400 = vector.extract_strided_slice %375 {offsets = [8, 56], sizes = [8, 8], strides = [1, 1]} : vector<16x96xf32> to vector<8x8xf32>
    %401 = vector.shape_cast %393 : vector<8x8xf32> to vector<1x8x8xf32>
    %402 = vector.shape_cast %394 : vector<8x8xf32> to vector<1x8x8xf32>
    %403 = vector.shape_cast %395 : vector<8x8xf32> to vector<1x8x8xf32>
    %404 = vector.shape_cast %396 : vector<8x8xf32> to vector<1x8x8xf32>
    %405 = vector.shape_cast %397 : vector<8x8xf32> to vector<1x8x8xf32>
    %406 = vector.shape_cast %398 : vector<8x8xf32> to vector<1x8x8xf32>
    %407 = vector.shape_cast %399 : vector<8x8xf32> to vector<1x8x8xf32>
    %408 = vector.shape_cast %400 : vector<8x8xf32> to vector<1x8x8xf32>
    %409 = tpu.concatenate %401, %402, %403, %404, %405, %406, %407, %408 in 0 : vector<1x8x8xf32>, vector<1x8x8xf32>, vector<1x8x8xf32>, vector<1x8x8xf32>, vector<1x8x8xf32>, vector<1x8x8xf32>, vector<1x8x8xf32>, vector<1x8x8xf32> -> vector<8x8x8xf32>
    %410 = vector.extract_strided_slice %375 {offsets = [0, 64], sizes = [8, 8], strides = [1, 1]} : vector<16x96xf32> to vector<8x8xf32>
    %411 = vector.extract_strided_slice %375 {offsets = [0, 72], sizes = [8, 8], strides = [1, 1]} : vector<16x96xf32> to vector<8x8xf32>
    %412 = vector.extract_strided_slice %375 {offsets = [0, 80], sizes = [8, 8], strides = [1, 1]} : vector<16x96xf32> to vector<8x8xf32>
    %413 = vector.extract_strided_slice %375 {offsets = [0, 88], sizes = [8, 8], strides = [1, 1]} : vector<16x96xf32> to vector<8x8xf32>
    %414 = vector.extract_strided_slice %375 {offsets = [8, 64], sizes = [8, 8], strides = [1, 1]} : vector<16x96xf32> to vector<8x8xf32>
    %415 = vector.extract_strided_slice %375 {offsets = [8, 72], sizes = [8, 8], strides = [1, 1]} : vector<16x96xf32> to vector<8x8xf32>
    %416 = vector.extract_strided_slice %375 {offsets = [8, 80], sizes = [8, 8], strides = [1, 1]} : vector<16x96xf32> to vector<8x8xf32>
    %417 = vector.extract_strided_slice %375 {offsets = [8, 88], sizes = [8, 8], strides = [1, 1]} : vector<16x96xf32> to vector<8x8xf32>
    %418 = vector.shape_cast %410 : vector<8x8xf32> to vector<1x8x8xf32>
    %419 = vector.shape_cast %411 : vector<8x8xf32> to vector<1x8x8xf32>
    %420 = vector.shape_cast %412 : vector<8x8xf32> to vector<1x8x8xf32>
    %421 = vector.shape_cast %413 : vector<8x8xf32> to vector<1x8x8xf32>
    %422 = vector.shape_cast %414 : vector<8x8xf32> to vector<1x8x8xf32>
    %423 = vector.shape_cast %415 : vector<8x8xf32> to vector<1x8x8xf32>
    %424 = vector.shape_cast %416 : vector<8x8xf32> to vector<1x8x8xf32>
    %425 = vector.shape_cast %417 : vector<8x8xf32> to vector<1x8x8xf32>
    %426 = tpu.concatenate %418, %419, %420, %421, %422, %423, %424, %425 in 0 : vector<1x8x8xf32>, vector<1x8x8xf32>, vector<1x8x8xf32>, vector<1x8x8xf32>, vector<1x8x8xf32>, vector<1x8x8xf32>, vector<1x8x8xf32>, vector<1x8x8xf32> -> vector<8x8x8xf32>
    "tpu.trace_start"() <{level = 10 : i32, message = "nqk,ntk->nqt"}> : () -> ()
    %cst_125 = arith.constant dense<0.000000e+00> : vector<8x8x8xf32>
    %427 = tpu.matmul %392, %409, %cst_125 {dimension_numbers = #tpu.dot_dimension_numbers<[2], [2], [1], [1], [0, 0, 0, 1, 1, 1], [0], [0]>} : vector<8x8x8xf32>, vector<8x8x8xf32>, vector<8x8x8xf32> -> vector<8x8x8xf32>
    "tpu.trace_stop"() : () -> ()
    %cst_126 = arith.constant 0.353553385 : f32
    %428 = vector.broadcast %cst_126 : f32 to vector<8x8x8xf32>
    %429 = arith.mulf %427, %428 : vector<8x8x8xf32>
    %430 = vector.shape_cast %6 : vector<8x8xf32> to vector<1x8x8xf32>
    %431 = vector.broadcast %430 : vector<1x8x8xf32> to vector<8x8x8xf32>
    %432 = arith.addf %429, %431 : vector<8x8x8xf32>
    %cst_127 = arith.constant dense<0xFF800000> : vector<8x8xf32>
    %433 = vector.multi_reduction <maximumf>, %432, %cst_127 [2] : vector<8x8x8xf32> to vector<8x8xf32>
    %434 = vector.shape_cast %433 : vector<8x8xf32> to vector<8x8x1xf32>
    %435 = vector.broadcast %434 : vector<8x8x1xf32> to vector<8x8x8xf32>
    %436 = arith.subf %432, %435 : vector<8x8x8xf32>
    %437 = math.exp %436 : vector<8x8x8xf32>
    %cst_128 = arith.constant dense<0.000000e+00> : vector<8x8xf32>
    %438 = vector.multi_reduction <add>, %437, %cst_128 [2] : vector<8x8x8xf32> to vector<8x8xf32>
    %439 = vector.shape_cast %438 : vector<8x8xf32> to vector<8x8x1xf32>
    %440 = tpu.reciprocal %439 {approx = true} : vector<8x8x1xf32> -> vector<8x8x1xf32>
    %441 = arith.mulf %439, %440 : vector<8x8x1xf32>
    %cst_129 = arith.constant 2.000000e+00 : f32
    %442 = vector.broadcast %cst_129 : f32 to vector<8x8x1xf32>
    %443 = arith.subf %442, %441 : vector<8x8x1xf32>
    %444 = arith.mulf %440, %443 : vector<8x8x1xf32>
    %445 = vector.broadcast %444 : vector<8x8x1xf32> to vector<8x8x8xf32>
    %446 = arith.mulf %437, %445 : vector<8x8x8xf32>
    "tpu.trace_start"() <{level = 10 : i32, message = "nqt,ntk->nqk"}> : () -> ()
    %cst_130 = arith.constant dense<0.000000e+00> : vector<8x8x8xf32>
    %447 = tpu.matmul %446, %426, %cst_130 {dimension_numbers = #tpu.dot_dimension_numbers<[2], [1], [1], [2], [0, 0, 0, 1, 1, 2], [0], [0]>} : vector<8x8x8xf32>, vector<8x8x8xf32>, vector<8x8x8xf32> -> vector<8x8x8xf32>
    "tpu.trace_stop"() : () -> ()
    %448 = vector.extract_strided_slice %447 {offsets = [0, 0, 0], sizes = [1, 8, 8], strides = [1, 1, 1]} : vector<8x8x8xf32> to vector<1x8x8xf32>
    %449 = vector.shape_cast %448 : vector<1x8x8xf32> to vector<8x8xf32>
    %450 = vector.extract_strided_slice %447 {offsets = [1, 0, 0], sizes = [1, 8, 8], strides = [1, 1, 1]} : vector<8x8x8xf32> to vector<1x8x8xf32>
    %451 = vector.shape_cast %450 : vector<1x8x8xf32> to vector<8x8xf32>
    %452 = vector.extract_strided_slice %447 {offsets = [2, 0, 0], sizes = [1, 8, 8], strides = [1, 1, 1]} : vector<8x8x8xf32> to vector<1x8x8xf32>
    %453 = vector.shape_cast %452 : vector<1x8x8xf32> to vector<8x8xf32>
    %454 = vector.extract_strided_slice %447 {offsets = [3, 0, 0], sizes = [1, 8, 8], strides = [1, 1, 1]} : vector<8x8x8xf32> to vector<1x8x8xf32>
    %455 = vector.shape_cast %454 : vector<1x8x8xf32> to vector<8x8xf32>
    %456 = tpu.concatenate %449, %451, %453, %455 in 1 : vector<8x8xf32>, vector<8x8xf32>, vector<8x8xf32>, vector<8x8xf32> -> vector<8x32xf32>
    %457 = vector.extract_strided_slice %447 {offsets = [4, 0, 0], sizes = [1, 8, 8], strides = [1, 1, 1]} : vector<8x8x8xf32> to vector<1x8x8xf32>
    %458 = vector.shape_cast %457 : vector<1x8x8xf32> to vector<8x8xf32>
    %459 = vector.extract_strided_slice %447 {offsets = [5, 0, 0], sizes = [1, 8, 8], strides = [1, 1, 1]} : vector<8x8x8xf32> to vector<1x8x8xf32>
    %460 = vector.shape_cast %459 : vector<1x8x8xf32> to vector<8x8xf32>
    %461 = vector.extract_strided_slice %447 {offsets = [6, 0, 0], sizes = [1, 8, 8], strides = [1, 1, 1]} : vector<8x8x8xf32> to vector<1x8x8xf32>
    %462 = vector.shape_cast %461 : vector<1x8x8xf32> to vector<8x8xf32>
    %463 = vector.extract_strided_slice %447 {offsets = [7, 0, 0], sizes = [1, 8, 8], strides = [1, 1, 1]} : vector<8x8x8xf32> to vector<1x8x8xf32>
    %464 = vector.shape_cast %463 : vector<1x8x8xf32> to vector<8x8xf32>
    %465 = tpu.concatenate %458, %460, %462, %464 in 1 : vector<8x8xf32>, vector<8x8xf32>, vector<8x8xf32>, vector<8x8xf32> -> vector<8x32xf32>
    %466 = tpu.concatenate %456, %465 in 0 : vector<8x32xf32>, vector<8x32xf32> -> vector<16x32xf32>
    %c2_131 = arith.constant 2 : index
    %c0_132 = arith.constant 0 : index
    %c0_133 = arith.constant 0 : index
    %467 = vector.load %arg3[%c2_131, %c0_132, %c0_133] : memref<5x32x32xf32, #tpu.memory_space<vmem>>, vector<1x32x32xf32>
    %468 = vector.shape_cast %467 : vector<1x32x32xf32> to vector<32x32xf32>
    %cst_134 = arith.constant dense<0.000000e+00> : vector<16x32xf32>
    %469 = tpu.matmul %466, %468, %cst_134 {dimension_numbers = #tpu.dot_dimension_numbers<[1], [0], [0], [1], [0, 0, 1, 1], [], []>} : vector<16x32xf32>, vector<32x32xf32>, vector<16x32xf32> -> vector<16x32xf32>
    %c2_135 = arith.constant 2 : index
    %c0_136 = arith.constant 0 : index
    %c0_137 = arith.constant 0 : index
    %470 = vector.load %arg4[%c2_135, %c0_136, %c0_137] : memref<5x1x32xf32, #tpu.memory_space<vmem>>, vector<1x1x32xf32>
    %471 = vector.shape_cast %470 : vector<1x1x32xf32> to vector<1x32xf32>
    %472 = vector.broadcast %471 : vector<1x32xf32> to vector<16x32xf32>
    %473 = arith.addf %469, %472 : vector<16x32xf32>
    %474 = arith.addf %368, %473 : vector<16x32xf32>
    %c2_138 = arith.constant 2 : index
    %c0_139 = arith.constant 0 : index
    %c0_140 = arith.constant 0 : index
    %475 = vector.load %arg5[%c2_138, %c0_139, %c0_140] : memref<5x1x32xf32, #tpu.memory_space<vmem>>, vector<1x1x32xf32>
    %476 = vector.shape_cast %475 : vector<1x1x32xf32> to vector<1x32xf32>
    %c2_141 = arith.constant 2 : index
    %c0_142 = arith.constant 0 : index
    %c0_143 = arith.constant 0 : index
    %477 = vector.load %arg6[%c2_141, %c0_142, %c0_143] : memref<5x1x32xf32, #tpu.memory_space<vmem>>, vector<1x1x32xf32>
    %478 = vector.shape_cast %477 : vector<1x1x32xf32> to vector<1x32xf32>
    %cst_144 = arith.constant dense<0.000000e+00> : vector<16xf32>
    %479 = vector.multi_reduction <add>, %474, %cst_144 [1] : vector<16x32xf32> to vector<16xf32>
    %480 = vector.shape_cast %479 : vector<16xf32> to vector<16x1xf32>
    %cst_145 = arith.constant 3.200000e+01 : f32
    %481 = vector.broadcast %cst_145 : f32 to vector<16x1xf32>
    %482 = arith.divf %480, %481 : vector<16x1xf32>
    %483 = vector.broadcast %482 : vector<16x1xf32> to vector<16x32xf32>
    %484 = arith.subf %474, %483 : vector<16x32xf32>
    %485 = arith.mulf %484, %484 : vector<16x32xf32>
    %cst_146 = arith.constant dense<0.000000e+00> : vector<16xf32>
    %486 = vector.multi_reduction <add>, %485, %cst_146 [1] : vector<16x32xf32> to vector<16xf32>
    %487 = vector.shape_cast %486 : vector<16xf32> to vector<16x1xf32>
    %cst_147 = arith.constant 3.200000e+01 : f32
    %488 = vector.broadcast %cst_147 : f32 to vector<16x1xf32>
    %489 = arith.divf %487, %488 : vector<16x1xf32>
    %490 = vector.broadcast %482 : vector<16x1xf32> to vector<16x32xf32>
    %491 = arith.subf %474, %490 : vector<16x32xf32>
    %cst_148 = arith.constant 9.99999974E-6 : f32
    %492 = vector.broadcast %cst_148 : f32 to vector<16x1xf32>
    %493 = arith.addf %489, %492 : vector<16x1xf32>
    %494 = math.rsqrt %493 : vector<16x1xf32>
    %495 = vector.broadcast %494 : vector<16x1xf32> to vector<16x32xf32>
    %496 = arith.mulf %491, %495 : vector<16x32xf32>
    %497 = vector.broadcast %476 : vector<1x32xf32> to vector<16x32xf32>
    %498 = arith.mulf %496, %497 : vector<16x32xf32>
    %499 = vector.broadcast %478 : vector<1x32xf32> to vector<16x32xf32>
    %500 = arith.addf %498, %499 : vector<16x32xf32>
    %c2_149 = arith.constant 2 : index
    %c0_150 = arith.constant 0 : index
    %c0_151 = arith.constant 0 : index
    %501 = vector.load %arg7[%c2_149, %c0_150, %c0_151] : memref<5x32x128xf32, #tpu.memory_space<vmem>>, vector<1x32x128xf32>
    %502 = vector.shape_cast %501 : vector<1x32x128xf32> to vector<32x128xf32>
    %cst_152 = arith.constant dense<0.000000e+00> : vector<16x128xf32>
    %503 = tpu.matmul %500, %502, %cst_152 {dimension_numbers = #tpu.dot_dimension_numbers<[1], [0], [0], [1], [0, 0, 1, 1], [], []>} : vector<16x32xf32>, vector<32x128xf32>, vector<16x128xf32> -> vector<16x128xf32>
    %c2_153 = arith.constant 2 : index
    %c0_154 = arith.constant 0 : index
    %c0_155 = arith.constant 0 : index
    %504 = vector.load %arg8[%c2_153, %c0_154, %c0_155] : memref<5x1x128xf32, #tpu.memory_space<vmem>>, vector<1x1x128xf32>
    %505 = vector.shape_cast %504 : vector<1x1x128xf32> to vector<1x128xf32>
    %506 = vector.broadcast %505 : vector<1x128xf32> to vector<16x128xf32>
    %507 = arith.addf %503, %506 : vector<16x128xf32>
    %cst_156 = arith.constant 5.000000e-01 : f32
    %508 = vector.broadcast %cst_156 : f32 to vector<16x128xf32>
    %509 = arith.mulf %508, %507 : vector<16x128xf32>
    %cst_157 = arith.constant 0.707106769 : f32
    %510 = vector.broadcast %cst_157 : f32 to vector<16x128xf32>
    %511 = arith.mulf %507, %510 : vector<16x128xf32>
    %512 = math.erf %511 : vector<16x128xf32>
    %cst_158 = arith.constant 1.000000e+00 : f32
    %513 = vector.broadcast %cst_158 : f32 to vector<16x128xf32>
    %514 = arith.addf %513, %512 : vector<16x128xf32>
    %515 = arith.mulf %509, %514 : vector<16x128xf32>
    %c2_159 = arith.constant 2 : index
    %c0_160 = arith.constant 0 : index
    %c0_161 = arith.constant 0 : index
    %516 = vector.load %arg9[%c2_159, %c0_160, %c0_161] : memref<5x128x32xf32, #tpu.memory_space<vmem>>, vector<1x128x32xf32>
    %517 = vector.shape_cast %516 : vector<1x128x32xf32> to vector<128x32xf32>
    %cst_162 = arith.constant dense<0.000000e+00> : vector<16x32xf32>
    %518 = tpu.matmul %515, %517, %cst_162 {dimension_numbers = #tpu.dot_dimension_numbers<[1], [0], [0], [1], [0, 0, 1, 1], [], []>} : vector<16x128xf32>, vector<128x32xf32>, vector<16x32xf32> -> vector<16x32xf32>
    %c2_163 = arith.constant 2 : index
    %c0_164 = arith.constant 0 : index
    %c0_165 = arith.constant 0 : index
    %519 = vector.load %arg10[%c2_163, %c0_164, %c0_165] : memref<5x1x32xf32, #tpu.memory_space<vmem>>, vector<1x1x32xf32>
    %520 = vector.shape_cast %519 : vector<1x1x32xf32> to vector<1x32xf32>
    %521 = vector.broadcast %520 : vector<1x32xf32> to vector<16x32xf32>
    %522 = arith.addf %518, %521 : vector<16x32xf32>
    %523 = arith.addf %500, %522 : vector<16x32xf32>
    %c2_166 = arith.constant 2 : index
    %c0_167 = arith.constant 0 : index
    %c0_168 = arith.constant 0 : index
    %524 = vector.load %arg5[%c2_166, %c0_167, %c0_168] : memref<5x1x32xf32, #tpu.memory_space<vmem>>, vector<1x1x32xf32>
    %525 = vector.shape_cast %524 : vector<1x1x32xf32> to vector<1x32xf32>
    %c2_169 = arith.constant 2 : index
    %c0_170 = arith.constant 0 : index
    %c0_171 = arith.constant 0 : index
    %526 = vector.load %arg6[%c2_169, %c0_170, %c0_171] : memref<5x1x32xf32, #tpu.memory_space<vmem>>, vector<1x1x32xf32>
    %527 = vector.shape_cast %526 : vector<1x1x32xf32> to vector<1x32xf32>
    %cst_172 = arith.constant dense<0.000000e+00> : vector<16xf32>
    %528 = vector.multi_reduction <add>, %523, %cst_172 [1] : vector<16x32xf32> to vector<16xf32>
    %529 = vector.shape_cast %528 : vector<16xf32> to vector<16x1xf32>
    %cst_173 = arith.constant 3.200000e+01 : f32
    %530 = vector.broadcast %cst_173 : f32 to vector<16x1xf32>
    %531 = arith.divf %529, %530 : vector<16x1xf32>
    %532 = vector.broadcast %531 : vector<16x1xf32> to vector<16x32xf32>
    %533 = arith.subf %523, %532 : vector<16x32xf32>
    %534 = arith.mulf %533, %533 : vector<16x32xf32>
    %cst_174 = arith.constant dense<0.000000e+00> : vector<16xf32>
    %535 = vector.multi_reduction <add>, %534, %cst_174 [1] : vector<16x32xf32> to vector<16xf32>
    %536 = vector.shape_cast %535 : vector<16xf32> to vector<16x1xf32>
    %cst_175 = arith.constant 3.200000e+01 : f32
    %537 = vector.broadcast %cst_175 : f32 to vector<16x1xf32>
    %538 = arith.divf %536, %537 : vector<16x1xf32>
    %539 = vector.broadcast %531 : vector<16x1xf32> to vector<16x32xf32>
    %540 = arith.subf %523, %539 : vector<16x32xf32>
    %cst_176 = arith.constant 9.99999974E-6 : f32
    %541 = vector.broadcast %cst_176 : f32 to vector<16x1xf32>
    %542 = arith.addf %538, %541 : vector<16x1xf32>
    %543 = math.rsqrt %542 : vector<16x1xf32>
    %544 = vector.broadcast %543 : vector<16x1xf32> to vector<16x32xf32>
    %545 = arith.mulf %540, %544 : vector<16x32xf32>
    %546 = vector.broadcast %525 : vector<1x32xf32> to vector<16x32xf32>
    %547 = arith.mulf %545, %546 : vector<16x32xf32>
    %548 = vector.broadcast %527 : vector<1x32xf32> to vector<16x32xf32>
    %549 = arith.addf %547, %548 : vector<16x32xf32>
    %c3 = arith.constant 3 : index
    %c0_177 = arith.constant 0 : index
    %c0_178 = arith.constant 0 : index
    %550 = vector.load %arg1[%c3, %c0_177, %c0_178] : memref<5x32x96xf32, #tpu.memory_space<vmem>>, vector<1x32x96xf32>
    %551 = vector.shape_cast %550 : vector<1x32x96xf32> to vector<32x96xf32>
    %cst_179 = arith.constant dense<0.000000e+00> : vector<16x96xf32>
    %552 = tpu.matmul %549, %551, %cst_179 {dimension_numbers = #tpu.dot_dimension_numbers<[1], [0], [0], [1], [0, 0, 1, 1], [], []>} : vector<16x32xf32>, vector<32x96xf32>, vector<16x96xf32> -> vector<16x96xf32>
    %c3_180 = arith.constant 3 : index
    %c0_181 = arith.constant 0 : index
    %c0_182 = arith.constant 0 : index
    %553 = vector.load %arg2[%c3_180, %c0_181, %c0_182] : memref<5x1x96xf32, #tpu.memory_space<vmem>>, vector<1x1x96xf32>
    %554 = vector.shape_cast %553 : vector<1x1x96xf32> to vector<1x96xf32>
    %555 = vector.broadcast %554 : vector<1x96xf32> to vector<16x96xf32>
    %556 = arith.addf %552, %555 : vector<16x96xf32>
    %557 = vector.extract_strided_slice %556 {offsets = [0, 0], sizes = [8, 8], strides = [1, 1]} : vector<16x96xf32> to vector<8x8xf32>
    %558 = vector.extract_strided_slice %556 {offsets = [0, 8], sizes = [8, 8], strides = [1, 1]} : vector<16x96xf32> to vector<8x8xf32>
    %559 = vector.extract_strided_slice %556 {offsets = [0, 16], sizes = [8, 8], strides = [1, 1]} : vector<16x96xf32> to vector<8x8xf32>
    %560 = vector.extract_strided_slice %556 {offsets = [0, 24], sizes = [8, 8], strides = [1, 1]} : vector<16x96xf32> to vector<8x8xf32>
    %561 = vector.extract_strided_slice %556 {offsets = [8, 0], sizes = [8, 8], strides = [1, 1]} : vector<16x96xf32> to vector<8x8xf32>
    %562 = vector.extract_strided_slice %556 {offsets = [8, 8], sizes = [8, 8], strides = [1, 1]} : vector<16x96xf32> to vector<8x8xf32>
    %563 = vector.extract_strided_slice %556 {offsets = [8, 16], sizes = [8, 8], strides = [1, 1]} : vector<16x96xf32> to vector<8x8xf32>
    %564 = vector.extract_strided_slice %556 {offsets = [8, 24], sizes = [8, 8], strides = [1, 1]} : vector<16x96xf32> to vector<8x8xf32>
    %565 = vector.shape_cast %557 : vector<8x8xf32> to vector<1x8x8xf32>
    %566 = vector.shape_cast %558 : vector<8x8xf32> to vector<1x8x8xf32>
    %567 = vector.shape_cast %559 : vector<8x8xf32> to vector<1x8x8xf32>
    %568 = vector.shape_cast %560 : vector<8x8xf32> to vector<1x8x8xf32>
    %569 = vector.shape_cast %561 : vector<8x8xf32> to vector<1x8x8xf32>
    %570 = vector.shape_cast %562 : vector<8x8xf32> to vector<1x8x8xf32>
    %571 = vector.shape_cast %563 : vector<8x8xf32> to vector<1x8x8xf32>
    %572 = vector.shape_cast %564 : vector<8x8xf32> to vector<1x8x8xf32>
    %573 = tpu.concatenate %565, %566, %567, %568, %569, %570, %571, %572 in 0 : vector<1x8x8xf32>, vector<1x8x8xf32>, vector<1x8x8xf32>, vector<1x8x8xf32>, vector<1x8x8xf32>, vector<1x8x8xf32>, vector<1x8x8xf32>, vector<1x8x8xf32> -> vector<8x8x8xf32>
    %574 = vector.extract_strided_slice %556 {offsets = [0, 32], sizes = [8, 8], strides = [1, 1]} : vector<16x96xf32> to vector<8x8xf32>
    %575 = vector.extract_strided_slice %556 {offsets = [0, 40], sizes = [8, 8], strides = [1, 1]} : vector<16x96xf32> to vector<8x8xf32>
    %576 = vector.extract_strided_slice %556 {offsets = [0, 48], sizes = [8, 8], strides = [1, 1]} : vector<16x96xf32> to vector<8x8xf32>
    %577 = vector.extract_strided_slice %556 {offsets = [0, 56], sizes = [8, 8], strides = [1, 1]} : vector<16x96xf32> to vector<8x8xf32>
    %578 = vector.extract_strided_slice %556 {offsets = [8, 32], sizes = [8, 8], strides = [1, 1]} : vector<16x96xf32> to vector<8x8xf32>
    %579 = vector.extract_strided_slice %556 {offsets = [8, 40], sizes = [8, 8], strides = [1, 1]} : vector<16x96xf32> to vector<8x8xf32>
    %580 = vector.extract_strided_slice %556 {offsets = [8, 48], sizes = [8, 8], strides = [1, 1]} : vector<16x96xf32> to vector<8x8xf32>
    %581 = vector.extract_strided_slice %556 {offsets = [8, 56], sizes = [8, 8], strides = [1, 1]} : vector<16x96xf32> to vector<8x8xf32>
    %582 = vector.shape_cast %574 : vector<8x8xf32> to vector<1x8x8xf32>
    %583 = vector.shape_cast %575 : vector<8x8xf32> to vector<1x8x8xf32>
    %584 = vector.shape_cast %576 : vector<8x8xf32> to vector<1x8x8xf32>
    %585 = vector.shape_cast %577 : vector<8x8xf32> to vector<1x8x8xf32>
    %586 = vector.shape_cast %578 : vector<8x8xf32> to vector<1x8x8xf32>
    %587 = vector.shape_cast %579 : vector<8x8xf32> to vector<1x8x8xf32>
    %588 = vector.shape_cast %580 : vector<8x8xf32> to vector<1x8x8xf32>
    %589 = vector.shape_cast %581 : vector<8x8xf32> to vector<1x8x8xf32>
    %590 = tpu.concatenate %582, %583, %584, %585, %586, %587, %588, %589 in 0 : vector<1x8x8xf32>, vector<1x8x8xf32>, vector<1x8x8xf32>, vector<1x8x8xf32>, vector<1x8x8xf32>, vector<1x8x8xf32>, vector<1x8x8xf32>, vector<1x8x8xf32> -> vector<8x8x8xf32>
    %591 = vector.extract_strided_slice %556 {offsets = [0, 64], sizes = [8, 8], strides = [1, 1]} : vector<16x96xf32> to vector<8x8xf32>
    %592 = vector.extract_strided_slice %556 {offsets = [0, 72], sizes = [8, 8], strides = [1, 1]} : vector<16x96xf32> to vector<8x8xf32>
    %593 = vector.extract_strided_slice %556 {offsets = [0, 80], sizes = [8, 8], strides = [1, 1]} : vector<16x96xf32> to vector<8x8xf32>
    %594 = vector.extract_strided_slice %556 {offsets = [0, 88], sizes = [8, 8], strides = [1, 1]} : vector<16x96xf32> to vector<8x8xf32>
    %595 = vector.extract_strided_slice %556 {offsets = [8, 64], sizes = [8, 8], strides = [1, 1]} : vector<16x96xf32> to vector<8x8xf32>
    %596 = vector.extract_strided_slice %556 {offsets = [8, 72], sizes = [8, 8], strides = [1, 1]} : vector<16x96xf32> to vector<8x8xf32>
    %597 = vector.extract_strided_slice %556 {offsets = [8, 80], sizes = [8, 8], strides = [1, 1]} : vector<16x96xf32> to vector<8x8xf32>
    %598 = vector.extract_strided_slice %556 {offsets = [8, 88], sizes = [8, 8], strides = [1, 1]} : vector<16x96xf32> to vector<8x8xf32>
    %599 = vector.shape_cast %591 : vector<8x8xf32> to vector<1x8x8xf32>
    %600 = vector.shape_cast %592 : vector<8x8xf32> to vector<1x8x8xf32>
    %601 = vector.shape_cast %593 : vector<8x8xf32> to vector<1x8x8xf32>
    %602 = vector.shape_cast %594 : vector<8x8xf32> to vector<1x8x8xf32>
    %603 = vector.shape_cast %595 : vector<8x8xf32> to vector<1x8x8xf32>
    %604 = vector.shape_cast %596 : vector<8x8xf32> to vector<1x8x8xf32>
    %605 = vector.shape_cast %597 : vector<8x8xf32> to vector<1x8x8xf32>
    %606 = vector.shape_cast %598 : vector<8x8xf32> to vector<1x8x8xf32>
    %607 = tpu.concatenate %599, %600, %601, %602, %603, %604, %605, %606 in 0 : vector<1x8x8xf32>, vector<1x8x8xf32>, vector<1x8x8xf32>, vector<1x8x8xf32>, vector<1x8x8xf32>, vector<1x8x8xf32>, vector<1x8x8xf32>, vector<1x8x8xf32> -> vector<8x8x8xf32>
    "tpu.trace_start"() <{level = 10 : i32, message = "nqk,ntk->nqt"}> : () -> ()
    %cst_183 = arith.constant dense<0.000000e+00> : vector<8x8x8xf32>
    %608 = tpu.matmul %573, %590, %cst_183 {dimension_numbers = #tpu.dot_dimension_numbers<[2], [2], [1], [1], [0, 0, 0, 1, 1, 1], [0], [0]>} : vector<8x8x8xf32>, vector<8x8x8xf32>, vector<8x8x8xf32> -> vector<8x8x8xf32>
    "tpu.trace_stop"() : () -> ()
    %cst_184 = arith.constant 0.353553385 : f32
    %609 = vector.broadcast %cst_184 : f32 to vector<8x8x8xf32>
    %610 = arith.mulf %608, %609 : vector<8x8x8xf32>
    %611 = vector.shape_cast %6 : vector<8x8xf32> to vector<1x8x8xf32>
    %612 = vector.broadcast %611 : vector<1x8x8xf32> to vector<8x8x8xf32>
    %613 = arith.addf %610, %612 : vector<8x8x8xf32>
    %cst_185 = arith.constant dense<0xFF800000> : vector<8x8xf32>
    %614 = vector.multi_reduction <maximumf>, %613, %cst_185 [2] : vector<8x8x8xf32> to vector<8x8xf32>
    %615 = vector.shape_cast %614 : vector<8x8xf32> to vector<8x8x1xf32>
    %616 = vector.broadcast %615 : vector<8x8x1xf32> to vector<8x8x8xf32>
    %617 = arith.subf %613, %616 : vector<8x8x8xf32>
    %618 = math.exp %617 : vector<8x8x8xf32>
    %cst_186 = arith.constant dense<0.000000e+00> : vector<8x8xf32>
    %619 = vector.multi_reduction <add>, %618, %cst_186 [2] : vector<8x8x8xf32> to vector<8x8xf32>
    %620 = vector.shape_cast %619 : vector<8x8xf32> to vector<8x8x1xf32>
    %621 = tpu.reciprocal %620 {approx = true} : vector<8x8x1xf32> -> vector<8x8x1xf32>
    %622 = arith.mulf %620, %621 : vector<8x8x1xf32>
    %cst_187 = arith.constant 2.000000e+00 : f32
    %623 = vector.broadcast %cst_187 : f32 to vector<8x8x1xf32>
    %624 = arith.subf %623, %622 : vector<8x8x1xf32>
    %625 = arith.mulf %621, %624 : vector<8x8x1xf32>
    %626 = vector.broadcast %625 : vector<8x8x1xf32> to vector<8x8x8xf32>
    %627 = arith.mulf %618, %626 : vector<8x8x8xf32>
    "tpu.trace_start"() <{level = 10 : i32, message = "nqt,ntk->nqk"}> : () -> ()
    %cst_188 = arith.constant dense<0.000000e+00> : vector<8x8x8xf32>
    %628 = tpu.matmul %627, %607, %cst_188 {dimension_numbers = #tpu.dot_dimension_numbers<[2], [1], [1], [2], [0, 0, 0, 1, 1, 2], [0], [0]>} : vector<8x8x8xf32>, vector<8x8x8xf32>, vector<8x8x8xf32> -> vector<8x8x8xf32>
    "tpu.trace_stop"() : () -> ()
    %629 = vector.extract_strided_slice %628 {offsets = [0, 0, 0], sizes = [1, 8, 8], strides = [1, 1, 1]} : vector<8x8x8xf32> to vector<1x8x8xf32>
    %630 = vector.shape_cast %629 : vector<1x8x8xf32> to vector<8x8xf32>
    %631 = vector.extract_strided_slice %628 {offsets = [1, 0, 0], sizes = [1, 8, 8], strides = [1, 1, 1]} : vector<8x8x8xf32> to vector<1x8x8xf32>
    %632 = vector.shape_cast %631 : vector<1x8x8xf32> to vector<8x8xf32>
    %633 = vector.extract_strided_slice %628 {offsets = [2, 0, 0], sizes = [1, 8, 8], strides = [1, 1, 1]} : vector<8x8x8xf32> to vector<1x8x8xf32>
    %634 = vector.shape_cast %633 : vector<1x8x8xf32> to vector<8x8xf32>
    %635 = vector.extract_strided_slice %628 {offsets = [3, 0, 0], sizes = [1, 8, 8], strides = [1, 1, 1]} : vector<8x8x8xf32> to vector<1x8x8xf32>
    %636 = vector.shape_cast %635 : vector<1x8x8xf32> to vector<8x8xf32>
    %637 = tpu.concatenate %630, %632, %634, %636 in 1 : vector<8x8xf32>, vector<8x8xf32>, vector<8x8xf32>, vector<8x8xf32> -> vector<8x32xf32>
    %638 = vector.extract_strided_slice %628 {offsets = [4, 0, 0], sizes = [1, 8, 8], strides = [1, 1, 1]} : vector<8x8x8xf32> to vector<1x8x8xf32>
    %639 = vector.shape_cast %638 : vector<1x8x8xf32> to vector<8x8xf32>
    %640 = vector.extract_strided_slice %628 {offsets = [5, 0, 0], sizes = [1, 8, 8], strides = [1, 1, 1]} : vector<8x8x8xf32> to vector<1x8x8xf32>
    %641 = vector.shape_cast %640 : vector<1x8x8xf32> to vector<8x8xf32>
    %642 = vector.extract_strided_slice %628 {offsets = [6, 0, 0], sizes = [1, 8, 8], strides = [1, 1, 1]} : vector<8x8x8xf32> to vector<1x8x8xf32>
    %643 = vector.shape_cast %642 : vector<1x8x8xf32> to vector<8x8xf32>
    %644 = vector.extract_strided_slice %628 {offsets = [7, 0, 0], sizes = [1, 8, 8], strides = [1, 1, 1]} : vector<8x8x8xf32> to vector<1x8x8xf32>
    %645 = vector.shape_cast %644 : vector<1x8x8xf32> to vector<8x8xf32>
    %646 = tpu.concatenate %639, %641, %643, %645 in 1 : vector<8x8xf32>, vector<8x8xf32>, vector<8x8xf32>, vector<8x8xf32> -> vector<8x32xf32>
    %647 = tpu.concatenate %637, %646 in 0 : vector<8x32xf32>, vector<8x32xf32> -> vector<16x32xf32>
    %c3_189 = arith.constant 3 : index
    %c0_190 = arith.constant 0 : index
    %c0_191 = arith.constant 0 : index
    %648 = vector.load %arg3[%c3_189, %c0_190, %c0_191] : memref<5x32x32xf32, #tpu.memory_space<vmem>>, vector<1x32x32xf32>
    %649 = vector.shape_cast %648 : vector<1x32x32xf32> to vector<32x32xf32>
    %cst_192 = arith.constant dense<0.000000e+00> : vector<16x32xf32>
    %650 = tpu.matmul %647, %649, %cst_192 {dimension_numbers = #tpu.dot_dimension_numbers<[1], [0], [0], [1], [0, 0, 1, 1], [], []>} : vector<16x32xf32>, vector<32x32xf32>, vector<16x32xf32> -> vector<16x32xf32>
    %c3_193 = arith.constant 3 : index
    %c0_194 = arith.constant 0 : index
    %c0_195 = arith.constant 0 : index
    %651 = vector.load %arg4[%c3_193, %c0_194, %c0_195] : memref<5x1x32xf32, #tpu.memory_space<vmem>>, vector<1x1x32xf32>
    %652 = vector.shape_cast %651 : vector<1x1x32xf32> to vector<1x32xf32>
    %653 = vector.broadcast %652 : vector<1x32xf32> to vector<16x32xf32>
    %654 = arith.addf %650, %653 : vector<16x32xf32>
    %655 = arith.addf %549, %654 : vector<16x32xf32>
    %c3_196 = arith.constant 3 : index
    %c0_197 = arith.constant 0 : index
    %c0_198 = arith.constant 0 : index
    %656 = vector.load %arg5[%c3_196, %c0_197, %c0_198] : memref<5x1x32xf32, #tpu.memory_space<vmem>>, vector<1x1x32xf32>
    %657 = vector.shape_cast %656 : vector<1x1x32xf32> to vector<1x32xf32>
    %c3_199 = arith.constant 3 : index
    %c0_200 = arith.constant 0 : index
    %c0_201 = arith.constant 0 : index
    %658 = vector.load %arg6[%c3_199, %c0_200, %c0_201] : memref<5x1x32xf32, #tpu.memory_space<vmem>>, vector<1x1x32xf32>
    %659 = vector.shape_cast %658 : vector<1x1x32xf32> to vector<1x32xf32>
    %cst_202 = arith.constant dense<0.000000e+00> : vector<16xf32>
    %660 = vector.multi_reduction <add>, %655, %cst_202 [1] : vector<16x32xf32> to vector<16xf32>
    %661 = vector.shape_cast %660 : vector<16xf32> to vector<16x1xf32>
    %cst_203 = arith.constant 3.200000e+01 : f32
    %662 = vector.broadcast %cst_203 : f32 to vector<16x1xf32>
    %663 = arith.divf %661, %662 : vector<16x1xf32>
    %664 = vector.broadcast %663 : vector<16x1xf32> to vector<16x32xf32>
    %665 = arith.subf %655, %664 : vector<16x32xf32>
    %666 = arith.mulf %665, %665 : vector<16x32xf32>
    %cst_204 = arith.constant dense<0.000000e+00> : vector<16xf32>
    %667 = vector.multi_reduction <add>, %666, %cst_204 [1] : vector<16x32xf32> to vector<16xf32>
    %668 = vector.shape_cast %667 : vector<16xf32> to vector<16x1xf32>
    %cst_205 = arith.constant 3.200000e+01 : f32
    %669 = vector.broadcast %cst_205 : f32 to vector<16x1xf32>
    %670 = arith.divf %668, %669 : vector<16x1xf32>
    %671 = vector.broadcast %663 : vector<16x1xf32> to vector<16x32xf32>
    %672 = arith.subf %655, %671 : vector<16x32xf32>
    %cst_206 = arith.constant 9.99999974E-6 : f32
    %673 = vector.broadcast %cst_206 : f32 to vector<16x1xf32>
    %674 = arith.addf %670, %673 : vector<16x1xf32>
    %675 = math.rsqrt %674 : vector<16x1xf32>
    %676 = vector.broadcast %675 : vector<16x1xf32> to vector<16x32xf32>
    %677 = arith.mulf %672, %676 : vector<16x32xf32>
    %678 = vector.broadcast %657 : vector<1x32xf32> to vector<16x32xf32>
    %679 = arith.mulf %677, %678 : vector<16x32xf32>
    %680 = vector.broadcast %659 : vector<1x32xf32> to vector<16x32xf32>
    %681 = arith.addf %679, %680 : vector<16x32xf32>
    %c3_207 = arith.constant 3 : index
    %c0_208 = arith.constant 0 : index
    %c0_209 = arith.constant 0 : index
    %682 = vector.load %arg7[%c3_207, %c0_208, %c0_209] : memref<5x32x128xf32, #tpu.memory_space<vmem>>, vector<1x32x128xf32>
    %683 = vector.shape_cast %682 : vector<1x32x128xf32> to vector<32x128xf32>
    %cst_210 = arith.constant dense<0.000000e+00> : vector<16x128xf32>
    %684 = tpu.matmul %681, %683, %cst_210 {dimension_numbers = #tpu.dot_dimension_numbers<[1], [0], [0], [1], [0, 0, 1, 1], [], []>} : vector<16x32xf32>, vector<32x128xf32>, vector<16x128xf32> -> vector<16x128xf32>
    %c3_211 = arith.constant 3 : index
    %c0_212 = arith.constant 0 : index
    %c0_213 = arith.constant 0 : index
    %685 = vector.load %arg8[%c3_211, %c0_212, %c0_213] : memref<5x1x128xf32, #tpu.memory_space<vmem>>, vector<1x1x128xf32>
    %686 = vector.shape_cast %685 : vector<1x1x128xf32> to vector<1x128xf32>
    %687 = vector.broadcast %686 : vector<1x128xf32> to vector<16x128xf32>
    %688 = arith.addf %684, %687 : vector<16x128xf32>
    %cst_214 = arith.constant 5.000000e-01 : f32
    %689 = vector.broadcast %cst_214 : f32 to vector<16x128xf32>
    %690 = arith.mulf %689, %688 : vector<16x128xf32>
    %cst_215 = arith.constant 0.707106769 : f32
    %691 = vector.broadcast %cst_215 : f32 to vector<16x128xf32>
    %692 = arith.mulf %688, %691 : vector<16x128xf32>
    %693 = math.erf %692 : vector<16x128xf32>
    %cst_216 = arith.constant 1.000000e+00 : f32
    %694 = vector.broadcast %cst_216 : f32 to vector<16x128xf32>
    %695 = arith.addf %694, %693 : vector<16x128xf32>
    %696 = arith.mulf %690, %695 : vector<16x128xf32>
    %c3_217 = arith.constant 3 : index
    %c0_218 = arith.constant 0 : index
    %c0_219 = arith.constant 0 : index
    %697 = vector.load %arg9[%c3_217, %c0_218, %c0_219] : memref<5x128x32xf32, #tpu.memory_space<vmem>>, vector<1x128x32xf32>
    %698 = vector.shape_cast %697 : vector<1x128x32xf32> to vector<128x32xf32>
    %cst_220 = arith.constant dense<0.000000e+00> : vector<16x32xf32>
    %699 = tpu.matmul %696, %698, %cst_220 {dimension_numbers = #tpu.dot_dimension_numbers<[1], [0], [0], [1], [0, 0, 1, 1], [], []>} : vector<16x128xf32>, vector<128x32xf32>, vector<16x32xf32> -> vector<16x32xf32>
    %c3_221 = arith.constant 3 : index
    %c0_222 = arith.constant 0 : index
    %c0_223 = arith.constant 0 : index
    %700 = vector.load %arg10[%c3_221, %c0_222, %c0_223] : memref<5x1x32xf32, #tpu.memory_space<vmem>>, vector<1x1x32xf32>
    %701 = vector.shape_cast %700 : vector<1x1x32xf32> to vector<1x32xf32>
    %702 = vector.broadcast %701 : vector<1x32xf32> to vector<16x32xf32>
    %703 = arith.addf %699, %702 : vector<16x32xf32>
    %704 = arith.addf %681, %703 : vector<16x32xf32>
    %c3_224 = arith.constant 3 : index
    %c0_225 = arith.constant 0 : index
    %c0_226 = arith.constant 0 : index
    %705 = vector.load %arg5[%c3_224, %c0_225, %c0_226] : memref<5x1x32xf32, #tpu.memory_space<vmem>>, vector<1x1x32xf32>
    %706 = vector.shape_cast %705 : vector<1x1x32xf32> to vector<1x32xf32>
    %c3_227 = arith.constant 3 : index
    %c0_228 = arith.constant 0 : index
    %c0_229 = arith.constant 0 : index
    %707 = vector.load %arg6[%c3_227, %c0_228, %c0_229] : memref<5x1x32xf32, #tpu.memory_space<vmem>>, vector<1x1x32xf32>
    %708 = vector.shape_cast %707 : vector<1x1x32xf32> to vector<1x32xf32>
    %cst_230 = arith.constant dense<0.000000e+00> : vector<16xf32>
    %709 = vector.multi_reduction <add>, %704, %cst_230 [1] : vector<16x32xf32> to vector<16xf32>
    %710 = vector.shape_cast %709 : vector<16xf32> to vector<16x1xf32>
    %cst_231 = arith.constant 3.200000e+01 : f32
    %711 = vector.broadcast %cst_231 : f32 to vector<16x1xf32>
    %712 = arith.divf %710, %711 : vector<16x1xf32>
    %713 = vector.broadcast %712 : vector<16x1xf32> to vector<16x32xf32>
    %714 = arith.subf %704, %713 : vector<16x32xf32>
    %715 = arith.mulf %714, %714 : vector<16x32xf32>
    %cst_232 = arith.constant dense<0.000000e+00> : vector<16xf32>
    %716 = vector.multi_reduction <add>, %715, %cst_232 [1] : vector<16x32xf32> to vector<16xf32>
    %717 = vector.shape_cast %716 : vector<16xf32> to vector<16x1xf32>
    %cst_233 = arith.constant 3.200000e+01 : f32
    %718 = vector.broadcast %cst_233 : f32 to vector<16x1xf32>
    %719 = arith.divf %717, %718 : vector<16x1xf32>
    %720 = vector.broadcast %712 : vector<16x1xf32> to vector<16x32xf32>
    %721 = arith.subf %704, %720 : vector<16x32xf32>
    %cst_234 = arith.constant 9.99999974E-6 : f32
    %722 = vector.broadcast %cst_234 : f32 to vector<16x1xf32>
    %723 = arith.addf %719, %722 : vector<16x1xf32>
    %724 = math.rsqrt %723 : vector<16x1xf32>
    %725 = vector.broadcast %724 : vector<16x1xf32> to vector<16x32xf32>
    %726 = arith.mulf %721, %725 : vector<16x32xf32>
    %727 = vector.broadcast %706 : vector<1x32xf32> to vector<16x32xf32>
    %728 = arith.mulf %726, %727 : vector<16x32xf32>
    %729 = vector.broadcast %708 : vector<1x32xf32> to vector<16x32xf32>
    %730 = arith.addf %728, %729 : vector<16x32xf32>
    %c4 = arith.constant 4 : index
    %c0_235 = arith.constant 0 : index
    %c0_236 = arith.constant 0 : index
    %731 = vector.load %arg1[%c4, %c0_235, %c0_236] : memref<5x32x96xf32, #tpu.memory_space<vmem>>, vector<1x32x96xf32>
    %732 = vector.shape_cast %731 : vector<1x32x96xf32> to vector<32x96xf32>
    %cst_237 = arith.constant dense<0.000000e+00> : vector<16x96xf32>
    %733 = tpu.matmul %730, %732, %cst_237 {dimension_numbers = #tpu.dot_dimension_numbers<[1], [0], [0], [1], [0, 0, 1, 1], [], []>} : vector<16x32xf32>, vector<32x96xf32>, vector<16x96xf32> -> vector<16x96xf32>
    %c4_238 = arith.constant 4 : index
    %c0_239 = arith.constant 0 : index
    %c0_240 = arith.constant 0 : index
    %734 = vector.load %arg2[%c4_238, %c0_239, %c0_240] : memref<5x1x96xf32, #tpu.memory_space<vmem>>, vector<1x1x96xf32>
    %735 = vector.shape_cast %734 : vector<1x1x96xf32> to vector<1x96xf32>
    %736 = vector.broadcast %735 : vector<1x96xf32> to vector<16x96xf32>
    %737 = arith.addf %733, %736 : vector<16x96xf32>
    %738 = vector.extract_strided_slice %737 {offsets = [0, 0], sizes = [8, 8], strides = [1, 1]} : vector<16x96xf32> to vector<8x8xf32>
    %739 = vector.extract_strided_slice %737 {offsets = [0, 8], sizes = [8, 8], strides = [1, 1]} : vector<16x96xf32> to vector<8x8xf32>
    %740 = vector.extract_strided_slice %737 {offsets = [0, 16], sizes = [8, 8], strides = [1, 1]} : vector<16x96xf32> to vector<8x8xf32>
    %741 = vector.extract_strided_slice %737 {offsets = [0, 24], sizes = [8, 8], strides = [1, 1]} : vector<16x96xf32> to vector<8x8xf32>
    %742 = vector.extract_strided_slice %737 {offsets = [8, 0], sizes = [8, 8], strides = [1, 1]} : vector<16x96xf32> to vector<8x8xf32>
    %743 = vector.extract_strided_slice %737 {offsets = [8, 8], sizes = [8, 8], strides = [1, 1]} : vector<16x96xf32> to vector<8x8xf32>
    %744 = vector.extract_strided_slice %737 {offsets = [8, 16], sizes = [8, 8], strides = [1, 1]} : vector<16x96xf32> to vector<8x8xf32>
    %745 = vector.extract_strided_slice %737 {offsets = [8, 24], sizes = [8, 8], strides = [1, 1]} : vector<16x96xf32> to vector<8x8xf32>
    %746 = vector.shape_cast %738 : vector<8x8xf32> to vector<1x8x8xf32>
    %747 = vector.shape_cast %739 : vector<8x8xf32> to vector<1x8x8xf32>
    %748 = vector.shape_cast %740 : vector<8x8xf32> to vector<1x8x8xf32>
    %749 = vector.shape_cast %741 : vector<8x8xf32> to vector<1x8x8xf32>
    %750 = vector.shape_cast %742 : vector<8x8xf32> to vector<1x8x8xf32>
    %751 = vector.shape_cast %743 : vector<8x8xf32> to vector<1x8x8xf32>
    %752 = vector.shape_cast %744 : vector<8x8xf32> to vector<1x8x8xf32>
    %753 = vector.shape_cast %745 : vector<8x8xf32> to vector<1x8x8xf32>
    %754 = tpu.concatenate %746, %747, %748, %749, %750, %751, %752, %753 in 0 : vector<1x8x8xf32>, vector<1x8x8xf32>, vector<1x8x8xf32>, vector<1x8x8xf32>, vector<1x8x8xf32>, vector<1x8x8xf32>, vector<1x8x8xf32>, vector<1x8x8xf32> -> vector<8x8x8xf32>
    %755 = vector.extract_strided_slice %737 {offsets = [0, 32], sizes = [8, 8], strides = [1, 1]} : vector<16x96xf32> to vector<8x8xf32>
    %756 = vector.extract_strided_slice %737 {offsets = [0, 40], sizes = [8, 8], strides = [1, 1]} : vector<16x96xf32> to vector<8x8xf32>
    %757 = vector.extract_strided_slice %737 {offsets = [0, 48], sizes = [8, 8], strides = [1, 1]} : vector<16x96xf32> to vector<8x8xf32>
    %758 = vector.extract_strided_slice %737 {offsets = [0, 56], sizes = [8, 8], strides = [1, 1]} : vector<16x96xf32> to vector<8x8xf32>
    %759 = vector.extract_strided_slice %737 {offsets = [8, 32], sizes = [8, 8], strides = [1, 1]} : vector<16x96xf32> to vector<8x8xf32>
    %760 = vector.extract_strided_slice %737 {offsets = [8, 40], sizes = [8, 8], strides = [1, 1]} : vector<16x96xf32> to vector<8x8xf32>
    %761 = vector.extract_strided_slice %737 {offsets = [8, 48], sizes = [8, 8], strides = [1, 1]} : vector<16x96xf32> to vector<8x8xf32>
    %762 = vector.extract_strided_slice %737 {offsets = [8, 56], sizes = [8, 8], strides = [1, 1]} : vector<16x96xf32> to vector<8x8xf32>
    %763 = vector.shape_cast %755 : vector<8x8xf32> to vector<1x8x8xf32>
    %764 = vector.shape_cast %756 : vector<8x8xf32> to vector<1x8x8xf32>
    %765 = vector.shape_cast %757 : vector<8x8xf32> to vector<1x8x8xf32>
    %766 = vector.shape_cast %758 : vector<8x8xf32> to vector<1x8x8xf32>
    %767 = vector.shape_cast %759 : vector<8x8xf32> to vector<1x8x8xf32>
    %768 = vector.shape_cast %760 : vector<8x8xf32> to vector<1x8x8xf32>
    %769 = vector.shape_cast %761 : vector<8x8xf32> to vector<1x8x8xf32>
    %770 = vector.shape_cast %762 : vector<8x8xf32> to vector<1x8x8xf32>
    %771 = tpu.concatenate %763, %764, %765, %766, %767, %768, %769, %770 in 0 : vector<1x8x8xf32>, vector<1x8x8xf32>, vector<1x8x8xf32>, vector<1x8x8xf32>, vector<1x8x8xf32>, vector<1x8x8xf32>, vector<1x8x8xf32>, vector<1x8x8xf32> -> vector<8x8x8xf32>
    %772 = vector.extract_strided_slice %737 {offsets = [0, 64], sizes = [8, 8], strides = [1, 1]} : vector<16x96xf32> to vector<8x8xf32>
    %773 = vector.extract_strided_slice %737 {offsets = [0, 72], sizes = [8, 8], strides = [1, 1]} : vector<16x96xf32> to vector<8x8xf32>
    %774 = vector.extract_strided_slice %737 {offsets = [0, 80], sizes = [8, 8], strides = [1, 1]} : vector<16x96xf32> to vector<8x8xf32>
    %775 = vector.extract_strided_slice %737 {offsets = [0, 88], sizes = [8, 8], strides = [1, 1]} : vector<16x96xf32> to vector<8x8xf32>
    %776 = vector.extract_strided_slice %737 {offsets = [8, 64], sizes = [8, 8], strides = [1, 1]} : vector<16x96xf32> to vector<8x8xf32>
    %777 = vector.extract_strided_slice %737 {offsets = [8, 72], sizes = [8, 8], strides = [1, 1]} : vector<16x96xf32> to vector<8x8xf32>
    %778 = vector.extract_strided_slice %737 {offsets = [8, 80], sizes = [8, 8], strides = [1, 1]} : vector<16x96xf32> to vector<8x8xf32>
    %779 = vector.extract_strided_slice %737 {offsets = [8, 88], sizes = [8, 8], strides = [1, 1]} : vector<16x96xf32> to vector<8x8xf32>
    %780 = vector.shape_cast %772 : vector<8x8xf32> to vector<1x8x8xf32>
    %781 = vector.shape_cast %773 : vector<8x8xf32> to vector<1x8x8xf32>
    %782 = vector.shape_cast %774 : vector<8x8xf32> to vector<1x8x8xf32>
    %783 = vector.shape_cast %775 : vector<8x8xf32> to vector<1x8x8xf32>
    %784 = vector.shape_cast %776 : vector<8x8xf32> to vector<1x8x8xf32>
    %785 = vector.shape_cast %777 : vector<8x8xf32> to vector<1x8x8xf32>
    %786 = vector.shape_cast %778 : vector<8x8xf32> to vector<1x8x8xf32>
    %787 = vector.shape_cast %779 : vector<8x8xf32> to vector<1x8x8xf32>
    %788 = tpu.concatenate %780, %781, %782, %783, %784, %785, %786, %787 in 0 : vector<1x8x8xf32>, vector<1x8x8xf32>, vector<1x8x8xf32>, vector<1x8x8xf32>, vector<1x8x8xf32>, vector<1x8x8xf32>, vector<1x8x8xf32>, vector<1x8x8xf32> -> vector<8x8x8xf32>
    "tpu.trace_start"() <{level = 10 : i32, message = "nqk,ntk->nqt"}> : () -> ()
    %cst_241 = arith.constant dense<0.000000e+00> : vector<8x8x8xf32>
    %789 = tpu.matmul %754, %771, %cst_241 {dimension_numbers = #tpu.dot_dimension_numbers<[2], [2], [1], [1], [0, 0, 0, 1, 1, 1], [0], [0]>} : vector<8x8x8xf32>, vector<8x8x8xf32>, vector<8x8x8xf32> -> vector<8x8x8xf32>
    "tpu.trace_stop"() : () -> ()
    %cst_242 = arith.constant 0.353553385 : f32
    %790 = vector.broadcast %cst_242 : f32 to vector<8x8x8xf32>
    %791 = arith.mulf %789, %790 : vector<8x8x8xf32>
    %792 = vector.shape_cast %6 : vector<8x8xf32> to vector<1x8x8xf32>
    %793 = vector.broadcast %792 : vector<1x8x8xf32> to vector<8x8x8xf32>
    %794 = arith.addf %791, %793 : vector<8x8x8xf32>
    %cst_243 = arith.constant dense<0xFF800000> : vector<8x8xf32>
    %795 = vector.multi_reduction <maximumf>, %794, %cst_243 [2] : vector<8x8x8xf32> to vector<8x8xf32>
    %796 = vector.shape_cast %795 : vector<8x8xf32> to vector<8x8x1xf32>
    %797 = vector.broadcast %796 : vector<8x8x1xf32> to vector<8x8x8xf32>
    %798 = arith.subf %794, %797 : vector<8x8x8xf32>
    %799 = math.exp %798 : vector<8x8x8xf32>
    %cst_244 = arith.constant dense<0.000000e+00> : vector<8x8xf32>
    %800 = vector.multi_reduction <add>, %799, %cst_244 [2] : vector<8x8x8xf32> to vector<8x8xf32>
    %801 = vector.shape_cast %800 : vector<8x8xf32> to vector<8x8x1xf32>
    %802 = tpu.reciprocal %801 {approx = true} : vector<8x8x1xf32> -> vector<8x8x1xf32>
    %803 = arith.mulf %801, %802 : vector<8x8x1xf32>
    %cst_245 = arith.constant 2.000000e+00 : f32
    %804 = vector.broadcast %cst_245 : f32 to vector<8x8x1xf32>
    %805 = arith.subf %804, %803 : vector<8x8x1xf32>
    %806 = arith.mulf %802, %805 : vector<8x8x1xf32>
    %807 = vector.broadcast %806 : vector<8x8x1xf32> to vector<8x8x8xf32>
    %808 = arith.mulf %799, %807 : vector<8x8x8xf32>
    "tpu.trace_start"() <{level = 10 : i32, message = "nqt,ntk->nqk"}> : () -> ()
    %cst_246 = arith.constant dense<0.000000e+00> : vector<8x8x8xf32>
    %809 = tpu.matmul %808, %788, %cst_246 {dimension_numbers = #tpu.dot_dimension_numbers<[2], [1], [1], [2], [0, 0, 0, 1, 1, 2], [0], [0]>} : vector<8x8x8xf32>, vector<8x8x8xf32>, vector<8x8x8xf32> -> vector<8x8x8xf32>
    "tpu.trace_stop"() : () -> ()
    %810 = vector.extract_strided_slice %809 {offsets = [0, 0, 0], sizes = [1, 8, 8], strides = [1, 1, 1]} : vector<8x8x8xf32> to vector<1x8x8xf32>
    %811 = vector.shape_cast %810 : vector<1x8x8xf32> to vector<8x8xf32>
    %812 = vector.extract_strided_slice %809 {offsets = [1, 0, 0], sizes = [1, 8, 8], strides = [1, 1, 1]} : vector<8x8x8xf32> to vector<1x8x8xf32>
    %813 = vector.shape_cast %812 : vector<1x8x8xf32> to vector<8x8xf32>
    %814 = vector.extract_strided_slice %809 {offsets = [2, 0, 0], sizes = [1, 8, 8], strides = [1, 1, 1]} : vector<8x8x8xf32> to vector<1x8x8xf32>
    %815 = vector.shape_cast %814 : vector<1x8x8xf32> to vector<8x8xf32>
    %816 = vector.extract_strided_slice %809 {offsets = [3, 0, 0], sizes = [1, 8, 8], strides = [1, 1, 1]} : vector<8x8x8xf32> to vector<1x8x8xf32>
    %817 = vector.shape_cast %816 : vector<1x8x8xf32> to vector<8x8xf32>
    %818 = tpu.concatenate %811, %813, %815, %817 in 1 : vector<8x8xf32>, vector<8x8xf32>, vector<8x8xf32>, vector<8x8xf32> -> vector<8x32xf32>
    %819 = vector.extract_strided_slice %809 {offsets = [4, 0, 0], sizes = [1, 8, 8], strides = [1, 1, 1]} : vector<8x8x8xf32> to vector<1x8x8xf32>
    %820 = vector.shape_cast %819 : vector<1x8x8xf32> to vector<8x8xf32>
    %821 = vector.extract_strided_slice %809 {offsets = [5, 0, 0], sizes = [1, 8, 8], strides = [1, 1, 1]} : vector<8x8x8xf32> to vector<1x8x8xf32>
    %822 = vector.shape_cast %821 : vector<1x8x8xf32> to vector<8x8xf32>
    %823 = vector.extract_strided_slice %809 {offsets = [6, 0, 0], sizes = [1, 8, 8], strides = [1, 1, 1]} : vector<8x8x8xf32> to vector<1x8x8xf32>
    %824 = vector.shape_cast %823 : vector<1x8x8xf32> to vector<8x8xf32>
    %825 = vector.extract_strided_slice %809 {offsets = [7, 0, 0], sizes = [1, 8, 8], strides = [1, 1, 1]} : vector<8x8x8xf32> to vector<1x8x8xf32>
    %826 = vector.shape_cast %825 : vector<1x8x8xf32> to vector<8x8xf32>
    %827 = tpu.concatenate %820, %822, %824, %826 in 1 : vector<8x8xf32>, vector<8x8xf32>, vector<8x8xf32>, vector<8x8xf32> -> vector<8x32xf32>
    %828 = tpu.concatenate %818, %827 in 0 : vector<8x32xf32>, vector<8x32xf32> -> vector<16x32xf32>
    %c4_247 = arith.constant 4 : index
    %c0_248 = arith.constant 0 : index
    %c0_249 = arith.constant 0 : index
    %829 = vector.load %arg3[%c4_247, %c0_248, %c0_249] : memref<5x32x32xf32, #tpu.memory_space<vmem>>, vector<1x32x32xf32>
    %830 = vector.shape_cast %829 : vector<1x32x32xf32> to vector<32x32xf32>
    %cst_250 = arith.constant dense<0.000000e+00> : vector<16x32xf32>
    %831 = tpu.matmul %828, %830, %cst_250 {dimension_numbers = #tpu.dot_dimension_numbers<[1], [0], [0], [1], [0, 0, 1, 1], [], []>} : vector<16x32xf32>, vector<32x32xf32>, vector<16x32xf32> -> vector<16x32xf32>
    %c4_251 = arith.constant 4 : index
    %c0_252 = arith.constant 0 : index
    %c0_253 = arith.constant 0 : index
    %832 = vector.load %arg4[%c4_251, %c0_252, %c0_253] : memref<5x1x32xf32, #tpu.memory_space<vmem>>, vector<1x1x32xf32>
    %833 = vector.shape_cast %832 : vector<1x1x32xf32> to vector<1x32xf32>
    %834 = vector.broadcast %833 : vector<1x32xf32> to vector<16x32xf32>
    %835 = arith.addf %831, %834 : vector<16x32xf32>
    %836 = arith.addf %730, %835 : vector<16x32xf32>
    %c4_254 = arith.constant 4 : index
    %c0_255 = arith.constant 0 : index
    %c0_256 = arith.constant 0 : index
    %837 = vector.load %arg5[%c4_254, %c0_255, %c0_256] : memref<5x1x32xf32, #tpu.memory_space<vmem>>, vector<1x1x32xf32>
    %838 = vector.shape_cast %837 : vector<1x1x32xf32> to vector<1x32xf32>
    %c4_257 = arith.constant 4 : index
    %c0_258 = arith.constant 0 : index
    %c0_259 = arith.constant 0 : index
    %839 = vector.load %arg6[%c4_257, %c0_258, %c0_259] : memref<5x1x32xf32, #tpu.memory_space<vmem>>, vector<1x1x32xf32>
    %840 = vector.shape_cast %839 : vector<1x1x32xf32> to vector<1x32xf32>
    %cst_260 = arith.constant dense<0.000000e+00> : vector<16xf32>
    %841 = vector.multi_reduction <add>, %836, %cst_260 [1] : vector<16x32xf32> to vector<16xf32>
    %842 = vector.shape_cast %841 : vector<16xf32> to vector<16x1xf32>
    %cst_261 = arith.constant 3.200000e+01 : f32
    %843 = vector.broadcast %cst_261 : f32 to vector<16x1xf32>
    %844 = arith.divf %842, %843 : vector<16x1xf32>
    %845 = vector.broadcast %844 : vector<16x1xf32> to vector<16x32xf32>
    %846 = arith.subf %836, %845 : vector<16x32xf32>
    %847 = arith.mulf %846, %846 : vector<16x32xf32>
    %cst_262 = arith.constant dense<0.000000e+00> : vector<16xf32>
    %848 = vector.multi_reduction <add>, %847, %cst_262 [1] : vector<16x32xf32> to vector<16xf32>
    %849 = vector.shape_cast %848 : vector<16xf32> to vector<16x1xf32>
    %cst_263 = arith.constant 3.200000e+01 : f32
    %850 = vector.broadcast %cst_263 : f32 to vector<16x1xf32>
    %851 = arith.divf %849, %850 : vector<16x1xf32>
    %852 = vector.broadcast %844 : vector<16x1xf32> to vector<16x32xf32>
    %853 = arith.subf %836, %852 : vector<16x32xf32>
    %cst_264 = arith.constant 9.99999974E-6 : f32
    %854 = vector.broadcast %cst_264 : f32 to vector<16x1xf32>
    %855 = arith.addf %851, %854 : vector<16x1xf32>
    %856 = math.rsqrt %855 : vector<16x1xf32>
    %857 = vector.broadcast %856 : vector<16x1xf32> to vector<16x32xf32>
    %858 = arith.mulf %853, %857 : vector<16x32xf32>
    %859 = vector.broadcast %838 : vector<1x32xf32> to vector<16x32xf32>
    %860 = arith.mulf %858, %859 : vector<16x32xf32>
    %861 = vector.broadcast %840 : vector<1x32xf32> to vector<16x32xf32>
    %862 = arith.addf %860, %861 : vector<16x32xf32>
    %c4_265 = arith.constant 4 : index
    %c0_266 = arith.constant 0 : index
    %c0_267 = arith.constant 0 : index
    %863 = vector.load %arg7[%c4_265, %c0_266, %c0_267] : memref<5x32x128xf32, #tpu.memory_space<vmem>>, vector<1x32x128xf32>
    %864 = vector.shape_cast %863 : vector<1x32x128xf32> to vector<32x128xf32>
    %cst_268 = arith.constant dense<0.000000e+00> : vector<16x128xf32>
    %865 = tpu.matmul %862, %864, %cst_268 {dimension_numbers = #tpu.dot_dimension_numbers<[1], [0], [0], [1], [0, 0, 1, 1], [], []>} : vector<16x32xf32>, vector<32x128xf32>, vector<16x128xf32> -> vector<16x128xf32>
    %c4_269 = arith.constant 4 : index
    %c0_270 = arith.constant 0 : index
    %c0_271 = arith.constant 0 : index
    %866 = vector.load %arg8[%c4_269, %c0_270, %c0_271] : memref<5x1x128xf32, #tpu.memory_space<vmem>>, vector<1x1x128xf32>
    %867 = vector.shape_cast %866 : vector<1x1x128xf32> to vector<1x128xf32>
    %868 = vector.broadcast %867 : vector<1x128xf32> to vector<16x128xf32>
    %869 = arith.addf %865, %868 : vector<16x128xf32>
    %cst_272 = arith.constant 5.000000e-01 : f32
    %870 = vector.broadcast %cst_272 : f32 to vector<16x128xf32>
    %871 = arith.mulf %870, %869 : vector<16x128xf32>
    %cst_273 = arith.constant 0.707106769 : f32
    %872 = vector.broadcast %cst_273 : f32 to vector<16x128xf32>
    %873 = arith.mulf %869, %872 : vector<16x128xf32>
    %874 = math.erf %873 : vector<16x128xf32>
    %cst_274 = arith.constant 1.000000e+00 : f32
    %875 = vector.broadcast %cst_274 : f32 to vector<16x128xf32>
    %876 = arith.addf %875, %874 : vector<16x128xf32>
    %877 = arith.mulf %871, %876 : vector<16x128xf32>
    %c4_275 = arith.constant 4 : index
    %c0_276 = arith.constant 0 : index
    %c0_277 = arith.constant 0 : index
    %878 = vector.load %arg9[%c4_275, %c0_276, %c0_277] : memref<5x128x32xf32, #tpu.memory_space<vmem>>, vector<1x128x32xf32>
    %879 = vector.shape_cast %878 : vector<1x128x32xf32> to vector<128x32xf32>
    %cst_278 = arith.constant dense<0.000000e+00> : vector<16x32xf32>
    %880 = tpu.matmul %877, %879, %cst_278 {dimension_numbers = #tpu.dot_dimension_numbers<[1], [0], [0], [1], [0, 0, 1, 1], [], []>} : vector<16x128xf32>, vector<128x32xf32>, vector<16x32xf32> -> vector<16x32xf32>
    %c4_279 = arith.constant 4 : index
    %c0_280 = arith.constant 0 : index
    %c0_281 = arith.constant 0 : index
    %881 = vector.load %arg10[%c4_279, %c0_280, %c0_281] : memref<5x1x32xf32, #tpu.memory_space<vmem>>, vector<1x1x32xf32>
    %882 = vector.shape_cast %881 : vector<1x1x32xf32> to vector<1x32xf32>
    %883 = vector.broadcast %882 : vector<1x32xf32> to vector<16x32xf32>
    %884 = arith.addf %880, %883 : vector<16x32xf32>
    %885 = arith.addf %862, %884 : vector<16x32xf32>
    %c4_282 = arith.constant 4 : index
    %c0_283 = arith.constant 0 : index
    %c0_284 = arith.constant 0 : index
    %886 = vector.load %arg5[%c4_282, %c0_283, %c0_284] : memref<5x1x32xf32, #tpu.memory_space<vmem>>, vector<1x1x32xf32>
    %887 = vector.shape_cast %886 : vector<1x1x32xf32> to vector<1x32xf32>
    %c4_285 = arith.constant 4 : index
    %c0_286 = arith.constant 0 : index
    %c0_287 = arith.constant 0 : index
    %888 = vector.load %arg6[%c4_285, %c0_286, %c0_287] : memref<5x1x32xf32, #tpu.memory_space<vmem>>, vector<1x1x32xf32>
    %889 = vector.shape_cast %888 : vector<1x1x32xf32> to vector<1x32xf32>
    %cst_288 = arith.constant dense<0.000000e+00> : vector<16xf32>
    %890 = vector.multi_reduction <add>, %885, %cst_288 [1] : vector<16x32xf32> to vector<16xf32>
    %891 = vector.shape_cast %890 : vector<16xf32> to vector<16x1xf32>
    %cst_289 = arith.constant 3.200000e+01 : f32
    %892 = vector.broadcast %cst_289 : f32 to vector<16x1xf32>
    %893 = arith.divf %891, %892 : vector<16x1xf32>
    %894 = vector.broadcast %893 : vector<16x1xf32> to vector<16x32xf32>
    %895 = arith.subf %885, %894 : vector<16x32xf32>
    %896 = arith.mulf %895, %895 : vector<16x32xf32>
    %cst_290 = arith.constant dense<0.000000e+00> : vector<16xf32>
    %897 = vector.multi_reduction <add>, %896, %cst_290 [1] : vector<16x32xf32> to vector<16xf32>
    %898 = vector.shape_cast %897 : vector<16xf32> to vector<16x1xf32>
    %cst_291 = arith.constant 3.200000e+01 : f32
    %899 = vector.broadcast %cst_291 : f32 to vector<16x1xf32>
    %900 = arith.divf %898, %899 : vector<16x1xf32>
    %901 = vector.broadcast %893 : vector<16x1xf32> to vector<16x32xf32>
    %902 = arith.subf %885, %901 : vector<16x32xf32>
    %cst_292 = arith.constant 9.99999974E-6 : f32
    %903 = vector.broadcast %cst_292 : f32 to vector<16x1xf32>
    %904 = arith.addf %900, %903 : vector<16x1xf32>
    %905 = math.rsqrt %904 : vector<16x1xf32>
    %906 = vector.broadcast %905 : vector<16x1xf32> to vector<16x32xf32>
    %907 = arith.mulf %902, %906 : vector<16x32xf32>
    %908 = vector.broadcast %887 : vector<1x32xf32> to vector<16x32xf32>
    %909 = arith.mulf %907, %908 : vector<16x32xf32>
    %910 = vector.broadcast %889 : vector<1x32xf32> to vector<16x32xf32>
    %911 = arith.addf %909, %910 : vector<16x32xf32>
    %c0_293 = arith.constant 0 : index
    %c0_294 = arith.constant 0 : index
    %912 = vector.load %arg11[%c0_293, %c0_294] : memref<32x32xf32, #tpu.memory_space<vmem>>, vector<32x32xf32>
    %cst_295 = arith.constant dense<0.000000e+00> : vector<16x32xf32>
    %913 = tpu.matmul %911, %912, %cst_295 {dimension_numbers = #tpu.dot_dimension_numbers<[1], [0], [0], [1], [0, 0, 1, 1], [], []>} : vector<16x32xf32>, vector<32x32xf32>, vector<16x32xf32> -> vector<16x32xf32>
    %c0_296 = arith.constant 0 : index
    %c0_297 = arith.constant 0 : index
    %914 = vector.load %arg12[%c0_296, %c0_297] : memref<1x32xf32, #tpu.memory_space<vmem>>, vector<1x32xf32>
    %915 = vector.broadcast %914 : vector<1x32xf32> to vector<16x32xf32>
    %916 = arith.addf %913, %915 : vector<16x32xf32>
    %cst_298 = arith.constant dense<0xFF800000> : vector<16xf32>
    %917 = vector.multi_reduction <maximumf>, %916, %cst_298 [1] : vector<16x32xf32> to vector<16xf32>
    %918 = vector.shape_cast %917 : vector<16xf32> to vector<16x1xf32>
    %919 = vector.broadcast %918 : vector<16x1xf32> to vector<16x32xf32>
    %920 = arith.subf %916, %919 : vector<16x32xf32>
    %921 = math.exp %920 : vector<16x32xf32>
    %cst_299 = arith.constant dense<0.000000e+00> : vector<16xf32>
    %922 = vector.multi_reduction <add>, %921, %cst_299 [1] : vector<16x32xf32> to vector<16xf32>
    %923 = vector.shape_cast %922 : vector<16xf32> to vector<16x1xf32>
    %924 = tpu.reciprocal %923 {approx = true} : vector<16x1xf32> -> vector<16x1xf32>
    %925 = arith.mulf %923, %924 : vector<16x1xf32>
    %cst_300 = arith.constant 2.000000e+00 : f32
    %926 = vector.broadcast %cst_300 : f32 to vector<16x1xf32>
    %927 = arith.subf %926, %925 : vector<16x1xf32>
    %928 = arith.mulf %924, %927 : vector<16x1xf32>
    %929 = vector.broadcast %928 : vector<16x1xf32> to vector<16x32xf32>
    %930 = arith.mulf %921, %929 : vector<16x32xf32>
    %c0_301 = arith.constant 0 : index
    %c0_302 = arith.constant 0 : index
    %931 = vector.load %arg13[%c0_301, %c0_302] : memref<16x32xf32, #tpu.memory_space<vmem>>, vector<16x32xf32>
    tpu.vector_store %arg13[%c0_301, %c0_302], %930 {strides = array<i32>} : memref<16x32xf32, #tpu.memory_space<vmem>>, vector<16x32xf32>,
    return
  }
}

</mosaic_0001>

<llo_original>
// kernel: decoder_forward.1
$region0: #{decoder_forward.1}
  #allocation0 [shape = 'u32[]', space=smem, size = 0x4, offset = 0x4, fixed_abs, tag = 'smem constant byte address 0x4 - core index']
  #allocation1 [shape = 'u32[144,128]{1,0:T(1,128)}', space=vmem, size = 0x12000, scoped, tag = 'internal scratch']
  %s0 = inlined_call_operand.vmem [shape: f32[16,32], index: 0, kind: input, shape index: {}]
  %s1 = inlined_call_operand.vmem [shape: f32[5,32,96], index: 1, kind: input, shape index: {}]
  %s2 = inlined_call_operand.vmem [shape: f32[5,1,96], index: 2, kind: input, shape index: {}]
  %s3 = inlined_call_operand.vmem [shape: f32[5,32,32], index: 3, kind: input, shape index: {}]
  %s4 = inlined_call_operand.vmem [shape: f32[5,1,32], index: 4, kind: input, shape index: {}]
  %s5 = inlined_call_operand.vmem [shape: f32[5,1,32], index: 5, kind: input, shape index: {}]
  %s6 = inlined_call_operand.vmem [shape: f32[5,1,32], index: 6, kind: input, shape index: {}]
  %s7 = inlined_call_operand.vmem [shape: f32[5,32,128], index: 7, kind: input, shape index: {}]
  %s8 = inlined_call_operand.vmem [shape: f32[5,1,128], index: 8, kind: input, shape index: {}]
  %s9 = inlined_call_operand.vmem [shape: f32[5,128,32], index: 9, kind: input, shape index: {}]
  %s10 = inlined_call_operand.vmem [shape: f32[5,1,32], index: 10, kind: input, shape index: {}]
  %s11 = inlined_call_operand.vmem [shape: f32[32,32], index: 11, kind: input, shape index: {}]
  %s12 = inlined_call_operand.vmem [shape: f32[1,32], index: 12, kind: input, shape index: {}]
  %s13 = inlined_call_operand.hbm [shape: f32[16,32], index: 13, kind: output, shape index: {}]
  %s14 = sld [smem:[#allocation0]]
  $region62: #{decoder_forward.1} parent=0
    _
  %s16 = ssub.s32 1, %s14
  %s17 = scalar_select 0, %s16, %s14
  $region1: #{decoder_forward.1} parent=0
    #allocation2 [shape = 'u8[8192]{0}', space=vmem, size = 0x2000, scoped, tag = 'output window, operand 0, single buffered']
    #allocation3 [shape = 's32[1]{0}', space=sflag, size = 0x4, scoped, tag = 'scoped memory for decoder_forward.1']
    %18 = vsyncpa [#allocation3], 0
    // Predicated region
    $region2: #{decoder_forward.1} parent=1 // pred_check
      _
    $region3: #{decoder_forward.1} parent=1 // pred_check_branch
      %20 = sbr.rel (0) target = $region5
    $region4: #{decoder_forward.1} parent=1 // pred_region
      _
    $region5: #{decoder_forward.1} parent=1 // pred_fallthru
      _
    // Predicated region
    $region6: #{decoder_forward.1} parent=1 // pred_check
      _
    $region7: #{decoder_forward.1} parent=1 // pred_check_branch
      %22 = sbr.rel (0) target = $region9
    $region8: #{decoder_forward.1} parent=1 // pred_region
      _
    $region9: #{decoder_forward.1} parent=1 // pred_fallthru
      _
    // Predicated region
    $region10: #{decoder_forward.1} parent=1 // pred_check
      _
    $region11: #{decoder_forward.1} parent=1 // pred_check_branch
      %24 = sbr.rel (0) target = $region13
    $region12: #{decoder_forward.1} parent=1 // pred_region
      _
    $region13: #{decoder_forward.1} parent=1 // pred_fallthru
      _
    // Predicated region
    $region14: #{decoder_forward.1} parent=1 // pred_check
      _
    $region15: #{decoder_forward.1} parent=1 // pred_check_branch
      %26 = sbr.rel (0) target = $region17
    $region16: #{decoder_forward.1} parent=1 // pred_region
      _
    $region17: #{decoder_forward.1} parent=1 // pred_fallthru
      _
    // Predicated region
    $region18: #{decoder_forward.1} parent=1 // pred_check
      _
    $region19: #{decoder_forward.1} parent=1 // pred_check_branch
      %28 = sbr.rel (0) target = $region21
    $region20: #{decoder_forward.1} parent=1 // pred_region
      _
    $region21: #{decoder_forward.1} parent=1 // pred_fallthru
      _
    // Predicated region
    $region22: #{decoder_forward.1} parent=1 // pred_check
      _
    $region23: #{decoder_forward.1} parent=1 // pred_check_branch
      %30 = sbr.rel (0) target = $region25
    $region24: #{decoder_forward.1} parent=1 // pred_region
      _
    $region25: #{decoder_forward.1} parent=1 // pred_fallthru
      _
    // Predicated region
    $region26: #{decoder_forward.1} parent=1 // pred_check
      _
    $region27: #{decoder_forward.1} parent=1 // pred_check_branch
      %32 = sbr.rel (0) target = $region29
    $region28: #{decoder_forward.1} parent=1 // pred_region
      _
    $region29: #{decoder_forward.1} parent=1 // pred_fallthru
      _
    // Predicated region
    $region30: #{decoder_forward.1} parent=1 // pred_check
      _
    $region31: #{decoder_forward.1} parent=1 // pred_check_branch
      %34 = sbr.rel (0) target = $region33
    $region32: #{decoder_forward.1} parent=1 // pred_region
      _
    $region33: #{decoder_forward.1} parent=1 // pred_fallthru
      _
    // Predicated region
    $region34: #{decoder_forward.1} parent=1 // pred_check
      _
    $region35: #{decoder_forward.1} parent=1 // pred_check_branch
      %36 = sbr.rel (0) target = $region37
    $region36: #{decoder_forward.1} parent=1 // pred_region
      _
    $region37: #{decoder_forward.1} parent=1 // pred_fallthru
      _
    // Predicated region
    $region38: #{decoder_forward.1} parent=1 // pred_check
      _
    $region39: #{decoder_forward.1} parent=1 // pred_check_branch
      %38 = sbr.rel (0) target = $region41
    $region40: #{decoder_forward.1} parent=1 // pred_region
      _
    $region41: #{decoder_forward.1} parent=1 // pred_fallthru
      _
    // Predicated region
    $region42: #{decoder_forward.1} parent=1 // pred_check
      _
    $region43: #{decoder_forward.1} parent=1 // pred_check_branch
      %40 = sbr.rel (0) target = $region45
    $region44: #{decoder_forward.1} parent=1 // pred_region
      _
    $region45: #{decoder_forward.1} parent=1 // pred_fallthru
      _
    // Predicated region
    $region46: #{decoder_forward.1} parent=1 // pred_check
      _
    $region47: #{decoder_forward.1} parent=1 // pred_check_branch
      %42 = sbr.rel (0) target = $region49
    $region48: #{decoder_forward.1} parent=1 // pred_region
      _
    $region49: #{decoder_forward.1} parent=1 // pred_fallthru
      _
    // Predicated region
    $region50: #{decoder_forward.1} parent=1 // pred_check
      _
    $region51: #{decoder_forward.1} parent=1 // pred_check_branch
      %44 = sbr.rel (0) target = $region53
    $region52: #{decoder_forward.1} parent=1 // pred_region
      _
    $region53: #{decoder_forward.1} parent=1 // pred_fallthru
      _
    %v45 = vld [vmem:[%s0] sm:$0xff]
    %v46 = vld [vmem:[%s0 + $0x8] sm:$0xff]
    %v47 = vlaneseq
    %v48 = vshrl.u32 %v47, 7
    %v49 = vlaneseq
    %v50 = vand.u32 %v49, 127
    %vm51 = vcmp.le.s32.totalorder %v50, %v48
    %v52 = vsel %vm51, 0.0, -1e+30
    %v53 = vld [vmem:[%s1] sm:$0xff]
    %v54 = vld [vmem:[%s1 + $0x8] sm:$0xff]
    %v55 = vld [vmem:[%s1 + $0x10] sm:$0xff]
    %v56 = vld [vmem:[%s1 + $0x18] sm:$0xff]
    %v57 = vld [vmem:[%s2] sm:$0x1]
    %v59 = vlaneseq
    %v60 = vshrl.u32 %v59, 7
    %v61 = vsub.s32 0, %v60
    %v62 = vrot.slane %v57, %v61
    %vm64 = vcmask 261120
    %v66 = vsel %vm64, %v45, 0
    %v69 = vsel %vm64, %v46, 0
    %71 = vmatprep.subr.mxu0 0.0
    %72 = vmatpush1.msra.mxu0 %v53
    %73 = vmatprep.subr.mxu0 0.0
    %74 = vmatpush1.msra.mxu0 %v54
    %75 = vmatprep.subr.mxu0 0.0
    %76 = vmatpush1.msra.mxu0 %v55
    %77 = vmatprep.subr.mxu0 0.0
    %78 = vmatpush1.msra.mxu0 %v56
    %79 = vmatprep.subr.mxu0 0.0
    %80 = vmatpush1.msra.mxu0 0.0
    %81 = vmatprep.subr.mxu0 0.0
    %82 = vmatpush1.msra.mxu0 0.0
    %83 = vmatprep.subr.mxu0 0.0
    %84 = vmatpush1.msra.mxu0 0.0
    %85 = vmatprep.subr.mxu0 0.0
    %86 = vmatpush1.msra.mxu0 0.0
    %87 = vmatprep.subr.mxu0 0.0
    %88 = vmatpush1.msra.mxu0 0.0
    %89 = vmatprep.subr.mxu0 0.0
    %90 = vmatpush1.msra.mxu0 0.0
    %91 = vmatprep.subr.mxu0 0.0
    %92 = vmatpush1.msra.mxu0 0.0
    %93 = vmatprep.subr.mxu0 0.0
    %94 = vmatpush1.msra.mxu0 0.0
    %95 = vmatprep.subr.mxu0 0.0
    %96 = vmatpush1.msra.mxu0 0.0
    %97 = vmatprep.subr.mxu0 0.0
    %98 = vmatpush1.msra.mxu0 0.0
    %99 = vmatprep.subr.mxu0 0.0
    %100 = vmatpush1.msra.mxu0 0.0
    %101 = vmatprep.subr.mxu0 0.0
    %102 = vmatpush1.msra.mxu0 0.0
    %103 = vmatprep.subr.mxu0 0.0
    %104 = vmatpush1.msra.mxu0 0.0
    %105 = vmatprep.subr.mxu0 0.0
    %106 = vmatpush1.msra.mxu0 0.0
    %107 = vmatprep.subr.mxu0 0.0
    %108 = vmatpush1.msra.mxu0 0.0
    %109 = vmatprep.subr.mxu0 0.0
    %110 = vmatpush1.msra.mxu0 0.0
    %111 = vmatprep.subr.mxu0 0.0
    %112 = vmatpush1.msra.mxu0 0.0
    %113 = vmatprep.subr.mxu0 0.0
    %114 = vmatpush1.msra.mxu0 0.0
    %115 = vmatprep.subr.mxu0 0.0
    %116 = vmatpush1.msra.mxu0 0.0
    %117 = vmatprep.subr.mxu0 0.0
    %118 = vmatpush1.msra.mxu0 0.0
    %119 = vmatprep.subr.mxu0 0.0
    %120 = vmatpush1.msra.mxu0 0.0
    %121 = vmatprep.subr.mxu0 0.0
    %122 = vmatpush1.msra.mxu0 0.0
    %123 = vmatprep.subr.mxu0 0.0
    %124 = vmatpush1.msra.mxu0 0.0
    %125 = vmatprep.subr.mxu0 0.0
    %126 = vmatpush1.msra.mxu0 0.0
    %127 = vmatprep.subr.mxu0 0.0
    %128 = vmatpush1.msra.mxu0 0.0
    %129 = vmatprep.subr.mxu0 0.0
    %130 = vmatpush1.msra.mxu0 0.0
    %131 = vmatprep.subr.mxu0 0.0
    %132 = vmatpush1.msra.mxu0 0.0
    %133 = vmatprep.subr.mxu0 0.0
    %134 = vmatpush1.msra.mxu0 0.0
    %135 = vmatprep.mubr.f32.mxu0 0.0
    %136 = vmatmul.mubr.f32.gmra.mrb[0].mxu0 %v66
    %v137 = vpop.f32.mrb[0].mxu0
    %v138 = vadd.f32 %v62, %v137
    %v139 = vpop.f32.mrb[0].mxu0
    %140 = vmatprep.mubr.f32.mxu0 0.0
    %141 = vmatmul.mubr.f32.gmra.mrb[0].mxu0 %v69
    %v142 = vpop.f32.mrb[0].mxu0
    %v143 = vadd.f32 %v62, %v142
    %v144 = vpop.f32.mrb[0].mxu0
    %145 = vdwg.mxu0
    %147 = vrot.lane.b32.xlu0 %v138, 120
    %v148 = vpop.permute.xlu0 %147
    %149 = vrot.lane.b32.xlu0 %v138, 112
    %v150 = vpop.permute.xlu0 %149
    %151 = vrot.lane.b32.xlu0 %v138, 104
    %v152 = vpop.permute.xlu0 %151
    %154 = vrot.lane.b32.xlu0 %v143, 120
    %v155 = vpop.permute.xlu0 %154
    %156 = vrot.lane.b32.xlu0 %v143, 112
    %v157 = vpop.permute.xlu0 %156
    %158 = vrot.lane.b32.xlu0 %v143, 104
    %v159 = vpop.permute.xlu0 %158
    %160 = vrot.lane.b32.xlu0 %v138, 96
    %v161 = vpop.permute.xlu0 %160
    %vm162 = vcmask 64512
    %v163 = vsel %vm162, %v138, 0
    %v165 = vsel %vm162, %v161, 0
    %167 = vmatprep.subr.mxu0 0.0
    %168 = vmatpush1.xpose.msra.mxu0 %v165
    %169 = vmatprep.subr.mxu0 0.0
    %170 = vmatpush1.xpose.msra.mxu0 0.0
    %171 = vmatprep.subr.mxu0 0.0
    %172 = vmatpush1.xpose.msra.mxu0 0.0
    %173 = vmatprep.subr.mxu0 0.0
    %174 = vmatpush1.xpose.msra.mxu0 0.0
    %175 = vmatprep.subr.mxu0 0.0
    %176 = vmatpush1.xpose.msra.mxu0 0.0
    %177 = vmatprep.subr.mxu0 0.0
    %178 = vmatpush1.xpose.msra.mxu0 0.0
    %179 = vmatprep.subr.mxu0 0.0
    %180 = vmatpush1.xpose.msra.mxu0 0.0
    %181 = vmatprep.subr.mxu0 0.0
    %182 = vmatpush1.xpose.msra.mxu0 0.0
    %183 = vmatprep.subr.mxu0 0.0
    %184 = vmatpush1.xpose.msra.mxu0 0.0
    %185 = vmatprep.subr.mxu0 0.0
    %186 = vmatpush1.xpose.msra.mxu0 0.0
    %187 = vmatprep.subr.mxu0 0.0
    %188 = vmatpush1.xpose.msra.mxu0 0.0
    %189 = vmatprep.subr.mxu0 0.0
    %190 = vmatpush1.xpose.msra.mxu0 0.0
    %191 = vmatprep.subr.mxu0 0.0
    %192 = vmatpush1.xpose.msra.mxu0 0.0
    %193 = vmatprep.subr.mxu0 0.0
    %194 = vmatpush1.xpose.msra.mxu0 0.0
    %195 = vmatprep.subr.mxu0 0.0
    %196 = vmatpush1.xpose.msra.mxu0 0.0
    %197 = vmatprep.subr.mxu0 0.0
    %198 = vmatpush1.xpose.msra.mxu0 0.0
    %199 = vmatprep.subr.mxu0 0.0
    %200 = vmatpush1.xpose.msra.mxu0 0.0
    %201 = vmatprep.subr.mxu0 0.0
    %202 = vmatpush1.xpose.msra.mxu0 0.0
    %203 = vmatprep.subr.mxu0 0.0
    %204 = vmatpush1.xpose.msra.mxu0 0.0
    %205 = vmatprep.subr.mxu0 0.0
    %206 = vmatpush1.xpose.msra.mxu0 0.0
    %207 = vmatprep.subr.mxu0 0.0
    %208 = vmatpush1.xpose.msra.mxu0 0.0
    %209 = vmatprep.subr.mxu0 0.0
    %210 = vmatpush1.xpose.msra.mxu0 0.0
    %211 = vmatprep.subr.mxu0 0.0
    %212 = vmatpush1.xpose.msra.mxu0 0.0
    %213 = vmatprep.subr.mxu0 0.0
    %214 = vmatpush1.xpose.msra.mxu0 0.0
    %215 = vmatprep.subr.mxu0 0.0
    %216 = vmatpush1.xpose.msra.mxu0 0.0
    %217 = vmatprep.subr.mxu0 0.0
    %218 = vmatpush1.xpose.msra.mxu0 0.0
    %219 = vmatprep.subr.mxu0 0.0
    %220 = vmatpush1.xpose.msra.mxu0 0.0
    %221 = vmatprep.subr.mxu0 0.0
    %222 = vmatpush1.xpose.msra.mxu0 0.0
    %223 = vmatprep.subr.mxu0 0.0
    %224 = vmatpush1.xpose.msra.mxu0 0.0
    %225 = vmatprep.subr.mxu0 0.0
    %226 = vmatpush1.xpose.msra.mxu0 0.0
    %227 = vmatprep.subr.mxu0 0.0
    %228 = vmatpush1.xpose.msra.mxu0 0.0
    %229 = vmatprep.subr.mxu0 0.0
    %230 = vmatpush1.xpose.msra.mxu0 0.0
    %231 = vmatprep.mubr.f32.mxu0 0.0
    %232 = vmatmul.mubr.f32.gmra.mrb[0].mxu0 %v163
    %v233 = vpop.f32.mrb[0].mxu0
    %v234 = vadd.f32 0.0, %v233
    %v235 = vpop.f32.mrb[0].mxu0
    %236 = vdwg.mxu0
    %237 = vrot.lane.b32.xlu0 %v148, 96
    %v238 = vpop.permute.xlu0 %237
    %v239 = vsel %vm162, %v148, 0
    %v241 = vsel %vm162, %v238, 0
    %243 = vmatprep.subr.mxu0 0.0
    %244 = vmatpush1.xpose.msra.mxu0 %v241
    %245 = vmatprep.subr.mxu0 0.0
    %246 = vmatpush1.xpose.msra.mxu0 0.0
    %247 = vmatprep.subr.mxu0 0.0
    %248 = vmatpush1.xpose.msra.mxu0 0.0
    %249 = vmatprep.subr.mxu0 0.0
    %250 = vmatpush1.xpose.msra.mxu0 0.0
    %251 = vmatprep.subr.mxu0 0.0
    %252 = vmatpush1.xpose.msra.mxu0 0.0
    %253 = vmatprep.subr.mxu0 0.0
    %254 = vmatpush1.xpose.msra.mxu0 0.0
    %255 = vmatprep.subr.mxu0 0.0
    %256 = vmatpush1.xpose.msra.mxu0 0.0
    %257 = vmatprep.subr.mxu0 0.0
    %258 = vmatpush1.xpose.msra.mxu0 0.0
    %259 = vmatprep.subr.mxu0 0.0
    %260 = vmatpush1.xpose.msra.mxu0 0.0
    %261 = vmatprep.subr.mxu0 0.0
    %262 = vmatpush1.xpose.msra.mxu0 0.0
    %263 = vmatprep.subr.mxu0 0.0
    %264 = vmatpush1.xpose.msra.mxu0 0.0
    %265 = vmatprep.subr.mxu0 0.0
    %266 = vmatpush1.xpose.msra.mxu0 0.0
    %267 = vmatprep.subr.mxu0 0.0
    %268 = vmatpush1.xpose.msra.mxu0 0.0
    %269 = vmatprep.subr.mxu0 0.0
    %270 = vmatpush1.xpose.msra.mxu0 0.0
    %271 = vmatprep.subr.mxu0 0.0
    %272 = vmatpush1.xpose.msra.mxu0 0.0
    %273 = vmatprep.subr.mxu0 0.0
    %274 = vmatpush1.xpose.msra.mxu0 0.0
    %275 = vmatprep.subr.mxu0 0.0
    %276 = vmatpush1.xpose.msra.mxu0 0.0
    %277 = vmatprep.subr.mxu0 0.0
    %278 = vmatpush1.xpose.msra.mxu0 0.0
    %279 = vmatprep.subr.mxu0 0.0
    %280 = vmatpush1.xpose.msra.mxu0 0.0
    %281 = vmatprep.subr.mxu0 0.0
    %282 = vmatpush1.xpose.msra.mxu0 0.0
    %283 = vmatprep.subr.mxu0 0.0
    %284 = vmatpush1.xpose.msra.mxu0 0.0
    %285 = vmatprep.subr.mxu0 0.0
    %286 = vmatpush1.xpose.msra.mxu0 0.0
    %287 = vmatprep.subr.mxu0 0.0
    %288 = vmatpush1.xpose.msra.mxu0 0.0
    %289 = vmatprep.subr.mxu0 0.0
    %290 = vmatpush1.xpose.msra.mxu0 0.0
    %291 = vmatprep.subr.mxu0 0.0
    %292 = vmatpush1.xpose.msra.mxu0 0.0
    %293 = vmatprep.subr.mxu0 0.0
    %294 = vmatpush1.xpose.msra.mxu0 0.0
    %295 = vmatprep.subr.mxu0 0.0
    %296 = vmatpush1.xpose.msra.mxu0 0.0
    %297 = vmatprep.subr.mxu0 0.0
    %298 = vmatpush1.xpose.msra.mxu0 0.0
    %299 = vmatprep.subr.mxu0 0.0
    %300 = vmatpush1.xpose.msra.mxu0 0.0
    %301 = vmatprep.subr.mxu0 0.0
    %302 = vmatpush1.xpose.msra.mxu0 0.0
    %303 = vmatprep.subr.mxu0 0.0
    %304 = vmatpush1.xpose.msra.mxu0 0.0
    %305 = vmatprep.subr.mxu0 0.0
    %306 = vmatpush1.xpose.msra.mxu0 0.0
    %307 = vmatprep.mubr.f32.mxu0 0.0
    %308 = vmatmul.mubr.f32.gmra.mrb[0].mxu0 %v239
    %v309 = vpop.f32.mrb[0].mxu0
    %v310 = vadd.f32 0.0, %v309
    %v311 = vpop.f32.mrb[0].mxu0
    %312 = vdwg.mxu0
    %313 = vrot.lane.b32.xlu0 %v150, 96
    %v314 = vpop.permute.xlu0 %313
    %v315 = vsel %vm162, %v150, 0
    %v317 = vsel %vm162, %v314, 0
    %319 = vmatprep.subr.mxu0 0.0
    %320 = vmatpush1.xpose.msra.mxu0 %v317
    %321 = vmatprep.subr.mxu0 0.0
    %322 = vmatpush1.xpose.msra.mxu0 0.0
    %323 = vmatprep.subr.mxu0 0.0
    %324 = vmatpush1.xpose.msra.mxu0 0.0
    %325 = vmatprep.subr.mxu0 0.0
    %326 = vmatpush1.xpose.msra.mxu0 0.0
    %327 = vmatprep.subr.mxu0 0.0
    %328 = vmatpush1.xpose.msra.mxu0 0.0
    %329 = vmatprep.subr.mxu0 0.0
    %330 = vmatpush1.xpose.msra.mxu0 0.0
    %331 = vmatprep.subr.mxu0 0.0
    %332 = vmatpush1.xpose.msra.mxu0 0.0
    %333 = vmatprep.subr.mxu0 0.0
    %334 = vmatpush1.xpose.msra.mxu0 0.0
    %335 = vmatprep.subr.mxu0 0.0
    %336 = vmatpush1.xpose.msra.mxu0 0.0
    %337 = vmatprep.subr.mxu0 0.0
    %338 = vmatpush1.xpose.msra.mxu0 0.0
    %339 = vmatprep.subr.mxu0 0.0
    %340 = vmatpush1.xpose.msra.mxu0 0.0
    %341 = vmatprep.subr.mxu0 0.0
    %342 = vmatpush1.xpose.msra.mxu0 0.0
    %343 = vmatprep.subr.mxu0 0.0
    %344 = vmatpush1.xpose.msra.mxu0 0.0
    %345 = vmatprep.subr.mxu0 0.0
    %346 = vmatpush1.xpose.msra.mxu0 0.0
    %347 = vmatprep.subr.mxu0 0.0
    %348 = vmatpush1.xpose.msra.mxu0 0.0
    %349 = vmatprep.subr.mxu0 0.0
    %350 = vmatpush1.xpose.msra.mxu0 0.0
    %351 = vmatprep.subr.mxu0 0.0
    %352 = vmatpush1.xpose.msra.mxu0 0.0
    %353 = vmatprep.subr.mxu0 0.0
    %354 = vmatpush1.xpose.msra.mxu0 0.0
    %355 = vmatprep.subr.mxu0 0.0
    %356 = vmatpush1.xpose.msra.mxu0 0.0
    %357 = vmatprep.subr.mxu0 0.0
    %358 = vmatpush1.xpose.msra.mxu0 0.0
    %359 = vmatprep.subr.mxu0 0.0
    %360 = vmatpush1.xpose.msra.mxu0 0.0
    %361 = vmatprep.subr.mxu0 0.0
    %362 = vmatpush1.xpose.msra.mxu0 0.0
    %363 = vmatprep.subr.mxu0 0.0
    %364 = vmatpush1.xpose.msra.mxu0 0.0
    %365 = vmatprep.subr.mxu0 0.0
    %366 = vmatpush1.xpose.msra.mxu0 0.0
    %367 = vmatprep.subr.mxu0 0.0
    %368 = vmatpush1.xpose.msra.mxu0 0.0
    %369 = vmatprep.subr.mxu0 0.0
    %370 = vmatpush1.xpose.msra.mxu0 0.0
    %371 = vmatprep.subr.mxu0 0.0
    %372 = vmatpush1.xpose.msra.mxu0 0.0
    %373 = vmatprep.subr.mxu0 0.0
    %374 = vmatpush1.xpose.msra.mxu0 0.0
    %375 = vmatprep.subr.mxu0 0.0
    %376 = vmatpush1.xpose.msra.mxu0 0.0
    %377 = vmatprep.subr.mxu0 0.0
    %378 = vmatpush1.xpose.msra.mxu0 0.0
    %379 = vmatprep.subr.mxu0 0.0
    %380 = vmatpush1.xpose.msra.mxu0 0.0
    %381 = vmatprep.subr.mxu0 0.0
    %382 = vmatpush1.xpose.msra.mxu0 0.0
    %383 = vmatprep.mubr.f32.mxu0 0.0
    %384 = vmatmul.mubr.f32.gmra.mrb[0].mxu0 %v315
    %v385 = vpop.f32.mrb[0].mxu0
    %v386 = vadd.f32 0.0, %v385
    %v387 = vpop.f32.mrb[0].mxu0
    %388 = vdwg.mxu0
    %389 = vrot.lane.b32.xlu0 %v152, 96
    %v390 = vpop.permute.xlu0 %389
    %v391 = vsel %vm162, %v152, 0
    %v393 = vsel %vm162, %v390, 0
    %395 = vmatprep.subr.mxu0 0.0
    %396 = vmatpush1.xpose.msra.mxu0 %v393
    %397 = vmatprep.subr.mxu0 0.0
    %398 = vmatpush1.xpose.msra.mxu0 0.0
    %399 = vmatprep.subr.mxu0 0.0
    %400 = vmatpush1.xpose.msra.mxu0 0.0
    %401 = vmatprep.subr.mxu0 0.0
    %402 = vmatpush1.xpose.msra.mxu0 0.0
    %403 = vmatprep.subr.mxu0 0.0
    %404 = vmatpush1.xpose.msra.mxu0 0.0
    %405 = vmatprep.subr.mxu0 0.0
    %406 = vmatpush1.xpose.msra.mxu0 0.0
    %407 = vmatprep.subr.mxu0 0.0
    %408 = vmatpush1.xpose.msra.mxu0 0.0
    %409 = vmatprep.subr.mxu0 0.0
    %410 = vmatpush1.xpose.msra.mxu0 0.0
    %411 = vmatprep.subr.mxu0 0.0
    %412 = vmatpush1.xpose.msra.mxu0 0.0
    %413 = vmatprep.subr.mxu0 0.0
    %414 = vmatpush1.xpose.msra.mxu0 0.0
    %415 = vmatprep.subr.mxu0 0.0
    %416 = vmatpush1.xpose.msra.mxu0 0.0
    %417 = vmatprep.subr.mxu0 0.0
    %418 = vmatpush1.xpose.msra.mxu0 0.0
    %419 = vmatprep.subr.mxu0 0.0
    %420 = vmatpush1.xpose.msra.mxu0 0.0
    %421 = vmatprep.subr.mxu0 0.0
    %422 = vmatpush1.xpose.msra.mxu0 0.0
    %423 = vmatprep.subr.mxu0 0.0
    %424 = vmatpush1.xpose.msra.mxu0 0.0
    %425 = vmatprep.subr.mxu0 0.0
    %426 = vmatpush1.xpose.msra.mxu0 0.0
    %427 = vmatprep.subr.mxu0 0.0
    %428 = vmatpush1.xpose.msra.mxu0 0.0
    %429 = vmatprep.subr.mxu0 0.0
    %430 = vmatpush1.xpose.msra.mxu0 0.0
    %431 = vmatprep.subr.mxu0 0.0
    %432 = vmatpush1.xpose.msra.mxu0 0.0
    %433 = vmatprep.subr.mxu0 0.0
    %434 = vmatpush1.xpose.msra.mxu0 0.0
    %435 = vmatprep.subr.mxu0 0.0
    %436 = vmatpush1.xpose.msra.mxu0 0.0
    %437 = vmatprep.subr.mxu0 0.0
    %438 = vmatpush1.xpose.msra.mxu0 0.0
    %439 = vmatprep.subr.mxu0 0.0
    %440 = vmatpush1.xpose.msra.mxu0 0.0
    %441 = vmatprep.subr.mxu0 0.0
    %442 = vmatpush1.xpose.msra.mxu0 0.0
    %443 = vmatprep.subr.mxu0 0.0
    %444 = vmatpush1.xpose.msra.mxu0 0.0
    %445 = vmatprep.subr.mxu0 0.0
    %446 = vmatpush1.xpose.msra.mxu0 0.0
    %447 = vmatprep.subr.mxu0 0.0
    %448 = vmatpush1.xpose.msra.mxu0 0.0
    %449 = vmatprep.subr.mxu0 0.0
    %450 = vmatpush1.xpose.msra.mxu0 0.0
    %451 = vmatprep.subr.mxu0 0.0
    %452 = vmatpush1.xpose.msra.mxu0 0.0
    %453 = vmatprep.subr.mxu0 0.0
    %454 = vmatpush1.xpose.msra.mxu0 0.0
    %455 = vmatprep.subr.mxu0 0.0
    %456 = vmatpush1.xpose.msra.mxu0 0.0
    %457 = vmatprep.subr.mxu0 0.0
    %458 = vmatpush1.xpose.msra.mxu0 0.0
    %459 = vmatprep.mubr.f32.mxu0 0.0
    %460 = vmatmul.mubr.f32.gmra.mrb[0].mxu0 %v391
    %v461 = vpop.f32.mrb[0].mxu0
    %v462 = vadd.f32 0.0, %v461
    %v463 = vpop.f32.mrb[0].mxu0
    %464 = vdwg.mxu0
    %465 = vrot.lane.b32.xlu0 %v143, 96
    %v466 = vpop.permute.xlu0 %465
    %v467 = vsel %vm162, %v143, 0
    %v469 = vsel %vm162, %v466, 0
    %471 = vmatprep.subr.mxu0 0.0
    %472 = vmatpush1.xpose.msra.mxu0 %v469
    %473 = vmatprep.subr.mxu0 0.0
    %474 = vmatpush1.xpose.msra.mxu0 0.0
    %475 = vmatprep.subr.mxu0 0.0
    %476 = vmatpush1.xpose.msra.mxu0 0.0
    %477 = vmatprep.subr.mxu0 0.0
    %478 = vmatpush1.xpose.msra.mxu0 0.0
    %479 = vmatprep.subr.mxu0 0.0
    %480 = vmatpush1.xpose.msra.mxu0 0.0
    %481 = vmatprep.subr.mxu0 0.0
    %482 = vmatpush1.xpose.msra.mxu0 0.0
    %483 = vmatprep.subr.mxu0 0.0
    %484 = vmatpush1.xpose.msra.mxu0 0.0
    %485 = vmatprep.subr.mxu0 0.0
    %486 = vmatpush1.xpose.msra.mxu0 0.0
    %487 = vmatprep.subr.mxu0 0.0
    %488 = vmatpush1.xpose.msra.mxu0 0.0
    %489 = vmatprep.subr.mxu0 0.0
    %490 = vmatpush1.xpose.msra.mxu0 0.0
    %491 = vmatprep.subr.mxu0 0.0
    %492 = vmatpush1.xpose.msra.mxu0 0.0
    %493 = vmatprep.subr.mxu0 0.0
    %494 = vmatpush1.xpose.msra.mxu0 0.0
    %495 = vmatprep.subr.mxu0 0.0
    %496 = vmatpush1.xpose.msra.mxu0 0.0
    %497 = vmatprep.subr.mxu0 0.0
    %498 = vmatpush1.xpose.msra.mxu0 0.0
    %499 = vmatprep.subr.mxu0 0.0
    %500 = vmatpush1.xpose.msra.mxu0 0.0
    %501 = vmatprep.subr.mxu0 0.0
    %502 = vmatpush1.xpose.msra.mxu0 0.0
    %503 = vmatprep.subr.mxu0 0.0
    %504 = vmatpush1.xpose.msra.mxu0 0.0
    %505 = vmatprep.subr.mxu0 0.0
    %506 = vmatpush1.xpose.msra.mxu0 0.0
    %507 = vmatprep.subr.mxu0 0.0
    %508 = vmatpush1.xpose.msra.mxu0 0.0
    %509 = vmatprep.subr.mxu0 0.0
    %510 = vmatpush1.xpose.msra.mxu0 0.0
    %511 = vmatprep.subr.mxu0 0.0
    %512 = vmatpush1.xpose.msra.mxu0 0.0
    %513 = vmatprep.subr.mxu0 0.0
    %514 = vmatpush1.xpose.msra.mxu0 0.0
    %515 = vmatprep.subr.mxu0 0.0
    %516 = vmatpush1.xpose.msra.mxu0 0.0
    %517 = vmatprep.subr.mxu0 0.0
    %518 = vmatpush1.xpose.msra.mxu0 0.0
    %519 = vmatprep.subr.mxu0 0.0
    %520 = vmatpush1.xpose.msra.mxu0 0.0
    %521 = vmatprep.subr.mxu0 0.0
    %522 = vmatpush1.xpose.msra.mxu0 0.0
    %523 = vmatprep.subr.mxu0 0.0
    %524 = vmatpush1.xpose.msra.mxu0 0.0
    %525 = vmatprep.subr.mxu0 0.0
    %526 = vmatpush1.xpose.msra.mxu0 0.0
    %527 = vmatprep.subr.mxu0 0.0
    %528 = vmatpush1.xpose.msra.mxu0 0.0
    %529 = vmatprep.subr.mxu0 0.0
    %530 = vmatpush1.xpose.msra.mxu0 0.0
    %531 = vmatprep.subr.mxu0 0.0
    %532 = vmatpush1.xpose.msra.mxu0 0.0
    %533 = vmatprep.subr.mxu0 0.0
    %534 = vmatpush1.xpose.msra.mxu0 0.0
    %535 = vmatprep.mubr.f32.mxu0 0.0
    %536 = vmatmul.mubr.f32.gmra.mrb[0].mxu0 %v467
    %v537 = vpop.f32.mrb[0].mxu0
    %v538 = vadd.f32 0.0, %v537
    %v539 = vpop.f32.mrb[0].mxu0
    %540 = vdwg.mxu0
    %541 = vrot.lane.b32.xlu0 %v155, 96
    %v542 = vpop.permute.xlu0 %541
    %v543 = vsel %vm162, %v155, 0
    %v545 = vsel %vm162, %v542, 0
    %547 = vmatprep.subr.mxu0 0.0
    %548 = vmatpush1.xpose.msra.mxu0 %v545
    %549 = vmatprep.subr.mxu0 0.0
    %550 = vmatpush1.xpose.msra.mxu0 0.0
    %551 = vmatprep.subr.mxu0 0.0
    %552 = vmatpush1.xpose.msra.mxu0 0.0
    %553 = vmatprep.subr.mxu0 0.0
    %554 = vmatpush1.xpose.msra.mxu0 0.0
    %555 = vmatprep.subr.mxu0 0.0
    %556 = vmatpush1.xpose.msra.mxu0 0.0
    %557 = vmatprep.subr.mxu0 0.0
    %558 = vmatpush1.xpose.msra.mxu0 0.0
    %559 = vmatprep.subr.mxu0 0.0
    %560 = vmatpush1.xpose.msra.mxu0 0.0
    %561 = vmatprep.subr.mxu0 0.0
    %562 = vmatpush1.xpose.msra.mxu0 0.0
    %563 = vmatprep.subr.mxu0 0.0
    %564 = vmatpush1.xpose.msra.mxu0 0.0
    %565 = vmatprep.subr.mxu0 0.0
    %566 = vmatpush1.xpose.msra.mxu0 0.0
    %567 = vmatprep.subr.mxu0 0.0
    %568 = vmatpush1.xpose.msra.mxu0 0.0
    %569 = vmatprep.subr.mxu0 0.0
    %570 = vmatpush1.xpose.msra.mxu0 0.0
    %571 = vmatprep.subr.mxu0 0.0
    %572 = vmatpush1.xpose.msra.mxu0 0.0
    %573 = vmatprep.subr.mxu0 0.0
    %574 = vmatpush1.xpose.msra.mxu0 0.0
    %575 = vmatprep.subr.mxu0 0.0
    %576 = vmatpush1.xpose.msra.mxu0 0.0
    %577 = vmatprep.subr.mxu0 0.0
    %578 = vmatpush1.xpose.msra.mxu0 0.0
    %579 = vmatprep.subr.mxu0 0.0
    %580 = vmatpush1.xpose.msra.mxu0 0.0
    %581 = vmatprep.subr.mxu0 0.0
    %582 = vmatpush1.xpose.msra.mxu0 0.0
    %583 = vmatprep.subr.mxu0 0.0
    %584 = vmatpush1.xpose.msra.mxu0 0.0
    %585 = vmatprep.subr.mxu0 0.0
    %586 = vmatpush1.xpose.msra.mxu0 0.0
    %587 = vmatprep.subr.mxu0 0.0
    %588 = vmatpush1.xpose.msra.mxu0 0.0
    %589 = vmatprep.subr.mxu0 0.0
    %590 = vmatpush1.xpose.msra.mxu0 0.0
    %591 = vmatprep.subr.mxu0 0.0
    %592 = vmatpush1.xpose.msra.mxu0 0.0
    %593 = vmatprep.subr.mxu0 0.0
    %594 = vmatpush1.xpose.msra.mxu0 0.0
    %595 = vmatprep.subr.mxu0 0.0
    %596 = vmatpush1.xpose.msra.mxu0 0.0
    %597 = vmatprep.subr.mxu0 0.0
    %598 = vmatpush1.xpose.msra.mxu0 0.0
    %599 = vmatprep.subr.mxu0 0.0
    %600 = vmatpush1.xpose.msra.mxu0 0.0
    %601 = vmatprep.subr.mxu0 0.0
    %602 = vmatpush1.xpose.msra.mxu0 0.0
    %603 = vmatprep.subr.mxu0 0.0
    %604 = vmatpush1.xpose.msra.mxu0 0.0
    %605 = vmatprep.subr.mxu0 0.0
    %606 = vmatpush1.xpose.msra.mxu0 0.0
    %607 = vmatprep.subr.mxu0 0.0
    %608 = vmatpush1.xpose.msra.mxu0 0.0
    %609 = vmatprep.subr.mxu0 0.0
    %610 = vmatpush1.xpose.msra.mxu0 0.0
    %611 = vmatprep.mubr.f32.mxu0 0.0
    %612 = vmatmul.mubr.f32.gmra.mrb[0].mxu0 %v543
    %v613 = vpop.f32.mrb[0].mxu0
    %v614 = vadd.f32 0.0, %v613
    %v615 = vpop.f32.mrb[0].mxu0
    %616 = vdwg.mxu0
    %617 = vrot.lane.b32.xlu0 %v157, 96
    %v618 = vpop.permute.xlu0 %617
    %v619 = vsel %vm162, %v157, 0
    %v621 = vsel %vm162, %v618, 0
    %623 = vmatprep.subr.mxu0 0.0
    %624 = vmatpush1.xpose.msra.mxu0 %v621
    %625 = vmatprep.subr.mxu0 0.0
    %626 = vmatpush1.xpose.msra.mxu0 0.0
    %627 = vmatprep.subr.mxu0 0.0
    %628 = vmatpush1.xpose.msra.mxu0 0.0
    %629 = vmatprep.subr.mxu0 0.0
    %630 = vmatpush1.xpose.msra.mxu0 0.0
    %631 = vmatprep.subr.mxu0 0.0
    %632 = vmatpush1.xpose.msra.mxu0 0.0
    %633 = vmatprep.subr.mxu0 0.0
    %634 = vmatpush1.xpose.msra.mxu0 0.0
    %635 = vmatprep.subr.mxu0 0.0
    %636 = vmatpush1.xpose.msra.mxu0 0.0
    %637 = vmatprep.subr.mxu0 0.0
    %638 = vmatpush1.xpose.msra.mxu0 0.0
    %639 = vmatprep.subr.mxu0 0.0
    %640 = vmatpush1.xpose.msra.mxu0 0.0
    %641 = vmatprep.subr.mxu0 0.0
    %642 = vmatpush1.xpose.msra.mxu0 0.0
    %643 = vmatprep.subr.mxu0 0.0
    %644 = vmatpush1.xpose.msra.mxu0 0.0
    %645 = vmatprep.subr.mxu0 0.0
    %646 = vmatpush1.xpose.msra.mxu0 0.0
    %647 = vmatprep.subr.mxu0 0.0
    %648 = vmatpush1.xpose.msra.mxu0 0.0
    %649 = vmatprep.subr.mxu0 0.0
    %650 = vmatpush1.xpose.msra.mxu0 0.0
    %651 = vmatprep.subr.mxu0 0.0
    %652 = vmatpush1.xpose.msra.mxu0 0.0
    %653 = vmatprep.subr.mxu0 0.0
    %654 = vmatpush1.xpose.msra.mxu0 0.0
    %655 = vmatprep.subr.mxu0 0.0
    %656 = vmatpush1.xpose.msra.mxu0 0.0
    %657 = vmatprep.subr.mxu0 0.0
    %658 = vmatpush1.xpose.msra.mxu0 0.0
    %659 = vmatprep.subr.mxu0 0.0
    %660 = vmatpush1.xpose.msra.mxu0 0.0
    %661 = vmatprep.subr.mxu0 0.0
    %662 = vmatpush1.xpose.msra.mxu0 0.0
    %663 = vmatprep.subr.mxu0 0.0
    %664 = vmatpush1.xpose.msra.mxu0 0.0
    %665 = vmatprep.subr.mxu0 0.0
    %666 = vmatpush1.xpose.msra.mxu0 0.0
    %667 = vmatprep.subr.mxu0 0.0
    %668 = vmatpush1.xpose.msra.mxu0 0.0
    %669 = vmatprep.subr.mxu0 0.0
    %670 = vmatpush1.xpose.msra.mxu0 0.0
    %671 = vmatprep.subr.mxu0 0.0
    %672 = vmatpush1.xpose.msra.mxu0 0.0
    %673 = vmatprep.subr.mxu0 0.0
    %674 = vmatpush1.xpose.msra.mxu0 0.0
    %675 = vmatprep.subr.mxu0 0.0
    %676 = vmatpush1.xpose.msra.mxu0 0.0
    %677 = vmatprep.subr.mxu0 0.0
    %678 = vmatpush1.xpose.msra.mxu0 0.0
    %679 = vmatprep.subr.mxu0 0.0
    %680 = vmatpush1.xpose.msra.mxu0 0.0
    %681 = vmatprep.subr.mxu0 0.0
    %682 = vmatpush1.xpose.msra.mxu0 0.0
    %683 = vmatprep.subr.mxu0 0.0
    %684 = vmatpush1.xpose.msra.mxu0 0.0
    %685 = vmatprep.subr.mxu0 0.0
    %686 = vmatpush1.xpose.msra.mxu0 0.0
    %687 = vmatprep.mubr.f32.mxu0 0.0
    %688 = vmatmul.mubr.f32.gmra.mrb[0].mxu0 %v619
    %v689 = vpop.f32.mrb[0].mxu0
    %v690 = vadd.f32 0.0, %v689
    %v691 = vpop.f32.mrb[0].mxu0
    %692 = vdwg.mxu0
    %693 = vrot.lane.b32.xlu0 %v159, 96
    %v694 = vpop.permute.xlu0 %693
    %v695 = vsel %vm162, %v159, 0
    %v697 = vsel %vm162, %v694, 0
    %699 = vmatprep.subr.mxu0 0.0
    %700 = vmatpush1.xpose.msra.mxu0 %v697
    %701 = vmatprep.subr.mxu0 0.0
    %702 = vmatpush1.xpose.msra.mxu0 0.0
    %703 = vmatprep.subr.mxu0 0.0
    %704 = vmatpush1.xpose.msra.mxu0 0.0
    %705 = vmatprep.subr.mxu0 0.0
    %706 = vmatpush1.xpose.msra.mxu0 0.0
    %707 = vmatprep.subr.mxu0 0.0
    %708 = vmatpush1.xpose.msra.mxu0 0.0
    %709 = vmatprep.subr.mxu0 0.0
    %710 = vmatpush1.xpose.msra.mxu0 0.0
    %711 = vmatprep.subr.mxu0 0.0
    %712 = vmatpush1.xpose.msra.mxu0 0.0
    %713 = vmatprep.subr.mxu0 0.0
    %714 = vmatpush1.xpose.msra.mxu0 0.0
    %715 = vmatprep.subr.mxu0 0.0
    %716 = vmatpush1.xpose.msra.mxu0 0.0
    %717 = vmatprep.subr.mxu0 0.0
    %718 = vmatpush1.xpose.msra.mxu0 0.0
    %719 = vmatprep.subr.mxu0 0.0
    %720 = vmatpush1.xpose.msra.mxu0 0.0
    %721 = vmatprep.subr.mxu0 0.0
    %722 = vmatpush1.xpose.msra.mxu0 0.0
    %723 = vmatprep.subr.mxu0 0.0
    %724 = vmatpush1.xpose.msra.mxu0 0.0
    %725 = vmatprep.subr.mxu0 0.0
    %726 = vmatpush1.xpose.msra.mxu0 0.0
    %727 = vmatprep.subr.mxu0 0.0
    %728 = vmatpush1.xpose.msra.mxu0 0.0
    %729 = vmatprep.subr.mxu0 0.0
    %730 = vmatpush1.xpose.msra.mxu0 0.0
    %731 = vmatprep.subr.mxu0 0.0
    %732 = vmatpush1.xpose.msra.mxu0 0.0
    %733 = vmatprep.subr.mxu0 0.0
    %734 = vmatpush1.xpose.msra.mxu0 0.0
    %735 = vmatprep.subr.mxu0 0.0
    %736 = vmatpush1.xpose.msra.mxu0 0.0
    %737 = vmatprep.subr.mxu0 0.0
    %738 = vmatpush1.xpose.msra.mxu0 0.0
    %739 = vmatprep.subr.mxu0 0.0
    %740 = vmatpush1.xpose.msra.mxu0 0.0
    %741 = vmatprep.subr.mxu0 0.0
    %742 = vmatpush1.xpose.msra.mxu0 0.0
    %743 = vmatprep.subr.mxu0 0.0
    %744 = vmatpush1.xpose.msra.mxu0 0.0
    %745 = vmatprep.subr.mxu0 0.0
    %746 = vmatpush1.xpose.msra.mxu0 0.0
    %747 = vmatprep.subr.mxu0 0.0
    %748 = vmatpush1.xpose.msra.mxu0 0.0
    %749 = vmatprep.subr.mxu0 0.0
    %750 = vmatpush1.xpose.msra.mxu0 0.0
    %751 = vmatprep.subr.mxu0 0.0
    %752 = vmatpush1.xpose.msra.mxu0 0.0
    %753 = vmatprep.subr.mxu0 0.0
    %754 = vmatpush1.xpose.msra.mxu0 0.0
    %755 = vmatprep.subr.mxu0 0.0
    %756 = vmatpush1.xpose.msra.mxu0 0.0
    %757 = vmatprep.subr.mxu0 0.0
    %758 = vmatpush1.xpose.msra.mxu0 0.0
    %759 = vmatprep.subr.mxu0 0.0
    %760 = vmatpush1.xpose.msra.mxu0 0.0
    %761 = vmatprep.subr.mxu0 0.0
    %762 = vmatpush1.xpose.msra.mxu0 0.0
    %763 = vmatprep.mubr.f32.mxu0 0.0
    %764 = vmatmul.mubr.f32.gmra.mrb[0].mxu0 %v695
    %v765 = vpop.f32.mrb[0].mxu0
    %v766 = vadd.f32 0.0, %v765
    %v767 = vpop.f32.mrb[0].mxu0
    %768 = vdwg.mxu0
    %v769 = vmul.f32 %v234, 0.35355338
    %v770 = vmul.f32 %v310, 0.35355338
    %v771 = vmul.f32 %v386, 0.35355338
    %v772 = vmul.f32 %v462, 0.35355338
    %v773 = vmul.f32 %v538, 0.35355338
    %v774 = vmul.f32 %v614, 0.35355338
    %v775 = vmul.f32 %v690, 0.35355338
    %v776 = vmul.f32 %v766, 0.35355338
    %v777 = vadd.f32 %v769, %v52
    %v778 = vadd.f32 %v770, %v52
    %v779 = vadd.f32 %v771, %v52
    %v780 = vadd.f32 %v772, %v52
    %v781 = vadd.f32 %v773, %v52
    %v782 = vadd.f32 %v774, %v52
    %v783 = vadd.f32 %v775, %v52
    %v784 = vadd.f32 %v776, %v52
    %v785 = vsel %vm162, %v777, -inf
    %786 = vmax.xlane.f32.xlu0 %v785
    %v787 = vpop.xlane.xlu0 %786
    %v788 = vsel %vm162, %v778, -inf
    %789 = vmax.xlane.f32.xlu0 %v788
    %v790 = vpop.xlane.xlu0 %789
    %v791 = vsel %vm162, %v779, -inf
    %792 = vmax.xlane.f32.xlu0 %v791
    %v793 = vpop.xlane.xlu0 %792
    %v794 = vsel %vm162, %v780, -inf
    %795 = vmax.xlane.f32.xlu0 %v794
    %v796 = vpop.xlane.xlu0 %795
    %v797 = vsel %vm162, %v781, -inf
    %798 = vmax.xlane.f32.xlu0 %v797
    %v799 = vpop.xlane.xlu0 %798
    %v800 = vsel %vm162, %v782, -inf
    %801 = vmax.xlane.f32.xlu0 %v800
    %v802 = vpop.xlane.xlu0 %801
    %v803 = vsel %vm162, %v783, -inf
    %804 = vmax.xlane.f32.xlu0 %v803
    %v805 = vpop.xlane.xlu0 %804
    %v806 = vsel %vm162, %v784, -inf
    %807 = vmax.xlane.f32.xlu0 %v806
    %v808 = vpop.xlane.xlu0 %807
    %v809 = vsub.f32 %v777, %v787
    %v810 = vsub.f32 %v778, %v790
    %v811 = vsub.f32 %v779, %v793
    %v812 = vsub.f32 %v780, %v796
    %v813 = vsub.f32 %v781, %v799
    %v814 = vsub.f32 %v782, %v802
    %v815 = vsub.f32 %v783, %v805
    %v816 = vsub.f32 %v784, %v808
    %v817 = vmul.f32 %v809, 1.442695
    %v818 = vpow.pop %v817
    %v819 = vmul.f32 %v810, 1.442695
    %v820 = vpow.pop %v819
    %v821 = vmul.f32 %v811, 1.442695
    %v822 = vpow.pop %v821
    %v823 = vmul.f32 %v812, 1.442695
    %v824 = vpow.pop %v823
    %v825 = vmul.f32 %v813, 1.442695
    %v826 = vpow.pop %v825
    %v827 = vmul.f32 %v814, 1.442695
    %v828 = vpow.pop %v827
    %v829 = vmul.f32 %v815, 1.442695
    %v830 = vpow.pop %v829
    %v831 = vmul.f32 %v816, 1.442695
    %v832 = vpow.pop %v831
    %v833 = vsel %vm162, %v818, 0.0
    %834 = vadd.xlane.f32.xlu0 %v833
    %v835 = vpop.xlane.xlu0 %834
    %v836 = vsel %vm162, %v820, 0.0
    %837 = vadd.xlane.f32.xlu0 %v836
    %v838 = vpop.xlane.xlu0 %837
    %v839 = vsel %vm162, %v822, 0.0
    %840 = vadd.xlane.f32.xlu0 %v839
    %v841 = vpop.xlane.xlu0 %840
    %v842 = vsel %vm162, %v824, 0.0
    %843 = vadd.xlane.f32.xlu0 %v842
    %v844 = vpop.xlane.xlu0 %843
    %v845 = vsel %vm162, %v826, 0.0
    %846 = vadd.xlane.f32.xlu0 %v845
    %v847 = vpop.xlane.xlu0 %846
    %v848 = vsel %vm162, %v828, 0.0
    %849 = vadd.xlane.f32.xlu0 %v848
    %v850 = vpop.xlane.xlu0 %849
    %v851 = vsel %vm162, %v830, 0.0
    %852 = vadd.xlane.f32.xlu0 %v851
    %v853 = vpop.xlane.xlu0 %852
    %v854 = vsel %vm162, %v832, 0.0
    %855 = vadd.xlane.f32.xlu0 %v854
    %v856 = vpop.xlane.xlu0 %855
    %v857 = vrcp.pop %v835
    %v858 = vrcp.pop %v838
    %v859 = vrcp.pop %v841
    %v860 = vrcp.pop %v844
    %v861 = vrcp.pop %v847
    %v862 = vrcp.pop %v850
    %v863 = vrcp.pop %v853
    %v864 = vrcp.pop %v856
    %v865 = vmul.f32 %v835, %v857
    %v866 = vmul.f32 %v838, %v858
    %v867 = vmul.f32 %v841, %v859
    %v868 = vmul.f32 %v844, %v860
    %v869 = vmul.f32 %v847, %v861
    %v870 = vmul.f32 %v850, %v862
    %v871 = vmul.f32 %v853, %v863
    %v872 = vmul.f32 %v856, %v864
    %v873 = vsub.f32 2.0, %v865
    %v874 = vsub.f32 2.0, %v866
    %v875 = vsub.f32 2.0, %v867
    %v876 = vsub.f32 2.0, %v868
    %v877 = vsub.f32 2.0, %v869
    %v878 = vsub.f32 2.0, %v870
    %v879 = vsub.f32 2.0, %v871
    %v880 = vsub.f32 2.0, %v872
    %v881 = vmul.f32 %v857, %v873
    %v882 = vmul.f32 %v858, %v874
    %v883 = vmul.f32 %v859, %v875
    %v884 = vmul.f32 %v860, %v876
    %v885 = vmul.f32 %v861, %v877
    %v886 = vmul.f32 %v862, %v878
    %v887 = vmul.f32 %v863, %v879
    %v888 = vmul.f32 %v864, %v880
    %v889 = vmul.f32 %v818, %v881
    %v890 = vmul.f32 %v820, %v882
    %v891 = vmul.f32 %v822, %v883
    %v892 = vmul.f32 %v824, %v884
    %v893 = vmul.f32 %v826, %v885
    %v894 = vmul.f32 %v828, %v886
    %v895 = vmul.f32 %v830, %v887
    %v896 = vmul.f32 %v832, %v888
    %897 = vrot.lane.b32.xlu0 %v138, 64
    %v898 = vpop.permute.xlu0 %897
    %v901 = vsel %vm162, %v889, 0
    %903 = vmatprep.subr.mxu0 0.0
    %904 = vmatpush1.msra.mxu0 %v898
    %905 = vmatprep.subr.mxu0 0.0
    %906 = vmatpush1.msra.mxu0 0.0
    %907 = vmatprep.subr.mxu0 0.0
    %908 = vmatpush1.msra.mxu0 0.0
    %909 = vmatprep.subr.mxu0 0.0
    %910 = vmatpush1.msra.mxu0 0.0
    %911 = vmatprep.subr.mxu0 0.0
    %912 = vmatpush1.msra.mxu0 0.0
    %913 = vmatprep.subr.mxu0 0.0
    %914 = vmatpush1.msra.mxu0 0.0
    %915 = vmatprep.subr.mxu0 0.0
    %916 = vmatpush1.msra.mxu0 0.0
    %917 = vmatprep.subr.mxu0 0.0
    %918 = vmatpush1.msra.mxu0 0.0
    %919 = vmatprep.subr.mxu0 0.0
    %920 = vmatpush1.msra.mxu0 0.0
    %921 = vmatprep.subr.mxu0 0.0
    %922 = vmatpush1.msra.mxu0 0.0
    %923 = vmatprep.subr.mxu0 0.0
    %924 = vmatpush1.msra.mxu0 0.0
    %925 = vmatprep.subr.mxu0 0.0
    %926 = vmatpush1.msra.mxu0 0.0
    %927 = vmatprep.subr.mxu0 0.0
    %928 = vmatpush1.msra.mxu0 0.0
    %929 = vmatprep.subr.mxu0 0.0
    %930 = vmatpush1.msra.mxu0 0.0
    %931 = vmatprep.subr.mxu0 0.0
    %932 = vmatpush1.msra.mxu0 0.0
    %933 = vmatprep.subr.mxu0 0.0
    %934 = vmatpush1.msra.mxu0 0.0
    %935 = vmatprep.subr.mxu0 0.0
    %936 = vmatpush1.msra.mxu0 0.0
    %937 = vmatprep.subr.mxu0 0.0
    %938 = vmatpush1.msra.mxu0 0.0
    %939 = vmatprep.subr.mxu0 0.0
    %940 = vmatpush1.msra.mxu0 0.0
    %941 = vmatprep.subr.mxu0 0.0
    %942 = vmatpush1.msra.mxu0 0.0
    %943 = vmatprep.subr.mxu0 0.0
    %944 = vmatpush1.msra.mxu0 0.0
    %945 = vmatprep.subr.mxu0 0.0
    %946 = vmatpush1.msra.mxu0 0.0
    %947 = vmatprep.subr.mxu0 0.0
    %948 = vmatpush1.msra.mxu0 0.0
    %949 = vmatprep.subr.mxu0 0.0
    %950 = vmatpush1.msra.mxu0 0.0
    %951 = vmatprep.subr.mxu0 0.0
    %952 = vmatpush1.msra.mxu0 0.0
    %953 = vmatprep.subr.mxu0 0.0
    %954 = vmatpush1.msra.mxu0 0.0
    %955 = vmatprep.subr.mxu0 0.0
    %956 = vmatpush1.msra.mxu0 0.0
    %957 = vmatprep.subr.mxu0 0.0
    %958 = vmatpush1.msra.mxu0 0.0
    %959 = vmatprep.subr.mxu0 0.0
    %960 = vmatpush1.msra.mxu0 0.0
    %961 = vmatprep.subr.mxu0 0.0
    %962 = vmatpush1.msra.mxu0 0.0
    %963 = vmatprep.subr.mxu0 0.0
    %964 = vmatpush1.msra.mxu0 0.0
    %965 = vmatprep.subr.mxu0 0.0
    %966 = vmatpush1.msra.mxu0 0.0
    %967 = vmatprep.mubr.f32.mxu0 0.0
    %968 = vmatmul.mubr.f32.gmra.mrb[0].mxu0 %v901
    %v969 = vpop.f32.mrb[0].mxu0
    %v970 = vadd.f32 0.0, %v969
    %v971 = vpop.f32.mrb[0].mxu0
    %972 = vdwg.mxu0
    %973 = vrot.lane.b32.xlu0 %v148, 64
    %v974 = vpop.permute.xlu0 %973
    %v977 = vsel %vm162, %v890, 0
    %979 = vmatprep.subr.mxu0 0.0
    %980 = vmatpush1.msra.mxu0 %v974
    %981 = vmatprep.subr.mxu0 0.0
    %982 = vmatpush1.msra.mxu0 0.0
    %983 = vmatprep.subr.mxu0 0.0
    %984 = vmatpush1.msra.mxu0 0.0
    %985 = vmatprep.subr.mxu0 0.0
    %986 = vmatpush1.msra.mxu0 0.0
    %987 = vmatprep.subr.mxu0 0.0
    %988 = vmatpush1.msra.mxu0 0.0
    %989 = vmatprep.subr.mxu0 0.0
    %990 = vmatpush1.msra.mxu0 0.0
    %991 = vmatprep.subr.mxu0 0.0
    %992 = vmatpush1.msra.mxu0 0.0
    %993 = vmatprep.subr.mxu0 0.0
    %994 = vmatpush1.msra.mxu0 0.0
    %995 = vmatprep.subr.mxu0 0.0
    %996 = vmatpush1.msra.mxu0 0.0
    %997 = vmatprep.subr.mxu0 0.0
    %998 = vmatpush1.msra.mxu0 0.0
    %999 = vmatprep.subr.mxu0 0.0
    %1000 = vmatpush1.msra.mxu0 0.0
    %1001 = vmatprep.subr.mxu0 0.0
    %1002 = vmatpush1.msra.mxu0 0.0
    %1003 = vmatprep.subr.mxu0 0.0
    %1004 = vmatpush1.msra.mxu0 0.0
    %1005 = vmatprep.subr.mxu0 0.0
    %1006 = vmatpush1.msra.mxu0 0.0
    %1007 = vmatprep.subr.mxu0 0.0
    %1008 = vmatpush1.msra.mxu0 0.0
    %1009 = vmatprep.subr.mxu0 0.0
    %1010 = vmatpush1.msra.mxu0 0.0
    %1011 = vmatprep.subr.mxu0 0.0
    %1012 = vmatpush1.msra.mxu0 0.0
    %1013 = vmatprep.subr.mxu0 0.0
    %1014 = vmatpush1.msra.mxu0 0.0
    %1015 = vmatprep.subr.mxu0 0.0
    %1016 = vmatpush1.msra.mxu0 0.0
    %1017 = vmatprep.subr.mxu0 0.0
    %1018 = vmatpush1.msra.mxu0 0.0
    %1019 = vmatprep.subr.mxu0 0.0
    %1020 = vmatpush1.msra.mxu0 0.0
    %1021 = vmatprep.subr.mxu0 0.0
    %1022 = vmatpush1.msra.mxu0 0.0
    %1023 = vmatprep.subr.mxu0 0.0
    %1024 = vmatpush1.msra.mxu0 0.0
    %1025 = vmatprep.subr.mxu0 0.0
    %1026 = vmatpush1.msra.mxu0 0.0
    %1027 = vmatprep.subr.mxu0 0.0
    %1028 = vmatpush1.msra.mxu0 0.0
    %1029 = vmatprep.subr.mxu0 0.0
    %1030 = vmatpush1.msra.mxu0 0.0
    %1031 = vmatprep.subr.mxu0 0.0
    %1032 = vmatpush1.msra.mxu0 0.0
    %1033 = vmatprep.subr.mxu0 0.0
    %1034 = vmatpush1.msra.mxu0 0.0
    %1035 = vmatprep.subr.mxu0 0.0
    %1036 = vmatpush1.msra.mxu0 0.0
    %1037 = vmatprep.subr.mxu0 0.0
    %1038 = vmatpush1.msra.mxu0 0.0
    %1039 = vmatprep.subr.mxu0 0.0
    %1040 = vmatpush1.msra.mxu0 0.0
    %1041 = vmatprep.subr.mxu0 0.0
    %1042 = vmatpush1.msra.mxu0 0.0
    %1043 = vmatprep.mubr.f32.mxu0 0.0
    %1044 = vmatmul.mubr.f32.gmra.mrb[0].mxu0 %v977
    %v1045 = vpop.f32.mrb[0].mxu0
    %v1046 = vadd.f32 0.0, %v1045
    %v1047 = vpop.f32.mrb[0].mxu0
    %1048 = vdwg.mxu0
    %1049 = vrot.lane.b32.xlu0 %v150, 64
    %v1050 = vpop.permute.xlu0 %1049
    %v1053 = vsel %vm162, %v891, 0
    %1055 = vmatprep.subr.mxu0 0.0
    %1056 = vmatpush1.msra.mxu0 %v1050
    %1057 = vmatprep.subr.mxu0 0.0
    %1058 = vmatpush1.msra.mxu0 0.0
    %1059 = vmatprep.subr.mxu0 0.0
    %1060 = vmatpush1.msra.mxu0 0.0
    %1061 = vmatprep.subr.mxu0 0.0
    %1062 = vmatpush1.msra.mxu0 0.0
    %1063 = vmatprep.subr.mxu0 0.0
    %1064 = vmatpush1.msra.mxu0 0.0
    %1065 = vmatprep.subr.mxu0 0.0
    %1066 = vmatpush1.msra.mxu0 0.0
    %1067 = vmatprep.subr.mxu0 0.0
    %1068 = vmatpush1.msra.mxu0 0.0
    %1069 = vmatprep.subr.mxu0 0.0
    %1070 = vmatpush1.msra.mxu0 0.0
    %1071 = vmatprep.subr.mxu0 0.0
    %1072 = vmatpush1.msra.mxu0 0.0
    %1073 = vmatprep.subr.mxu0 0.0
    %1074 = vmatpush1.msra.mxu0 0.0
    %1075 = vmatprep.subr.mxu0 0.0
    %1076 = vmatpush1.msra.mxu0 0.0
    %1077 = vmatprep.subr.mxu0 0.0
    %1078 = vmatpush1.msra.mxu0 0.0
    %1079 = vmatprep.subr.mxu0 0.0
    %1080 = vmatpush1.msra.mxu0 0.0
    %1081 = vmatprep.subr.mxu0 0.0
    %1082 = vmatpush1.msra.mxu0 0.0
    %1083 = vmatprep.subr.mxu0 0.0
    %1084 = vmatpush1.msra.mxu0 0.0
    %1085 = vmatprep.subr.mxu0 0.0
    %1086 = vmatpush1.msra.mxu0 0.0
    %1087 = vmatprep.subr.mxu0 0.0
    %1088 = vmatpush1.msra.mxu0 0.0
    %1089 = vmatprep.subr.mxu0 0.0
    %1090 = vmatpush1.msra.mxu0 0.0
    %1091 = vmatprep.subr.mxu0 0.0
    %1092 = vmatpush1.msra.mxu0 0.0
    %1093 = vmatprep.subr.mxu0 0.0
    %1094 = vmatpush1.msra.mxu0 0.0
    %1095 = vmatprep.subr.mxu0 0.0
    %1096 = vmatpush1.msra.mxu0 0.0
    %1097 = vmatprep.subr.mxu0 0.0
    %1098 = vmatpush1.msra.mxu0 0.0
    %1099 = vmatprep.subr.mxu0 0.0
    %1100 = vmatpush1.msra.mxu0 0.0
    %1101 = vmatprep.subr.mxu0 0.0
    %1102 = vmatpush1.msra.mxu0 0.0
    %1103 = vmatprep.subr.mxu0 0.0
    %1104 = vmatpush1.msra.mxu0 0.0
    %1105 = vmatprep.subr.mxu0 0.0
    %1106 = vmatpush1.msra.mxu0 0.0
    %1107 = vmatprep.subr.mxu0 0.0
    %1108 = vmatpush1.msra.mxu0 0.0
    %1109 = vmatprep.subr.mxu0 0.0
    %1110 = vmatpush1.msra.mxu0 0.0
    %1111 = vmatprep.subr.mxu0 0.0
    %1112 = vmatpush1.msra.mxu0 0.0
    %1113 = vmatprep.subr.mxu0 0.0
    %1114 = vmatpush1.msra.mxu0 0.0
    %1115 = vmatprep.subr.mxu0 0.0
    %1116 = vmatpush1.msra.mxu0 0.0
    %1117 = vmatprep.subr.mxu0 0.0
    %1118 = vmatpush1.msra.mxu0 0.0
    %1119 = vmatprep.mubr.f32.mxu0 0.0
    %1120 = vmatmul.mubr.f32.gmra.mrb[0].mxu0 %v1053
    %v1121 = vpop.f32.mrb[0].mxu0
    %v1122 = vadd.f32 0.0, %v1121
    %v1123 = vpop.f32.mrb[0].mxu0
    %1124 = vdwg.mxu0
    %1125 = vrot.lane.b32.xlu0 %v152, 64
    %v1126 = vpop.permute.xlu0 %1125
    %v1129 = vsel %vm162, %v892, 0
    %1131 = vmatprep.subr.mxu0 0.0
    %1132 = vmatpush1.msra.mxu0 %v1126
    %1133 = vmatprep.subr.mxu0 0.0
    %1134 = vmatpush1.msra.mxu0 0.0
    %1135 = vmatprep.subr.mxu0 0.0
    %1136 = vmatpush1.msra.mxu0 0.0
    %1137 = vmatprep.subr.mxu0 0.0
    %1138 = vmatpush1.msra.mxu0 0.0
    %1139 = vmatprep.subr.mxu0 0.0
    %1140 = vmatpush1.msra.mxu0 0.0
    %1141 = vmatprep.subr.mxu0 0.0
    %1142 = vmatpush1.msra.mxu0 0.0
    %1143 = vmatprep.subr.mxu0 0.0
    %1144 = vmatpush1.msra.mxu0 0.0
    %1145 = vmatprep.subr.mxu0 0.0
    %1146 = vmatpush1.msra.mxu0 0.0
    %1147 = vmatprep.subr.mxu0 0.0
    %1148 = vmatpush1.msra.mxu0 0.0
    %1149 = vmatprep.subr.mxu0 0.0
    %1150 = vmatpush1.msra.mxu0 0.0
    %1151 = vmatprep.subr.mxu0 0.0
    %1152 = vmatpush1.msra.mxu0 0.0
    %1153 = vmatprep.subr.mxu0 0.0
    %1154 = vmatpush1.msra.mxu0 0.0
    %1155 = vmatprep.subr.mxu0 0.0
    %1156 = vmatpush1.msra.mxu0 0.0
    %1157 = vmatprep.subr.mxu0 0.0
    %1158 = vmatpush1.msra.mxu0 0.0
    %1159 = vmatprep.subr.mxu0 0.0
    %1160 = vmatpush1.msra.mxu0 0.0
    %1161 = vmatprep.subr.mxu0 0.0
    %1162 = vmatpush1.msra.mxu0 0.0
    %1163 = vmatprep.subr.mxu0 0.0
    %1164 = vmatpush1.msra.mxu0 0.0
    %1165 = vmatprep.subr.mxu0 0.0
    %1166 = vmatpush1.msra.mxu0 0.0
    %1167 = vmatprep.subr.mxu0 0.0
    %1168 = vmatpush1.msra.mxu0 0.0
    %1169 = vmatprep.subr.mxu0 0.0
    %1170 = vmatpush1.msra.mxu0 0.0
    %1171 = vmatprep.subr.mxu0 0.0
    %1172 = vmatpush1.msra.mxu0 0.0
    %1173 = vmatprep.subr.mxu0 0.0
    %1174 = vmatpush1.msra.mxu0 0.0
    %1175 = vmatprep.subr.mxu0 0.0
    %1176 = vmatpush1.msra.mxu0 0.0
    %1177 = vmatprep.subr.mxu0 0.0
    %1178 = vmatpush1.msra.mxu0 0.0
    %1179 = vmatprep.subr.mxu0 0.0
    %1180 = vmatpush1.msra.mxu0 0.0
    %1181 = vmatprep.subr.mxu0 0.0
    %1182 = vmatpush1.msra.mxu0 0.0
    %1183 = vmatprep.subr.mxu0 0.0
    %1184 = vmatpush1.msra.mxu0 0.0
    %1185 = vmatprep.subr.mxu0 0.0
    %1186 = vmatpush1.msra.mxu0 0.0
    %1187 = vmatprep.subr.mxu0 0.0
    %1188 = vmatpush1.msra.mxu0 0.0
    %1189 = vmatprep.subr.mxu0 0.0
    %1190 = vmatpush1.msra.mxu0 0.0
    %1191 = vmatprep.subr.mxu0 0.0
    %1192 = vmatpush1.msra.mxu0 0.0
    %1193 = vmatprep.subr.mxu0 0.0
    %1194 = vmatpush1.msra.mxu0 0.0
    %1195 = vmatprep.mubr.f32.mxu0 0.0
    %1196 = vmatmul.mubr.f32.gmra.mrb[0].mxu0 %v1129
    %v1197 = vpop.f32.mrb[0].mxu0
    %v1198 = vadd.f32 0.0, %v1197
    %v1199 = vpop.f32.mrb[0].mxu0
    %1200 = vdwg.mxu0
    %1201 = vrot.lane.b32.xlu0 %v143, 64
    %v1202 = vpop.permute.xlu0 %1201
    %v1205 = vsel %vm162, %v893, 0
    %1207 = vmatprep.subr.mxu0 0.0
    %1208 = vmatpush1.msra.mxu0 %v1202
    %1209 = vmatprep.subr.mxu0 0.0
    %1210 = vmatpush1.msra.mxu0 0.0
    %1211 = vmatprep.subr.mxu0 0.0
    %1212 = vmatpush1.msra.mxu0 0.0
    %1213 = vmatprep.subr.mxu0 0.0
    %1214 = vmatpush1.msra.mxu0 0.0
    %1215 = vmatprep.subr.mxu0 0.0
    %1216 = vmatpush1.msra.mxu0 0.0
    %1217 = vmatprep.subr.mxu0 0.0
    %1218 = vmatpush1.msra.mxu0 0.0
    %1219 = vmatprep.subr.mxu0 0.0
    %1220 = vmatpush1.msra.mxu0 0.0
    %1221 = vmatprep.subr.mxu0 0.0
    %1222 = vmatpush1.msra.mxu0 0.0
    %1223 = vmatprep.subr.mxu0 0.0
    %1224 = vmatpush1.msra.mxu0 0.0
    %1225 = vmatprep.subr.mxu0 0.0
    %1226 = vmatpush1.msra.mxu0 0.0
    %1227 = vmatprep.subr.mxu0 0.0
    %1228 = vmatpush1.msra.mxu0 0.0
    %1229 = vmatprep.subr.mxu0 0.0
    %1230 = vmatpush1.msra.mxu0 0.0
    %1231 = vmatprep.subr.mxu0 0.0
    %1232 = vmatpush1.msra.mxu0 0.0
    %1233 = vmatprep.subr.mxu0 0.0
    %1234 = vmatpush1.msra.mxu0 0.0
    %1235 = vmatprep.subr.mxu0 0.0
    %1236 = vmatpush1.msra.mxu0 0.0
    %1237 = vmatprep.subr.mxu0 0.0
    %1238 = vmatpush1.msra.mxu0 0.0
    %1239 = vmatprep.subr.mxu0 0.0
    %1240 = vmatpush1.msra.mxu0 0.0
    %1241 = vmatprep.subr.mxu0 0.0
    %1242 = vmatpush1.msra.mxu0 0.0
    %1243 = vmatprep.subr.mxu0 0.0
    %1244 = vmatpush1.msra.mxu0 0.0
    %1245 = vmatprep.subr.mxu0 0.0
    %1246 = vmatpush1.msra.mxu0 0.0
    %1247 = vmatprep.subr.mxu0 0.0
    %1248 = vmatpush1.msra.mxu0 0.0
    %1249 = vmatprep.subr.mxu0 0.0
    %1250 = vmatpush1.msra.mxu0 0.0
    %1251 = vmatprep.subr.mxu0 0.0
    %1252 = vmatpush1.msra.mxu0 0.0
    %1253 = vmatprep.subr.mxu0 0.0
    %1254 = vmatpush1.msra.mxu0 0.0
    %1255 = vmatprep.subr.mxu0 0.0
    %1256 = vmatpush1.msra.mxu0 0.0
    %1257 = vmatprep.subr.mxu0 0.0
    %1258 = vmatpush1.msra.mxu0 0.0
    %1259 = vmatprep.subr.mxu0 0.0
    %1260 = vmatpush1.msra.mxu0 0.0
    %1261 = vmatprep.subr.mxu0 0.0
    %1262 = vmatpush1.msra.mxu0 0.0
    %1263 = vmatprep.subr.mxu0 0.0
    %1264 = vmatpush1.msra.mxu0 0.0
    %1265 = vmatprep.subr.mxu0 0.0
    %1266 = vmatpush1.msra.mxu0 0.0
    %1267 = vmatprep.subr.mxu0 0.0
    %1268 = vmatpush1.msra.mxu0 0.0
    %1269 = vmatprep.subr.mxu0 0.0
    %1270 = vmatpush1.msra.mxu0 0.0
    %1271 = vmatprep.mubr.f32.mxu0 0.0
    %1272 = vmatmul.mubr.f32.gmra.mrb[0].mxu0 %v1205
    %v1273 = vpop.f32.mrb[0].mxu0
    %v1274 = vadd.f32 0.0, %v1273
    %v1275 = vpop.f32.mrb[0].mxu0
    %1276 = vdwg.mxu0
    %1277 = vrot.lane.b32.xlu0 %v155, 64
    %v1278 = vpop.permute.xlu0 %1277
    %v1281 = vsel %vm162, %v894, 0
    %1283 = vmatprep.subr.mxu0 0.0
    %1284 = vmatpush1.msra.mxu0 %v1278
    %1285 = vmatprep.subr.mxu0 0.0
    %1286 = vmatpush1.msra.mxu0 0.0
    %1287 = vmatprep.subr.mxu0 0.0
    %1288 = vmatpush1.msra.mxu0 0.0
    %1289 = vmatprep.subr.mxu0 0.0
    %1290 = vmatpush1.msra.mxu0 0.0
    %1291 = vmatprep.subr.mxu0 0.0
    %1292 = vmatpush1.msra.mxu0 0.0
    %1293 = vmatprep.subr.mxu0 0.0
    %1294 = vmatpush1.msra.mxu0 0.0
    %1295 = vmatprep.subr.mxu0 0.0
    %1296 = vmatpush1.msra.mxu0 0.0
    %1297 = vmatprep.subr.mxu0 0.0
    %1298 = vmatpush1.msra.mxu0 0.0
    %1299 = vmatprep.subr.mxu0 0.0
    %1300 = vmatpush1.msra.mxu0 0.0
    %1301 = vmatprep.subr.mxu0 0.0
    %1302 = vmatpush1.msra.mxu0 0.0
    %1303 = vmatprep.subr.mxu0 0.0
    %1304 = vmatpush1.msra.mxu0 0.0
    %1305 = vmatprep.subr.mxu0 0.0
    %1306 = vmatpush1.msra.mxu0 0.0
    %1307 = vmatprep.subr.mxu0 0.0
    %1308 = vmatpush1.msra.mxu0 0.0
    %1309 = vmatprep.subr.mxu0 0.0
    %1310 = vmatpush1.msra.mxu0 0.0
    %1311 = vmatprep.subr.mxu0 0.0
    %1312 = vmatpush1.msra.mxu0 0.0
    %1313 = vmatprep.subr.mxu0 0.0
    %1314 = vmatpush1.msra.mxu0 0.0
    %1315 = vmatprep.subr.mxu0 0.0
    %1316 = vmatpush1.msra.mxu0 0.0
    %1317 = vmatprep.subr.mxu0 0.0
    %1318 = vmatpush1.msra.mxu0 0.0
    %1319 = vmatprep.subr.mxu0 0.0
    %1320 = vmatpush1.msra.mxu0 0.0
    %1321 = vmatprep.subr.mxu0 0.0
    %1322 = vmatpush1.msra.mxu0 0.0
    %1323 = vmatprep.subr.mxu0 0.0
    %1324 = vmatpush1.msra.mxu0 0.0
    %1325 = vmatprep.subr.mxu0 0.0
    %1326 = vmatpush1.msra.mxu0 0.0
    %1327 = vmatprep.subr.mxu0 0.0
    %1328 = vmatpush1.msra.mxu0 0.0
    %1329 = vmatprep.subr.mxu0 0.0
    %1330 = vmatpush1.msra.mxu0 0.0
    %1331 = vmatprep.subr.mxu0 0.0
    %1332 = vmatpush1.msra.mxu0 0.0
    %1333 = vmatprep.subr.mxu0 0.0
    %1334 = vmatpush1.msra.mxu0 0.0
    %1335 = vmatprep.subr.mxu0 0.0
    %1336 = vmatpush1.msra.mxu0 0.0
    %1337 = vmatprep.subr.mxu0 0.0
    %1338 = vmatpush1.msra.mxu0 0.0
    %1339 = vmatprep.subr.mxu0 0.0
    %1340 = vmatpush1.msra.mxu0 0.0
    %1341 = vmatprep.subr.mxu0 0.0
    %1342 = vmatpush1.msra.mxu0 0.0
    %1343 = vmatprep.subr.mxu0 0.0
    %1344 = vmatpush1.msra.mxu0 0.0
    %1345 = vmatprep.subr.mxu0 0.0
    %1346 = vmatpush1.msra.mxu0 0.0
    %1347 = vmatprep.mubr.f32.mxu0 0.0
    %1348 = vmatmul.mubr.f32.gmra.mrb[0].mxu0 %v1281
    %v1349 = vpop.f32.mrb[0].mxu0
    %v1350 = vadd.f32 0.0, %v1349
    %v1351 = vpop.f32.mrb[0].mxu0
    %1352 = vdwg.mxu0
    %1353 = vrot.lane.b32.xlu0 %v157, 64
    %v1354 = vpop.permute.xlu0 %1353
    %v1357 = vsel %vm162, %v895, 0
    %1359 = vmatprep.subr.mxu0 0.0
    %1360 = vmatpush1.msra.mxu0 %v1354
    %1361 = vmatprep.subr.mxu0 0.0
    %1362 = vmatpush1.msra.mxu0 0.0
    %1363 = vmatprep.subr.mxu0 0.0
    %1364 = vmatpush1.msra.mxu0 0.0
    %1365 = vmatprep.subr.mxu0 0.0
    %1366 = vmatpush1.msra.mxu0 0.0
    %1367 = vmatprep.subr.mxu0 0.0
    %1368 = vmatpush1.msra.mxu0 0.0
    %1369 = vmatprep.subr.mxu0 0.0
    %1370 = vmatpush1.msra.mxu0 0.0
    %1371 = vmatprep.subr.mxu0 0.0
    %1372 = vmatpush1.msra.mxu0 0.0
    %1373 = vmatprep.subr.mxu0 0.0
    %1374 = vmatpush1.msra.mxu0 0.0
    %1375 = vmatprep.subr.mxu0 0.0
    %1376 = vmatpush1.msra.mxu0 0.0
    %1377 = vmatprep.subr.mxu0 0.0
    %1378 = vmatpush1.msra.mxu0 0.0
    %1379 = vmatprep.subr.mxu0 0.0
    %1380 = vmatpush1.msra.mxu0 0.0
    %1381 = vmatprep.subr.mxu0 0.0
    %1382 = vmatpush1.msra.mxu0 0.0
    %1383 = vmatprep.subr.mxu0 0.0
    %1384 = vmatpush1.msra.mxu0 0.0
    %1385 = vmatprep.subr.mxu0 0.0
    %1386 = vmatpush1.msra.mxu0 0.0
    %1387 = vmatprep.subr.mxu0 0.0
    %1388 = vmatpush1.msra.mxu0 0.0
    %1389 = vmatprep.subr.mxu0 0.0
    %1390 = vmatpush1.msra.mxu0 0.0
    %1391 = vmatprep.subr.mxu0 0.0
    %1392 = vmatpush1.msra.mxu0 0.0
    %1393 = vmatprep.subr.mxu0 0.0
    %1394 = vmatpush1.msra.mxu0 0.0
    %1395 = vmatprep.subr.mxu0 0.0
    %1396 = vmatpush1.msra.mxu0 0.0
    %1397 = vmatprep.subr.mxu0 0.0
    %1398 = vmatpush1.msra.mxu0 0.0
    %1399 = vmatprep.subr.mxu0 0.0
    %1400 = vmatpush1.msra.mxu0 0.0
    %1401 = vmatprep.subr.mxu0 0.0
    %1402 = vmatpush1.msra.mxu0 0.0
    %1403 = vmatprep.subr.mxu0 0.0
    %1404 = vmatpush1.msra.mxu0 0.0
    %1405 = vmatprep.subr.mxu0 0.0
    %1406 = vmatpush1.msra.mxu0 0.0
    %1407 = vmatprep.subr.mxu0 0.0
    %1408 = vmatpush1.msra.mxu0 0.0
    %1409 = vmatprep.subr.mxu0 0.0
    %1410 = vmatpush1.msra.mxu0 0.0
    %1411 = vmatprep.subr.mxu0 0.0
    %1412 = vmatpush1.msra.mxu0 0.0
    %1413 = vmatprep.subr.mxu0 0.0
    %1414 = vmatpush1.msra.mxu0 0.0
    %1415 = vmatprep.subr.mxu0 0.0
    %1416 = vmatpush1.msra.mxu0 0.0
    %1417 = vmatprep.subr.mxu0 0.0
    %1418 = vmatpush1.msra.mxu0 0.0
    %1419 = vmatprep.subr.mxu0 0.0
    %1420 = vmatpush1.msra.mxu0 0.0
    %1421 = vmatprep.subr.mxu0 0.0
    %1422 = vmatpush1.msra.mxu0 0.0
    %1423 = vmatprep.mubr.f32.mxu0 0.0
    %1424 = vmatmul.mubr.f32.gmra.mrb[0].mxu0 %v1357
    %v1425 = vpop.f32.mrb[0].mxu0
    %v1426 = vadd.f32 0.0, %v1425
    %v1427 = vpop.f32.mrb[0].mxu0
    %1428 = vdwg.mxu0
    %1429 = vrot.lane.b32.xlu0 %v159, 64
    %v1430 = vpop.permute.xlu0 %1429
    %v1433 = vsel %vm162, %v896, 0
    %1435 = vmatprep.subr.mxu0 0.0
    %1436 = vmatpush1.msra.mxu0 %v1430
    %1437 = vmatprep.subr.mxu0 0.0
    %1438 = vmatpush1.msra.mxu0 0.0
    %1439 = vmatprep.subr.mxu0 0.0
    %1440 = vmatpush1.msra.mxu0 0.0
    %1441 = vmatprep.subr.mxu0 0.0
    %1442 = vmatpush1.msra.mxu0 0.0
    %1443 = vmatprep.subr.mxu0 0.0
    %1444 = vmatpush1.msra.mxu0 0.0
    %1445 = vmatprep.subr.mxu0 0.0
    %1446 = vmatpush1.msra.mxu0 0.0
    %1447 = vmatprep.subr.mxu0 0.0
    %1448 = vmatpush1.msra.mxu0 0.0
    %1449 = vmatprep.subr.mxu0 0.0
    %1450 = vmatpush1.msra.mxu0 0.0
    %1451 = vmatprep.subr.mxu0 0.0
    %1452 = vmatpush1.msra.mxu0 0.0
    %1453 = vmatprep.subr.mxu0 0.0
    %1454 = vmatpush1.msra.mxu0 0.0
    %1455 = vmatprep.subr.mxu0 0.0
    %1456 = vmatpush1.msra.mxu0 0.0
    %1457 = vmatprep.subr.mxu0 0.0
    %1458 = vmatpush1.msra.mxu0 0.0
    %1459 = vmatprep.subr.mxu0 0.0
    %1460 = vmatpush1.msra.mxu0 0.0
    %1461 = vmatprep.subr.mxu0 0.0
    %1462 = vmatpush1.msra.mxu0 0.0
    %1463 = vmatprep.subr.mxu0 0.0
    %1464 = vmatpush1.msra.mxu0 0.0
    %1465 = vmatprep.subr.mxu0 0.0
    %1466 = vmatpush1.msra.mxu0 0.0
    %1467 = vmatprep.subr.mxu0 0.0
    %1468 = vmatpush1.msra.mxu0 0.0
    %1469 = vmatprep.subr.mxu0 0.0
    %1470 = vmatpush1.msra.mxu0 0.0
    %1471 = vmatprep.subr.mxu0 0.0
    %1472 = vmatpush1.msra.mxu0 0.0
    %1473 = vmatprep.subr.mxu0 0.0
    %1474 = vmatpush1.msra.mxu0 0.0
    %1475 = vmatprep.subr.mxu0 0.0
    %1476 = vmatpush1.msra.mxu0 0.0
    %1477 = vmatprep.subr.mxu0 0.0
    %1478 = vmatpush1.msra.mxu0 0.0
    %1479 = vmatprep.subr.mxu0 0.0
    %1480 = vmatpush1.msra.mxu0 0.0
    %1481 = vmatprep.subr.mxu0 0.0
    %1482 = vmatpush1.msra.mxu0 0.0
    %1483 = vmatprep.subr.mxu0 0.0
    %1484 = vmatpush1.msra.mxu0 0.0
    %1485 = vmatprep.subr.mxu0 0.0
    %1486 = vmatpush1.msra.mxu0 0.0
    %1487 = vmatprep.subr.mxu0 0.0
    %1488 = vmatpush1.msra.mxu0 0.0
    %1489 = vmatprep.subr.mxu0 0.0
    %1490 = vmatpush1.msra.mxu0 0.0
    %1491 = vmatprep.subr.mxu0 0.0
    %1492 = vmatpush1.msra.mxu0 0.0
    %1493 = vmatprep.subr.mxu0 0.0
    %1494 = vmatpush1.msra.mxu0 0.0
    %1495 = vmatprep.subr.mxu0 0.0
    %1496 = vmatpush1.msra.mxu0 0.0
    %1497 = vmatprep.subr.mxu0 0.0
    %1498 = vmatpush1.msra.mxu0 0.0
    %1499 = vmatprep.mubr.f32.mxu0 0.0
    %1500 = vmatmul.mubr.f32.gmra.mrb[0].mxu0 %v1433
    %v1501 = vpop.f32.mrb[0].mxu0
    %v1502 = vadd.f32 0.0, %v1501
    %v1503 = vpop.f32.mrb[0].mxu0
    %1504 = vdwg.mxu0
    %1506 = vrot.lane.b32.xlu0 %v1046, 8
    %v1507 = vpop.permute.xlu0 %1506
    %1510 = vrot.lane.b32.xlu0 %v1122, 16
    %v1511 = vpop.permute.xlu0 %1510
    %1514 = vrot.lane.b32.xlu0 %v1198, 24
    %v1515 = vpop.permute.xlu0 %1514
    %v1517 = vsel %vm162, %v970, %v1507
    %vm1518 = vcmask 130048
    %v1519 = vsel %vm1518, %v1517, %v1511
    %vm1520 = vcmask 195584
    %v1521 = vsel %vm1520, %v1519, %v1515
    %1523 = vrot.lane.b32.xlu0 %v1350, 8
    %v1524 = vpop.permute.xlu0 %1523
    %1527 = vrot.lane.b32.xlu0 %v1426, 16
    %v1528 = vpop.permute.xlu0 %1527
    %1531 = vrot.lane.b32.xlu0 %v1502, 24
    %v1532 = vpop.permute.xlu0 %1531
    %v1534 = vsel %vm162, %v1274, %v1524
    %v1535 = vsel %vm1518, %v1534, %v1528
    %v1536 = vsel %vm1520, %v1535, %v1532
    %v1537 = vld [vmem:[%s3] sm:$0xff]
    %v1538 = vld [vmem:[%s3 + $0x8] sm:$0xff]
    %v1539 = vld [vmem:[%s3 + $0x10] sm:$0xff]
    %v1540 = vld [vmem:[%s3 + $0x18] sm:$0xff]
    %v1541 = vld [vmem:[%s4] sm:$0x1]
    %v1543 = vlaneseq
    %v1544 = vshrl.u32 %v1543, 7
    %v1545 = vsub.s32 0, %v1544
    %v1546 = vrot.slane %v1541, %v1545
    %v1549 = vsel %vm64, %v1521, 0
    %v1552 = vsel %vm64, %v1536, 0
    %1554 = vmatprep.subr.mxu0 0.0
    %1555 = vmatpush1.msra.mxu0 %v1537
    %1556 = vmatprep.subr.mxu0 0.0
    %1557 = vmatpush1.msra.mxu0 %v1538
    %1558 = vmatprep.subr.mxu0 0.0
    %1559 = vmatpush1.msra.mxu0 %v1539
    %1560 = vmatprep.subr.mxu0 0.0
    %1561 = vmatpush1.msra.mxu0 %v1540
    %1562 = vmatprep.subr.mxu0 0.0
    %1563 = vmatpush1.msra.mxu0 0.0
    %1564 = vmatprep.subr.mxu0 0.0
    %1565 = vmatpush1.msra.mxu0 0.0
    %1566 = vmatprep.subr.mxu0 0.0
    %1567 = vmatpush1.msra.mxu0 0.0
    %1568 = vmatprep.subr.mxu0 0.0
    %1569 = vmatpush1.msra.mxu0 0.0
    %1570 = vmatprep.subr.mxu0 0.0
    %1571 = vmatpush1.msra.mxu0 0.0
    %1572 = vmatprep.subr.mxu0 0.0
    %1573 = vmatpush1.msra.mxu0 0.0
    %1574 = vmatprep.subr.mxu0 0.0
    %1575 = vmatpush1.msra.mxu0 0.0
    %1576 = vmatprep.subr.mxu0 0.0
    %1577 = vmatpush1.msra.mxu0 0.0
    %1578 = vmatprep.subr.mxu0 0.0
    %1579 = vmatpush1.msra.mxu0 0.0
    %1580 = vmatprep.subr.mxu0 0.0
    %1581 = vmatpush1.msra.mxu0 0.0
    %1582 = vmatprep.subr.mxu0 0.0
    %1583 = vmatpush1.msra.mxu0 0.0
    %1584 = vmatprep.subr.mxu0 0.0
    %1585 = vmatpush1.msra.mxu0 0.0
    %1586 = vmatprep.subr.mxu0 0.0
    %1587 = vmatpush1.msra.mxu0 0.0
    %1588 = vmatprep.subr.mxu0 0.0
    %1589 = vmatpush1.msra.mxu0 0.0
    %1590 = vmatprep.subr.mxu0 0.0
    %1591 = vmatpush1.msra.mxu0 0.0
    %1592 = vmatprep.subr.mxu0 0.0
    %1593 = vmatpush1.msra.mxu0 0.0
    %1594 = vmatprep.subr.mxu0 0.0
    %1595 = vmatpush1.msra.mxu0 0.0
    %1596 = vmatprep.subr.mxu0 0.0
    %1597 = vmatpush1.msra.mxu0 0.0
    %1598 = vmatprep.subr.mxu0 0.0
    %1599 = vmatpush1.msra.mxu0 0.0
    %1600 = vmatprep.subr.mxu0 0.0
    %1601 = vmatpush1.msra.mxu0 0.0
    %1602 = vmatprep.subr.mxu0 0.0
    %1603 = vmatpush1.msra.mxu0 0.0
    %1604 = vmatprep.subr.mxu0 0.0
    %1605 = vmatpush1.msra.mxu0 0.0
    %1606 = vmatprep.subr.mxu0 0.0
    %1607 = vmatpush1.msra.mxu0 0.0
    %1608 = vmatprep.subr.mxu0 0.0
    %1609 = vmatpush1.msra.mxu0 0.0
    %1610 = vmatprep.subr.mxu0 0.0
    %1611 = vmatpush1.msra.mxu0 0.0
    %1612 = vmatprep.subr.mxu0 0.0
    %1613 = vmatpush1.msra.mxu0 0.0
    %1614 = vmatprep.subr.mxu0 0.0
    %1615 = vmatpush1.msra.mxu0 0.0
    %1616 = vmatprep.subr.mxu0 0.0
    %1617 = vmatpush1.msra.mxu0 0.0
    %1618 = vmatprep.mubr.f32.mxu0 0.0
    %1619 = vmatmul.mubr.f32.gmra.mrb[0].mxu0 %v1549
    %v1620 = vpop.f32.mrb[0].mxu0
    %v1621 = vadd.f32 %v1546, %v1620
    %v1622 = vpop.f32.mrb[0].mxu0
    %1623 = vmatprep.mubr.f32.mxu0 0.0
    %1624 = vmatmul.mubr.f32.gmra.mrb[0].mxu0 %v1552
    %v1625 = vpop.f32.mrb[0].mxu0
    %v1626 = vadd.f32 %v1546, %v1625
    %v1627 = vpop.f32.mrb[0].mxu0
    %1628 = vdwg.mxu0
    %v1629 = vadd.f32 %v45, %v1621
    %v1630 = vadd.f32 %v46, %v1626
    %v1631 = vld [vmem:[%s5] sm:$0x1]
    %v1632 = vld [vmem:[%s6] sm:$0x1]
    %v1633 = vsel %vm64, %v1629, 0.0
    %1634 = vadd.xlane.f32.xlu0 %v1633
    %v1635 = vpop.xlane.xlu0 %1634
    %v1636 = vsel %vm64, %v1630, 0.0
    %1637 = vadd.xlane.f32.xlu0 %v1636
    %v1638 = vpop.xlane.xlu0 %1637
    %v1639 = vrcp.pop 32.0
    %v1640 = vmul.f32 %v1635, %v1639
    %v1641 = vmul.f32 %v1638, %v1639
    %v1642 = vsub.f32 %v1629, %v1640
    %v1643 = vsub.f32 %v1630, %v1641
    %v1644 = vmul.f32 %v1642, %v1642
    %v1645 = vmul.f32 %v1643, %v1643
    %v1646 = vsel %vm64, %v1644, 0.0
    %1647 = vadd.xlane.f32.xlu0 %v1646
    %v1648 = vpop.xlane.xlu0 %1647
    %v1649 = vsel %vm64, %v1645, 0.0
    %1650 = vadd.xlane.f32.xlu0 %v1649
    %v1651 = vpop.xlane.xlu0 %1650
    %v1652 = vmul.f32 %v1648, %v1639
    %v1653 = vmul.f32 %v1651, %v1639
    %v1654 = vadd.f32 %v1652, 1e-05
    %v1655 = vadd.f32 %v1653, 1e-05
    %v1656 = vrsqrt.pop %v1654
    %v1657 = vrsqrt.pop %v1655
    %v1658 = vmul.f32 %v1642, %v1656
    %v1659 = vmul.f32 %v1643, %v1657
    %v1661 = vlaneseq
    %v1662 = vshrl.u32 %v1661, 7
    %v1663 = vsub.s32 0, %v1662
    %v1664 = vrot.slane %v1631, %v1663
    %v1666 = vmul.f32 %v1658, %v1664
    %v1667 = vmul.f32 %v1659, %v1664
    %v1669 = vlaneseq
    %v1670 = vshrl.u32 %v1669, 7
    %v1671 = vsub.s32 0, %v1670
    %v1672 = vrot.slane %v1632, %v1671
    %v1674 = vadd.f32 %v1666, %v1672
    %v1675 = vadd.f32 %v1667, %v1672
    %v1676 = vld [vmem:[%s7] sm:$0xff]
    %v1677 = vld [vmem:[%s7 + $0x8] sm:$0xff]
    %v1678 = vld [vmem:[%s7 + $0x10] sm:$0xff]
    %v1679 = vld [vmem:[%s7 + $0x18] sm:$0xff]
    %v1680 = vld [vmem:[%s8] sm:$0x1]
    %v1682 = vlaneseq
    %v1683 = vshrl.u32 %v1682, 7
    %v1684 = vsub.s32 0, %v1683
    %v1685 = vrot.slane %v1680, %v1684
    %v1688 = vsel %vm64, %v1674, 0
    %v1691 = vsel %vm64, %v1675, 0
    %1693 = vmatprep.subr.mxu0 0.0
    %1694 = vmatpush1.msra.mxu0 %v1676
    %1695 = vmatprep.subr.mxu0 0.0
    %1696 = vmatpush1.msra.mxu0 %v1677
    %1697 = vmatprep.subr.mxu0 0.0
    %1698 = vmatpush1.msra.mxu0 %v1678
    %1699 = vmatprep.subr.mxu0 0.0
    %1700 = vmatpush1.msra.mxu0 %v1679
    %1701 = vmatprep.subr.mxu0 0.0
    %1702 = vmatpush1.msra.mxu0 0.0
    %1703 = vmatprep.subr.mxu0 0.0
    %1704 = vmatpush1.msra.mxu0 0.0
    %1705 = vmatprep.subr.mxu0 0.0
    %1706 = vmatpush1.msra.mxu0 0.0
    %1707 = vmatprep.subr.mxu0 0.0
    %1708 = vmatpush1.msra.mxu0 0.0
    %1709 = vmatprep.subr.mxu0 0.0
    %1710 = vmatpush1.msra.mxu0 0.0
    %1711 = vmatprep.subr.mxu0 0.0
    %1712 = vmatpush1.msra.mxu0 0.0
    %1713 = vmatprep.subr.mxu0 0.0
    %1714 = vmatpush1.msra.mxu0 0.0
    %1715 = vmatprep.subr.mxu0 0.0
    %1716 = vmatpush1.msra.mxu0 0.0
    %1717 = vmatprep.subr.mxu0 0.0
    %1718 = vmatpush1.msra.mxu0 0.0
    %1719 = vmatprep.subr.mxu0 0.0
    %1720 = vmatpush1.msra.mxu0 0.0
    %1721 = vmatprep.subr.mxu0 0.0
    %1722 = vmatpush1.msra.mxu0 0.0
    %1723 = vmatprep.subr.mxu0 0.0
    %1724 = vmatpush1.msra.mxu0 0.0
    %1725 = vmatprep.subr.mxu0 0.0
    %1726 = vmatpush1.msra.mxu0 0.0
    %1727 = vmatprep.subr.mxu0 0.0
    %1728 = vmatpush1.msra.mxu0 0.0
    %1729 = vmatprep.subr.mxu0 0.0
    %1730 = vmatpush1.msra.mxu0 0.0
    %1731 = vmatprep.subr.mxu0 0.0
    %1732 = vmatpush1.msra.mxu0 0.0
    %1733 = vmatprep.subr.mxu0 0.0
    %1734 = vmatpush1.msra.mxu0 0.0
    %1735 = vmatprep.subr.mxu0 0.0
    %1736 = vmatpush1.msra.mxu0 0.0
    %1737 = vmatprep.subr.mxu0 0.0
    %1738 = vmatpush1.msra.mxu0 0.0
    %1739 = vmatprep.subr.mxu0 0.0
    %1740 = vmatpush1.msra.mxu0 0.0
    %1741 = vmatprep.subr.mxu0 0.0
    %1742 = vmatpush1.msra.mxu0 0.0
    %1743 = vmatprep.subr.mxu0 0.0
    %1744 = vmatpush1.msra.mxu0 0.0
    %1745 = vmatprep.subr.mxu0 0.0
    %1746 = vmatpush1.msra.mxu0 0.0
    %1747 = vmatprep.subr.mxu0 0.0
    %1748 = vmatpush1.msra.mxu0 0.0
    %1749 = vmatprep.subr.mxu0 0.0
    %1750 = vmatpush1.msra.mxu0 0.0
    %1751 = vmatprep.subr.mxu0 0.0
    %1752 = vmatpush1.msra.mxu0 0.0
    %1753 = vmatprep.subr.mxu0 0.0
    %1754 = vmatpush1.msra.mxu0 0.0
    %1755 = vmatprep.subr.mxu0 0.0
    %1756 = vmatpush1.msra.mxu0 0.0
    %1757 = vmatprep.mubr.f32.mxu0 0.0
    %1758 = vmatmul.mubr.f32.gmra.mrb[0].mxu0 %v1688
    %v1759 = vpop.f32.mrb[0].mxu0
    %v1760 = vadd.f32 %v1685, %v1759
    %v1761 = vpop.f32.mrb[0].mxu0
    %1762 = vmatprep.mubr.f32.mxu0 0.0
    %1763 = vmatmul.mubr.f32.gmra.mrb[0].mxu0 %v1691
    %v1764 = vpop.f32.mrb[0].mxu0
    %v1765 = vadd.f32 %v1685, %v1764
    %v1766 = vpop.f32.mrb[0].mxu0
    %1767 = vdwg.mxu0
    %v1768 = vmul.f32 %v1760, 0.5
    %v1769 = vmul.f32 %v1765, 0.5
    %v1770 = vmul.f32 %v1760, 0.70710677
    %v1771 = vmul.f32 %v1765, 0.70710677
    %v1772 = verf.f32.pop %v1770
    %v1773 = verf.f32.pop %v1771
    %v1774 = vadd.f32 %v1772, 1.0
    %v1775 = vadd.f32 %v1773, 1.0
    %v1776 = vmul.f32 %v1768, %v1774
    %v1777 = vmul.f32 %v1769, %v1775
    %v1778 = vld [vmem:[%s9] sm:$0xff]
    %v1779 = vld [vmem:[%s9 + $0x8] sm:$0xff]
    %v1780 = vld [vmem:[%s9 + $0x10] sm:$0xff]
    %v1781 = vld [vmem:[%s9 + $0x18] sm:$0xff]
    %v1782 = vld [vmem:[%s9 + $0x20] sm:$0xff]
    %v1783 = vld [vmem:[%s9 + $0x28] sm:$0xff]
    %v1784 = vld [vmem:[%s9 + $0x30] sm:$0xff]
    %v1785 = vld [vmem:[%s9 + $0x38] sm:$0xff]
    %v1786 = vld [vmem:[%s9 + $0x40] sm:$0xff]
    %v1787 = vld [vmem:[%s9 + $0x48] sm:$0xff]
    %v1788 = vld [vmem:[%s9 + $0x50] sm:$0xff]
    %v1789 = vld [vmem:[%s9 + $0x58] sm:$0xff]
    %v1790 = vld [vmem:[%s9 + $0x60] sm:$0xff]
    %v1791 = vld [vmem:[%s9 + $0x68] sm:$0xff]
    %v1792 = vld [vmem:[%s9 + $0x70] sm:$0xff]
    %v1793 = vld [vmem:[%s9 + $0x78] sm:$0xff]
    %v1794 = vld [vmem:[%s10] sm:$0x1]
    %v1796 = vlaneseq
    %v1797 = vshrl.u32 %v1796, 7
    %v1798 = vsub.s32 0, %v1797
    %v1799 = vrot.slane %v1794, %v1798
    %1801 = vmatprep.subr.mxu0 0.0
    %1802 = vmatpush1.msra.mxu0 %v1778
    %1803 = vmatprep.subr.mxu0 0.0
    %1804 = vmatpush1.msra.mxu0 %v1779
    %1805 = vmatprep.subr.mxu0 0.0
    %1806 = vmatpush1.msra.mxu0 %v1780
    %1807 = vmatprep.subr.mxu0 0.0
    %1808 = vmatpush1.msra.mxu0 %v1781
    %1809 = vmatprep.subr.mxu0 0.0
    %1810 = vmatpush1.msra.mxu0 %v1782
    %1811 = vmatprep.subr.mxu0 0.0
    %1812 = vmatpush1.msra.mxu0 %v1783
    %1813 = vmatprep.subr.mxu0 0.0
    %1814 = vmatpush1.msra.mxu0 %v1784
    %1815 = vmatprep.subr.mxu0 0.0
    %1816 = vmatpush1.msra.mxu0 %v1785
    %1817 = vmatprep.subr.mxu0 0.0
    %1818 = vmatpush1.msra.mxu0 %v1786
    %1819 = vmatprep.subr.mxu0 0.0
    %1820 = vmatpush1.msra.mxu0 %v1787
    %1821 = vmatprep.subr.mxu0 0.0
    %1822 = vmatpush1.msra.mxu0 %v1788
    %1823 = vmatprep.subr.mxu0 0.0
    %1824 = vmatpush1.msra.mxu0 %v1789
    %1825 = vmatprep.subr.mxu0 0.0
    %1826 = vmatpush1.msra.mxu0 %v1790
    %1827 = vmatprep.subr.mxu0 0.0
    %1828 = vmatpush1.msra.mxu0 %v1791
    %1829 = vmatprep.subr.mxu0 0.0
    %1830 = vmatpush1.msra.mxu0 %v1792
    %1831 = vmatprep.subr.mxu0 0.0
    %1832 = vmatpush1.msra.mxu0 %v1793
    %1833 = vmatprep.subr.mxu0 0.0
    %1834 = vmatpush1.msra.mxu0 0.0
    %1835 = vmatprep.subr.mxu0 0.0
    %1836 = vmatpush1.msra.mxu0 0.0
    %1837 = vmatprep.subr.mxu0 0.0
    %1838 = vmatpush1.msra.mxu0 0.0
    %1839 = vmatprep.subr.mxu0 0.0
    %1840 = vmatpush1.msra.mxu0 0.0
    %1841 = vmatprep.subr.mxu0 0.0
    %1842 = vmatpush1.msra.mxu0 0.0
    %1843 = vmatprep.subr.mxu0 0.0
    %1844 = vmatpush1.msra.mxu0 0.0
    %1845 = vmatprep.subr.mxu0 0.0
    %1846 = vmatpush1.msra.mxu0 0.0
    %1847 = vmatprep.subr.mxu0 0.0
    %1848 = vmatpush1.msra.mxu0 0.0
    %1849 = vmatprep.subr.mxu0 0.0
    %1850 = vmatpush1.msra.mxu0 0.0
    %1851 = vmatprep.subr.mxu0 0.0
    %1852 = vmatpush1.msra.mxu0 0.0
    %1853 = vmatprep.subr.mxu0 0.0
    %1854 = vmatpush1.msra.mxu0 0.0
    %1855 = vmatprep.subr.mxu0 0.0
    %1856 = vmatpush1.msra.mxu0 0.0
    %1857 = vmatprep.subr.mxu0 0.0
    %1858 = vmatpush1.msra.mxu0 0.0
    %1859 = vmatprep.subr.mxu0 0.0
    %1860 = vmatpush1.msra.mxu0 0.0
    %1861 = vmatprep.subr.mxu0 0.0
    %1862 = vmatpush1.msra.mxu0 0.0
    %1863 = vmatprep.subr.mxu0 0.0
    %1864 = vmatpush1.msra.mxu0 0.0
    %1865 = vmatprep.mubr.f32.mxu0 0.0
    %1866 = vmatmul.mubr.f32.gmra.mrb[0].mxu0 %v1776
    %v1867 = vpop.f32.mrb[0].mxu0
    %v1868 = vadd.f32 %v1799, %v1867
    %v1869 = vpop.f32.mrb[0].mxu0
    %1870 = vmatprep.mubr.f32.mxu0 0.0
    %1871 = vmatmul.mubr.f32.gmra.mrb[0].mxu0 %v1777
    %v1872 = vpop.f32.mrb[0].mxu0
    %v1873 = vadd.f32 %v1799, %v1872
    %v1874 = vpop.f32.mrb[0].mxu0
    %1875 = vdwg.mxu0
    %v1876 = vadd.f32 %v1674, %v1868
    %v1877 = vadd.f32 %v1675, %v1873
    %v1878 = vsel %vm64, %v1876, 0.0
    %1879 = vadd.xlane.f32.xlu0 %v1878
    %v1880 = vpop.xlane.xlu0 %1879
    %v1881 = vsel %vm64, %v1877, 0.0
    %1882 = vadd.xlane.f32.xlu0 %v1881
    %v1883 = vpop.xlane.xlu0 %1882
    %v1884 = vmul.f32 %v1880, %v1639
    %v1885 = vmul.f32 %v1883, %v1639
    %v1886 = vsub.f32 %v1876, %v1884
    %v1887 = vsub.f32 %v1877, %v1885
    %v1888 = vmul.f32 %v1886, %v1886
    %v1889 = vmul.f32 %v1887, %v1887
    %v1890 = vsel %vm64, %v1888, 0.0
    %1891 = vadd.xlane.f32.xlu0 %v1890
    %v1892 = vpop.xlane.xlu0 %1891
    %v1893 = vsel %vm64, %v1889, 0.0
    %1894 = vadd.xlane.f32.xlu0 %v1893
    %v1895 = vpop.xlane.xlu0 %1894
    %v1896 = vmul.f32 %v1892, %v1639
    %v1897 = vmul.f32 %v1895, %v1639
    %v1898 = vadd.f32 %v1896, 1e-05
    %v1899 = vadd.f32 %v1897, 1e-05
    %v1900 = vrsqrt.pop %v1898
    %v1901 = vrsqrt.pop %v1899
    %v1902 = vmul.f32 %v1886, %v1900
    %v1903 = vmul.f32 %v1887, %v1901
    %v1904 = vmul.f32 %v1902, %v1664
    %v1905 = vmul.f32 %v1903, %v1664
    %v1906 = vadd.f32 %v1904, %v1672
    %v1907 = vadd.f32 %v1905, %v1672
    %s1908 = scalar_lea.vmem %s1, 32
    %v1909 = vld [vmem:[%s1908] sm:$0xff]
    %v1910 = vld [vmem:[%s1908 + $0x8] sm:$0xff]
    %v1911 = vld [vmem:[%s1908 + $0x10] sm:$0xff]
    %v1912 = vld [vmem:[%s1908 + $0x18] sm:$0xff]
    %s1913 = scalar_lea.vmem %s2, 1
    %v1914 = vld [vmem:[%s1913] sm:$0x1]
    %v1916 = vlaneseq
    %v1917 = vshrl.u32 %v1916, 7
    %v1918 = vsub.s32 0, %v1917
    %v1919 = vrot.slane %v1914, %v1918
    %v1922 = vsel %vm64, %v1906, 0
    %v1925 = vsel %vm64, %v1907, 0
    %1927 = vmatprep.subr.mxu0 0.0
    %1928 = vmatpush1.msra.mxu0 %v1909
    %1929 = vmatprep.subr.mxu0 0.0
    %1930 = vmatpush1.msra.mxu0 %v1910
    %1931 = vmatprep.subr.mxu0 0.0
    %1932 = vmatpush1.msra.mxu0 %v1911
    %1933 = vmatprep.subr.mxu0 0.0
    %1934 = vmatpush1.msra.mxu0 %v1912
    %1935 = vmatprep.subr.mxu0 0.0
    %1936 = vmatpush1.msra.mxu0 0.0
    %1937 = vmatprep.subr.mxu0 0.0
    %1938 = vmatpush1.msra.mxu0 0.0
    %1939 = vmatprep.subr.mxu0 0.0
    %1940 = vmatpush1.msra.mxu0 0.0
    %1941 = vmatprep.subr.mxu0 0.0
    %1942 = vmatpush1.msra.mxu0 0.0
    %1943 = vmatprep.subr.mxu0 0.0
    %1944 = vmatpush1.msra.mxu0 0.0
    %1945 = vmatprep.subr.mxu0 0.0
    %1946 = vmatpush1.msra.mxu0 0.0
    %1947 = vmatprep.subr.mxu0 0.0
    %1948 = vmatpush1.msra.mxu0 0.0
    %1949 = vmatprep.subr.mxu0 0.0
    %1950 = vmatpush1.msra.mxu0 0.0
    %1951 = vmatprep.subr.mxu0 0.0
    %1952 = vmatpush1.msra.mxu0 0.0
    %1953 = vmatprep.subr.mxu0 0.0
    %1954 = vmatpush1.msra.mxu0 0.0
    %1955 = vmatprep.subr.mxu0 0.0
    %1956 = vmatpush1.msra.mxu0 0.0
    %1957 = vmatprep.subr.mxu0 0.0
    %1958 = vmatpush1.msra.mxu0 0.0
    %1959 = vmatprep.subr.mxu0 0.0
    %1960 = vmatpush1.msra.mxu0 0.0
    %1961 = vmatprep.subr.mxu0 0.0
    %1962 = vmatpush1.msra.mxu0 0.0
    %1963 = vmatprep.subr.mxu0 0.0
    %1964 = vmatpush1.msra.mxu0 0.0
    %1965 = vmatprep.subr.mxu0 0.0
    %1966 = vmatpush1.msra.mxu0 0.0
    %1967 = vmatprep.subr.mxu0 0.0
    %1968 = vmatpush1.msra.mxu0 0.0
    %1969 = vmatprep.subr.mxu0 0.0
    %1970 = vmatpush1.msra.mxu0 0.0
    %1971 = vmatprep.subr.mxu0 0.0
    %1972 = vmatpush1.msra.mxu0 0.0
    %1973 = vmatprep.subr.mxu0 0.0
    %1974 = vmatpush1.msra.mxu0 0.0
    %1975 = vmatprep.subr.mxu0 0.0
    %1976 = vmatpush1.msra.mxu0 0.0
    %1977 = vmatprep.subr.mxu0 0.0
    %1978 = vmatpush1.msra.mxu0 0.0
    %1979 = vmatprep.subr.mxu0 0.0
    %1980 = vmatpush1.msra.mxu0 0.0
    %1981 = vmatprep.subr.mxu0 0.0
    %1982 = vmatpush1.msra.mxu0 0.0
    %1983 = vmatprep.subr.mxu0 0.0
    %1984 = vmatpush1.msra.mxu0 0.0
    %1985 = vmatprep.subr.mxu0 0.0
    %1986 = vmatpush1.msra.mxu0 0.0
    %1987 = vmatprep.subr.mxu0 0.0
    %1988 = vmatpush1.msra.mxu0 0.0
    %1989 = vmatprep.subr.mxu0 0.0
    %1990 = vmatpush1.msra.mxu0 0.0
    %1991 = vmatprep.mubr.f32.mxu0 0.0
    %1992 = vmatmul.mubr.f32.gmra.mrb[0].mxu0 %v1922
    %v1993 = vpop.f32.mrb[0].mxu0
    %v1994 = vadd.f32 %v1919, %v1993
    %v1995 = vpop.f32.mrb[0].mxu0
    %1996 = vmatprep.mubr.f32.mxu0 0.0
    %1997 = vmatmul.mubr.f32.gmra.mrb[0].mxu0 %v1925
    %v1998 = vpop.f32.mrb[0].mxu0
    %v1999 = vadd.f32 %v1919, %v1998
    %v2000 = vpop.f32.mrb[0].mxu0
    %2001 = vdwg.mxu0
    %2003 = vrot.lane.b32.xlu0 %v1994, 120
    %v2004 = vpop.permute.xlu0 %2003
    %2005 = vrot.lane.b32.xlu0 %v1994, 112
    %v2006 = vpop.permute.xlu0 %2005
    %2007 = vrot.lane.b32.xlu0 %v1994, 104
    %v2008 = vpop.permute.xlu0 %2007
    %2010 = vrot.lane.b32.xlu0 %v1999, 120
    %v2011 = vpop.permute.xlu0 %2010
    %2012 = vrot.lane.b32.xlu0 %v1999, 112
    %v2013 = vpop.permute.xlu0 %2012
    %2014 = vrot.lane.b32.xlu0 %v1999, 104
    %v2015 = vpop.permute.xlu0 %2014
    %2016 = vrot.lane.b32.xlu0 %v1994, 96
    %v2017 = vpop.permute.xlu0 %2016
    %v2018 = vsel %vm162, %v1994, 0
    %v2020 = vsel %vm162, %v2017, 0
    %2022 = vmatprep.subr.mxu0 0.0
    %2023 = vmatpush1.xpose.msra.mxu0 %v2020
    %2024 = vmatprep.subr.mxu0 0.0
    %2025 = vmatpush1.xpose.msra.mxu0 0.0
    %2026 = vmatprep.subr.mxu0 0.0
    %2027 = vmatpush1.xpose.msra.mxu0 0.0
    %2028 = vmatprep.subr.mxu0 0.0
    %2029 = vmatpush1.xpose.msra.mxu0 0.0
    %2030 = vmatprep.subr.mxu0 0.0
    %2031 = vmatpush1.xpose.msra.mxu0 0.0
    %2032 = vmatprep.subr.mxu0 0.0
    %2033 = vmatpush1.xpose.msra.mxu0 0.0
    %2034 = vmatprep.subr.mxu0 0.0
    %2035 = vmatpush1.xpose.msra.mxu0 0.0
    %2036 = vmatprep.subr.mxu0 0.0
    %2037 = vmatpush1.xpose.msra.mxu0 0.0
    %2038 = vmatprep.subr.mxu0 0.0
    %2039 = vmatpush1.xpose.msra.mxu0 0.0
    %2040 = vmatprep.subr.mxu0 0.0
    %2041 = vmatpush1.xpose.msra.mxu0 0.0
    %2042 = vmatprep.subr.mxu0 0.0
    %2043 = vmatpush1.xpose.msra.mxu0 0.0
    %2044 = vmatprep.subr.mxu0 0.0
    %2045 = vmatpush1.xpose.msra.mxu0 0.0
    %2046 = vmatprep.subr.mxu0 0.0
    %2047 = vmatpush1.xpose.msra.mxu0 0.0
    %2048 = vmatprep.subr.mxu0 0.0
    %2049 = vmatpush1.xpose.msra.mxu0 0.0
    %2050 = vmatprep.subr.mxu0 0.0
    %2051 = vmatpush1.xpose.msra.mxu0 0.0
    %2052 = vmatprep.subr.mxu0 0.0
    %2053 = vmatpush1.xpose.msra.mxu0 0.0
    %2054 = vmatprep.subr.mxu0 0.0
    %2055 = vmatpush1.xpose.msra.mxu0 0.0
    %2056 = vmatprep.subr.mxu0 0.0
    %2057 = vmatpush1.xpose.msra.mxu0 0.0
    %2058 = vmatprep.subr.mxu0 0.0
    %2059 = vmatpush1.xpose.msra.mxu0 0.0
    %2060 = vmatprep.subr.mxu0 0.0
    %2061 = vmatpush1.xpose.msra.mxu0 0.0
    %2062 = vmatprep.subr.mxu0 0.0
    %2063 = vmatpush1.xpose.msra.mxu0 0.0
    %2064 = vmatprep.subr.mxu0 0.0
    %2065 = vmatpush1.xpose.msra.mxu0 0.0
    %2066 = vmatprep.subr.mxu0 0.0
    %2067 = vmatpush1.xpose.msra.mxu0 0.0
    %2068 = vmatprep.subr.mxu0 0.0
    %2069 = vmatpush1.xpose.msra.mxu0 0.0
    %2070 = vmatprep.subr.mxu0 0.0
    %2071 = vmatpush1.xpose.msra.mxu0 0.0
    %2072 = vmatprep.subr.mxu0 0.0
    %2073 = vmatpush1.xpose.msra.mxu0 0.0
    %2074 = vmatprep.subr.mxu0 0.0
    %2075 = vmatpush1.xpose.msra.mxu0 0.0
    %2076 = vmatprep.subr.mxu0 0.0
    %2077 = vmatpush1.xpose.msra.mxu0 0.0
    %2078 = vmatprep.subr.mxu0 0.0
    %2079 = vmatpush1.xpose.msra.mxu0 0.0
    %2080 = vmatprep.subr.mxu0 0.0
    %2081 = vmatpush1.xpose.msra.mxu0 0.0
    %2082 = vmatprep.subr.mxu0 0.0
    %2083 = vmatpush1.xpose.msra.mxu0 0.0
    %2084 = vmatprep.subr.mxu0 0.0
    %2085 = vmatpush1.xpose.msra.mxu0 0.0
    %2086 = vmatprep.mubr.f32.mxu0 0.0
    %2087 = vmatmul.mubr.f32.gmra.mrb[0].mxu0 %v2018
    %v2088 = vpop.f32.mrb[0].mxu0
    %v2089 = vadd.f32 0.0, %v2088
    %v2090 = vpop.f32.mrb[0].mxu0
    %2091 = vdwg.mxu0
    %2092 = vrot.lane.b32.xlu0 %v2004, 96
    %v2093 = vpop.permute.xlu0 %2092
    %v2094 = vsel %vm162, %v2004, 0
    %v2096 = vsel %vm162, %v2093, 0
    %2098 = vmatprep.subr.mxu0 0.0
    %2099 = vmatpush1.xpose.msra.mxu0 %v2096
    %2100 = vmatprep.subr.mxu0 0.0
    %2101 = vmatpush1.xpose.msra.mxu0 0.0
    %2102 = vmatprep.subr.mxu0 0.0
    %2103 = vmatpush1.xpose.msra.mxu0 0.0
    %2104 = vmatprep.subr.mxu0 0.0
    %2105 = vmatpush1.xpose.msra.mxu0 0.0
    %2106 = vmatprep.subr.mxu0 0.0
    %2107 = vmatpush1.xpose.msra.mxu0 0.0
    %2108 = vmatprep.subr.mxu0 0.0
    %2109 = vmatpush1.xpose.msra.mxu0 0.0
    %2110 = vmatprep.subr.mxu0 0.0
    %2111 = vmatpush1.xpose.msra.mxu0 0.0
    %2112 = vmatprep.subr.mxu0 0.0
    %2113 = vmatpush1.xpose.msra.mxu0 0.0
    %2114 = vmatprep.subr.mxu0 0.0
    %2115 = vmatpush1.xpose.msra.mxu0 0.0
    %2116 = vmatprep.subr.mxu0 0.0
    %2117 = vmatpush1.xpose.msra.mxu0 0.0
    %2118 = vmatprep.subr.mxu0 0.0
    %2119 = vmatpush1.xpose.msra.mxu0 0.0
    %2120 = vmatprep.subr.mxu0 0.0
    %2121 = vmatpush1.xpose.msra.mxu0 0.0
    %2122 = vmatprep.subr.mxu0 0.0
    %2123 = vmatpush1.xpose.msra.mxu0 0.0
    %2124 = vmatprep.subr.mxu0 0.0
    %2125 = vmatpush1.xpose.msra.mxu0 0.0
    %2126 = vmatprep.subr.mxu0 0.0
    %2127 = vmatpush1.xpose.msra.mxu0 0.0
    %2128 = vmatprep.subr.mxu0 0.0
    %2129 = vmatpush1.xpose.msra.mxu0 0.0
    %2130 = vmatprep.subr.mxu0 0.0
    %2131 = vmatpush1.xpose.msra.mxu0 0.0
    %2132 = vmatprep.subr.mxu0 0.0
    %2133 = vmatpush1.xpose.msra.mxu0 0.0
    %2134 = vmatprep.subr.mxu0 0.0
    %2135 = vmatpush1.xpose.msra.mxu0 0.0
    %2136 = vmatprep.subr.mxu0 0.0
    %2137 = vmatpush1.xpose.msra.mxu0 0.0
    %2138 = vmatprep.subr.mxu0 0.0
    %2139 = vmatpush1.xpose.msra.mxu0 0.0
    %2140 = vmatprep.subr.mxu0 0.0
    %2141 = vmatpush1.xpose.msra.mxu0 0.0
    %2142 = vmatprep.subr.mxu0 0.0
    %2143 = vmatpush1.xpose.msra.mxu0 0.0
    %2144 = vmatprep.subr.mxu0 0.0
    %2145 = vmatpush1.xpose.msra.mxu0 0.0
    %2146 = vmatprep.subr.mxu0 0.0
    %2147 = vmatpush1.xpose.msra.mxu0 0.0
    %2148 = vmatprep.subr.mxu0 0.0
    %2149 = vmatpush1.xpose.msra.mxu0 0.0
    %2150 = vmatprep.subr.mxu0 0.0
    %2151 = vmatpush1.xpose.msra.mxu0 0.0
    %2152 = vmatprep.subr.mxu0 0.0
    %2153 = vmatpush1.xpose.msra.mxu0 0.0
    %2154 = vmatprep.subr.mxu0 0.0
    %2155 = vmatpush1.xpose.msra.mxu0 0.0
    %2156 = vmatprep.subr.mxu0 0.0
    %2157 = vmatpush1.xpose.msra.mxu0 0.0
    %2158 = vmatprep.subr.mxu0 0.0
    %2159 = vmatpush1.xpose.msra.mxu0 0.0
    %2160 = vmatprep.subr.mxu0 0.0
    %2161 = vmatpush1.xpose.msra.mxu0 0.0
    %2162 = vmatprep.mubr.f32.mxu0 0.0
    %2163 = vmatmul.mubr.f32.gmra.mrb[0].mxu0 %v2094
    %v2164 = vpop.f32.mrb[0].mxu0
    %v2165 = vadd.f32 0.0, %v2164
    %v2166 = vpop.f32.mrb[0].mxu0
    %2167 = vdwg.mxu0
    %2168 = vrot.lane.b32.xlu0 %v2006, 96
    %v2169 = vpop.permute.xlu0 %2168
    %v2170 = vsel %vm162, %v2006, 0
    %v2172 = vsel %vm162, %v2169, 0
    %2174 = vmatprep.subr.mxu0 0.0
    %2175 = vmatpush1.xpose.msra.mxu0 %v2172
    %2176 = vmatprep.subr.mxu0 0.0
    %2177 = vmatpush1.xpose.msra.mxu0 0.0
    %2178 = vmatprep.subr.mxu0 0.0
    %2179 = vmatpush1.xpose.msra.mxu0 0.0
    %2180 = vmatprep.subr.mxu0 0.0
    %2181 = vmatpush1.xpose.msra.mxu0 0.0
    %2182 = vmatprep.subr.mxu0 0.0
    %2183 = vmatpush1.xpose.msra.mxu0 0.0
    %2184 = vmatprep.subr.mxu0 0.0
    %2185 = vmatpush1.xpose.msra.mxu0 0.0
    %2186 = vmatprep.subr.mxu0 0.0
    %2187 = vmatpush1.xpose.msra.mxu0 0.0
    %2188 = vmatprep.subr.mxu0 0.0
    %2189 = vmatpush1.xpose.msra.mxu0 0.0
    %2190 = vmatprep.subr.mxu0 0.0
    %2191 = vmatpush1.xpose.msra.mxu0 0.0
    %2192 = vmatprep.subr.mxu0 0.0
    %2193 = vmatpush1.xpose.msra.mxu0 0.0
    %2194 = vmatprep.subr.mxu0 0.0
    %2195 = vmatpush1.xpose.msra.mxu0 0.0
    %2196 = vmatprep.subr.mxu0 0.0
    %2197 = vmatpush1.xpose.msra.mxu0 0.0
    %2198 = vmatprep.subr.mxu0 0.0
    %2199 = vmatpush1.xpose.msra.mxu0 0.0
    %2200 = vmatprep.subr.mxu0 0.0
    %2201 = vmatpush1.xpose.msra.mxu0 0.0
    %2202 = vmatprep.subr.mxu0 0.0
    %2203 = vmatpush1.xpose.msra.mxu0 0.0
    %2204 = vmatprep.subr.mxu0 0.0
    %2205 = vmatpush1.xpose.msra.mxu0 0.0
    %2206 = vmatprep.subr.mxu0 0.0
    %2207 = vmatpush1.xpose.msra.mxu0 0.0
    %2208 = vmatprep.subr.mxu0 0.0
    %2209 = vmatpush1.xpose.msra.mxu0 0.0
    %2210 = vmatprep.subr.mxu0 0.0
    %2211 = vmatpush1.xpose.msra.mxu0 0.0
    %2212 = vmatprep.subr.mxu0 0.0
    %2213 = vmatpush1.xpose.msra.mxu0 0.0
    %2214 = vmatprep.subr.mxu0 0.0
    %2215 = vmatpush1.xpose.msra.mxu0 0.0
    %2216 = vmatprep.subr.mxu0 0.0
    %2217 = vmatpush1.xpose.msra.mxu0 0.0
    %2218 = vmatprep.subr.mxu0 0.0
    %2219 = vmatpush1.xpose.msra.mxu0 0.0
    %2220 = vmatprep.subr.mxu0 0.0
    %2221 = vmatpush1.xpose.msra.mxu0 0.0
    %2222 = vmatprep.subr.mxu0 0.0
    %2223 = vmatpush1.xpose.msra.mxu0 0.0
    %2224 = vmatprep.subr.mxu0 0.0
    %2225 = vmatpush1.xpose.msra.mxu0 0.0
    %2226 = vmatprep.subr.mxu0 0.0
    %2227 = vmatpush1.xpose.msra.mxu0 0.0
    %2228 = vmatprep.subr.mxu0 0.0
    %2229 = vmatpush1.xpose.msra.mxu0 0.0
    %2230 = vmatprep.subr.mxu0 0.0
    %2231 = vmatpush1.xpose.msra.mxu0 0.0
    %2232 = vmatprep.subr.mxu0 0.0
    %2233 = vmatpush1.xpose.msra.mxu0 0.0
    %2234 = vmatprep.subr.mxu0 0.0
    %2235 = vmatpush1.xpose.msra.mxu0 0.0
    %2236 = vmatprep.subr.mxu0 0.0
    %2237 = vmatpush1.xpose.msra.mxu0 0.0
    %2238 = vmatprep.mubr.f32.mxu0 0.0
    %2239 = vmatmul.mubr.f32.gmra.mrb[0].mxu0 %v2170
    %v2240 = vpop.f32.mrb[0].mxu0
    %v2241 = vadd.f32 0.0, %v2240
    %v2242 = vpop.f32.mrb[0].mxu0
    %2243 = vdwg.mxu0
    %2244 = vrot.lane.b32.xlu0 %v2008, 96
    %v2245 = vpop.permute.xlu0 %2244
    %v2246 = vsel %vm162, %v2008, 0
    %v2248 = vsel %vm162, %v2245, 0
    %2250 = vmatprep.subr.mxu0 0.0
    %2251 = vmatpush1.xpose.msra.mxu0 %v2248
    %2252 = vmatprep.subr.mxu0 0.0
    %2253 = vmatpush1.xpose.msra.mxu0 0.0
    %2254 = vmatprep.subr.mxu0 0.0
    %2255 = vmatpush1.xpose.msra.mxu0 0.0
    %2256 = vmatprep.subr.mxu0 0.0
    %2257 = vmatpush1.xpose.msra.mxu0 0.0
    %2258 = vmatprep.subr.mxu0 0.0
    %2259 = vmatpush1.xpose.msra.mxu0 0.0
    %2260 = vmatprep.subr.mxu0 0.0
    %2261 = vmatpush1.xpose.msra.mxu0 0.0
    %2262 = vmatprep.subr.mxu0 0.0
    %2263 = vmatpush1.xpose.msra.mxu0 0.0
    %2264 = vmatprep.subr.mxu0 0.0
    %2265 = vmatpush1.xpose.msra.mxu0 0.0
    %2266 = vmatprep.subr.mxu0 0.0
    %2267 = vmatpush1.xpose.msra.mxu0 0.0
    %2268 = vmatprep.subr.mxu0 0.0
    %2269 = vmatpush1.xpose.msra.mxu0 0.0
    %2270 = vmatprep.subr.mxu0 0.0
    %2271 = vmatpush1.xpose.msra.mxu0 0.0
    %2272 = vmatprep.subr.mxu0 0.0
    %2273 = vmatpush1.xpose.msra.mxu0 0.0
    %2274 = vmatprep.subr.mxu0 0.0
    %2275 = vmatpush1.xpose.msra.mxu0 0.0
    %2276 = vmatprep.subr.mxu0 0.0
    %2277 = vmatpush1.xpose.msra.mxu0 0.0
    %2278 = vmatprep.subr.mxu0 0.0
    %2279 = vmatpush1.xpose.msra.mxu0 0.0
    %2280 = vmatprep.subr.mxu0 0.0
    %2281 = vmatpush1.xpose.msra.mxu0 0.0
    %2282 = vmatprep.subr.mxu0 0.0
    %2283 = vmatpush1.xpose.msra.mxu0 0.0
    %2284 = vmatprep.subr.mxu0 0.0
    %2285 = vmatpush1.xpose.msra.mxu0 0.0
    %2286 = vmatprep.subr.mxu0 0.0
    %2287 = vmatpush1.xpose.msra.mxu0 0.0
    %2288 = vmatprep.subr.mxu0 0.0
    %2289 = vmatpush1.xpose.msra.mxu0 0.0
    %2290 = vmatprep.subr.mxu0 0.0
    %2291 = vmatpush1.xpose.msra.mxu0 0.0
    %2292 = vmatprep.subr.mxu0 0.0
    %2293 = vmatpush1.xpose.msra.mxu0 0.0
    %2294 = vmatprep.subr.mxu0 0.0
    %2295 = vmatpush1.xpose.msra.mxu0 0.0
    %2296 = vmatprep.subr.mxu0 0.0
    %2297 = vmatpush1.xpose.msra.mxu0 0.0
    %2298 = vmatprep.subr.mxu0 0.0
    %2299 = vmatpush1.xpose.msra.mxu0 0.0
    %2300 = vmatprep.subr.mxu0 0.0
    %2301 = vmatpush1.xpose.msra.mxu0 0.0
    %2302 = vmatprep.subr.mxu0 0.0
    %2303 = vmatpush1.xpose.msra.mxu0 0.0
    %2304 = vmatprep.subr.mxu0 0.0
    %2305 = vmatpush1.xpose.msra.mxu0 0.0
    %2306 = vmatprep.subr.mxu0 0.0
    %2307 = vmatpush1.xpose.msra.mxu0 0.0
    %2308 = vmatprep.subr.mxu0 0.0
    %2309 = vmatpush1.xpose.msra.mxu0 0.0
    %2310 = vmatprep.subr.mxu0 0.0
    %2311 = vmatpush1.xpose.msra.mxu0 0.0
    %2312 = vmatprep.subr.mxu0 0.0
    %2313 = vmatpush1.xpose.msra.mxu0 0.0
    %2314 = vmatprep.mubr.f32.mxu0 0.0
    %2315 = vmatmul.mubr.f32.gmra.mrb[0].mxu0 %v2246
    %v2316 = vpop.f32.mrb[0].mxu0
    %v2317 = vadd.f32 0.0, %v2316
    %v2318 = vpop.f32.mrb[0].mxu0
    %2319 = vdwg.mxu0
    %2320 = vrot.lane.b32.xlu0 %v1999, 96
    %v2321 = vpop.permute.xlu0 %2320
    %v2322 = vsel %vm162, %v1999, 0
    %v2324 = vsel %vm162, %v2321, 0
    %2326 = vmatprep.subr.mxu0 0.0
    %2327 = vmatpush1.xpose.msra.mxu0 %v2324
    %2328 = vmatprep.subr.mxu0 0.0
    %2329 = vmatpush1.xpose.msra.mxu0 0.0
    %2330 = vmatprep.subr.mxu0 0.0
    %2331 = vmatpush1.xpose.msra.mxu0 0.0
    %2332 = vmatprep.subr.mxu0 0.0
    %2333 = vmatpush1.xpose.msra.mxu0 0.0
    %2334 = vmatprep.subr.mxu0 0.0
    %2335 = vmatpush1.xpose.msra.mxu0 0.0
    %2336 = vmatprep.subr.mxu0 0.0
    %2337 = vmatpush1.xpose.msra.mxu0 0.0
    %2338 = vmatprep.subr.mxu0 0.0
    %2339 = vmatpush1.xpose.msra.mxu0 0.0
    %2340 = vmatprep.subr.mxu0 0.0
    %2341 = vmatpush1.xpose.msra.mxu0 0.0
    %2342 = vmatprep.subr.mxu0 0.0
    %2343 = vmatpush1.xpose.msra.mxu0 0.0
    %2344 = vmatprep.subr.mxu0 0.0
    %2345 = vmatpush1.xpose.msra.mxu0 0.0
    %2346 = vmatprep.subr.mxu0 0.0
    %2347 = vmatpush1.xpose.msra.mxu0 0.0
    %2348 = vmatprep.subr.mxu0 0.0
    %2349 = vmatpush1.xpose.msra.mxu0 0.0
    %2350 = vmatprep.subr.mxu0 0.0
    %2351 = vmatpush1.xpose.msra.mxu0 0.0
    %2352 = vmatprep.subr.mxu0 0.0
    %2353 = vmatpush1.xpose.msra.mxu0 0.0
    %2354 = vmatprep.subr.mxu0 0.0
    %2355 = vmatpush1.xpose.msra.mxu0 0.0
    %2356 = vmatprep.subr.mxu0 0.0
    %2357 = vmatpush1.xpose.msra.mxu0 0.0
    %2358 = vmatprep.subr.mxu0 0.0
    %2359 = vmatpush1.xpose.msra.mxu0 0.0
    %2360 = vmatprep.subr.mxu0 0.0
    %2361 = vmatpush1.xpose.msra.mxu0 0.0
    %2362 = vmatprep.subr.mxu0 0.0
    %2363 = vmatpush1.xpose.msra.mxu0 0.0
    %2364 = vmatprep.subr.mxu0 0.0
    %2365 = vmatpush1.xpose.msra.mxu0 0.0
    %2366 = vmatprep.subr.mxu0 0.0
    %2367 = vmatpush1.xpose.msra.mxu0 0.0
    %2368 = vmatprep.subr.mxu0 0.0
    %2369 = vmatpush1.xpose.msra.mxu0 0.0
    %2370 = vmatprep.subr.mxu0 0.0
    %2371 = vmatpush1.xpose.msra.mxu0 0.0
    %2372 = vmatprep.subr.mxu0 0.0
    %2373 = vmatpush1.xpose.msra.mxu0 0.0
    %2374 = vmatprep.subr.mxu0 0.0
    %2375 = vmatpush1.xpose.msra.mxu0 0.0
    %2376 = vmatprep.subr.mxu0 0.0
    %2377 = vmatpush1.xpose.msra.mxu0 0.0
    %2378 = vmatprep.subr.mxu0 0.0
    %2379 = vmatpush1.xpose.msra.mxu0 0.0
    %2380 = vmatprep.subr.mxu0 0.0
    %2381 = vmatpush1.xpose.msra.mxu0 0.0
    %2382 = vmatprep.subr.mxu0 0.0
    %2383 = vmatpush1.xpose.msra.mxu0 0.0
    %2384 = vmatprep.subr.mxu0 0.0
    %2385 = vmatpush1.xpose.msra.mxu0 0.0
    %2386 = vmatprep.subr.mxu0 0.0
    %2387 = vmatpush1.xpose.msra.mxu0 0.0
    %2388 = vmatprep.subr.mxu0 0.0
    %2389 = vmatpush1.xpose.msra.mxu0 0.0
    %2390 = vmatprep.mubr.f32.mxu0 0.0
    %2391 = vmatmul.mubr.f32.gmra.mrb[0].mxu0 %v2322
    %v2392 = vpop.f32.mrb[0].mxu0
    %v2393 = vadd.f32 0.0, %v2392
    %v2394 = vpop.f32.mrb[0].mxu0
    %2395 = vdwg.mxu0
    %2396 = vrot.lane.b32.xlu0 %v2011, 96
    %v2397 = vpop.permute.xlu0 %2396
    %v2398 = vsel %vm162, %v2011, 0
    %v2400 = vsel %vm162, %v2397, 0
    %2402 = vmatprep.subr.mxu0 0.0
    %2403 = vmatpush1.xpose.msra.mxu0 %v2400
    %2404 = vmatprep.subr.mxu0 0.0
    %2405 = vmatpush1.xpose.msra.mxu0 0.0
    %2406 = vmatprep.subr.mxu0 0.0
    %2407 = vmatpush1.xpose.msra.mxu0 0.0
    %2408 = vmatprep.subr.mxu0 0.0
    %2409 = vmatpush1.xpose.msra.mxu0 0.0
    %2410 = vmatprep.subr.mxu0 0.0
    %2411 = vmatpush1.xpose.msra.mxu0 0.0
    %2412 = vmatprep.subr.mxu0 0.0
    %2413 = vmatpush1.xpose.msra.mxu0 0.0
    %2414 = vmatprep.subr.mxu0 0.0
    %2415 = vmatpush1.xpose.msra.mxu0 0.0
    %2416 = vmatprep.subr.mxu0 0.0
    %2417 = vmatpush1.xpose.msra.mxu0 0.0
    %2418 = vmatprep.subr.mxu0 0.0
    %2419 = vmatpush1.xpose.msra.mxu0 0.0
    %2420 = vmatprep.subr.mxu0 0.0
    %2421 = vmatpush1.xpose.msra.mxu0 0.0
    %2422 = vmatprep.subr.mxu0 0.0
    %2423 = vmatpush1.xpose.msra.mxu0 0.0
    %2424 = vmatprep.subr.mxu0 0.0
    %2425 = vmatpush1.xpose.msra.mxu0 0.0
    %2426 = vmatprep.subr.mxu0 0.0
    %2427 = vmatpush1.xpose.msra.mxu0 0.0
    %2428 = vmatprep.subr.mxu0 0.0
    %2429 = vmatpush1.xpose.msra.mxu0 0.0
    %2430 = vmatprep.subr.mxu0 0.0
    %2431 = vmatpush1.xpose.msra.mxu0 0.0
    %2432 = vmatprep.subr.mxu0 0.0
    %2433 = vmatpush1.xpose.msra.mxu0 0.0
    %2434 = vmatprep.subr.mxu0 0.0
    %2435 = vmatpush1.xpose.msra.mxu0 0.0
    %2436 = vmatprep.subr.mxu0 0.0
    %2437 = vmatpush1.xpose.msra.mxu0 0.0
    %2438 = vmatprep.subr.mxu0 0.0
    %2439 = vmatpush1.xpose.msra.mxu0 0.0
    %2440 = vmatprep.subr.mxu0 0.0
    %2441 = vmatpush1.xpose.msra.mxu0 0.0
    %2442 = vmatprep.subr.mxu0 0.0
    %2443 = vmatpush1.xpose.msra.mxu0 0.0
    %2444 = vmatprep.subr.mxu0 0.0
    %2445 = vmatpush1.xpose.msra.mxu0 0.0
    %2446 = vmatprep.subr.mxu0 0.0
    %2447 = vmatpush1.xpose.msra.mxu0 0.0
    %2448 = vmatprep.subr.mxu0 0.0
    %2449 = vmatpush1.xpose.msra.mxu0 0.0
    %2450 = vmatprep.subr.mxu0 0.0
    %2451 = vmatpush1.xpose.msra.mxu0 0.0
    %2452 = vmatprep.subr.mxu0 0.0
    %2453 = vmatpush1.xpose.msra.mxu0 0.0
    %2454 = vmatprep.subr.mxu0 0.0
    %2455 = vmatpush1.xpose.msra.mxu0 0.0
    %2456 = vmatprep.subr.mxu0 0.0
    %2457 = vmatpush1.xpose.msra.mxu0 0.0
    %2458 = vmatprep.subr.mxu0 0.0
    %2459 = vmatpush1.xpose.msra.mxu0 0.0
    %2460 = vmatprep.subr.mxu0 0.0
    %2461 = vmatpush1.xpose.msra.mxu0 0.0
    %2462 = vmatprep.subr.mxu0 0.0
    %2463 = vmatpush1.xpose.msra.mxu0 0.0
    %2464 = vmatprep.subr.mxu0 0.0
    %2465 = vmatpush1.xpose.msra.mxu0 0.0
    %2466 = vmatprep.mubr.f32.mxu0 0.0
    %2467 = vmatmul.mubr.f32.gmra.mrb[0].mxu0 %v2398
    %v2468 = vpop.f32.mrb[0].mxu0
    %v2469 = vadd.f32 0.0, %v2468
    %v2470 = vpop.f32.mrb[0].mxu0
    %2471 = vdwg.mxu0
    %2472 = vrot.lane.b32.xlu0 %v2013, 96
    %v2473 = vpop.permute.xlu0 %2472
    %v2474 = vsel %vm162, %v2013, 0
    %v2476 = vsel %vm162, %v2473, 0
    %2478 = vmatprep.subr.mxu0 0.0
    %2479 = vmatpush1.xpose.msra.mxu0 %v2476
    %2480 = vmatprep.subr.mxu0 0.0
    %2481 = vmatpush1.xpose.msra.mxu0 0.0
    %2482 = vmatprep.subr.mxu0 0.0
    %2483 = vmatpush1.xpose.msra.mxu0 0.0
    %2484 = vmatprep.subr.mxu0 0.0
    %2485 = vmatpush1.xpose.msra.mxu0 0.0
    %2486 = vmatprep.subr.mxu0 0.0
    %2487 = vmatpush1.xpose.msra.mxu0 0.0
    %2488 = vmatprep.subr.mxu0 0.0
    %2489 = vmatpush1.xpose.msra.mxu0 0.0
    %2490 = vmatprep.subr.mxu0 0.0
    %2491 = vmatpush1.xpose.msra.mxu0 0.0
    %2492 = vmatprep.subr.mxu0 0.0
    %2493 = vmatpush1.xpose.msra.mxu0 0.0
    %2494 = vmatprep.subr.mxu0 0.0
    %2495 = vmatpush1.xpose.msra.mxu0 0.0
    %2496 = vmatprep.subr.mxu0 0.0
    %2497 = vmatpush1.xpose.msra.mxu0 0.0
    %2498 = vmatprep.subr.mxu0 0.0
    %2499 = vmatpush1.xpose.msra.mxu0 0.0
    %2500 = vmatprep.subr.mxu0 0.0
    %2501 = vmatpush1.xpose.msra.mxu0 0.0
    %2502 = vmatprep.subr.mxu0 0.0
    %2503 = vmatpush1.xpose.msra.mxu0 0.0
    %2504 = vmatprep.subr.mxu0 0.0
    %2505 = vmatpush1.xpose.msra.mxu0 0.0
    %2506 = vmatprep.subr.mxu0 0.0
    %2507 = vmatpush1.xpose.msra.mxu0 0.0
    %2508 = vmatprep.subr.mxu0 0.0
    %2509 = vmatpush1.xpose.msra.mxu0 0.0
    %2510 = vmatprep.subr.mxu0 0.0
    %2511 = vmatpush1.xpose.msra.mxu0 0.0
    %2512 = vmatprep.subr.mxu0 0.0
    %2513 = vmatpush1.xpose.msra.mxu0 0.0
    %2514 = vmatprep.subr.mxu0 0.0
    %2515 = vmatpush1.xpose.msra.mxu0 0.0
    %2516 = vmatprep.subr.mxu0 0.0
    %2517 = vmatpush1.xpose.msra.mxu0 0.0
    %2518 = vmatprep.subr.mxu0 0.0
    %2519 = vmatpush1.xpose.msra.mxu0 0.0
    %2520 = vmatprep.subr.mxu0 0.0
    %2521 = vmatpush1.xpose.msra.mxu0 0.0
    %2522 = vmatprep.subr.mxu0 0.0
    %2523 = vmatpush1.xpose.msra.mxu0 0.0
    %2524 = vmatprep.subr.mxu0 0.0
    %2525 = vmatpush1.xpose.msra.mxu0 0.0
    %2526 = vmatprep.subr.mxu0 0.0
    %2527 = vmatpush1.xpose.msra.mxu0 0.0
    %2528 = vmatprep.subr.mxu0 0.0
    %2529 = vmatpush1.xpose.msra.mxu0 0.0
    %2530 = vmatprep.subr.mxu0 0.0
    %2531 = vmatpush1.xpose.msra.mxu0 0.0
    %2532 = vmatprep.subr.mxu0 0.0
    %2533 = vmatpush1.xpose.msra.mxu0 0.0
    %2534 = vmatprep.subr.mxu0 0.0
    %2535 = vmatpush1.xpose.msra.mxu0 0.0
    %2536 = vmatprep.subr.mxu0 0.0
    %2537 = vmatpush1.xpose.msra.mxu0 0.0
    %2538 = vmatprep.subr.mxu0 0.0
    %2539 = vmatpush1.xpose.msra.mxu0 0.0
    %2540 = vmatprep.subr.mxu0 0.0
    %2541 = vmatpush1.xpose.msra.mxu0 0.0
    %2542 = vmatprep.mubr.f32.mxu0 0.0
    %2543 = vmatmul.mubr.f32.gmra.mrb[0].mxu0 %v2474
    %v2544 = vpop.f32.mrb[0].mxu0
    %v2545 = vadd.f32 0.0, %v2544
    %v2546 = vpop.f32.mrb[0].mxu0
    %2547 = vdwg.mxu0
    %2548 = vrot.lane.b32.xlu0 %v2015, 96
    %v2549 = vpop.permute.xlu0 %2548
    %v2550 = vsel %vm162, %v2015, 0
    %v2552 = vsel %vm162, %v2549, 0
    %2554 = vmatprep.subr.mxu0 0.0
    %2555 = vmatpush1.xpose.msra.mxu0 %v2552
    %2556 = vmatprep.subr.mxu0 0.0
    %2557 = vmatpush1.xpose.msra.mxu0 0.0
    %2558 = vmatprep.subr.mxu0 0.0
    %2559 = vmatpush1.xpose.msra.mxu0 0.0
    %2560 = vmatprep.subr.mxu0 0.0
    %2561 = vmatpush1.xpose.msra.mxu0 0.0
    %2562 = vmatprep.subr.mxu0 0.0
    %2563 = vmatpush1.xpose.msra.mxu0 0.0
    %2564 = vmatprep.subr.mxu0 0.0
    %2565 = vmatpush1.xpose.msra.mxu0 0.0
    %2566 = vmatprep.subr.mxu0 0.0
    %2567 = vmatpush1.xpose.msra.mxu0 0.0
    %2568 = vmatprep.subr.mxu0 0.0
    %2569 = vmatpush1.xpose.msra.mxu0 0.0
    %2570 = vmatprep.subr.mxu0 0.0
    %2571 = vmatpush1.xpose.msra.mxu0 0.0
    %2572 = vmatprep.subr.mxu0 0.0
    %2573 = vmatpush1.xpose.msra.mxu0 0.0
    %2574 = vmatprep.subr.mxu0 0.0
    %2575 = vmatpush1.xpose.msra.mxu0 0.0
    %2576 = vmatprep.subr.mxu0 0.0
    %2577 = vmatpush1.xpose.msra.mxu0 0.0
    %2578 = vmatprep.subr.mxu0 0.0
    %2579 = vmatpush1.xpose.msra.mxu0 0.0
    %2580 = vmatprep.subr.mxu0 0.0
    %2581 = vmatpush1.xpose.msra.mxu0 0.0
    %2582 = vmatprep.subr.mxu0 0.0
    %2583 = vmatpush1.xpose.msra.mxu0 0.0
    %2584 = vmatprep.subr.mxu0 0.0
    %2585 = vmatpush1.xpose.msra.mxu0 0.0
    %2586 = vmatprep.subr.mxu0 0.0
    %2587 = vmatpush1.xpose.msra.mxu0 0.0
    %2588 = vmatprep.subr.mxu0 0.0
    %2589 = vmatpush1.xpose.msra.mxu0 0.0
    %2590 = vmatprep.subr.mxu0 0.0
    %2591 = vmatpush1.xpose.msra.mxu0 0.0
    %2592 = vmatprep.subr.mxu0 0.0
    %2593 = vmatpush1.xpose.msra.mxu0 0.0
    %2594 = vmatprep.subr.mxu0 0.0
    %2595 = vmatpush1.xpose.msra.mxu0 0.0
    %2596 = vmatprep.subr.mxu0 0.0
    %2597 = vmatpush1.xpose.msra.mxu0 0.0
    %2598 = vmatprep.subr.mxu0 0.0
    %2599 = vmatpush1.xpose.msra.mxu0 0.0
    %2600 = vmatprep.subr.mxu0 0.0
    %2601 = vmatpush1.xpose.msra.mxu0 0.0
    %2602 = vmatprep.subr.mxu0 0.0
    %2603 = vmatpush1.xpose.msra.mxu0 0.0
    %2604 = vmatprep.subr.mxu0 0.0
    %2605 = vmatpush1.xpose.msra.mxu0 0.0
    %2606 = vmatprep.subr.mxu0 0.0
    %2607 = vmatpush1.xpose.msra.mxu0 0.0
    %2608 = vmatprep.subr.mxu0 0.0
    %2609 = vmatpush1.xpose.msra.mxu0 0.0
    %2610 = vmatprep.subr.mxu0 0.0
    %2611 = vmatpush1.xpose.msra.mxu0 0.0
    %2612 = vmatprep.subr.mxu0 0.0
    %2613 = vmatpush1.xpose.msra.mxu0 0.0
    %2614 = vmatprep.subr.mxu0 0.0
    %2615 = vmatpush1.xpose.msra.mxu0 0.0
    %2616 = vmatprep.subr.mxu0 0.0
    %2617 = vmatpush1.xpose.msra.mxu0 0.0
    %2618 = vmatprep.mubr.f32.mxu0 0.0
    %2619 = vmatmul.mubr.f32.gmra.mrb[0].mxu0 %v2550
    %v2620 = vpop.f32.mrb[0].mxu0
    %v2621 = vadd.f32 0.0, %v2620
    %v2622 = vpop.f32.mrb[0].mxu0
    %2623 = vdwg.mxu0
    %v2624 = vmul.f32 %v2089, 0.35355338
    %v2625 = vmul.f32 %v2165, 0.35355338
    %v2626 = vmul.f32 %v2241, 0.35355338
    %v2627 = vmul.f32 %v2317, 0.35355338
    %v2628 = vmul.f32 %v2393, 0.35355338
    %v2629 = vmul.f32 %v2469, 0.35355338
    %v2630 = vmul.f32 %v2545, 0.35355338
    %v2631 = vmul.f32 %v2621, 0.35355338
    %v2632 = vadd.f32 %v2624, %v52
    %v2633 = vadd.f32 %v2625, %v52
    %v2634 = vadd.f32 %v2626, %v52
    %v2635 = vadd.f32 %v2627, %v52
    %v2636 = vadd.f32 %v2628, %v52
    %v2637 = vadd.f32 %v2629, %v52
    %v2638 = vadd.f32 %v2630, %v52
    %v2639 = vadd.f32 %v2631, %v52
    %v2640 = vsel %vm162, %v2632, -inf
    %2641 = vmax.xlane.f32.xlu0 %v2640
    %v2642 = vpop.xlane.xlu0 %2641
    %v2643 = vsel %vm162, %v2633, -inf
    %2644 = vmax.xlane.f32.xlu0 %v2643
    %v2645 = vpop.xlane.xlu0 %2644
    %v2646 = vsel %vm162, %v2634, -inf
    %2647 = vmax.xlane.f32.xlu0 %v2646
    %v2648 = vpop.xlane.xlu0 %2647
    %v2649 = vsel %vm162, %v2635, -inf
    %2650 = vmax.xlane.f32.xlu0 %v2649
    %v2651 = vpop.xlane.xlu0 %2650
    %v2652 = vsel %vm162, %v2636, -inf
    %2653 = vmax.xlane.f32.xlu0 %v2652
    %v2654 = vpop.xlane.xlu0 %2653
    %v2655 = vsel %vm162, %v2637, -inf
    %2656 = vmax.xlane.f32.xlu0 %v2655
    %v2657 = vpop.xlane.xlu0 %2656
    %v2658 = vsel %vm162, %v2638, -inf
    %2659 = vmax.xlane.f32.xlu0 %v2658
    %v2660 = vpop.xlane.xlu0 %2659
    %v2661 = vsel %vm162, %v2639, -inf
    %2662 = vmax.xlane.f32.xlu0 %v2661
    %v2663 = vpop.xlane.xlu0 %2662
    %v2664 = vsub.f32 %v2632, %v2642
    %v2665 = vsub.f32 %v2633, %v2645
    %v2666 = vsub.f32 %v2634, %v2648
    %v2667 = vsub.f32 %v2635, %v2651
    %v2668 = vsub.f32 %v2636, %v2654
    %v2669 = vsub.f32 %v2637, %v2657
    %v2670 = vsub.f32 %v2638, %v2660
    %v2671 = vsub.f32 %v2639, %v2663
    %v2672 = vmul.f32 %v2664, 1.442695
    %v2673 = vpow.pop %v2672
    %v2674 = vmul.f32 %v2665, 1.442695
    %v2675 = vpow.pop %v2674
    %v2676 = vmul.f32 %v2666, 1.442695
    %v2677 = vpow.pop %v2676
    %v2678 = vmul.f32 %v2667, 1.442695
    %v2679 = vpow.pop %v2678
    %v2680 = vmul.f32 %v2668, 1.442695
    %v2681 = vpow.pop %v2680
    %v2682 = vmul.f32 %v2669, 1.442695
    %v2683 = vpow.pop %v2682
    %v2684 = vmul.f32 %v2670, 1.442695
    %v2685 = vpow.pop %v2684
    %v2686 = vmul.f32 %v2671, 1.442695
    %v2687 = vpow.pop %v2686
    %v2688 = vsel %vm162, %v2673, 0.0
    %2689 = vadd.xlane.f32.xlu0 %v2688
    %v2690 = vpop.xlane.xlu0 %2689
    %v2691 = vsel %vm162, %v2675, 0.0
    %2692 = vadd.xlane.f32.xlu0 %v2691
    %v2693 = vpop.xlane.xlu0 %2692
    %v2694 = vsel %vm162, %v2677, 0.0
    %2695 = vadd.xlane.f32.xlu0 %v2694
    %v2696 = vpop.xlane.xlu0 %2695
    %v2697 = vsel %vm162, %v2679, 0.0
    %2698 = vadd.xlane.f32.xlu0 %v2697
    %v2699 = vpop.xlane.xlu0 %2698
    %v2700 = vsel %vm162, %v2681, 0.0
    %2701 = vadd.xlane.f32.xlu0 %v2700
    %v2702 = vpop.xlane.xlu0 %2701
    %v2703 = vsel %vm162, %v2683, 0.0
    %2704 = vadd.xlane.f32.xlu0 %v2703
    %v2705 = vpop.xlane.xlu0 %2704
    %v2706 = vsel %vm162, %v2685, 0.0
    %2707 = vadd.xlane.f32.xlu0 %v2706
    %v2708 = vpop.xlane.xlu0 %2707
    %v2709 = vsel %vm162, %v2687, 0.0
    %2710 = vadd.xlane.f32.xlu0 %v2709
    %v2711 = vpop.xlane.xlu0 %2710
    %v2712 = vrcp.pop %v2690
    %v2713 = vrcp.pop %v2693
    %v2714 = vrcp.pop %v2696
    %v2715 = vrcp.pop %v2699
    %v2716 = vrcp.pop %v2702
    %v2717 = vrcp.pop %v2705
    %v2718 = vrcp.pop %v2708
    %v2719 = vrcp.pop %v2711
    %v2720 = vmul.f32 %v2690, %v2712
    %v2721 = vmul.f32 %v2693, %v2713
    %v2722 = vmul.f32 %v2696, %v2714
    %v2723 = vmul.f32 %v2699, %v2715
    %v2724 = vmul.f32 %v2702, %v2716
    %v2725 = vmul.f32 %v2705, %v2717
    %v2726 = vmul.f32 %v2708, %v2718
    %v2727 = vmul.f32 %v2711, %v2719
    %v2728 = vsub.f32 2.0, %v2720
    %v2729 = vsub.f32 2.0, %v2721
    %v2730 = vsub.f32 2.0, %v2722
    %v2731 = vsub.f32 2.0, %v2723
    %v2732 = vsub.f32 2.0, %v2724
    %v2733 = vsub.f32 2.0, %v2725
    %v2734 = vsub.f32 2.0, %v2726
    %v2735 = vsub.f32 2.0, %v2727
    %v2736 = vmul.f32 %v2712, %v2728
    %v2737 = vmul.f32 %v2713, %v2729
    %v2738 = vmul.f32 %v2714, %v2730
    %v2739 = vmul.f32 %v2715, %v2731
    %v2740 = vmul.f32 %v2716, %v2732
    %v2741 = vmul.f32 %v2717, %v2733
    %v2742 = vmul.f32 %v2718, %v2734
    %v2743 = vmul.f32 %v2719, %v2735
    %v2744 = vmul.f32 %v2673, %v2736
    %v2745 = vmul.f32 %v2675, %v2737
    %v2746 = vmul.f32 %v2677, %v2738
    %v2747 = vmul.f32 %v2679, %v2739
    %v2748 = vmul.f32 %v2681, %v2740
    %v2749 = vmul.f32 %v2683, %v2741
    %v2750 = vmul.f32 %v2685, %v2742
    %v2751 = vmul.f32 %v2687, %v2743
    %2752 = vrot.lane.b32.xlu0 %v1994, 64
    %v2753 = vpop.permute.xlu0 %2752
    %v2756 = vsel %vm162, %v2744, 0
    %2758 = vmatprep.subr.mxu0 0.0
    %2759 = vmatpush1.msra.mxu0 %v2753
    %2760 = vmatprep.subr.mxu0 0.0
    %2761 = vmatpush1.msra.mxu0 0.0
    %2762 = vmatprep.subr.mxu0 0.0
    %2763 = vmatpush1.msra.mxu0 0.0
    %2764 = vmatprep.subr.mxu0 0.0
    %2765 = vmatpush1.msra.mxu0 0.0
    %2766 = vmatprep.subr.mxu0 0.0
    %2767 = vmatpush1.msra.mxu0 0.0
    %2768 = vmatprep.subr.mxu0 0.0
    %2769 = vmatpush1.msra.mxu0 0.0
    %2770 = vmatprep.subr.mxu0 0.0
    %2771 = vmatpush1.msra.mxu0 0.0
    %2772 = vmatprep.subr.mxu0 0.0
    %2773 = vmatpush1.msra.mxu0 0.0
    %2774 = vmatprep.subr.mxu0 0.0
    %2775 = vmatpush1.msra.mxu0 0.0
    %2776 = vmatprep.subr.mxu0 0.0
    %2777 = vmatpush1.msra.mxu0 0.0
    %2778 = vmatprep.subr.mxu0 0.0
    %2779 = vmatpush1.msra.mxu0 0.0
    %2780 = vmatprep.subr.mxu0 0.0
    %2781 = vmatpush1.msra.mxu0 0.0
    %2782 = vmatprep.subr.mxu0 0.0
    %2783 = vmatpush1.msra.mxu0 0.0
    %2784 = vmatprep.subr.mxu0 0.0
    %2785 = vmatpush1.msra.mxu0 0.0
    %2786 = vmatprep.subr.mxu0 0.0
    %2787 = vmatpush1.msra.mxu0 0.0
    %2788 = vmatprep.subr.mxu0 0.0
    %2789 = vmatpush1.msra.mxu0 0.0
    %2790 = vmatprep.subr.mxu0 0.0
    %2791 = vmatpush1.msra.mxu0 0.0
    %2792 = vmatprep.subr.mxu0 0.0
    %2793 = vmatpush1.msra.mxu0 0.0
    %2794 = vmatprep.subr.mxu0 0.0
    %2795 = vmatpush1.msra.mxu0 0.0
    %2796 = vmatprep.subr.mxu0 0.0
    %2797 = vmatpush1.msra.mxu0 0.0
    %2798 = vmatprep.subr.mxu0 0.0
    %2799 = vmatpush1.msra.mxu0 0.0
    %2800 = vmatprep.subr.mxu0 0.0
    %2801 = vmatpush1.msra.mxu0 0.0
    %2802 = vmatprep.subr.mxu0 0.0
    %2803 = vmatpush1.msra.mxu0 0.0
    %2804 = vmatprep.subr.mxu0 0.0
    %2805 = vmatpush1.msra.mxu0 0.0
    %2806 = vmatprep.subr.mxu0 0.0
    %2807 = vmatpush1.msra.mxu0 0.0
    %2808 = vmatprep.subr.mxu0 0.0
    %2809 = vmatpush1.msra.mxu0 0.0
    %2810 = vmatprep.subr.mxu0 0.0
    %2811 = vmatpush1.msra.mxu0 0.0
    %2812 = vmatprep.subr.mxu0 0.0
    %2813 = vmatpush1.msra.mxu0 0.0
    %2814 = vmatprep.subr.mxu0 0.0
    %2815 = vmatpush1.msra.mxu0 0.0
    %2816 = vmatprep.subr.mxu0 0.0
    %2817 = vmatpush1.msra.mxu0 0.0
    %2818 = vmatprep.subr.mxu0 0.0
    %2819 = vmatpush1.msra.mxu0 0.0
    %2820 = vmatprep.subr.mxu0 0.0
    %2821 = vmatpush1.msra.mxu0 0.0
    %2822 = vmatprep.mubr.f32.mxu0 0.0
    %2823 = vmatmul.mubr.f32.gmra.mrb[0].mxu0 %v2756
    %v2824 = vpop.f32.mrb[0].mxu0
    %v2825 = vadd.f32 0.0, %v2824
    %v2826 = vpop.f32.mrb[0].mxu0
    %2827 = vdwg.mxu0
    %2828 = vrot.lane.b32.xlu0 %v2004, 64
    %v2829 = vpop.permute.xlu0 %2828
    %v2832 = vsel %vm162, %v2745, 0
    %2834 = vmatprep.subr.mxu0 0.0
    %2835 = vmatpush1.msra.mxu0 %v2829
    %2836 = vmatprep.subr.mxu0 0.0
    %2837 = vmatpush1.msra.mxu0 0.0
    %2838 = vmatprep.subr.mxu0 0.0
    %2839 = vmatpush1.msra.mxu0 0.0
    %2840 = vmatprep.subr.mxu0 0.0
    %2841 = vmatpush1.msra.mxu0 0.0
    %2842 = vmatprep.subr.mxu0 0.0
    %2843 = vmatpush1.msra.mxu0 0.0
    %2844 = vmatprep.subr.mxu0 0.0
    %2845 = vmatpush1.msra.mxu0 0.0
    %2846 = vmatprep.subr.mxu0 0.0
    %2847 = vmatpush1.msra.mxu0 0.0
    %2848 = vmatprep.subr.mxu0 0.0
    %2849 = vmatpush1.msra.mxu0 0.0
    %2850 = vmatprep.subr.mxu0 0.0
    %2851 = vmatpush1.msra.mxu0 0.0
    %2852 = vmatprep.subr.mxu0 0.0
    %2853 = vmatpush1.msra.mxu0 0.0
    %2854 = vmatprep.subr.mxu0 0.0
    %2855 = vmatpush1.msra.mxu0 0.0
    %2856 = vmatprep.subr.mxu0 0.0
    %2857 = vmatpush1.msra.mxu0 0.0
    %2858 = vmatprep.subr.mxu0 0.0
    %2859 = vmatpush1.msra.mxu0 0.0
    %2860 = vmatprep.subr.mxu0 0.0
    %2861 = vmatpush1.msra.mxu0 0.0
    %2862 = vmatprep.subr.mxu0 0.0
    %2863 = vmatpush1.msra.mxu0 0.0
    %2864 = vmatprep.subr.mxu0 0.0
    %2865 = vmatpush1.msra.mxu0 0.0
    %2866 = vmatprep.subr.mxu0 0.0
    %2867 = vmatpush1.msra.mxu0 0.0
    %2868 = vmatprep.subr.mxu0 0.0
    %2869 = vmatpush1.msra.mxu0 0.0
    %2870 = vmatprep.subr.mxu0 0.0
    %2871 = vmatpush1.msra.mxu0 0.0
    %2872 = vmatprep.subr.mxu0 0.0
    %2873 = vmatpush1.msra.mxu0 0.0
    %2874 = vmatprep.subr.mxu0 0.0
    %2875 = vmatpush1.msra.mxu0 0.0
    %2876 = vmatprep.subr.mxu0 0.0
    %2877 = vmatpush1.msra.mxu0 0.0
    %2878 = vmatprep.subr.mxu0 0.0
    %2879 = vmatpush1.msra.mxu0 0.0
    %2880 = vmatprep.subr.mxu0 0.0
    %2881 = vmatpush1.msra.mxu0 0.0
    %2882 = vmatprep.subr.mxu0 0.0
    %2883 = vmatpush1.msra.mxu0 0.0
    %2884 = vmatprep.subr.mxu0 0.0
    %2885 = vmatpush1.msra.mxu0 0.0
    %2886 = vmatprep.subr.mxu0 0.0
    %2887 = vmatpush1.msra.mxu0 0.0
    %2888 = vmatprep.subr.mxu0 0.0
    %2889 = vmatpush1.msra.mxu0 0.0
    %2890 = vmatprep.subr.mxu0 0.0
    %2891 = vmatpush1.msra.mxu0 0.0
    %2892 = vmatprep.subr.mxu0 0.0
    %2893 = vmatpush1.msra.mxu0 0.0
    %2894 = vmatprep.subr.mxu0 0.0
    %2895 = vmatpush1.msra.mxu0 0.0
    %2896 = vmatprep.subr.mxu0 0.0
    %2897 = vmatpush1.msra.mxu0 0.0
    %2898 = vmatprep.mubr.f32.mxu0 0.0
    %2899 = vmatmul.mubr.f32.gmra.mrb[0].mxu0 %v2832
    %v2900 = vpop.f32.mrb[0].mxu0
    %v2901 = vadd.f32 0.0, %v2900
    %v2902 = vpop.f32.mrb[0].mxu0
    %2903 = vdwg.mxu0
    %2904 = vrot.lane.b32.xlu0 %v2006, 64
    %v2905 = vpop.permute.xlu0 %2904
    %v2908 = vsel %vm162, %v2746, 0
    %2910 = vmatprep.subr.mxu0 0.0
    %2911 = vmatpush1.msra.mxu0 %v2905
    %2912 = vmatprep.subr.mxu0 0.0
    %2913 = vmatpush1.msra.mxu0 0.0
    %2914 = vmatprep.subr.mxu0 0.0
    %2915 = vmatpush1.msra.mxu0 0.0
    %2916 = vmatprep.subr.mxu0 0.0
    %2917 = vmatpush1.msra.mxu0 0.0
    %2918 = vmatprep.subr.mxu0 0.0
    %2919 = vmatpush1.msra.mxu0 0.0
    %2920 = vmatprep.subr.mxu0 0.0
    %2921 = vmatpush1.msra.mxu0 0.0
    %2922 = vmatprep.subr.mxu0 0.0
    %2923 = vmatpush1.msra.mxu0 0.0
    %2924 = vmatprep.subr.mxu0 0.0
    %2925 = vmatpush1.msra.mxu0 0.0
    %2926 = vmatprep.subr.mxu0 0.0
    %2927 = vmatpush1.msra.mxu0 0.0
    %2928 = vmatprep.subr.mxu0 0.0
    %2929 = vmatpush1.msra.mxu0 0.0
    %2930 = vmatprep.subr.mxu0 0.0
    %2931 = vmatpush1.msra.mxu0 0.0
    %2932 = vmatprep.subr.mxu0 0.0
    %2933 = vmatpush1.msra.mxu0 0.0
    %2934 = vmatprep.subr.mxu0 0.0
    %2935 = vmatpush1.msra.mxu0 0.0
    %2936 = vmatprep.subr.mxu0 0.0
    %2937 = vmatpush1.msra.mxu0 0.0
    %2938 = vmatprep.subr.mxu0 0.0
    %2939 = vmatpush1.msra.mxu0 0.0
    %2940 = vmatprep.subr.mxu0 0.0
    %2941 = vmatpush1.msra.mxu0 0.0
    %2942 = vmatprep.subr.mxu0 0.0
    %2943 = vmatpush1.msra.mxu0 0.0
    %2944 = vmatprep.subr.mxu0 0.0
    %2945 = vmatpush1.msra.mxu0 0.0
    %2946 = vmatprep.subr.mxu0 0.0
    %2947 = vmatpush1.msra.mxu0 0.0
    %2948 = vmatprep.subr.mxu0 0.0
    %2949 = vmatpush1.msra.mxu0 0.0
    %2950 = vmatprep.subr.mxu0 0.0
    %2951 = vmatpush1.msra.mxu0 0.0
    %2952 = vmatprep.subr.mxu0 0.0
    %2953 = vmatpush1.msra.mxu0 0.0
    %2954 = vmatprep.subr.mxu0 0.0
    %2955 = vmatpush1.msra.mxu0 0.0
    %2956 = vmatprep.subr.mxu0 0.0
    %2957 = vmatpush1.msra.mxu0 0.0
    %2958 = vmatprep.subr.mxu0 0.0
    %2959 = vmatpush1.msra.mxu0 0.0
    %2960 = vmatprep.subr.mxu0 0.0
    %2961 = vmatpush1.msra.mxu0 0.0
    %2962 = vmatprep.subr.mxu0 0.0
    %2963 = vmatpush1.msra.mxu0 0.0
    %2964 = vmatprep.subr.mxu0 0.0
    %2965 = vmatpush1.msra.mxu0 0.0
    %2966 = vmatprep.subr.mxu0 0.0
    %2967 = vmatpush1.msra.mxu0 0.0
    %2968 = vmatprep.subr.mxu0 0.0
    %2969 = vmatpush1.msra.mxu0 0.0
    %2970 = vmatprep.subr.mxu0 0.0
    %2971 = vmatpush1.msra.mxu0 0.0
    %2972 = vmatprep.subr.mxu0 0.0
    %2973 = vmatpush1.msra.mxu0 0.0
    %2974 = vmatprep.mubr.f32.mxu0 0.0
    %2975 = vmatmul.mubr.f32.gmra.mrb[0].mxu0 %v2908
    %v2976 = vpop.f32.mrb[0].mxu0
    %v2977 = vadd.f32 0.0, %v2976
    %v2978 = vpop.f32.mrb[0].mxu0
    %2979 = vdwg.mxu0
    %2980 = vrot.lane.b32.xlu0 %v2008, 64
    %v2981 = vpop.permute.xlu0 %2980
    %v2984 = vsel %vm162, %v2747, 0
    %2986 = vmatprep.subr.mxu0 0.0
    %2987 = vmatpush1.msra.mxu0 %v2981
    %2988 = vmatprep.subr.mxu0 0.0
    %2989 = vmatpush1.msra.mxu0 0.0
    %2990 = vmatprep.subr.mxu0 0.0
    %2991 = vmatpush1.msra.mxu0 0.0
    %2992 = vmatprep.subr.mxu0 0.0
    %2993 = vmatpush1.msra.mxu0 0.0
    %2994 = vmatprep.subr.mxu0 0.0
    %2995 = vmatpush1.msra.mxu0 0.0
    %2996 = vmatprep.subr.mxu0 0.0
    %2997 = vmatpush1.msra.mxu0 0.0
    %2998 = vmatprep.subr.mxu0 0.0
    %2999 = vmatpush1.msra.mxu0 0.0
    %3000 = vmatprep.subr.mxu0 0.0
    %3001 = vmatpush1.msra.mxu0 0.0
    %3002 = vmatprep.subr.mxu0 0.0
    %3003 = vmatpush1.msra.mxu0 0.0
    %3004 = vmatprep.subr.mxu0 0.0
    %3005 = vmatpush1.msra.mxu0 0.0
    %3006 = vmatprep.subr.mxu0 0.0
    %3007 = vmatpush1.msra.mxu0 0.0
    %3008 = vmatprep.subr.mxu0 0.0
    %3009 = vmatpush1.msra.mxu0 0.0
    %3010 = vmatprep.subr.mxu0 0.0
    %3011 = vmatpush1.msra.mxu0 0.0
    %3012 = vmatprep.subr.mxu0 0.0
    %3013 = vmatpush1.msra.mxu0 0.0
    %3014 = vmatprep.subr.mxu0 0.0
    %3015 = vmatpush1.msra.mxu0 0.0
    %3016 = vmatprep.subr.mxu0 0.0
    %3017 = vmatpush1.msra.mxu0 0.0
    %3018 = vmatprep.subr.mxu0 0.0
    %3019 = vmatpush1.msra.mxu0 0.0
    %3020 = vmatprep.subr.mxu0 0.0
    %3021 = vmatpush1.msra.mxu0 0.0
    %3022 = vmatprep.subr.mxu0 0.0
    %3023 = vmatpush1.msra.mxu0 0.0
    %3024 = vmatprep.subr.mxu0 0.0
    %3025 = vmatpush1.msra.mxu0 0.0
    %3026 = vmatprep.subr.mxu0 0.0
    %3027 = vmatpush1.msra.mxu0 0.0
    %3028 = vmatprep.subr.mxu0 0.0
    %3029 = vmatpush1.msra.mxu0 0.0
    %3030 = vmatprep.subr.mxu0 0.0
    %3031 = vmatpush1.msra.mxu0 0.0
    %3032 = vmatprep.subr.mxu0 0.0
    %3033 = vmatpush1.msra.mxu0 0.0
    %3034 = vmatprep.subr.mxu0 0.0
    %3035 = vmatpush1.msra.mxu0 0.0
    %3036 = vmatprep.subr.mxu0 0.0
    %3037 = vmatpush1.msra.mxu0 0.0
    %3038 = vmatprep.subr.mxu0 0.0
    %3039 = vmatpush1.msra.mxu0 0.0
    %3040 = vmatprep.subr.mxu0 0.0
    %3041 = vmatpush1.msra.mxu0 0.0
    %3042 = vmatprep.subr.mxu0 0.0
    %3043 = vmatpush1.msra.mxu0 0.0
    %3044 = vmatprep.subr.mxu0 0.0
    %3045 = vmatpush1.msra.mxu0 0.0
    %3046 = vmatprep.subr.mxu0 0.0
    %3047 = vmatpush1.msra.mxu0 0.0
    %3048 = vmatprep.subr.mxu0 0.0
    %3049 = vmatpush1.msra.mxu0 0.0
    %3050 = vmatprep.mubr.f32.mxu0 0.0
    %3051 = vmatmul.mubr.f32.gmra.mrb[0].mxu0 %v2984
    %v3052 = vpop.f32.mrb[0].mxu0
    %v3053 = vadd.f32 0.0, %v3052
    %v3054 = vpop.f32.mrb[0].mxu0
    %3055 = vdwg.mxu0
    %3056 = vrot.lane.b32.xlu0 %v1999, 64
    %v3057 = vpop.permute.xlu0 %3056
    %v3060 = vsel %vm162, %v2748, 0
    %3062 = vmatprep.subr.mxu0 0.0
    %3063 = vmatpush1.msra.mxu0 %v3057
    %3064 = vmatprep.subr.mxu0 0.0
    %3065 = vmatpush1.msra.mxu0 0.0
    %3066 = vmatprep.subr.mxu0 0.0
    %3067 = vmatpush1.msra.mxu0 0.0
    %3068 = vmatprep.subr.mxu0 0.0
    %3069 = vmatpush1.msra.mxu0 0.0
    %3070 = vmatprep.subr.mxu0 0.0
    %3071 = vmatpush1.msra.mxu0 0.0
    %3072 = vmatprep.subr.mxu0 0.0
    %3073 = vmatpush1.msra.mxu0 0.0
    %3074 = vmatprep.subr.mxu0 0.0
    %3075 = vmatpush1.msra.mxu0 0.0
    %3076 = vmatprep.subr.mxu0 0.0
    %3077 = vmatpush1.msra.mxu0 0.0
    %3078 = vmatprep.subr.mxu0 0.0
    %3079 = vmatpush1.msra.mxu0 0.0
    %3080 = vmatprep.subr.mxu0 0.0
    %3081 = vmatpush1.msra.mxu0 0.0
    %3082 = vmatprep.subr.mxu0 0.0
    %3083 = vmatpush1.msra.mxu0 0.0
    %3084 = vmatprep.subr.mxu0 0.0
    %3085 = vmatpush1.msra.mxu0 0.0
    %3086 = vmatprep.subr.mxu0 0.0
    %3087 = vmatpush1.msra.mxu0 0.0
    %3088 = vmatprep.subr.mxu0 0.0
    %3089 = vmatpush1.msra.mxu0 0.0
    %3090 = vmatprep.subr.mxu0 0.0
    %3091 = vmatpush1.msra.mxu0 0.0
    %3092 = vmatprep.subr.mxu0 0.0
    %3093 = vmatpush1.msra.mxu0 0.0
    %3094 = vmatprep.subr.mxu0 0.0
    %3095 = vmatpush1.msra.mxu0 0.0
    %3096 = vmatprep.subr.mxu0 0.0
    %3097 = vmatpush1.msra.mxu0 0.0
    %3098 = vmatprep.subr.mxu0 0.0
    %3099 = vmatpush1.msra.mxu0 0.0
    %3100 = vmatprep.subr.mxu0 0.0
    %3101 = vmatpush1.msra.mxu0 0.0
    %3102 = vmatprep.subr.mxu0 0.0
    %3103 = vmatpush1.msra.mxu0 0.0
    %3104 = vmatprep.subr.mxu0 0.0
    %3105 = vmatpush1.msra.mxu0 0.0
    %3106 = vmatprep.subr.mxu0 0.0
    %3107 = vmatpush1.msra.mxu0 0.0
    %3108 = vmatprep.subr.mxu0 0.0
    %3109 = vmatpush1.msra.mxu0 0.0
    %3110 = vmatprep.subr.mxu0 0.0
    %3111 = vmatpush1.msra.mxu0 0.0
    %3112 = vmatprep.subr.mxu0 0.0
    %3113 = vmatpush1.msra.mxu0 0.0
    %3114 = vmatprep.subr.mxu0 0.0
    %3115 = vmatpush1.msra.mxu0 0.0
    %3116 = vmatprep.subr.mxu0 0.0
    %3117 = vmatpush1.msra.mxu0 0.0
    %3118 = vmatprep.subr.mxu0 0.0
    %3119 = vmatpush1.msra.mxu0 0.0
    %3120 = vmatprep.subr.mxu0 0.0
    %3121 = vmatpush1.msra.mxu0 0.0
    %3122 = vmatprep.subr.mxu0 0.0
    %3123 = vmatpush1.msra.mxu0 0.0
    %3124 = vmatprep.subr.mxu0 0.0
    %3125 = vmatpush1.msra.mxu0 0.0
    %3126 = vmatprep.mubr.f32.mxu0 0.0
    %3127 = vmatmul.mubr.f32.gmra.mrb[0].mxu0 %v3060
    %v3128 = vpop.f32.mrb[0].mxu0
    %v3129 = vadd.f32 0.0, %v3128
    %v3130 = vpop.f32.mrb[0].mxu0
    %3131 = vdwg.mxu0
    %3132 = vrot.lane.b32.xlu0 %v2011, 64
    %v3133 = vpop.permute.xlu0 %3132
    %v3136 = vsel %vm162, %v2749, 0
    %3138 = vmatprep.subr.mxu0 0.0
    %3139 = vmatpush1.msra.mxu0 %v3133
    %3140 = vmatprep.subr.mxu0 0.0
    %3141 = vmatpush1.msra.mxu0 0.0
    %3142 = vmatprep.subr.mxu0 0.0
    %3143 = vmatpush1.msra.mxu0 0.0
    %3144 = vmatprep.subr.mxu0 0.0
    %3145 = vmatpush1.msra.mxu0 0.0
    %3146 = vmatprep.subr.mxu0 0.0
    %3147 = vmatpush1.msra.mxu0 0.0
    %3148 = vmatprep.subr.mxu0 0.0
    %3149 = vmatpush1.msra.mxu0 0.0
    %3150 = vmatprep.subr.mxu0 0.0
    %3151 = vmatpush1.msra.mxu0 0.0
    %3152 = vmatprep.subr.mxu0 0.0
    %3153 = vmatpush1.msra.mxu0 0.0
    %3154 = vmatprep.subr.mxu0 0.0
    %3155 = vmatpush1.msra.mxu0 0.0
    %3156 = vmatprep.subr.mxu0 0.0
    %3157 = vmatpush1.msra.mxu0 0.0
    %3158 = vmatprep.subr.mxu0 0.0
    %3159 = vmatpush1.msra.mxu0 0.0
    %3160 = vmatprep.subr.mxu0 0.0
    %3161 = vmatpush1.msra.mxu0 0.0
    %3162 = vmatprep.subr.mxu0 0.0
    %3163 = vmatpush1.msra.mxu0 0.0
    %3164 = vmatprep.subr.mxu0 0.0
    %3165 = vmatpush1.msra.mxu0 0.0
    %3166 = vmatprep.subr.mxu0 0.0
    %3167 = vmatpush1.msra.mxu0 0.0
    %3168 = vmatprep.subr.mxu0 0.0
    %3169 = vmatpush1.msra.mxu0 0.0
    %3170 = vmatprep.subr.mxu0 0.0
    %3171 = vmatpush1.msra.mxu0 0.0
    %3172 = vmatprep.subr.mxu0 0.0
    %3173 = vmatpush1.msra.mxu0 0.0
    %3174 = vmatprep.subr.mxu0 0.0
    %3175 = vmatpush1.msra.mxu0 0.0
    %3176 = vmatprep.subr.mxu0 0.0
    %3177 = vmatpush1.msra.mxu0 0.0
    %3178 = vmatprep.subr.mxu0 0.0
    %3179 = vmatpush1.msra.mxu0 0.0
    %3180 = vmatprep.subr.mxu0 0.0
    %3181 = vmatpush1.msra.mxu0 0.0
    %3182 = vmatprep.subr.mxu0 0.0
    %3183 = vmatpush1.msra.mxu0 0.0
    %3184 = vmatprep.subr.mxu0 0.0
    %3185 = vmatpush1.msra.mxu0 0.0
    %3186 = vmatprep.subr.mxu0 0.0
    %3187 = vmatpush1.msra.mxu0 0.0
    %3188 = vmatprep.subr.mxu0 0.0
    %3189 = vmatpush1.msra.mxu0 0.0
    %3190 = vmatprep.subr.mxu0 0.0
    %3191 = vmatpush1.msra.mxu0 0.0
    %3192 = vmatprep.subr.mxu0 0.0
    %3193 = vmatpush1.msra.mxu0 0.0
    %3194 = vmatprep.subr.mxu0 0.0
    %3195 = vmatpush1.msra.mxu0 0.0
    %3196 = vmatprep.subr.mxu0 0.0
    %3197 = vmatpush1.msra.mxu0 0.0
    %3198 = vmatprep.subr.mxu0 0.0
    %3199 = vmatpush1.msra.mxu0 0.0
    %3200 = vmatprep.subr.mxu0 0.0
    %3201 = vmatpush1.msra.mxu0 0.0
    %3202 = vmatprep.mubr.f32.mxu0 0.0
    %3203 = vmatmul.mubr.f32.gmra.mrb[0].mxu0 %v3136
    %v3204 = vpop.f32.mrb[0].mxu0
    %v3205 = vadd.f32 0.0, %v3204
    %v3206 = vpop.f32.mrb[0].mxu0
    %3207 = vdwg.mxu0
    %3208 = vrot.lane.b32.xlu0 %v2013, 64
    %v3209 = vpop.permute.xlu0 %3208
    %v3212 = vsel %vm162, %v2750, 0
    %3214 = vmatprep.subr.mxu0 0.0
    %3215 = vmatpush1.msra.mxu0 %v3209
    %3216 = vmatprep.subr.mxu0 0.0
    %3217 = vmatpush1.msra.mxu0 0.0
    %3218 = vmatprep.subr.mxu0 0.0
    %3219 = vmatpush1.msra.mxu0 0.0
    %3220 = vmatprep.subr.mxu0 0.0
    %3221 = vmatpush1.msra.mxu0 0.0
    %3222 = vmatprep.subr.mxu0 0.0
    %3223 = vmatpush1.msra.mxu0 0.0
    %3224 = vmatprep.subr.mxu0 0.0
    %3225 = vmatpush1.msra.mxu0 0.0
    %3226 = vmatprep.subr.mxu0 0.0
    %3227 = vmatpush1.msra.mxu0 0.0
    %3228 = vmatprep.subr.mxu0 0.0
    %3229 = vmatpush1.msra.mxu0 0.0
    %3230 = vmatprep.subr.mxu0 0.0
    %3231 = vmatpush1.msra.mxu0 0.0
    %3232 = vmatprep.subr.mxu0 0.0
    %3233 = vmatpush1.msra.mxu0 0.0
    %3234 = vmatprep.subr.mxu0 0.0
    %3235 = vmatpush1.msra.mxu0 0.0
    %3236 = vmatprep.subr.mxu0 0.0
    %3237 = vmatpush1.msra.mxu0 0.0
    %3238 = vmatprep.subr.mxu0 0.0
    %3239 = vmatpush1.msra.mxu0 0.0
    %3240 = vmatprep.subr.mxu0 0.0
    %3241 = vmatpush1.msra.mxu0 0.0
    %3242 = vmatprep.subr.mxu0 0.0
    %3243 = vmatpush1.msra.mxu0 0.0
    %3244 = vmatprep.subr.mxu0 0.0
    %3245 = vmatpush1.msra.mxu0 0.0
    %3246 = vmatprep.subr.mxu0 0.0
    %3247 = vmatpush1.msra.mxu0 0.0
    %3248 = vmatprep.subr.mxu0 0.0
    %3249 = vmatpush1.msra.mxu0 0.0
    %3250 = vmatprep.subr.mxu0 0.0
    %3251 = vmatpush1.msra.mxu0 0.0
    %3252 = vmatprep.subr.mxu0 0.0
    %3253 = vmatpush1.msra.mxu0 0.0
    %3254 = vmatprep.subr.mxu0 0.0
    %3255 = vmatpush1.msra.mxu0 0.0
    %3256 = vmatprep.subr.mxu0 0.0
    %3257 = vmatpush1.msra.mxu0 0.0
    %3258 = vmatprep.subr.mxu0 0.0
    %3259 = vmatpush1.msra.mxu0 0.0
    %3260 = vmatprep.subr.mxu0 0.0
    %3261 = vmatpush1.msra.mxu0 0.0
    %3262 = vmatprep.subr.mxu0 0.0
    %3263 = vmatpush1.msra.mxu0 0.0
    %3264 = vmatprep.subr.mxu0 0.0
    %3265 = vmatpush1.msra.mxu0 0.0
    %3266 = vmatprep.subr.mxu0 0.0
    %3267 = vmatpush1.msra.mxu0 0.0
    %3268 = vmatprep.subr.mxu0 0.0
    %3269 = vmatpush1.msra.mxu0 0.0
    %3270 = vmatprep.subr.mxu0 0.0
    %3271 = vmatpush1.msra.mxu0 0.0
    %3272 = vmatprep.subr.mxu0 0.0
    %3273 = vmatpush1.msra.mxu0 0.0
    %3274 = vmatprep.subr.mxu0 0.0
    %3275 = vmatpush1.msra.mxu0 0.0
    %3276 = vmatprep.subr.mxu0 0.0
    %3277 = vmatpush1.msra.mxu0 0.0
    %3278 = vmatprep.mubr.f32.mxu0 0.0
    %3279 = vmatmul.mubr.f32.gmra.mrb[0].mxu0 %v3212
    %v3280 = vpop.f32.mrb[0].mxu0
    %v3281 = vadd.f32 0.0, %v3280
    %v3282 = vpop.f32.mrb[0].mxu0
    %3283 = vdwg.mxu0
    %3284 = vrot.lane.b32.xlu0 %v2015, 64
    %v3285 = vpop.permute.xlu0 %3284
    %v3288 = vsel %vm162, %v2751, 0
    %3290 = vmatprep.subr.mxu0 0.0
    %3291 = vmatpush1.msra.mxu0 %v3285
    %3292 = vmatprep.subr.mxu0 0.0
    %3293 = vmatpush1.msra.mxu0 0.0
    %3294 = vmatprep.subr.mxu0 0.0
    %3295 = vmatpush1.msra.mxu0 0.0
    %3296 = vmatprep.subr.mxu0 0.0
    %3297 = vmatpush1.msra.mxu0 0.0
    %3298 = vmatprep.subr.mxu0 0.0
    %3299 = vmatpush1.msra.mxu0 0.0
    %3300 = vmatprep.subr.mxu0 0.0
    %3301 = vmatpush1.msra.mxu0 0.0
    %3302 = vmatprep.subr.mxu0 0.0
    %3303 = vmatpush1.msra.mxu0 0.0
    %3304 = vmatprep.subr.mxu0 0.0
    %3305 = vmatpush1.msra.mxu0 0.0
    %3306 = vmatprep.subr.mxu0 0.0
    %3307 = vmatpush1.msra.mxu0 0.0
    %3308 = vmatprep.subr.mxu0 0.0
    %3309 = vmatpush1.msra.mxu0 0.0
    %3310 = vmatprep.subr.mxu0 0.0
    %3311 = vmatpush1.msra.mxu0 0.0
    %3312 = vmatprep.subr.mxu0 0.0
    %3313 = vmatpush1.msra.mxu0 0.0
    %3314 = vmatprep.subr.mxu0 0.0
    %3315 = vmatpush1.msra.mxu0 0.0
    %3316 = vmatprep.subr.mxu0 0.0
    %3317 = vmatpush1.msra.mxu0 0.0
    %3318 = vmatprep.subr.mxu0 0.0
    %3319 = vmatpush1.msra.mxu0 0.0
    %3320 = vmatprep.subr.mxu0 0.0
    %3321 = vmatpush1.msra.mxu0 0.0
    %3322 = vmatprep.subr.mxu0 0.0
    %3323 = vmatpush1.msra.mxu0 0.0
    %3324 = vmatprep.subr.mxu0 0.0
    %3325 = vmatpush1.msra.mxu0 0.0
    %3326 = vmatprep.subr.mxu0 0.0
    %3327 = vmatpush1.msra.mxu0 0.0
    %3328 = vmatprep.subr.mxu0 0.0
    %3329 = vmatpush1.msra.mxu0 0.0
    %3330 = vmatprep.subr.mxu0 0.0
    %3331 = vmatpush1.msra.mxu0 0.0
    %3332 = vmatprep.subr.mxu0 0.0
    %3333 = vmatpush1.msra.mxu0 0.0
    %3334 = vmatprep.subr.mxu0 0.0
    %3335 = vmatpush1.msra.mxu0 0.0
    %3336 = vmatprep.subr.mxu0 0.0
    %3337 = vmatpush1.msra.mxu0 0.0
    %3338 = vmatprep.subr.mxu0 0.0
    %3339 = vmatpush1.msra.mxu0 0.0
    %3340 = vmatprep.subr.mxu0 0.0
    %3341 = vmatpush1.msra.mxu0 0.0
    %3342 = vmatprep.subr.mxu0 0.0
    %3343 = vmatpush1.msra.mxu0 0.0
    %3344 = vmatprep.subr.mxu0 0.0
    %3345 = vmatpush1.msra.mxu0 0.0
    %3346 = vmatprep.subr.mxu0 0.0
    %3347 = vmatpush1.msra.mxu0 0.0
    %3348 = vmatprep.subr.mxu0 0.0
    %3349 = vmatpush1.msra.mxu0 0.0
    %3350 = vmatprep.subr.mxu0 0.0
    %3351 = vmatpush1.msra.mxu0 0.0
    %3352 = vmatprep.subr.mxu0 0.0
    %3353 = vmatpush1.msra.mxu0 0.0
    %3354 = vmatprep.mubr.f32.mxu0 0.0
    %3355 = vmatmul.mubr.f32.gmra.mrb[0].mxu0 %v3288
    %v3356 = vpop.f32.mrb[0].mxu0
    %v3357 = vadd.f32 0.0, %v3356
    %v3358 = vpop.f32.mrb[0].mxu0
    %3359 = vdwg.mxu0
    %3361 = vrot.lane.b32.xlu0 %v2901, 8
    %v3362 = vpop.permute.xlu0 %3361
    %3365 = vrot.lane.b32.xlu0 %v2977, 16
    %v3366 = vpop.permute.xlu0 %3365
    %3369 = vrot.lane.b32.xlu0 %v3053, 24
    %v3370 = vpop.permute.xlu0 %3369
    %v3372 = vsel %vm162, %v2825, %v3362
    %v3373 = vsel %vm1518, %v3372, %v3366
    %v3374 = vsel %vm1520, %v3373, %v3370
    %3376 = vrot.lane.b32.xlu0 %v3205, 8
    %v3377 = vpop.permute.xlu0 %3376
    %3380 = vrot.lane.b32.xlu0 %v3281, 16
    %v3381 = vpop.permute.xlu0 %3380
    %3384 = vrot.lane.b32.xlu0 %v3357, 24
    %v3385 = vpop.permute.xlu0 %3384
    %v3387 = vsel %vm162, %v3129, %v3377
    %v3388 = vsel %vm1518, %v3387, %v3381
    %v3389 = vsel %vm1520, %v3388, %v3385
    %s3390 = scalar_lea.vmem %s3, 32
    %v3391 = vld [vmem:[%s3390] sm:$0xff]
    %v3392 = vld [vmem:[%s3390 + $0x8] sm:$0xff]
    %v3393 = vld [vmem:[%s3390 + $0x10] sm:$0xff]
    %v3394 = vld [vmem:[%s3390 + $0x18] sm:$0xff]
    %s3395 = scalar_lea.vmem %s4, 1
    %v3396 = vld [vmem:[%s3395] sm:$0x1]
    %v3398 = vlaneseq
    %v3399 = vshrl.u32 %v3398, 7
    %v3400 = vsub.s32 0, %v3399
    %v3401 = vrot.slane %v3396, %v3400
    %v3404 = vsel %vm64, %v3374, 0
    %v3407 = vsel %vm64, %v3389, 0
    %3409 = vmatprep.subr.mxu0 0.0
    %3410 = vmatpush1.msra.mxu0 %v3391
    %3411 = vmatprep.subr.mxu0 0.0
    %3412 = vmatpush1.msra.mxu0 %v3392
    %3413 = vmatprep.subr.mxu0 0.0
    %3414 = vmatpush1.msra.mxu0 %v3393
    %3415 = vmatprep.subr.mxu0 0.0
    %3416 = vmatpush1.msra.mxu0 %v3394
    %3417 = vmatprep.subr.mxu0 0.0
    %3418 = vmatpush1.msra.mxu0 0.0
    %3419 = vmatprep.subr.mxu0 0.0
    %3420 = vmatpush1.msra.mxu0 0.0
    %3421 = vmatprep.subr.mxu0 0.0
    %3422 = vmatpush1.msra.mxu0 0.0
    %3423 = vmatprep.subr.mxu0 0.0
    %3424 = vmatpush1.msra.mxu0 0.0
    %3425 = vmatprep.subr.mxu0 0.0
    %3426 = vmatpush1.msra.mxu0 0.0
    %3427 = vmatprep.subr.mxu0 0.0
    %3428 = vmatpush1.msra.mxu0 0.0
    %3429 = vmatprep.subr.mxu0 0.0
    %3430 = vmatpush1.msra.mxu0 0.0
    %3431 = vmatprep.subr.mxu0 0.0
    %3432 = vmatpush1.msra.mxu0 0.0
    %3433 = vmatprep.subr.mxu0 0.0
    %3434 = vmatpush1.msra.mxu0 0.0
    %3435 = vmatprep.subr.mxu0 0.0
    %3436 = vmatpush1.msra.mxu0 0.0
    %3437 = vmatprep.subr.mxu0 0.0
    %3438 = vmatpush1.msra.mxu0 0.0
    %3439 = vmatprep.subr.mxu0 0.0
    %3440 = vmatpush1.msra.mxu0 0.0
    %3441 = vmatprep.subr.mxu0 0.0
    %3442 = vmatpush1.msra.mxu0 0.0
    %3443 = vmatprep.subr.mxu0 0.0
    %3444 = vmatpush1.msra.mxu0 0.0
    %3445 = vmatprep.subr.mxu0 0.0
    %3446 = vmatpush1.msra.mxu0 0.0
    %3447 = vmatprep.subr.mxu0 0.0
    %3448 = vmatpush1.msra.mxu0 0.0
    %3449 = vmatprep.subr.mxu0 0.0
    %3450 = vmatpush1.msra.mxu0 0.0
    %3451 = vmatprep.subr.mxu0 0.0
    %3452 = vmatpush1.msra.mxu0 0.0
    %3453 = vmatprep.subr.mxu0 0.0
    %3454 = vmatpush1.msra.mxu0 0.0
    %3455 = vmatprep.subr.mxu0 0.0
    %3456 = vmatpush1.msra.mxu0 0.0
    %3457 = vmatprep.subr.mxu0 0.0
    %3458 = vmatpush1.msra.mxu0 0.0
    %3459 = vmatprep.subr.mxu0 0.0
    %3460 = vmatpush1.msra.mxu0 0.0
    %3461 = vmatprep.subr.mxu0 0.0
    %3462 = vmatpush1.msra.mxu0 0.0
    %3463 = vmatprep.subr.mxu0 0.0
    %3464 = vmatpush1.msra.mxu0 0.0
    %3465 = vmatprep.subr.mxu0 0.0
    %3466 = vmatpush1.msra.mxu0 0.0
    %3467 = vmatprep.subr.mxu0 0.0
    %3468 = vmatpush1.msra.mxu0 0.0
    %3469 = vmatprep.subr.mxu0 0.0
    %3470 = vmatpush1.msra.mxu0 0.0
    %3471 = vmatprep.subr.mxu0 0.0
    %3472 = vmatpush1.msra.mxu0 0.0
    %3473 = vmatprep.mubr.f32.mxu0 0.0
    %3474 = vmatmul.mubr.f32.gmra.mrb[0].mxu0 %v3404
    %v3475 = vpop.f32.mrb[0].mxu0
    %v3476 = vadd.f32 %v3401, %v3475
    %v3477 = vpop.f32.mrb[0].mxu0
    %3478 = vmatprep.mubr.f32.mxu0 0.0
    %3479 = vmatmul.mubr.f32.gmra.mrb[0].mxu0 %v3407
    %v3480 = vpop.f32.mrb[0].mxu0
    %v3481 = vadd.f32 %v3401, %v3480
    %v3482 = vpop.f32.mrb[0].mxu0
    %3483 = vdwg.mxu0
    %v3484 = vadd.f32 %v1906, %v3476
    %v3485 = vadd.f32 %v1907, %v3481
    %s3486 = scalar_lea.vmem %s5, 1
    %v3487 = vld [vmem:[%s3486] sm:$0x1]
    %s3488 = scalar_lea.vmem %s6, 1
    %v3489 = vld [vmem:[%s3488] sm:$0x1]
    %v3490 = vsel %vm64, %v3484, 0.0
    %3491 = vadd.xlane.f32.xlu0 %v3490
    %v3492 = vpop.xlane.xlu0 %3491
    %v3493 = vsel %vm64, %v3485, 0.0
    %3494 = vadd.xlane.f32.xlu0 %v3493
    %v3495 = vpop.xlane.xlu0 %3494
    %v3496 = vmul.f32 %v3492, %v1639
    %v3497 = vmul.f32 %v3495, %v1639
    %v3498 = vsub.f32 %v3484, %v3496
    %v3499 = vsub.f32 %v3485, %v3497
    %v3500 = vmul.f32 %v3498, %v3498
    %v3501 = vmul.f32 %v3499, %v3499
    %v3502 = vsel %vm64, %v3500, 0.0
    %3503 = vadd.xlane.f32.xlu0 %v3502
    %v3504 = vpop.xlane.xlu0 %3503
    %v3505 = vsel %vm64, %v3501, 0.0
    %3506 = vadd.xlane.f32.xlu0 %v3505
    %v3507 = vpop.xlane.xlu0 %3506
    %v3508 = vmul.f32 %v3504, %v1639
    %v3509 = vmul.f32 %v3507, %v1639
    %v3510 = vadd.f32 %v3508, 1e-05
    %v3511 = vadd.f32 %v3509, 1e-05
    %v3512 = vrsqrt.pop %v3510
    %v3513 = vrsqrt.pop %v3511
    %v3514 = vmul.f32 %v3498, %v3512
    %v3515 = vmul.f32 %v3499, %v3513
    %v3517 = vlaneseq
    %v3518 = vshrl.u32 %v3517, 7
    %v3519 = vsub.s32 0, %v3518
    %v3520 = vrot.slane %v3487, %v3519
    %v3522 = vmul.f32 %v3514, %v3520
    %v3523 = vmul.f32 %v3515, %v3520
    %v3525 = vlaneseq
    %v3526 = vshrl.u32 %v3525, 7
    %v3527 = vsub.s32 0, %v3526
    %v3528 = vrot.slane %v3489, %v3527
    %v3530 = vadd.f32 %v3522, %v3528
    %v3531 = vadd.f32 %v3523, %v3528
    %s3532 = scalar_lea.vmem %s7, 32
    %v3533 = vld [vmem:[%s3532] sm:$0xff]
    %v3534 = vld [vmem:[%s3532 + $0x8] sm:$0xff]
    %v3535 = vld [vmem:[%s3532 + $0x10] sm:$0xff]
    %v3536 = vld [vmem:[%s3532 + $0x18] sm:$0xff]
    %s3537 = scalar_lea.vmem %s8, 1
    %v3538 = vld [vmem:[%s3537] sm:$0x1]
    %v3540 = vlaneseq
    %v3541 = vshrl.u32 %v3540, 7
    %v3542 = vsub.s32 0, %v3541
    %v3543 = vrot.slane %v3538, %v3542
    %v3546 = vsel %vm64, %v3530, 0
    %v3549 = vsel %vm64, %v3531, 0
    %3551 = vmatprep.subr.mxu0 0.0
    %3552 = vmatpush1.msra.mxu0 %v3533
    %3553 = vmatprep.subr.mxu0 0.0
    %3554 = vmatpush1.msra.mxu0 %v3534
    %3555 = vmatprep.subr.mxu0 0.0
    %3556 = vmatpush1.msra.mxu0 %v3535
    %3557 = vmatprep.subr.mxu0 0.0
    %3558 = vmatpush1.msra.mxu0 %v3536
    %3559 = vmatprep.subr.mxu0 0.0
    %3560 = vmatpush1.msra.mxu0 0.0
    %3561 = vmatprep.subr.mxu0 0.0
    %3562 = vmatpush1.msra.mxu0 0.0
    %3563 = vmatprep.subr.mxu0 0.0
    %3564 = vmatpush1.msra.mxu0 0.0
    %3565 = vmatprep.subr.mxu0 0.0
    %3566 = vmatpush1.msra.mxu0 0.0
    %3567 = vmatprep.subr.mxu0 0.0
    %3568 = vmatpush1.msra.mxu0 0.0
    %3569 = vmatprep.subr.mxu0 0.0
    %3570 = vmatpush1.msra.mxu0 0.0
    %3571 = vmatprep.subr.mxu0 0.0
    %3572 = vmatpush1.msra.mxu0 0.0
    %3573 = vmatprep.subr.mxu0 0.0
    %3574 = vmatpush1.msra.mxu0 0.0
    %3575 = vmatprep.subr.mxu0 0.0
    %3576 = vmatpush1.msra.mxu0 0.0
    %3577 = vmatprep.subr.mxu0 0.0
    %3578 = vmatpush1.msra.mxu0 0.0
    %3579 = vmatprep.subr.mxu0 0.0
    %3580 = vmatpush1.msra.mxu0 0.0
    %3581 = vmatprep.subr.mxu0 0.0
    %3582 = vmatpush1.msra.mxu0 0.0
    %3583 = vmatprep.subr.mxu0 0.0
    %3584 = vmatpush1.msra.mxu0 0.0
    %3585 = vmatprep.subr.mxu0 0.0
    %3586 = vmatpush1.msra.mxu0 0.0
    %3587 = vmatprep.subr.mxu0 0.0
    %3588 = vmatpush1.msra.mxu0 0.0
    %3589 = vmatprep.subr.mxu0 0.0
    %3590 = vmatpush1.msra.mxu0 0.0
    %3591 = vmatprep.subr.mxu0 0.0
    %3592 = vmatpush1.msra.mxu0 0.0
    %3593 = vmatprep.subr.mxu0 0.0
    %3594 = vmatpush1.msra.mxu0 0.0
    %3595 = vmatprep.subr.mxu0 0.0
    %3596 = vmatpush1.msra.mxu0 0.0
    %3597 = vmatprep.subr.mxu0 0.0
    %3598 = vmatpush1.msra.mxu0 0.0
    %3599 = vmatprep.subr.mxu0 0.0
    %3600 = vmatpush1.msra.mxu0 0.0
    %3601 = vmatprep.subr.mxu0 0.0
    %3602 = vmatpush1.msra.mxu0 0.0
    %3603 = vmatprep.subr.mxu0 0.0
    %3604 = vmatpush1.msra.mxu0 0.0
    %3605 = vmatprep.subr.mxu0 0.0
    %3606 = vmatpush1.msra.mxu0 0.0
    %3607 = vmatprep.subr.mxu0 0.0
    %3608 = vmatpush1.msra.mxu0 0.0
    %3609 = vmatprep.subr.mxu0 0.0
    %3610 = vmatpush1.msra.mxu0 0.0
    %3611 = vmatprep.subr.mxu0 0.0
    %3612 = vmatpush1.msra.mxu0 0.0
    %3613 = vmatprep.subr.mxu0 0.0
    %3614 = vmatpush1.msra.mxu0 0.0
    %3615 = vmatprep.mubr.f32.mxu0 0.0
    %3616 = vmatmul.mubr.f32.gmra.mrb[0].mxu0 %v3546
    %v3617 = vpop.f32.mrb[0].mxu0
    %v3618 = vadd.f32 %v3543, %v3617
    %v3619 = vpop.f32.mrb[0].mxu0
    %3620 = vmatprep.mubr.f32.mxu0 0.0
    %3621 = vmatmul.mubr.f32.gmra.mrb[0].mxu0 %v3549
    %v3622 = vpop.f32.mrb[0].mxu0
    %v3623 = vadd.f32 %v3543, %v3622
    %v3624 = vpop.f32.mrb[0].mxu0
    %3625 = vdwg.mxu0
    %v3626 = vmul.f32 %v3618, 0.5
    %v3627 = vmul.f32 %v3623, 0.5
    %v3628 = vmul.f32 %v3618, 0.70710677
    %v3629 = vmul.f32 %v3623, 0.70710677
    %v3630 = verf.f32.pop %v3628
    %v3631 = verf.f32.pop %v3629
    %v3632 = vadd.f32 %v3630, 1.0
    %v3633 = vadd.f32 %v3631, 1.0
    %v3634 = vmul.f32 %v3626, %v3632
    %v3635 = vmul.f32 %v3627, %v3633
    %s3636 = scalar_lea.vmem %s9, 128
    %v3637 = vld [vmem:[%s3636] sm:$0xff]
    %v3638 = vld [vmem:[%s3636 + $0x8] sm:$0xff]
    %v3639 = vld [vmem:[%s3636 + $0x10] sm:$0xff]
    %v3640 = vld [vmem:[%s3636 + $0x18] sm:$0xff]
    %v3641 = vld [vmem:[%s3636 + $0x20] sm:$0xff]
    %v3642 = vld [vmem:[%s3636 + $0x28] sm:$0xff]
    %v3643 = vld [vmem:[%s3636 + $0x30] sm:$0xff]
    %v3644 = vld [vmem:[%s3636 + $0x38] sm:$0xff]
    %v3645 = vld [vmem:[%s3636 + $0x40] sm:$0xff]
    %v3646 = vld [vmem:[%s3636 + $0x48] sm:$0xff]
    %v3647 = vld [vmem:[%s3636 + $0x50] sm:$0xff]
    %v3648 = vld [vmem:[%s3636 + $0x58] sm:$0xff]
    %v3649 = vld [vmem:[%s3636 + $0x60] sm:$0xff]
    %v3650 = vld [vmem:[%s3636 + $0x68] sm:$0xff]
    %v3651 = vld [vmem:[%s3636 + $0x70] sm:$0xff]
    %v3652 = vld [vmem:[%s3636 + $0x78] sm:$0xff]
    %s3653 = scalar_lea.vmem %s10, 1
    %v3654 = vld [vmem:[%s3653] sm:$0x1]
    %v3656 = vlaneseq
    %v3657 = vshrl.u32 %v3656, 7
    %v3658 = vsub.s32 0, %v3657
    %v3659 = vrot.slane %v3654, %v3658
    %3661 = vmatprep.subr.mxu0 0.0
    %3662 = vmatpush1.msra.mxu0 %v3637
    %3663 = vmatprep.subr.mxu0 0.0
    %3664 = vmatpush1.msra.mxu0 %v3638
    %3665 = vmatprep.subr.mxu0 0.0
    %3666 = vmatpush1.msra.mxu0 %v3639
    %3667 = vmatprep.subr.mxu0 0.0
    %3668 = vmatpush1.msra.mxu0 %v3640
    %3669 = vmatprep.subr.mxu0 0.0
    %3670 = vmatpush1.msra.mxu0 %v3641
    %3671 = vmatprep.subr.mxu0 0.0
    %3672 = vmatpush1.msra.mxu0 %v3642
    %3673 = vmatprep.subr.mxu0 0.0
    %3674 = vmatpush1.msra.mxu0 %v3643
    %3675 = vmatprep.subr.mxu0 0.0
    %3676 = vmatpush1.msra.mxu0 %v3644
    %3677 = vmatprep.subr.mxu0 0.0
    %3678 = vmatpush1.msra.mxu0 %v3645
    %3679 = vmatprep.subr.mxu0 0.0
    %3680 = vmatpush1.msra.mxu0 %v3646
    %3681 = vmatprep.subr.mxu0 0.0
    %3682 = vmatpush1.msra.mxu0 %v3647
    %3683 = vmatprep.subr.mxu0 0.0
    %3684 = vmatpush1.msra.mxu0 %v3648
    %3685 = vmatprep.subr.mxu0 0.0
    %3686 = vmatpush1.msra.mxu0 %v3649
    %3687 = vmatprep.subr.mxu0 0.0
    %3688 = vmatpush1.msra.mxu0 %v3650
    %3689 = vmatprep.subr.mxu0 0.0
    %3690 = vmatpush1.msra.mxu0 %v3651
    %3691 = vmatprep.subr.mxu0 0.0
    %3692 = vmatpush1.msra.mxu0 %v3652
    %3693 = vmatprep.subr.mxu0 0.0
    %3694 = vmatpush1.msra.mxu0 0.0
    %3695 = vmatprep.subr.mxu0 0.0
    %3696 = vmatpush1.msra.mxu0 0.0
    %3697 = vmatprep.subr.mxu0 0.0
    %3698 = vmatpush1.msra.mxu0 0.0
    %3699 = vmatprep.subr.mxu0 0.0
    %3700 = vmatpush1.msra.mxu0 0.0
    %3701 = vmatprep.subr.mxu0 0.0
    %3702 = vmatpush1.msra.mxu0 0.0
    %3703 = vmatprep.subr.mxu0 0.0
    %3704 = vmatpush1.msra.mxu0 0.0
    %3705 = vmatprep.subr.mxu0 0.0
    %3706 = vmatpush1.msra.mxu0 0.0
    %3707 = vmatprep.subr.mxu0 0.0
    %3708 = vmatpush1.msra.mxu0 0.0
    %3709 = vmatprep.subr.mxu0 0.0
    %3710 = vmatpush1.msra.mxu0 0.0
    %3711 = vmatprep.subr.mxu0 0.0
    %3712 = vmatpush1.msra.mxu0 0.0
    %3713 = vmatprep.subr.mxu0 0.0
    %3714 = vmatpush1.msra.mxu0 0.0
    %3715 = vmatprep.subr.mxu0 0.0
    %3716 = vmatpush1.msra.mxu0 0.0
    %3717 = vmatprep.subr.mxu0 0.0
    %3718 = vmatpush1.msra.mxu0 0.0
    %3719 = vmatprep.subr.mxu0 0.0
    %3720 = vmatpush1.msra.mxu0 0.0
    %3721 = vmatprep.subr.mxu0 0.0
    %3722 = vmatpush1.msra.mxu0 0.0
    %3723 = vmatprep.subr.mxu0 0.0
    %3724 = vmatpush1.msra.mxu0 0.0
    %3725 = vmatprep.mubr.f32.mxu0 0.0
    %3726 = vmatmul.mubr.f32.gmra.mrb[0].mxu0 %v3634
    %v3727 = vpop.f32.mrb[0].mxu0
    %v3728 = vadd.f32 %v3659, %v3727
    %v3729 = vpop.f32.mrb[0].mxu0
    %3730 = vmatprep.mubr.f32.mxu0 0.0
    %3731 = vmatmul.mubr.f32.gmra.mrb[0].mxu0 %v3635
    %v3732 = vpop.f32.mrb[0].mxu0
    %v3733 = vadd.f32 %v3659, %v3732
    %v3734 = vpop.f32.mrb[0].mxu0
    %3735 = vdwg.mxu0
    %v3736 = vadd.f32 %v3530, %v3728
    %v3737 = vadd.f32 %v3531, %v3733
    %v3738 = vsel %vm64, %v3736, 0.0
    %3739 = vadd.xlane.f32.xlu0 %v3738
    %v3740 = vpop.xlane.xlu0 %3739
    %v3741 = vsel %vm64, %v3737, 0.0
    %3742 = vadd.xlane.f32.xlu0 %v3741
    %v3743 = vpop.xlane.xlu0 %3742
    %v3744 = vmul.f32 %v3740, %v1639
    %v3745 = vmul.f32 %v3743, %v1639
    %v3746 = vsub.f32 %v3736, %v3744
    %v3747 = vsub.f32 %v3737, %v3745
    %v3748 = vmul.f32 %v3746, %v3746
    %v3749 = vmul.f32 %v3747, %v3747
    %v3750 = vsel %vm64, %v3748, 0.0
    %3751 = vadd.xlane.f32.xlu0 %v3750
    %v3752 = vpop.xlane.xlu0 %3751
    %v3753 = vsel %vm64, %v3749, 0.0
    %3754 = vadd.xlane.f32.xlu0 %v3753
    %v3755 = vpop.xlane.xlu0 %3754
    %v3756 = vmul.f32 %v3752, %v1639
    %v3757 = vmul.f32 %v3755, %v1639
    %v3758 = vadd.f32 %v3756, 1e-05
    %v3759 = vadd.f32 %v3757, 1e-05
    %v3760 = vrsqrt.pop %v3758
    %v3761 = vrsqrt.pop %v3759
    %v3762 = vmul.f32 %v3746, %v3760
    %v3763 = vmul.f32 %v3747, %v3761
    %v3764 = vmul.f32 %v3762, %v3520
    %v3765 = vmul.f32 %v3763, %v3520
    %v3766 = vadd.f32 %v3764, %v3528
    %v3767 = vadd.f32 %v3765, %v3528
    %s3768 = scalar_lea.vmem %s1, 64
    %v3769 = vld [vmem:[%s3768] sm:$0xff]
    %v3770 = vld [vmem:[%s3768 + $0x8] sm:$0xff]
    %v3771 = vld [vmem:[%s3768 + $0x10] sm:$0xff]
    %v3772 = vld [vmem:[%s3768 + $0x18] sm:$0xff]
    %s3773 = scalar_lea.vmem %s2, 2
    %v3774 = vld [vmem:[%s3773] sm:$0x1]
    %v3776 = vlaneseq
    %v3777 = vshrl.u32 %v3776, 7
    %v3778 = vsub.s32 0, %v3777
    %v3779 = vrot.slane %v3774, %v3778
    %v3782 = vsel %vm64, %v3766, 0
    %v3785 = vsel %vm64, %v3767, 0
    %3787 = vmatprep.subr.mxu0 0.0
    %3788 = vmatpush1.msra.mxu0 %v3769
    %3789 = vmatprep.subr.mxu0 0.0
    %3790 = vmatpush1.msra.mxu0 %v3770
    %3791 = vmatprep.subr.mxu0 0.0
    %3792 = vmatpush1.msra.mxu0 %v3771
    %3793 = vmatprep.subr.mxu0 0.0
    %3794 = vmatpush1.msra.mxu0 %v3772
    %3795 = vmatprep.subr.mxu0 0.0
    %3796 = vmatpush1.msra.mxu0 0.0
    %3797 = vmatprep.subr.mxu0 0.0
    %3798 = vmatpush1.msra.mxu0 0.0
    %3799 = vmatprep.subr.mxu0 0.0
    %3800 = vmatpush1.msra.mxu0 0.0
    %3801 = vmatprep.subr.mxu0 0.0
    %3802 = vmatpush1.msra.mxu0 0.0
    %3803 = vmatprep.subr.mxu0 0.0
    %3804 = vmatpush1.msra.mxu0 0.0
    %3805 = vmatprep.subr.mxu0 0.0
    %3806 = vmatpush1.msra.mxu0 0.0
    %3807 = vmatprep.subr.mxu0 0.0
    %3808 = vmatpush1.msra.mxu0 0.0
    %3809 = vmatprep.subr.mxu0 0.0
    %3810 = vmatpush1.msra.mxu0 0.0
    %3811 = vmatprep.subr.mxu0 0.0
    %3812 = vmatpush1.msra.mxu0 0.0
    %3813 = vmatprep.subr.mxu0 0.0
    %3814 = vmatpush1.msra.mxu0 0.0
    %3815 = vmatprep.subr.mxu0 0.0
    %3816 = vmatpush1.msra.mxu0 0.0
    %3817 = vmatprep.subr.mxu0 0.0
    %3818 = vmatpush1.msra.mxu0 0.0
    %3819 = vmatprep.subr.mxu0 0.0
    %3820 = vmatpush1.msra.mxu0 0.0
    %3821 = vmatprep.subr.mxu0 0.0
    %3822 = vmatpush1.msra.mxu0 0.0
    %3823 = vmatprep.subr.mxu0 0.0
    %3824 = vmatpush1.msra.mxu0 0.0
    %3825 = vmatprep.subr.mxu0 0.0
    %3826 = vmatpush1.msra.mxu0 0.0
    %3827 = vmatprep.subr.mxu0 0.0
    %3828 = vmatpush1.msra.mxu0 0.0
    %3829 = vmatprep.subr.mxu0 0.0
    %3830 = vmatpush1.msra.mxu0 0.0
    %3831 = vmatprep.subr.mxu0 0.0
    %3832 = vmatpush1.msra.mxu0 0.0
    %3833 = vmatprep.subr.mxu0 0.0
    %3834 = vmatpush1.msra.mxu0 0.0
    %3835 = vmatprep.subr.mxu0 0.0
    %3836 = vmatpush1.msra.mxu0 0.0
    %3837 = vmatprep.subr.mxu0 0.0
    %3838 = vmatpush1.msra.mxu0 0.0
    %3839 = vmatprep.subr.mxu0 0.0
    %3840 = vmatpush1.msra.mxu0 0.0
    %3841 = vmatprep.subr.mxu0 0.0
    %3842 = vmatpush1.msra.mxu0 0.0
    %3843 = vmatprep.subr.mxu0 0.0
    %3844 = vmatpush1.msra.mxu0 0.0
    %3845 = vmatprep.subr.mxu0 0.0
    %3846 = vmatpush1.msra.mxu0 0.0
    %3847 = vmatprep.subr.mxu0 0.0
    %3848 = vmatpush1.msra.mxu0 0.0
    %3849 = vmatprep.subr.mxu0 0.0
    %3850 = vmatpush1.msra.mxu0 0.0
    %3851 = vmatprep.mubr.f32.mxu0 0.0
    %3852 = vmatmul.mubr.f32.gmra.mrb[0].mxu0 %v3782
    %v3853 = vpop.f32.mrb[0].mxu0
    %v3854 = vadd.f32 %v3779, %v3853
    %v3855 = vpop.f32.mrb[0].mxu0
    %3856 = vmatprep.mubr.f32.mxu0 0.0
    %3857 = vmatmul.mubr.f32.gmra.mrb[0].mxu0 %v3785
    %v3858 = vpop.f32.mrb[0].mxu0
    %v3859 = vadd.f32 %v3779, %v3858
    %v3860 = vpop.f32.mrb[0].mxu0
    %3861 = vdwg.mxu0
    %3863 = vrot.lane.b32.xlu0 %v3854, 120
    %v3864 = vpop.permute.xlu0 %3863
    %3865 = vrot.lane.b32.xlu0 %v3854, 112
    %v3866 = vpop.permute.xlu0 %3865
    %3867 = vrot.lane.b32.xlu0 %v3854, 104
    %v3868 = vpop.permute.xlu0 %3867
    %3870 = vrot.lane.b32.xlu0 %v3859, 120
    %v3871 = vpop.permute.xlu0 %3870
    %3872 = vrot.lane.b32.xlu0 %v3859, 112
    %v3873 = vpop.permute.xlu0 %3872
    %3874 = vrot.lane.b32.xlu0 %v3859, 104
    %v3875 = vpop.permute.xlu0 %3874
    %3876 = vrot.lane.b32.xlu0 %v3854, 96
    %v3877 = vpop.permute.xlu0 %3876
    %v3878 = vsel %vm162, %v3854, 0
    %v3880 = vsel %vm162, %v3877, 0
    %3882 = vmatprep.subr.mxu0 0.0
    %3883 = vmatpush1.xpose.msra.mxu0 %v3880
    %3884 = vmatprep.subr.mxu0 0.0
    %3885 = vmatpush1.xpose.msra.mxu0 0.0
    %3886 = vmatprep.subr.mxu0 0.0
    %3887 = vmatpush1.xpose.msra.mxu0 0.0
    %3888 = vmatprep.subr.mxu0 0.0
    %3889 = vmatpush1.xpose.msra.mxu0 0.0
    %3890 = vmatprep.subr.mxu0 0.0
    %3891 = vmatpush1.xpose.msra.mxu0 0.0
    %3892 = vmatprep.subr.mxu0 0.0
    %3893 = vmatpush1.xpose.msra.mxu0 0.0
    %3894 = vmatprep.subr.mxu0 0.0
    %3895 = vmatpush1.xpose.msra.mxu0 0.0
    %3896 = vmatprep.subr.mxu0 0.0
    %3897 = vmatpush1.xpose.msra.mxu0 0.0
    %3898 = vmatprep.subr.mxu0 0.0
    %3899 = vmatpush1.xpose.msra.mxu0 0.0
    %3900 = vmatprep.subr.mxu0 0.0
    %3901 = vmatpush1.xpose.msra.mxu0 0.0
    %3902 = vmatprep.subr.mxu0 0.0
    %3903 = vmatpush1.xpose.msra.mxu0 0.0
    %3904 = vmatprep.subr.mxu0 0.0
    %3905 = vmatpush1.xpose.msra.mxu0 0.0
    %3906 = vmatprep.subr.mxu0 0.0
    %3907 = vmatpush1.xpose.msra.mxu0 0.0
    %3908 = vmatprep.subr.mxu0 0.0
    %3909 = vmatpush1.xpose.msra.mxu0 0.0
    %3910 = vmatprep.subr.mxu0 0.0
    %3911 = vmatpush1.xpose.msra.mxu0 0.0
    %3912 = vmatprep.subr.mxu0 0.0
    %3913 = vmatpush1.xpose.msra.mxu0 0.0
    %3914 = vmatprep.subr.mxu0 0.0
    %3915 = vmatpush1.xpose.msra.mxu0 0.0
    %3916 = vmatprep.subr.mxu0 0.0
    %3917 = vmatpush1.xpose.msra.mxu0 0.0
    %3918 = vmatprep.subr.mxu0 0.0
    %3919 = vmatpush1.xpose.msra.mxu0 0.0
    %3920 = vmatprep.subr.mxu0 0.0
    %3921 = vmatpush1.xpose.msra.mxu0 0.0
    %3922 = vmatprep.subr.mxu0 0.0
    %3923 = vmatpush1.xpose.msra.mxu0 0.0
    %3924 = vmatprep.subr.mxu0 0.0
    %3925 = vmatpush1.xpose.msra.mxu0 0.0
    %3926 = vmatprep.subr.mxu0 0.0
    %3927 = vmatpush1.xpose.msra.mxu0 0.0
    %3928 = vmatprep.subr.mxu0 0.0
    %3929 = vmatpush1.xpose.msra.mxu0 0.0
    %3930 = vmatprep.subr.mxu0 0.0
    %3931 = vmatpush1.xpose.msra.mxu0 0.0
    %3932 = vmatprep.subr.mxu0 0.0
    %3933 = vmatpush1.xpose.msra.mxu0 0.0
    %3934 = vmatprep.subr.mxu0 0.0
    %3935 = vmatpush1.xpose.msra.mxu0 0.0
    %3936 = vmatprep.subr.mxu0 0.0
    %3937 = vmatpush1.xpose.msra.mxu0 0.0
    %3938 = vmatprep.subr.mxu0 0.0
    %3939 = vmatpush1.xpose.msra.mxu0 0.0
    %3940 = vmatprep.subr.mxu0 0.0
    %3941 = vmatpush1.xpose.msra.mxu0 0.0
    %3942 = vmatprep.subr.mxu0 0.0
    %3943 = vmatpush1.xpose.msra.mxu0 0.0
    %3944 = vmatprep.subr.mxu0 0.0
    %3945 = vmatpush1.xpose.msra.mxu0 0.0
    %3946 = vmatprep.mubr.f32.mxu0 0.0
    %3947 = vmatmul.mubr.f32.gmra.mrb[0].mxu0 %v3878
    %v3948 = vpop.f32.mrb[0].mxu0
    %v3949 = vadd.f32 0.0, %v3948
    %v3950 = vpop.f32.mrb[0].mxu0
    %3951 = vdwg.mxu0
    %3952 = vrot.lane.b32.xlu0 %v3864, 96
    %v3953 = vpop.permute.xlu0 %3952
    %v3954 = vsel %vm162, %v3864, 0
    %v3956 = vsel %vm162, %v3953, 0
    %3958 = vmatprep.subr.mxu0 0.0
    %3959 = vmatpush1.xpose.msra.mxu0 %v3956
    %3960 = vmatprep.subr.mxu0 0.0
    %3961 = vmatpush1.xpose.msra.mxu0 0.0
    %3962 = vmatprep.subr.mxu0 0.0
    %3963 = vmatpush1.xpose.msra.mxu0 0.0
    %3964 = vmatprep.subr.mxu0 0.0
    %3965 = vmatpush1.xpose.msra.mxu0 0.0
    %3966 = vmatprep.subr.mxu0 0.0
    %3967 = vmatpush1.xpose.msra.mxu0 0.0
    %3968 = vmatprep.subr.mxu0 0.0
    %3969 = vmatpush1.xpose.msra.mxu0 0.0
    %3970 = vmatprep.subr.mxu0 0.0
    %3971 = vmatpush1.xpose.msra.mxu0 0.0
    %3972 = vmatprep.subr.mxu0 0.0
    %3973 = vmatpush1.xpose.msra.mxu0 0.0
    %3974 = vmatprep.subr.mxu0 0.0
    %3975 = vmatpush1.xpose.msra.mxu0 0.0
    %3976 = vmatprep.subr.mxu0 0.0
    %3977 = vmatpush1.xpose.msra.mxu0 0.0
    %3978 = vmatprep.subr.mxu0 0.0
    %3979 = vmatpush1.xpose.msra.mxu0 0.0
    %3980 = vmatprep.subr.mxu0 0.0
    %3981 = vmatpush1.xpose.msra.mxu0 0.0
    %3982 = vmatprep.subr.mxu0 0.0
    %3983 = vmatpush1.xpose.msra.mxu0 0.0
    %3984 = vmatprep.subr.mxu0 0.0
    %3985 = vmatpush1.xpose.msra.mxu0 0.0
    %3986 = vmatprep.subr.mxu0 0.0
    %3987 = vmatpush1.xpose.msra.mxu0 0.0
    %3988 = vmatprep.subr.mxu0 0.0
    %3989 = vmatpush1.xpose.msra.mxu0 0.0
    %3990 = vmatprep.subr.mxu0 0.0
    %3991 = vmatpush1.xpose.msra.mxu0 0.0
    %3992 = vmatprep.subr.mxu0 0.0
    %3993 = vmatpush1.xpose.msra.mxu0 0.0
    %3994 = vmatprep.subr.mxu0 0.0
    %3995 = vmatpush1.xpose.msra.mxu0 0.0
    %3996 = vmatprep.subr.mxu0 0.0
    %3997 = vmatpush1.xpose.msra.mxu0 0.0
    %3998 = vmatprep.subr.mxu0 0.0
    %3999 = vmatpush1.xpose.msra.mxu0 0.0
    %4000 = vmatprep.subr.mxu0 0.0
    %4001 = vmatpush1.xpose.msra.mxu0 0.0
    %4002 = vmatprep.subr.mxu0 0.0
    %4003 = vmatpush1.xpose.msra.mxu0 0.0
    %4004 = vmatprep.subr.mxu0 0.0
    %4005 = vmatpush1.xpose.msra.mxu0 0.0
    %4006 = vmatprep.subr.mxu0 0.0
    %4007 = vmatpush1.xpose.msra.mxu0 0.0
    %4008 = vmatprep.subr.mxu0 0.0
    %4009 = vmatpush1.xpose.msra.mxu0 0.0
    %4010 = vmatprep.subr.mxu0 0.0
    %4011 = vmatpush1.xpose.msra.mxu0 0.0
    %4012 = vmatprep.subr.mxu0 0.0
    %4013 = vmatpush1.xpose.msra.mxu0 0.0
    %4014 = vmatprep.subr.mxu0 0.0
    %4015 = vmatpush1.xpose.msra.mxu0 0.0
    %4016 = vmatprep.subr.mxu0 0.0
    %4017 = vmatpush1.xpose.msra.mxu0 0.0
    %4018 = vmatprep.subr.mxu0 0.0
    %4019 = vmatpush1.xpose.msra.mxu0 0.0
    %4020 = vmatprep.subr.mxu0 0.0
    %4021 = vmatpush1.xpose.msra.mxu0 0.0
    %4022 = vmatprep.mubr.f32.mxu0 0.0
    %4023 = vmatmul.mubr.f32.gmra.mrb[0].mxu0 %v3954
    %v4024 = vpop.f32.mrb[0].mxu0
    %v4025 = vadd.f32 0.0, %v4024
    %v4026 = vpop.f32.mrb[0].mxu0
    %4027 = vdwg.mxu0
    %4028 = vrot.lane.b32.xlu0 %v3866, 96
    %v4029 = vpop.permute.xlu0 %4028
    %v4030 = vsel %vm162, %v3866, 0
    %v4032 = vsel %vm162, %v4029, 0
    %4034 = vmatprep.subr.mxu0 0.0
    %4035 = vmatpush1.xpose.msra.mxu0 %v4032
    %4036 = vmatprep.subr.mxu0 0.0
    %4037 = vmatpush1.xpose.msra.mxu0 0.0
    %4038 = vmatprep.subr.mxu0 0.0
    %4039 = vmatpush1.xpose.msra.mxu0 0.0
    %4040 = vmatprep.subr.mxu0 0.0
    %4041 = vmatpush1.xpose.msra.mxu0 0.0
    %4042 = vmatprep.subr.mxu0 0.0
    %4043 = vmatpush1.xpose.msra.mxu0 0.0
    %4044 = vmatprep.subr.mxu0 0.0
    %4045 = vmatpush1.xpose.msra.mxu0 0.0
    %4046 = vmatprep.subr.mxu0 0.0
    %4047 = vmatpush1.xpose.msra.mxu0 0.0
    %4048 = vmatprep.subr.mxu0 0.0
    %4049 = vmatpush1.xpose.msra.mxu0 0.0
    %4050 = vmatprep.subr.mxu0 0.0
    %4051 = vmatpush1.xpose.msra.mxu0 0.0
    %4052 = vmatprep.subr.mxu0 0.0
    %4053 = vmatpush1.xpose.msra.mxu0 0.0
    %4054 = vmatprep.subr.mxu0 0.0
    %4055 = vmatpush1.xpose.msra.mxu0 0.0
    %4056 = vmatprep.subr.mxu0 0.0
    %4057 = vmatpush1.xpose.msra.mxu0 0.0
    %4058 = vmatprep.subr.mxu0 0.0
    %4059 = vmatpush1.xpose.msra.mxu0 0.0
    %4060 = vmatprep.subr.mxu0 0.0
    %4061 = vmatpush1.xpose.msra.mxu0 0.0
    %4062 = vmatprep.subr.mxu0 0.0
    %4063 = vmatpush1.xpose.msra.mxu0 0.0
    %4064 = vmatprep.subr.mxu0 0.0
    %4065 = vmatpush1.xpose.msra.mxu0 0.0
    %4066 = vmatprep.subr.mxu0 0.0
    %4067 = vmatpush1.xpose.msra.mxu0 0.0
    %4068 = vmatprep.subr.mxu0 0.0
    %4069 = vmatpush1.xpose.msra.mxu0 0.0
    %4070 = vmatprep.subr.mxu0 0.0
    %4071 = vmatpush1.xpose.msra.mxu0 0.0
    %4072 = vmatprep.subr.mxu0 0.0
    %4073 = vmatpush1.xpose.msra.mxu0 0.0
    %4074 = vmatprep.subr.mxu0 0.0
    %4075 = vmatpush1.xpose.msra.mxu0 0.0
    %4076 = vmatprep.subr.mxu0 0.0
    %4077 = vmatpush1.xpose.msra.mxu0 0.0
    %4078 = vmatprep.subr.mxu0 0.0
    %4079 = vmatpush1.xpose.msra.mxu0 0.0
    %4080 = vmatprep.subr.mxu0 0.0
    %4081 = vmatpush1.xpose.msra.mxu0 0.0
    %4082 = vmatprep.subr.mxu0 0.0
    %4083 = vmatpush1.xpose.msra.mxu0 0.0
    %4084 = vmatprep.subr.mxu0 0.0
    %4085 = vmatpush1.xpose.msra.mxu0 0.0
    %4086 = vmatprep.subr.mxu0 0.0
    %4087 = vmatpush1.xpose.msra.mxu0 0.0
    %4088 = vmatprep.subr.mxu0 0.0
    %4089 = vmatpush1.xpose.msra.mxu0 0.0
    %4090 = vmatprep.subr.mxu0 0.0
    %4091 = vmatpush1.xpose.msra.mxu0 0.0
    %4092 = vmatprep.subr.mxu0 0.0
    %4093 = vmatpush1.xpose.msra.mxu0 0.0
    %4094 = vmatprep.subr.mxu0 0.0
    %4095 = vmatpush1.xpose.msra.mxu0 0.0
    %4096 = vmatprep.subr.mxu0 0.0
    %4097 = vmatpush1.xpose.msra.mxu0 0.0
    %4098 = vmatprep.mubr.f32.mxu0 0.0
    %4099 = vmatmul.mubr.f32.gmra.mrb[0].mxu0 %v4030
    %v4100 = vpop.f32.mrb[0].mxu0
    %v4101 = vadd.f32 0.0, %v4100
    %v4102 = vpop.f32.mrb[0].mxu0
    %4103 = vdwg.mxu0
    %4104 = vrot.lane.b32.xlu0 %v3868, 96
    %v4105 = vpop.permute.xlu0 %4104
    %v4106 = vsel %vm162, %v3868, 0
    %v4108 = vsel %vm162, %v4105, 0
    %4110 = vmatprep.subr.mxu0 0.0
    %4111 = vmatpush1.xpose.msra.mxu0 %v4108
    %4112 = vmatprep.subr.mxu0 0.0
    %4113 = vmatpush1.xpose.msra.mxu0 0.0
    %4114 = vmatprep.subr.mxu0 0.0
    %4115 = vmatpush1.xpose.msra.mxu0 0.0
    %4116 = vmatprep.subr.mxu0 0.0
    %4117 = vmatpush1.xpose.msra.mxu0 0.0
    %4118 = vmatprep.subr.mxu0 0.0
    %4119 = vmatpush1.xpose.msra.mxu0 0.0
    %4120 = vmatprep.subr.mxu0 0.0
    %4121 = vmatpush1.xpose.msra.mxu0 0.0
    %4122 = vmatprep.subr.mxu0 0.0
    %4123 = vmatpush1.xpose.msra.mxu0 0.0
    %4124 = vmatprep.subr.mxu0 0.0
    %4125 = vmatpush1.xpose.msra.mxu0 0.0
    %4126 = vmatprep.subr.mxu0 0.0
    %4127 = vmatpush1.xpose.msra.mxu0 0.0
    %4128 = vmatprep.subr.mxu0 0.0
    %4129 = vmatpush1.xpose.msra.mxu0 0.0
    %4130 = vmatprep.subr.mxu0 0.0
    %4131 = vmatpush1.xpose.msra.mxu0 0.0
    %4132 = vmatprep.subr.mxu0 0.0
    %4133 = vmatpush1.xpose.msra.mxu0 0.0
    %4134 = vmatprep.subr.mxu0 0.0
    %4135 = vmatpush1.xpose.msra.mxu0 0.0
    %4136 = vmatprep.subr.mxu0 0.0
    %4137 = vmatpush1.xpose.msra.mxu0 0.0
    %4138 = vmatprep.subr.mxu0 0.0
    %4139 = vmatpush1.xpose.msra.mxu0 0.0
    %4140 = vmatprep.subr.mxu0 0.0
    %4141 = vmatpush1.xpose.msra.mxu0 0.0
    %4142 = vmatprep.subr.mxu0 0.0
    %4143 = vmatpush1.xpose.msra.mxu0 0.0
    %4144 = vmatprep.subr.mxu0 0.0
    %4145 = vmatpush1.xpose.msra.mxu0 0.0
    %4146 = vmatprep.subr.mxu0 0.0
    %4147 = vmatpush1.xpose.msra.mxu0 0.0
    %4148 = vmatprep.subr.mxu0 0.0
    %4149 = vmatpush1.xpose.msra.mxu0 0.0
    %4150 = vmatprep.subr.mxu0 0.0
    %4151 = vmatpush1.xpose.msra.mxu0 0.0
    %4152 = vmatprep.subr.mxu0 0.0
    %4153 = vmatpush1.xpose.msra.mxu0 0.0
    %4154 = vmatprep.subr.mxu0 0.0
    %4155 = vmatpush1.xpose.msra.mxu0 0.0
    %4156 = vmatprep.subr.mxu0 0.0
    %4157 = vmatpush1.xpose.msra.mxu0 0.0
    %4158 = vmatprep.subr.mxu0 0.0
    %4159 = vmatpush1.xpose.msra.mxu0 0.0
    %4160 = vmatprep.subr.mxu0 0.0
    %4161 = vmatpush1.xpose.msra.mxu0 0.0
    %4162 = vmatprep.subr.mxu0 0.0
    %4163 = vmatpush1.xpose.msra.mxu0 0.0
    %4164 = vmatprep.subr.mxu0 0.0
    %4165 = vmatpush1.xpose.msra.mxu0 0.0
    %4166 = vmatprep.subr.mxu0 0.0
    %4167 = vmatpush1.xpose.msra.mxu0 0.0
    %4168 = vmatprep.subr.mxu0 0.0
    %4169 = vmatpush1.xpose.msra.mxu0 0.0
    %4170 = vmatprep.subr.mxu0 0.0
    %4171 = vmatpush1.xpose.msra.mxu0 0.0
    %4172 = vmatprep.subr.mxu0 0.0
    %4173 = vmatpush1.xpose.msra.mxu0 0.0
    %4174 = vmatprep.mubr.f32.mxu0 0.0
    %4175 = vmatmul.mubr.f32.gmra.mrb[0].mxu0 %v4106
    %v4176 = vpop.f32.mrb[0].mxu0
    %v4177 = vadd.f32 0.0, %v4176
    %v4178 = vpop.f32.mrb[0].mxu0
    %4179 = vdwg.mxu0
    %4180 = vrot.lane.b32.xlu0 %v3859, 96
    %v4181 = vpop.permute.xlu0 %4180
    %v4182 = vsel %vm162, %v3859, 0
    %v4184 = vsel %vm162, %v4181, 0
    %4186 = vmatprep.subr.mxu0 0.0
    %4187 = vmatpush1.xpose.msra.mxu0 %v4184
    %4188 = vmatprep.subr.mxu0 0.0
    %4189 = vmatpush1.xpose.msra.mxu0 0.0
    %4190 = vmatprep.subr.mxu0 0.0
    %4191 = vmatpush1.xpose.msra.mxu0 0.0
    %4192 = vmatprep.subr.mxu0 0.0
    %4193 = vmatpush1.xpose.msra.mxu0 0.0
    %4194 = vmatprep.subr.mxu0 0.0
    %4195 = vmatpush1.xpose.msra.mxu0 0.0
    %4196 = vmatprep.subr.mxu0 0.0
    %4197 = vmatpush1.xpose.msra.mxu0 0.0
    %4198 = vmatprep.subr.mxu0 0.0
    %4199 = vmatpush1.xpose.msra.mxu0 0.0
    %4200 = vmatprep.subr.mxu0 0.0
    %4201 = vmatpush1.xpose.msra.mxu0 0.0
    %4202 = vmatprep.subr.mxu0 0.0
    %4203 = vmatpush1.xpose.msra.mxu0 0.0
    %4204 = vmatprep.subr.mxu0 0.0
    %4205 = vmatpush1.xpose.msra.mxu0 0.0
    %4206 = vmatprep.subr.mxu0 0.0
    %4207 = vmatpush1.xpose.msra.mxu0 0.0
    %4208 = vmatprep.subr.mxu0 0.0
    %4209 = vmatpush1.xpose.msra.mxu0 0.0
    %4210 = vmatprep.subr.mxu0 0.0
    %4211 = vmatpush1.xpose.msra.mxu0 0.0
    %4212 = vmatprep.subr.mxu0 0.0
    %4213 = vmatpush1.xpose.msra.mxu0 0.0
    %4214 = vmatprep.subr.mxu0 0.0
    %4215 = vmatpush1.xpose.msra.mxu0 0.0
    %4216 = vmatprep.subr.mxu0 0.0
    %4217 = vmatpush1.xpose.msra.mxu0 0.0
    %4218 = vmatprep.subr.mxu0 0.0
    %4219 = vmatpush1.xpose.msra.mxu0 0.0
    %4220 = vmatprep.subr.mxu0 0.0
    %4221 = vmatpush1.xpose.msra.mxu0 0.0
    %4222 = vmatprep.subr.mxu0 0.0
    %4223 = vmatpush1.xpose.msra.mxu0 0.0
    %4224 = vmatprep.subr.mxu0 0.0
    %4225 = vmatpush1.xpose.msra.mxu0 0.0
    %4226 = vmatprep.subr.mxu0 0.0
    %4227 = vmatpush1.xpose.msra.mxu0 0.0
    %4228 = vmatprep.subr.mxu0 0.0
    %4229 = vmatpush1.xpose.msra.mxu0 0.0
    %4230 = vmatprep.subr.mxu0 0.0
    %4231 = vmatpush1.xpose.msra.mxu0 0.0
    %4232 = vmatprep.subr.mxu0 0.0
    %4233 = vmatpush1.xpose.msra.mxu0 0.0
    %4234 = vmatprep.subr.mxu0 0.0
    %4235 = vmatpush1.xpose.msra.mxu0 0.0
    %4236 = vmatprep.subr.mxu0 0.0
    %4237 = vmatpush1.xpose.msra.mxu0 0.0
    %4238 = vmatprep.subr.mxu0 0.0
    %4239 = vmatpush1.xpose.msra.mxu0 0.0
    %4240 = vmatprep.subr.mxu0 0.0
    %4241 = vmatpush1.xpose.msra.mxu0 0.0
    %4242 = vmatprep.subr.mxu0 0.0
    %4243 = vmatpush1.xpose.msra.mxu0 0.0
    %4244 = vmatprep.subr.mxu0 0.0
    %4245 = vmatpush1.xpose.msra.mxu0 0.0
    %4246 = vmatprep.subr.mxu0 0.0
    %4247 = vmatpush1.xpose.msra.mxu0 0.0
    %4248 = vmatprep.subr.mxu0 0.0
    %4249 = vmatpush1.xpose.msra.mxu0 0.0
    %4250 = vmatprep.mubr.f32.mxu0 0.0
    %4251 = vmatmul.mubr.f32.gmra.mrb[0].mxu0 %v4182
    %v4252 = vpop.f32.mrb[0].mxu0
    %v4253 = vadd.f32 0.0, %v4252
    %v4254 = vpop.f32.mrb[0].mxu0
    %4255 = vdwg.mxu0
    %4256 = vrot.lane.b32.xlu0 %v3871, 96
    %v4257 = vpop.permute.xlu0 %4256
    %v4258 = vsel %vm162, %v3871, 0
    %v4260 = vsel %vm162, %v4257, 0
    %4262 = vmatprep.subr.mxu0 0.0
    %4263 = vmatpush1.xpose.msra.mxu0 %v4260
    %4264 = vmatprep.subr.mxu0 0.0
    %4265 = vmatpush1.xpose.msra.mxu0 0.0
    %4266 = vmatprep.subr.mxu0 0.0
    %4267 = vmatpush1.xpose.msra.mxu0 0.0
    %4268 = vmatprep.subr.mxu0 0.0
    %4269 = vmatpush1.xpose.msra.mxu0 0.0
    %4270 = vmatprep.subr.mxu0 0.0
    %4271 = vmatpush1.xpose.msra.mxu0 0.0
    %4272 = vmatprep.subr.mxu0 0.0
    %4273 = vmatpush1.xpose.msra.mxu0 0.0
    %4274 = vmatprep.subr.mxu0 0.0
    %4275 = vmatpush1.xpose.msra.mxu0 0.0
    %4276 = vmatprep.subr.mxu0 0.0
    %4277 = vmatpush1.xpose.msra.mxu0 0.0
    %4278 = vmatprep.subr.mxu0 0.0
    %4279 = vmatpush1.xpose.msra.mxu0 0.0
    %4280 = vmatprep.subr.mxu0 0.0
    %4281 = vmatpush1.xpose.msra.mxu0 0.0
    %4282 = vmatprep.subr.mxu0 0.0
    %4283 = vmatpush1.xpose.msra.mxu0 0.0
    %4284 = vmatprep.subr.mxu0 0.0
    %4285 = vmatpush1.xpose.msra.mxu0 0.0
    %4286 = vmatprep.subr.mxu0 0.0
    %4287 = vmatpush1.xpose.msra.mxu0 0.0
    %4288 = vmatprep.subr.mxu0 0.0
    %4289 = vmatpush1.xpose.msra.mxu0 0.0
    %4290 = vmatprep.subr.mxu0 0.0
    %4291 = vmatpush1.xpose.msra.mxu0 0.0
    %4292 = vmatprep.subr.mxu0 0.0
    %4293 = vmatpush1.xpose.msra.mxu0 0.0
    %4294 = vmatprep.subr.mxu0 0.0
    %4295 = vmatpush1.xpose.msra.mxu0 0.0
    %4296 = vmatprep.subr.mxu0 0.0
    %4297 = vmatpush1.xpose.msra.mxu0 0.0
    %4298 = vmatprep.subr.mxu0 0.0
    %4299 = vmatpush1.xpose.msra.mxu0 0.0
    %4300 = vmatprep.subr.mxu0 0.0
    %4301 = vmatpush1.xpose.msra.mxu0 0.0
    %4302 = vmatprep.subr.mxu0 0.0
    %4303 = vmatpush1.xpose.msra.mxu0 0.0
    %4304 = vmatprep.subr.mxu0 0.0
    %4305 = vmatpush1.xpose.msra.mxu0 0.0
    %4306 = vmatprep.subr.mxu0 0.0
    %4307 = vmatpush1.xpose.msra.mxu0 0.0
    %4308 = vmatprep.subr.mxu0 0.0
    %4309 = vmatpush1.xpose.msra.mxu0 0.0
    %4310 = vmatprep.subr.mxu0 0.0
    %4311 = vmatpush1.xpose.msra.mxu0 0.0
    %4312 = vmatprep.subr.mxu0 0.0
    %4313 = vmatpush1.xpose.msra.mxu0 0.0
    %4314 = vmatprep.subr.mxu0 0.0
    %4315 = vmatpush1.xpose.msra.mxu0 0.0
    %4316 = vmatprep.subr.mxu0 0.0
    %4317 = vmatpush1.xpose.msra.mxu0 0.0
    %4318 = vmatprep.subr.mxu0 0.0
    %4319 = vmatpush1.xpose.msra.mxu0 0.0
    %4320 = vmatprep.subr.mxu0 0.0
    %4321 = vmatpush1.xpose.msra.mxu0 0.0
    %4322 = vmatprep.subr.mxu0 0.0
    %4323 = vmatpush1.xpose.msra.mxu0 0.0
    %4324 = vmatprep.subr.mxu0 0.0
    %4325 = vmatpush1.xpose.msra.mxu0 0.0
    %4326 = vmatprep.mubr.f32.mxu0 0.0
    %4327 = vmatmul.mubr.f32.gmra.mrb[0].mxu0 %v4258
    %v4328 = vpop.f32.mrb[0].mxu0
    %v4329 = vadd.f32 0.0, %v4328
    %v4330 = vpop.f32.mrb[0].mxu0
    %4331 = vdwg.mxu0
    %4332 = vrot.lane.b32.xlu0 %v3873, 96
    %v4333 = vpop.permute.xlu0 %4332
    %v4334 = vsel %vm162, %v3873, 0
    %v4336 = vsel %vm162, %v4333, 0
    %4338 = vmatprep.subr.mxu0 0.0
    %4339 = vmatpush1.xpose.msra.mxu0 %v4336
    %4340 = vmatprep.subr.mxu0 0.0
    %4341 = vmatpush1.xpose.msra.mxu0 0.0
    %4342 = vmatprep.subr.mxu0 0.0
    %4343 = vmatpush1.xpose.msra.mxu0 0.0
    %4344 = vmatprep.subr.mxu0 0.0
    %4345 = vmatpush1.xpose.msra.mxu0 0.0
    %4346 = vmatprep.subr.mxu0 0.0
    %4347 = vmatpush1.xpose.msra.mxu0 0.0
    %4348 = vmatprep.subr.mxu0 0.0
    %4349 = vmatpush1.xpose.msra.mxu0 0.0
    %4350 = vmatprep.subr.mxu0 0.0
    %4351 = vmatpush1.xpose.msra.mxu0 0.0
    %4352 = vmatprep.subr.mxu0 0.0
    %4353 = vmatpush1.xpose.msra.mxu0 0.0
    %4354 = vmatprep.subr.mxu0 0.0
    %4355 = vmatpush1.xpose.msra.mxu0 0.0
    %4356 = vmatprep.subr.mxu0 0.0
    %4357 = vmatpush1.xpose.msra.mxu0 0.0
    %4358 = vmatprep.subr.mxu0 0.0
    %4359 = vmatpush1.xpose.msra.mxu0 0.0
    %4360 = vmatprep.subr.mxu0 0.0
    %4361 = vmatpush1.xpose.msra.mxu0 0.0
    %4362 = vmatprep.subr.mxu0 0.0
    %4363 = vmatpush1.xpose.msra.mxu0 0.0
    %4364 = vmatprep.subr.mxu0 0.0
    %4365 = vmatpush1.xpose.msra.mxu0 0.0
    %4366 = vmatprep.subr.mxu0 0.0
    %4367 = vmatpush1.xpose.msra.mxu0 0.0
    %4368 = vmatprep.subr.mxu0 0.0
    %4369 = vmatpush1.xpose.msra.mxu0 0.0
    %4370 = vmatprep.subr.mxu0 0.0
    %4371 = vmatpush1.xpose.msra.mxu0 0.0
    %4372 = vmatprep.subr.mxu0 0.0
    %4373 = vmatpush1.xpose.msra.mxu0 0.0
    %4374 = vmatprep.subr.mxu0 0.0
    %4375 = vmatpush1.xpose.msra.mxu0 0.0
    %4376 = vmatprep.subr.mxu0 0.0
    %4377 = vmatpush1.xpose.msra.mxu0 0.0
    %4378 = vmatprep.subr.mxu0 0.0
    %4379 = vmatpush1.xpose.msra.mxu0 0.0
    %4380 = vmatprep.subr.mxu0 0.0
    %4381 = vmatpush1.xpose.msra.mxu0 0.0
    %4382 = vmatprep.subr.mxu0 0.0
    %4383 = vmatpush1.xpose.msra.mxu0 0.0
    %4384 = vmatprep.subr.mxu0 0.0
    %4385 = vmatpush1.xpose.msra.mxu0 0.0
    %4386 = vmatprep.subr.mxu0 0.0
    %4387 = vmatpush1.xpose.msra.mxu0 0.0
    %4388 = vmatprep.subr.mxu0 0.0
    %4389 = vmatpush1.xpose.msra.mxu0 0.0
    %4390 = vmatprep.subr.mxu0 0.0
    %4391 = vmatpush1.xpose.msra.mxu0 0.0
    %4392 = vmatprep.subr.mxu0 0.0
    %4393 = vmatpush1.xpose.msra.mxu0 0.0
    %4394 = vmatprep.subr.mxu0 0.0
    %4395 = vmatpush1.xpose.msra.mxu0 0.0
    %4396 = vmatprep.subr.mxu0 0.0
    %4397 = vmatpush1.xpose.msra.mxu0 0.0
    %4398 = vmatprep.subr.mxu0 0.0
    %4399 = vmatpush1.xpose.msra.mxu0 0.0
    %4400 = vmatprep.subr.mxu0 0.0
    %4401 = vmatpush1.xpose.msra.mxu0 0.0
    %4402 = vmatprep.mubr.f32.mxu0 0.0
    %4403 = vmatmul.mubr.f32.gmra.mrb[0].mxu0 %v4334
    %v4404 = vpop.f32.mrb[0].mxu0
    %v4405 = vadd.f32 0.0, %v4404
    %v4406 = vpop.f32.mrb[0].mxu0
    %4407 = vdwg.mxu0
    %4408 = vrot.lane.b32.xlu0 %v3875, 96
    %v4409 = vpop.permute.xlu0 %4408
    %v4410 = vsel %vm162, %v3875, 0
    %v4412 = vsel %vm162, %v4409, 0
    %4414 = vmatprep.subr.mxu0 0.0
    %4415 = vmatpush1.xpose.msra.mxu0 %v4412
    %4416 = vmatprep.subr.mxu0 0.0
    %4417 = vmatpush1.xpose.msra.mxu0 0.0
    %4418 = vmatprep.subr.mxu0 0.0
    %4419 = vmatpush1.xpose.msra.mxu0 0.0
    %4420 = vmatprep.subr.mxu0 0.0
    %4421 = vmatpush1.xpose.msra.mxu0 0.0
    %4422 = vmatprep.subr.mxu0 0.0
    %4423 = vmatpush1.xpose.msra.mxu0 0.0
    %4424 = vmatprep.subr.mxu0 0.0
    %4425 = vmatpush1.xpose.msra.mxu0 0.0
    %4426 = vmatprep.subr.mxu0 0.0
    %4427 = vmatpush1.xpose.msra.mxu0 0.0
    %4428 = vmatprep.subr.mxu0 0.0
    %4429 = vmatpush1.xpose.msra.mxu0 0.0
    %4430 = vmatprep.subr.mxu0 0.0
    %4431 = vmatpush1.xpose.msra.mxu0 0.0
    %4432 = vmatprep.subr.mxu0 0.0
    %4433 = vmatpush1.xpose.msra.mxu0 0.0
    %4434 = vmatprep.subr.mxu0 0.0
    %4435 = vmatpush1.xpose.msra.mxu0 0.0
    %4436 = vmatprep.subr.mxu0 0.0
    %4437 = vmatpush1.xpose.msra.mxu0 0.0
    %4438 = vmatprep.subr.mxu0 0.0
    %4439 = vmatpush1.xpose.msra.mxu0 0.0
    %4440 = vmatprep.subr.mxu0 0.0
    %4441 = vmatpush1.xpose.msra.mxu0 0.0
    %4442 = vmatprep.subr.mxu0 0.0
    %4443 = vmatpush1.xpose.msra.mxu0 0.0
    %4444 = vmatprep.subr.mxu0 0.0
    %4445 = vmatpush1.xpose.msra.mxu0 0.0
    %4446 = vmatprep.subr.mxu0 0.0
    %4447 = vmatpush1.xpose.msra.mxu0 0.0
    %4448 = vmatprep.subr.mxu0 0.0
    %4449 = vmatpush1.xpose.msra.mxu0 0.0
    %4450 = vmatprep.subr.mxu0 0.0
    %4451 = vmatpush1.xpose.msra.mxu0 0.0
    %4452 = vmatprep.subr.mxu0 0.0
    %4453 = vmatpush1.xpose.msra.mxu0 0.0
    %4454 = vmatprep.subr.mxu0 0.0
    %4455 = vmatpush1.xpose.msra.mxu0 0.0
    %4456 = vmatprep.subr.mxu0 0.0
    %4457 = vmatpush1.xpose.msra.mxu0 0.0
    %4458 = vmatprep.subr.mxu0 0.0
    %4459 = vmatpush1.xpose.msra.mxu0 0.0
    %4460 = vmatprep.subr.mxu0 0.0
    %4461 = vmatpush1.xpose.msra.mxu0 0.0
    %4462 = vmatprep.subr.mxu0 0.0
    %4463 = vmatpush1.xpose.msra.mxu0 0.0
    %4464 = vmatprep.subr.mxu0 0.0
    %4465 = vmatpush1.xpose.msra.mxu0 0.0
    %4466 = vmatprep.subr.mxu0 0.0
    %4467 = vmatpush1.xpose.msra.mxu0 0.0
    %4468 = vmatprep.subr.mxu0 0.0
    %4469 = vmatpush1.xpose.msra.mxu0 0.0
    %4470 = vmatprep.subr.mxu0 0.0
    %4471 = vmatpush1.xpose.msra.mxu0 0.0
    %4472 = vmatprep.subr.mxu0 0.0
    %4473 = vmatpush1.xpose.msra.mxu0 0.0
    %4474 = vmatprep.subr.mxu0 0.0
    %4475 = vmatpush1.xpose.msra.mxu0 0.0
    %4476 = vmatprep.subr.mxu0 0.0
    %4477 = vmatpush1.xpose.msra.mxu0 0.0
    %4478 = vmatprep.mubr.f32.mxu0 0.0
    %4479 = vmatmul.mubr.f32.gmra.mrb[0].mxu0 %v4410
    %v4480 = vpop.f32.mrb[0].mxu0
    %v4481 = vadd.f32 0.0, %v4480
    %v4482 = vpop.f32.mrb[0].mxu0
    %4483 = vdwg.mxu0
    %v4484 = vmul.f32 %v3949, 0.35355338
    %v4485 = vmul.f32 %v4025, 0.35355338
    %v4486 = vmul.f32 %v4101, 0.35355338
    %v4487 = vmul.f32 %v4177, 0.35355338
    %v4488 = vmul.f32 %v4253, 0.35355338
    %v4489 = vmul.f32 %v4329, 0.35355338
    %v4490 = vmul.f32 %v4405, 0.35355338
    %v4491 = vmul.f32 %v4481, 0.35355338
    %v4492 = vadd.f32 %v4484, %v52
    %v4493 = vadd.f32 %v4485, %v52
    %v4494 = vadd.f32 %v4486, %v52
    %v4495 = vadd.f32 %v4487, %v52
    %v4496 = vadd.f32 %v4488, %v52
    %v4497 = vadd.f32 %v4489, %v52
    %v4498 = vadd.f32 %v4490, %v52
    %v4499 = vadd.f32 %v4491, %v52
    %v4500 = vsel %vm162, %v4492, -inf
    %4501 = vmax.xlane.f32.xlu0 %v4500
    %v4502 = vpop.xlane.xlu0 %4501
    %v4503 = vsel %vm162, %v4493, -inf
    %4504 = vmax.xlane.f32.xlu0 %v4503
    %v4505 = vpop.xlane.xlu0 %4504
    %v4506 = vsel %vm162, %v4494, -inf
    %4507 = vmax.xlane.f32.xlu0 %v4506
    %v4508 = vpop.xlane.xlu0 %4507
    %v4509 = vsel %vm162, %v4495, -inf
    %4510 = vmax.xlane.f32.xlu0 %v4509
    %v4511 = vpop.xlane.xlu0 %4510
    %v4512 = vsel %vm162, %v4496, -inf
    %4513 = vmax.xlane.f32.xlu0 %v4512
    %v4514 = vpop.xlane.xlu0 %4513
    %v4515 = vsel %vm162, %v4497, -inf
    %4516 = vmax.xlane.f32.xlu0 %v4515
    %v4517 = vpop.xlane.xlu0 %4516
    %v4518 = vsel %vm162, %v4498, -inf
    %4519 = vmax.xlane.f32.xlu0 %v4518
    %v4520 = vpop.xlane.xlu0 %4519
    %v4521 = vsel %vm162, %v4499, -inf
    %4522 = vmax.xlane.f32.xlu0 %v4521
    %v4523 = vpop.xlane.xlu0 %4522
    %v4524 = vsub.f32 %v4492, %v4502
    %v4525 = vsub.f32 %v4493, %v4505
    %v4526 = vsub.f32 %v4494, %v4508
    %v4527 = vsub.f32 %v4495, %v4511
    %v4528 = vsub.f32 %v4496, %v4514
    %v4529 = vsub.f32 %v4497, %v4517
    %v4530 = vsub.f32 %v4498, %v4520
    %v4531 = vsub.f32 %v4499, %v4523
    %v4532 = vmul.f32 %v4524, 1.442695
    %v4533 = vpow.pop %v4532
    %v4534 = vmul.f32 %v4525, 1.442695
    %v4535 = vpow.pop %v4534
    %v4536 = vmul.f32 %v4526, 1.442695
    %v4537 = vpow.pop %v4536
    %v4538 = vmul.f32 %v4527, 1.442695
    %v4539 = vpow.pop %v4538
    %v4540 = vmul.f32 %v4528, 1.442695
    %v4541 = vpow.pop %v4540
    %v4542 = vmul.f32 %v4529, 1.442695
    %v4543 = vpow.pop %v4542
    %v4544 = vmul.f32 %v4530, 1.442695
    %v4545 = vpow.pop %v4544
    %v4546 = vmul.f32 %v4531, 1.442695
    %v4547 = vpow.pop %v4546
    %v4548 = vsel %vm162, %v4533, 0.0
    %4549 = vadd.xlane.f32.xlu0 %v4548
    %v4550 = vpop.xlane.xlu0 %4549
    %v4551 = vsel %vm162, %v4535, 0.0
    %4552 = vadd.xlane.f32.xlu0 %v4551
    %v4553 = vpop.xlane.xlu0 %4552
    %v4554 = vsel %vm162, %v4537, 0.0
    %4555 = vadd.xlane.f32.xlu0 %v4554
    %v4556 = vpop.xlane.xlu0 %4555
    %v4557 = vsel %vm162, %v4539, 0.0
    %4558 = vadd.xlane.f32.xlu0 %v4557
    %v4559 = vpop.xlane.xlu0 %4558
    %v4560 = vsel %vm162, %v4541, 0.0
    %4561 = vadd.xlane.f32.xlu0 %v4560
    %v4562 = vpop.xlane.xlu0 %4561
    %v4563 = vsel %vm162, %v4543, 0.0
    %4564 = vadd.xlane.f32.xlu0 %v4563
    %v4565 = vpop.xlane.xlu0 %4564
    %v4566 = vsel %vm162, %v4545, 0.0
    %4567 = vadd.xlane.f32.xlu0 %v4566
    %v4568 = vpop.xlane.xlu0 %4567
    %v4569 = vsel %vm162, %v4547, 0.0
    %4570 = vadd.xlane.f32.xlu0 %v4569
    %v4571 = vpop.xlane.xlu0 %4570
    %v4572 = vrcp.pop %v4550
    %v4573 = vrcp.pop %v4553
    %v4574 = vrcp.pop %v4556
    %v4575 = vrcp.pop %v4559
    %v4576 = vrcp.pop %v4562
    %v4577 = vrcp.pop %v4565
    %v4578 = vrcp.pop %v4568
    %v4579 = vrcp.pop %v4571
    %v4580 = vmul.f32 %v4550, %v4572
    %v4581 = vmul.f32 %v4553, %v4573
    %v4582 = vmul.f32 %v4556, %v4574
    %v4583 = vmul.f32 %v4559, %v4575
    %v4584 = vmul.f32 %v4562, %v4576
    %v4585 = vmul.f32 %v4565, %v4577
    %v4586 = vmul.f32 %v4568, %v4578
    %v4587 = vmul.f32 %v4571, %v4579
    %v4588 = vsub.f32 2.0, %v4580
    %v4589 = vsub.f32 2.0, %v4581
    %v4590 = vsub.f32 2.0, %v4582
    %v4591 = vsub.f32 2.0, %v4583
    %v4592 = vsub.f32 2.0, %v4584
    %v4593 = vsub.f32 2.0, %v4585
    %v4594 = vsub.f32 2.0, %v4586
    %v4595 = vsub.f32 2.0, %v4587
    %v4596 = vmul.f32 %v4572, %v4588
    %v4597 = vmul.f32 %v4573, %v4589
    %v4598 = vmul.f32 %v4574, %v4590
    %v4599 = vmul.f32 %v4575, %v4591
    %v4600 = vmul.f32 %v4576, %v4592
    %v4601 = vmul.f32 %v4577, %v4593
    %v4602 = vmul.f32 %v4578, %v4594
    %v4603 = vmul.f32 %v4579, %v4595
    %v4604 = vmul.f32 %v4533, %v4596
    %v4605 = vmul.f32 %v4535, %v4597
    %v4606 = vmul.f32 %v4537, %v4598
    %v4607 = vmul.f32 %v4539, %v4599
    %v4608 = vmul.f32 %v4541, %v4600
    %v4609 = vmul.f32 %v4543, %v4601
    %v4610 = vmul.f32 %v4545, %v4602
    %v4611 = vmul.f32 %v4547, %v4603
    %4612 = vrot.lane.b32.xlu0 %v3854, 64
    %v4613 = vpop.permute.xlu0 %4612
    %v4616 = vsel %vm162, %v4604, 0
    %4618 = vmatprep.subr.mxu0 0.0
    %4619 = vmatpush1.msra.mxu0 %v4613
    %4620 = vmatprep.subr.mxu0 0.0
    %4621 = vmatpush1.msra.mxu0 0.0
    %4622 = vmatprep.subr.mxu0 0.0
    %4623 = vmatpush1.msra.mxu0 0.0
    %4624 = vmatprep.subr.mxu0 0.0
    %4625 = vmatpush1.msra.mxu0 0.0
    %4626 = vmatprep.subr.mxu0 0.0
    %4627 = vmatpush1.msra.mxu0 0.0
    %4628 = vmatprep.subr.mxu0 0.0
    %4629 = vmatpush1.msra.mxu0 0.0
    %4630 = vmatprep.subr.mxu0 0.0
    %4631 = vmatpush1.msra.mxu0 0.0
    %4632 = vmatprep.subr.mxu0 0.0
    %4633 = vmatpush1.msra.mxu0 0.0
    %4634 = vmatprep.subr.mxu0 0.0
    %4635 = vmatpush1.msra.mxu0 0.0
    %4636 = vmatprep.subr.mxu0 0.0
    %4637 = vmatpush1.msra.mxu0 0.0
    %4638 = vmatprep.subr.mxu0 0.0
    %4639 = vmatpush1.msra.mxu0 0.0
    %4640 = vmatprep.subr.mxu0 0.0
    %4641 = vmatpush1.msra.mxu0 0.0
    %4642 = vmatprep.subr.mxu0 0.0
    %4643 = vmatpush1.msra.mxu0 0.0
    %4644 = vmatprep.subr.mxu0 0.0
    %4645 = vmatpush1.msra.mxu0 0.0
    %4646 = vmatprep.subr.mxu0 0.0
    %4647 = vmatpush1.msra.mxu0 0.0
    %4648 = vmatprep.subr.mxu0 0.0
    %4649 = vmatpush1.msra.mxu0 0.0
    %4650 = vmatprep.subr.mxu0 0.0
    %4651 = vmatpush1.msra.mxu0 0.0
    %4652 = vmatprep.subr.mxu0 0.0
    %4653 = vmatpush1.msra.mxu0 0.0
    %4654 = vmatprep.subr.mxu0 0.0
    %4655 = vmatpush1.msra.mxu0 0.0
    %4656 = vmatprep.subr.mxu0 0.0
    %4657 = vmatpush1.msra.mxu0 0.0
    %4658 = vmatprep.subr.mxu0 0.0
    %4659 = vmatpush1.msra.mxu0 0.0
    %4660 = vmatprep.subr.mxu0 0.0
    %4661 = vmatpush1.msra.mxu0 0.0
    %4662 = vmatprep.subr.mxu0 0.0
    %4663 = vmatpush1.msra.mxu0 0.0
    %4664 = vmatprep.subr.mxu0 0.0
    %4665 = vmatpush1.msra.mxu0 0.0
    %4666 = vmatprep.subr.mxu0 0.0
    %4667 = vmatpush1.msra.mxu0 0.0
    %4668 = vmatprep.subr.mxu0 0.0
    %4669 = vmatpush1.msra.mxu0 0.0
    %4670 = vmatprep.subr.mxu0 0.0
    %4671 = vmatpush1.msra.mxu0 0.0
    %4672 = vmatprep.subr.mxu0 0.0
    %4673 = vmatpush1.msra.mxu0 0.0
    %4674 = vmatprep.subr.mxu0 0.0
    %4675 = vmatpush1.msra.mxu0 0.0
    %4676 = vmatprep.subr.mxu0 0.0
    %4677 = vmatpush1.msra.mxu0 0.0
    %4678 = vmatprep.subr.mxu0 0.0
    %4679 = vmatpush1.msra.mxu0 0.0
    %4680 = vmatprep.subr.mxu0 0.0
    %4681 = vmatpush1.msra.mxu0 0.0
    %4682 = vmatprep.mubr.f32.mxu0 0.0
    %4683 = vmatmul.mubr.f32.gmra.mrb[0].mxu0 %v4616
    %v4684 = vpop.f32.mrb[0].mxu0
    %v4685 = vadd.f32 0.0, %v4684
    %v4686 = vpop.f32.mrb[0].mxu0
    %4687 = vdwg.mxu0
    %4688 = vrot.lane.b32.xlu0 %v3864, 64
    %v4689 = vpop.permute.xlu0 %4688
    %v4692 = vsel %vm162, %v4605, 0
    %4694 = vmatprep.subr.mxu0 0.0
    %4695 = vmatpush1.msra.mxu0 %v4689
    %4696 = vmatprep.subr.mxu0 0.0
    %4697 = vmatpush1.msra.mxu0 0.0
    %4698 = vmatprep.subr.mxu0 0.0
    %4699 = vmatpush1.msra.mxu0 0.0
    %4700 = vmatprep.subr.mxu0 0.0
    %4701 = vmatpush1.msra.mxu0 0.0
    %4702 = vmatprep.subr.mxu0 0.0
    %4703 = vmatpush1.msra.mxu0 0.0
    %4704 = vmatprep.subr.mxu0 0.0
    %4705 = vmatpush1.msra.mxu0 0.0
    %4706 = vmatprep.subr.mxu0 0.0
    %4707 = vmatpush1.msra.mxu0 0.0
    %4708 = vmatprep.subr.mxu0 0.0
    %4709 = vmatpush1.msra.mxu0 0.0
    %4710 = vmatprep.subr.mxu0 0.0
    %4711 = vmatpush1.msra.mxu0 0.0
    %4712 = vmatprep.subr.mxu0 0.0
    %4713 = vmatpush1.msra.mxu0 0.0
    %4714 = vmatprep.subr.mxu0 0.0
    %4715 = vmatpush1.msra.mxu0 0.0
    %4716 = vmatprep.subr.mxu0 0.0
    %4717 = vmatpush1.msra.mxu0 0.0
    %4718 = vmatprep.subr.mxu0 0.0
    %4719 = vmatpush1.msra.mxu0 0.0
    %4720 = vmatprep.subr.mxu0 0.0
    %4721 = vmatpush1.msra.mxu0 0.0
    %4722 = vmatprep.subr.mxu0 0.0
    %4723 = vmatpush1.msra.mxu0 0.0
    %4724 = vmatprep.subr.mxu0 0.0
    %4725 = vmatpush1.msra.mxu0 0.0
    %4726 = vmatprep.subr.mxu0 0.0
    %4727 = vmatpush1.msra.mxu0 0.0
    %4728 = vmatprep.subr.mxu0 0.0
    %4729 = vmatpush1.msra.mxu0 0.0
    %4730 = vmatprep.subr.mxu0 0.0
    %4731 = vmatpush1.msra.mxu0 0.0
    %4732 = vmatprep.subr.mxu0 0.0
    %4733 = vmatpush1.msra.mxu0 0.0
    %4734 = vmatprep.subr.mxu0 0.0
    %4735 = vmatpush1.msra.mxu0 0.0
    %4736 = vmatprep.subr.mxu0 0.0
    %4737 = vmatpush1.msra.mxu0 0.0
    %4738 = vmatprep.subr.mxu0 0.0
    %4739 = vmatpush1.msra.mxu0 0.0
    %4740 = vmatprep.subr.mxu0 0.0
    %4741 = vmatpush1.msra.mxu0 0.0
    %4742 = vmatprep.subr.mxu0 0.0
    %4743 = vmatpush1.msra.mxu0 0.0
    %4744 = vmatprep.subr.mxu0 0.0
    %4745 = vmatpush1.msra.mxu0 0.0
    %4746 = vmatprep.subr.mxu0 0.0
    %4747 = vmatpush1.msra.mxu0 0.0
    %4748 = vmatprep.subr.mxu0 0.0
    %4749 = vmatpush1.msra.mxu0 0.0
    %4750 = vmatprep.subr.mxu0 0.0
    %4751 = vmatpush1.msra.mxu0 0.0
    %4752 = vmatprep.subr.mxu0 0.0
    %4753 = vmatpush1.msra.mxu0 0.0
    %4754 = vmatprep.subr.mxu0 0.0
    %4755 = vmatpush1.msra.mxu0 0.0
    %4756 = vmatprep.subr.mxu0 0.0
    %4757 = vmatpush1.msra.mxu0 0.0
    %4758 = vmatprep.mubr.f32.mxu0 0.0
    %4759 = vmatmul.mubr.f32.gmra.mrb[0].mxu0 %v4692
    %v4760 = vpop.f32.mrb[0].mxu0
    %v4761 = vadd.f32 0.0, %v4760
    %v4762 = vpop.f32.mrb[0].mxu0
    %4763 = vdwg.mxu0
    %4764 = vrot.lane.b32.xlu0 %v3866, 64
    %v4765 = vpop.permute.xlu0 %4764
    %v4768 = vsel %vm162, %v4606, 0
    %4770 = vmatprep.subr.mxu0 0.0
    %4771 = vmatpush1.msra.mxu0 %v4765
    %4772 = vmatprep.subr.mxu0 0.0
    %4773 = vmatpush1.msra.mxu0 0.0
    %4774 = vmatprep.subr.mxu0 0.0
    %4775 = vmatpush1.msra.mxu0 0.0
    %4776 = vmatprep.subr.mxu0 0.0
    %4777 = vmatpush1.msra.mxu0 0.0
    %4778 = vmatprep.subr.mxu0 0.0
    %4779 = vmatpush1.msra.mxu0 0.0
    %4780 = vmatprep.subr.mxu0 0.0
    %4781 = vmatpush1.msra.mxu0 0.0
    %4782 = vmatprep.subr.mxu0 0.0
    %4783 = vmatpush1.msra.mxu0 0.0
    %4784 = vmatprep.subr.mxu0 0.0
    %4785 = vmatpush1.msra.mxu0 0.0
    %4786 = vmatprep.subr.mxu0 0.0
    %4787 = vmatpush1.msra.mxu0 0.0
    %4788 = vmatprep.subr.mxu0 0.0
    %4789 = vmatpush1.msra.mxu0 0.0
    %4790 = vmatprep.subr.mxu0 0.0
    %4791 = vmatpush1.msra.mxu0 0.0
    %4792 = vmatprep.subr.mxu0 0.0
    %4793 = vmatpush1.msra.mxu0 0.0
    %4794 = vmatprep.subr.mxu0 0.0
    %4795 = vmatpush1.msra.mxu0 0.0
    %4796 = vmatprep.subr.mxu0 0.0
    %4797 = vmatpush1.msra.mxu0 0.0
    %4798 = vmatprep.subr.mxu0 0.0
    %4799 = vmatpush1.msra.mxu0 0.0
    %4800 = vmatprep.subr.mxu0 0.0
    %4801 = vmatpush1.msra.mxu0 0.0
    %4802 = vmatprep.subr.mxu0 0.0
    %4803 = vmatpush1.msra.mxu0 0.0
    %4804 = vmatprep.subr.mxu0 0.0
    %4805 = vmatpush1.msra.mxu0 0.0
    %4806 = vmatprep.subr.mxu0 0.0
    %4807 = vmatpush1.msra.mxu0 0.0
    %4808 = vmatprep.subr.mxu0 0.0
    %4809 = vmatpush1.msra.mxu0 0.0
    %4810 = vmatprep.subr.mxu0 0.0
    %4811 = vmatpush1.msra.mxu0 0.0
    %4812 = vmatprep.subr.mxu0 0.0
    %4813 = vmatpush1.msra.mxu0 0.0
    %4814 = vmatprep.subr.mxu0 0.0
    %4815 = vmatpush1.msra.mxu0 0.0
    %4816 = vmatprep.subr.mxu0 0.0
    %4817 = vmatpush1.msra.mxu0 0.0
    %4818 = vmatprep.subr.mxu0 0.0
    %4819 = vmatpush1.msra.mxu0 0.0
    %4820 = vmatprep.subr.mxu0 0.0
    %4821 = vmatpush1.msra.mxu0 0.0
    %4822 = vmatprep.subr.mxu0 0.0
    %4823 = vmatpush1.msra.mxu0 0.0
    %4824 = vmatprep.subr.mxu0 0.0
    %4825 = vmatpush1.msra.mxu0 0.0
    %4826 = vmatprep.subr.mxu0 0.0
    %4827 = vmatpush1.msra.mxu0 0.0
    %4828 = vmatprep.subr.mxu0 0.0
    %4829 = vmatpush1.msra.mxu0 0.0
    %4830 = vmatprep.subr.mxu0 0.0
    %4831 = vmatpush1.msra.mxu0 0.0
    %4832 = vmatprep.subr.mxu0 0.0
    %4833 = vmatpush1.msra.mxu0 0.0
    %4834 = vmatprep.mubr.f32.mxu0 0.0
    %4835 = vmatmul.mubr.f32.gmra.mrb[0].mxu0 %v4768
    %v4836 = vpop.f32.mrb[0].mxu0
    %v4837 = vadd.f32 0.0, %v4836
    %v4838 = vpop.f32.mrb[0].mxu0
    %4839 = vdwg.mxu0
    %4840 = vrot.lane.b32.xlu0 %v3868, 64
    %v4841 = vpop.permute.xlu0 %4840
    %v4844 = vsel %vm162, %v4607, 0
    %4846 = vmatprep.subr.mxu0 0.0
    %4847 = vmatpush1.msra.mxu0 %v4841
    %4848 = vmatprep.subr.mxu0 0.0
    %4849 = vmatpush1.msra.mxu0 0.0
    %4850 = vmatprep.subr.mxu0 0.0
    %4851 = vmatpush1.msra.mxu0 0.0
    %4852 = vmatprep.subr.mxu0 0.0
    %4853 = vmatpush1.msra.mxu0 0.0
    %4854 = vmatprep.subr.mxu0 0.0
    %4855 = vmatpush1.msra.mxu0 0.0
    %4856 = vmatprep.subr.mxu0 0.0
    %4857 = vmatpush1.msra.mxu0 0.0
    %4858 = vmatprep.subr.mxu0 0.0
    %4859 = vmatpush1.msra.mxu0 0.0
    %4860 = vmatprep.subr.mxu0 0.0
    %4861 = vmatpush1.msra.mxu0 0.0
    %4862 = vmatprep.subr.mxu0 0.0
    %4863 = vmatpush1.msra.mxu0 0.0
    %4864 = vmatprep.subr.mxu0 0.0
    %4865 = vmatpush1.msra.mxu0 0.0
    %4866 = vmatprep.subr.mxu0 0.0
    %4867 = vmatpush1.msra.mxu0 0.0
    %4868 = vmatprep.subr.mxu0 0.0
    %4869 = vmatpush1.msra.mxu0 0.0
    %4870 = vmatprep.subr.mxu0 0.0
    %4871 = vmatpush1.msra.mxu0 0.0
    %4872 = vmatprep.subr.mxu0 0.0
    %4873 = vmatpush1.msra.mxu0 0.0
    %4874 = vmatprep.subr.mxu0 0.0
    %4875 = vmatpush1.msra.mxu0 0.0
    %4876 = vmatprep.subr.mxu0 0.0
    %4877 = vmatpush1.msra.mxu0 0.0
    %4878 = vmatprep.subr.mxu0 0.0
    %4879 = vmatpush1.msra.mxu0 0.0
    %4880 = vmatprep.subr.mxu0 0.0
    %4881 = vmatpush1.msra.mxu0 0.0
    %4882 = vmatprep.subr.mxu0 0.0
    %4883 = vmatpush1.msra.mxu0 0.0
    %4884 = vmatprep.subr.mxu0 0.0
    %4885 = vmatpush1.msra.mxu0 0.0
    %4886 = vmatprep.subr.mxu0 0.0
    %4887 = vmatpush1.msra.mxu0 0.0
    %4888 = vmatprep.subr.mxu0 0.0
    %4889 = vmatpush1.msra.mxu0 0.0
    %4890 = vmatprep.subr.mxu0 0.0
    %4891 = vmatpush1.msra.mxu0 0.0
    %4892 = vmatprep.subr.mxu0 0.0
    %4893 = vmatpush1.msra.mxu0 0.0
    %4894 = vmatprep.subr.mxu0 0.0
    %4895 = vmatpush1.msra.mxu0 0.0
    %4896 = vmatprep.subr.mxu0 0.0
    %4897 = vmatpush1.msra.mxu0 0.0
    %4898 = vmatprep.subr.mxu0 0.0
    %4899 = vmatpush1.msra.mxu0 0.0
    %4900 = vmatprep.subr.mxu0 0.0
    %4901 = vmatpush1.msra.mxu0 0.0
    %4902 = vmatprep.subr.mxu0 0.0
    %4903 = vmatpush1.msra.mxu0 0.0
    %4904 = vmatprep.subr.mxu0 0.0
    %4905 = vmatpush1.msra.mxu0 0.0
    %4906 = vmatprep.subr.mxu0 0.0
    %4907 = vmatpush1.msra.mxu0 0.0
    %4908 = vmatprep.subr.mxu0 0.0
    %4909 = vmatpush1.msra.mxu0 0.0
    %4910 = vmatprep.mubr.f32.mxu0 0.0
    %4911 = vmatmul.mubr.f32.gmra.mrb[0].mxu0 %v4844
    %v4912 = vpop.f32.mrb[0].mxu0
    %v4913 = vadd.f32 0.0, %v4912
    %v4914 = vpop.f32.mrb[0].mxu0
    %4915 = vdwg.mxu0
    %4916 = vrot.lane.b32.xlu0 %v3859, 64
    %v4917 = vpop.permute.xlu0 %4916
    %v4920 = vsel %vm162, %v4608, 0
    %4922 = vmatprep.subr.mxu0 0.0
    %4923 = vmatpush1.msra.mxu0 %v4917
    %4924 = vmatprep.subr.mxu0 0.0
    %4925 = vmatpush1.msra.mxu0 0.0
    %4926 = vmatprep.subr.mxu0 0.0
    %4927 = vmatpush1.msra.mxu0 0.0
    %4928 = vmatprep.subr.mxu0 0.0
    %4929 = vmatpush1.msra.mxu0 0.0
    %4930 = vmatprep.subr.mxu0 0.0
    %4931 = vmatpush1.msra.mxu0 0.0
    %4932 = vmatprep.subr.mxu0 0.0
    %4933 = vmatpush1.msra.mxu0 0.0
    %4934 = vmatprep.subr.mxu0 0.0
    %4935 = vmatpush1.msra.mxu0 0.0
    %4936 = vmatprep.subr.mxu0 0.0
    %4937 = vmatpush1.msra.mxu0 0.0
    %4938 = vmatprep.subr.mxu0 0.0
    %4939 = vmatpush1.msra.mxu0 0.0
    %4940 = vmatprep.subr.mxu0 0.0
    %4941 = vmatpush1.msra.mxu0 0.0
    %4942 = vmatprep.subr.mxu0 0.0
    %4943 = vmatpush1.msra.mxu0 0.0
    %4944 = vmatprep.subr.mxu0 0.0
    %4945 = vmatpush1.msra.mxu0 0.0
    %4946 = vmatprep.subr.mxu0 0.0
    %4947 = vmatpush1.msra.mxu0 0.0
    %4948 = vmatprep.subr.mxu0 0.0
    %4949 = vmatpush1.msra.mxu0 0.0
    %4950 = vmatprep.subr.mxu0 0.0
    %4951 = vmatpush1.msra.mxu0 0.0
    %4952 = vmatprep.subr.mxu0 0.0
    %4953 = vmatpush1.msra.mxu0 0.0
    %4954 = vmatprep.subr.mxu0 0.0
    %4955 = vmatpush1.msra.mxu0 0.0
    %4956 = vmatprep.subr.mxu0 0.0
    %4957 = vmatpush1.msra.mxu0 0.0
    %4958 = vmatprep.subr.mxu0 0.0
    %4959 = vmatpush1.msra.mxu0 0.0
    %4960 = vmatprep.subr.mxu0 0.0
    %4961 = vmatpush1.msra.mxu0 0.0
    %4962 = vmatprep.subr.mxu0 0.0
    %4963 = vmatpush1.msra.mxu0 0.0
    %4964 = vmatprep.subr.mxu0 0.0
    %4965 = vmatpush1.msra.mxu0 0.0
    %4966 = vmatprep.subr.mxu0 0.0
    %4967 = vmatpush1.msra.mxu0 0.0
    %4968 = vmatprep.subr.mxu0 0.0
    %4969 = vmatpush1.msra.mxu0 0.0
    %4970 = vmatprep.subr.mxu0 0.0
    %4971 = vmatpush1.msra.mxu0 0.0
    %4972 = vmatprep.subr.mxu0 0.0
    %4973 = vmatpush1.msra.mxu0 0.0
    %4974 = vmatprep.subr.mxu0 0.0
    %4975 = vmatpush1.msra.mxu0 0.0
    %4976 = vmatprep.subr.mxu0 0.0
    %4977 = vmatpush1.msra.mxu0 0.0
    %4978 = vmatprep.subr.mxu0 0.0
    %4979 = vmatpush1.msra.mxu0 0.0
    %4980 = vmatprep.subr.mxu0 0.0
    %4981 = vmatpush1.msra.mxu0 0.0
    %4982 = vmatprep.subr.mxu0 0.0
    %4983 = vmatpush1.msra.mxu0 0.0
    %4984 = vmatprep.subr.mxu0 0.0
    %4985 = vmatpush1.msra.mxu0 0.0
    %4986 = vmatprep.mubr.f32.mxu0 0.0
    %4987 = vmatmul.mubr.f32.gmra.mrb[0].mxu0 %v4920
    %v4988 = vpop.f32.mrb[0].mxu0
    %v4989 = vadd.f32 0.0, %v4988
    %v4990 = vpop.f32.mrb[0].mxu0
    %4991 = vdwg.mxu0
    %4992 = vrot.lane.b32.xlu0 %v3871, 64
    %v4993 = vpop.permute.xlu0 %4992
    %v4996 = vsel %vm162, %v4609, 0
    %4998 = vmatprep.subr.mxu0 0.0
    %4999 = vmatpush1.msra.mxu0 %v4993
    %5000 = vmatprep.subr.mxu0 0.0
    %5001 = vmatpush1.msra.mxu0 0.0
    %5002 = vmatprep.subr.mxu0 0.0
    %5003 = vmatpush1.msra.mxu0 0.0
    %5004 = vmatprep.subr.mxu0 0.0
    %5005 = vmatpush1.msra.mxu0 0.0
    %5006 = vmatprep.subr.mxu0 0.0
    %5007 = vmatpush1.msra.mxu0 0.0
    %5008 = vmatprep.subr.mxu0 0.0
    %5009 = vmatpush1.msra.mxu0 0.0
    %5010 = vmatprep.subr.mxu0 0.0
    %5011 = vmatpush1.msra.mxu0 0.0
    %5012 = vmatprep.subr.mxu0 0.0
    %5013 = vmatpush1.msra.mxu0 0.0
    %5014 = vmatprep.subr.mxu0 0.0
    %5015 = vmatpush1.msra.mxu0 0.0
    %5016 = vmatprep.subr.mxu0 0.0
    %5017 = vmatpush1.msra.mxu0 0.0
    %5018 = vmatprep.subr.mxu0 0.0
    %5019 = vmatpush1.msra.mxu0 0.0
    %5020 = vmatprep.subr.mxu0 0.0
    %5021 = vmatpush1.msra.mxu0 0.0
    %5022 = vmatprep.subr.mxu0 0.0
    %5023 = vmatpush1.msra.mxu0 0.0
    %5024 = vmatprep.subr.mxu0 0.0
    %5025 = vmatpush1.msra.mxu0 0.0
    %5026 = vmatprep.subr.mxu0 0.0
    %5027 = vmatpush1.msra.mxu0 0.0
    %5028 = vmatprep.subr.mxu0 0.0
    %5029 = vmatpush1.msra.mxu0 0.0
    %5030 = vmatprep.subr.mxu0 0.0
    %5031 = vmatpush1.msra.mxu0 0.0
    %5032 = vmatprep.subr.mxu0 0.0
    %5033 = vmatpush1.msra.mxu0 0.0
    %5034 = vmatprep.subr.mxu0 0.0
    %5035 = vmatpush1.msra.mxu0 0.0
    %5036 = vmatprep.subr.mxu0 0.0
    %5037 = vmatpush1.msra.mxu0 0.0
    %5038 = vmatprep.subr.mxu0 0.0
    %5039 = vmatpush1.msra.mxu0 0.0
    %5040 = vmatprep.subr.mxu0 0.0
    %5041 = vmatpush1.msra.mxu0 0.0
    %5042 = vmatprep.subr.mxu0 0.0
    %5043 = vmatpush1.msra.mxu0 0.0
    %5044 = vmatprep.subr.mxu0 0.0
    %5045 = vmatpush1.msra.mxu0 0.0
    %5046 = vmatprep.subr.mxu0 0.0
    %5047 = vmatpush1.msra.mxu0 0.0
    %5048 = vmatprep.subr.mxu0 0.0
    %5049 = vmatpush1.msra.mxu0 0.0
    %5050 = vmatprep.subr.mxu0 0.0
    %5051 = vmatpush1.msra.mxu0 0.0
    %5052 = vmatprep.subr.mxu0 0.0
    %5053 = vmatpush1.msra.mxu0 0.0
    %5054 = vmatprep.subr.mxu0 0.0
    %5055 = vmatpush1.msra.mxu0 0.0
    %5056 = vmatprep.subr.mxu0 0.0
    %5057 = vmatpush1.msra.mxu0 0.0
    %5058 = vmatprep.subr.mxu0 0.0
    %5059 = vmatpush1.msra.mxu0 0.0
    %5060 = vmatprep.subr.mxu0 0.0
    %5061 = vmatpush1.msra.mxu0 0.0
    %5062 = vmatprep.mubr.f32.mxu0 0.0
    %5063 = vmatmul.mubr.f32.gmra.mrb[0].mxu0 %v4996
    %v5064 = vpop.f32.mrb[0].mxu0
    %v5065 = vadd.f32 0.0, %v5064
    %v5066 = vpop.f32.mrb[0].mxu0
    %5067 = vdwg.mxu0
    %5068 = vrot.lane.b32.xlu0 %v3873, 64
    %v5069 = vpop.permute.xlu0 %5068
    %v5072 = vsel %vm162, %v4610, 0
    %5074 = vmatprep.subr.mxu0 0.0
    %5075 = vmatpush1.msra.mxu0 %v5069
    %5076 = vmatprep.subr.mxu0 0.0
    %5077 = vmatpush1.msra.mxu0 0.0
    %5078 = vmatprep.subr.mxu0 0.0
    %5079 = vmatpush1.msra.mxu0 0.0
    %5080 = vmatprep.subr.mxu0 0.0
    %5081 = vmatpush1.msra.mxu0 0.0
    %5082 = vmatprep.subr.mxu0 0.0
    %5083 = vmatpush1.msra.mxu0 0.0
    %5084 = vmatprep.subr.mxu0 0.0
    %5085 = vmatpush1.msra.mxu0 0.0
    %5086 = vmatprep.subr.mxu0 0.0
    %5087 = vmatpush1.msra.mxu0 0.0
    %5088 = vmatprep.subr.mxu0 0.0
    %5089 = vmatpush1.msra.mxu0 0.0
    %5090 = vmatprep.subr.mxu0 0.0
    %5091 = vmatpush1.msra.mxu0 0.0
    %5092 = vmatprep.subr.mxu0 0.0
    %5093 = vmatpush1.msra.mxu0 0.0
    %5094 = vmatprep.subr.mxu0 0.0
    %5095 = vmatpush1.msra.mxu0 0.0
    %5096 = vmatprep.subr.mxu0 0.0
    %5097 = vmatpush1.msra.mxu0 0.0
    %5098 = vmatprep.subr.mxu0 0.0
    %5099 = vmatpush1.msra.mxu0 0.0
    %5100 = vmatprep.subr.mxu0 0.0
    %5101 = vmatpush1.msra.mxu0 0.0
    %5102 = vmatprep.subr.mxu0 0.0
    %5103 = vmatpush1.msra.mxu0 0.0
    %5104 = vmatprep.subr.mxu0 0.0
    %5105 = vmatpush1.msra.mxu0 0.0
    %5106 = vmatprep.subr.mxu0 0.0
    %5107 = vmatpush1.msra.mxu0 0.0
    %5108 = vmatprep.subr.mxu0 0.0
    %5109 = vmatpush1.msra.mxu0 0.0
    %5110 = vmatprep.subr.mxu0 0.0
    %5111 = vmatpush1.msra.mxu0 0.0
    %5112 = vmatprep.subr.mxu0 0.0
    %5113 = vmatpush1.msra.mxu0 0.0
    %5114 = vmatprep.subr.mxu0 0.0
    %5115 = vmatpush1.msra.mxu0 0.0
    %5116 = vmatprep.subr.mxu0 0.0
    %5117 = vmatpush1.msra.mxu0 0.0
    %5118 = vmatprep.subr.mxu0 0.0
    %5119 = vmatpush1.msra.mxu0 0.0
    %5120 = vmatprep.subr.mxu0 0.0
    %5121 = vmatpush1.msra.mxu0 0.0
    %5122 = vmatprep.subr.mxu0 0.0
    %5123 = vmatpush1.msra.mxu0 0.0
    %5124 = vmatprep.subr.mxu0 0.0
    %5125 = vmatpush1.msra.mxu0 0.0
    %5126 = vmatprep.subr.mxu0 0.0
    %5127 = vmatpush1.msra.mxu0 0.0
    %5128 = vmatprep.subr.mxu0 0.0
    %5129 = vmatpush1.msra.mxu0 0.0
    %5130 = vmatprep.subr.mxu0 0.0
    %5131 = vmatpush1.msra.mxu0 0.0
    %5132 = vmatprep.subr.mxu0 0.0
    %5133 = vmatpush1.msra.mxu0 0.0
    %5134 = vmatprep.subr.mxu0 0.0
    %5135 = vmatpush1.msra.mxu0 0.0
    %5136 = vmatprep.subr.mxu0 0.0
    %5137 = vmatpush1.msra.mxu0 0.0
    %5138 = vmatprep.mubr.f32.mxu0 0.0
    %5139 = vmatmul.mubr.f32.gmra.mrb[0].mxu0 %v5072
    %v5140 = vpop.f32.mrb[0].mxu0
    %v5141 = vadd.f32 0.0, %v5140
    %v5142 = vpop.f32.mrb[0].mxu0
    %5143 = vdwg.mxu0
    %5144 = vrot.lane.b32.xlu0 %v3875, 64
    %v5145 = vpop.permute.xlu0 %5144
    %v5148 = vsel %vm162, %v4611, 0
    %5150 = vmatprep.subr.mxu0 0.0
    %5151 = vmatpush1.msra.mxu0 %v5145
    %5152 = vmatprep.subr.mxu0 0.0
    %5153 = vmatpush1.msra.mxu0 0.0
    %5154 = vmatprep.subr.mxu0 0.0
    %5155 = vmatpush1.msra.mxu0 0.0
    %5156 = vmatprep.subr.mxu0 0.0
    %5157 = vmatpush1.msra.mxu0 0.0
    %5158 = vmatprep.subr.mxu0 0.0
    %5159 = vmatpush1.msra.mxu0 0.0
    %5160 = vmatprep.subr.mxu0 0.0
    %5161 = vmatpush1.msra.mxu0 0.0
    %5162 = vmatprep.subr.mxu0 0.0
    %5163 = vmatpush1.msra.mxu0 0.0
    %5164 = vmatprep.subr.mxu0 0.0
    %5165 = vmatpush1.msra.mxu0 0.0
    %5166 = vmatprep.subr.mxu0 0.0
    %5167 = vmatpush1.msra.mxu0 0.0
    %5168 = vmatprep.subr.mxu0 0.0
    %5169 = vmatpush1.msra.mxu0 0.0
    %5170 = vmatprep.subr.mxu0 0.0
    %5171 = vmatpush1.msra.mxu0 0.0
    %5172 = vmatprep.subr.mxu0 0.0
    %5173 = vmatpush1.msra.mxu0 0.0
    %5174 = vmatprep.subr.mxu0 0.0
    %5175 = vmatpush1.msra.mxu0 0.0
    %5176 = vmatprep.subr.mxu0 0.0
    %5177 = vmatpush1.msra.mxu0 0.0
    %5178 = vmatprep.subr.mxu0 0.0
    %5179 = vmatpush1.msra.mxu0 0.0
    %5180 = vmatprep.subr.mxu0 0.0
    %5181 = vmatpush1.msra.mxu0 0.0
    %5182 = vmatprep.subr.mxu0 0.0
    %5183 = vmatpush1.msra.mxu0 0.0
    %5184 = vmatprep.subr.mxu0 0.0
    %5185 = vmatpush1.msra.mxu0 0.0
    %5186 = vmatprep.subr.mxu0 0.0
    %5187 = vmatpush1.msra.mxu0 0.0
    %5188 = vmatprep.subr.mxu0 0.0
    %5189 = vmatpush1.msra.mxu0 0.0
    %5190 = vmatprep.subr.mxu0 0.0
    %5191 = vmatpush1.msra.mxu0 0.0
    %5192 = vmatprep.subr.mxu0 0.0
    %5193 = vmatpush1.msra.mxu0 0.0
    %5194 = vmatprep.subr.mxu0 0.0
    %5195 = vmatpush1.msra.mxu0 0.0
    %5196 = vmatprep.subr.mxu0 0.0
    %5197 = vmatpush1.msra.mxu0 0.0
    %5198 = vmatprep.subr.mxu0 0.0
    %5199 = vmatpush1.msra.mxu0 0.0
    %5200 = vmatprep.subr.mxu0 0.0
    %5201 = vmatpush1.msra.mxu0 0.0
    %5202 = vmatprep.subr.mxu0 0.0
    %5203 = vmatpush1.msra.mxu0 0.0
    %5204 = vmatprep.subr.mxu0 0.0
    %5205 = vmatpush1.msra.mxu0 0.0
    %5206 = vmatprep.subr.mxu0 0.0
    %5207 = vmatpush1.msra.mxu0 0.0
    %5208 = vmatprep.subr.mxu0 0.0
    %5209 = vmatpush1.msra.mxu0 0.0
    %5210 = vmatprep.subr.mxu0 0.0
    %5211 = vmatpush1.msra.mxu0 0.0
    %5212 = vmatprep.subr.mxu0 0.0
    %5213 = vmatpush1.msra.mxu0 0.0
    %5214 = vmatprep.mubr.f32.mxu0 0.0
    %5215 = vmatmul.mubr.f32.gmra.mrb[0].mxu0 %v5148
    %v5216 = vpop.f32.mrb[0].mxu0
    %v5217 = vadd.f32 0.0, %v5216
    %v5218 = vpop.f32.mrb[0].mxu0
    %5219 = vdwg.mxu0
    %5221 = vrot.lane.b32.xlu0 %v4761, 8
    %v5222 = vpop.permute.xlu0 %5221
    %5225 = vrot.lane.b32.xlu0 %v4837, 16
    %v5226 = vpop.permute.xlu0 %5225
    %5229 = vrot.lane.b32.xlu0 %v4913, 24
    %v5230 = vpop.permute.xlu0 %5229
    %v5232 = vsel %vm162, %v4685, %v5222
    %v5233 = vsel %vm1518, %v5232, %v5226
    %v5234 = vsel %vm1520, %v5233, %v5230
    %5236 = vrot.lane.b32.xlu0 %v5065, 8
    %v5237 = vpop.permute.xlu0 %5236
    %5240 = vrot.lane.b32.xlu0 %v5141, 16
    %v5241 = vpop.permute.xlu0 %5240
    %5244 = vrot.lane.b32.xlu0 %v5217, 24
    %v5245 = vpop.permute.xlu0 %5244
    %v5247 = vsel %vm162, %v4989, %v5237
    %v5248 = vsel %vm1518, %v5247, %v5241
    %v5249 = vsel %vm1520, %v5248, %v5245
    %s5250 = scalar_lea.vmem %s3, 64
    %v5251 = vld [vmem:[%s5250] sm:$0xff]
    %v5252 = vld [vmem:[%s5250 + $0x8] sm:$0xff]
    %v5253 = vld [vmem:[%s5250 + $0x10] sm:$0xff]
    %v5254 = vld [vmem:[%s5250 + $0x18] sm:$0xff]
    %s5255 = scalar_lea.vmem %s4, 2
    %v5256 = vld [vmem:[%s5255] sm:$0x1]
    %v5258 = vlaneseq
    %v5259 = vshrl.u32 %v5258, 7
    %v5260 = vsub.s32 0, %v5259
    %v5261 = vrot.slane %v5256, %v5260
    %v5264 = vsel %vm64, %v5234, 0
    %v5267 = vsel %vm64, %v5249, 0
    %5269 = vmatprep.subr.mxu0 0.0
    %5270 = vmatpush1.msra.mxu0 %v5251
    %5271 = vmatprep.subr.mxu0 0.0
    %5272 = vmatpush1.msra.mxu0 %v5252
    %5273 = vmatprep.subr.mxu0 0.0
    %5274 = vmatpush1.msra.mxu0 %v5253
    %5275 = vmatprep.subr.mxu0 0.0
    %5276 = vmatpush1.msra.mxu0 %v5254
    %5277 = vmatprep.subr.mxu0 0.0
    %5278 = vmatpush1.msra.mxu0 0.0
    %5279 = vmatprep.subr.mxu0 0.0
    %5280 = vmatpush1.msra.mxu0 0.0
    %5281 = vmatprep.subr.mxu0 0.0
    %5282 = vmatpush1.msra.mxu0 0.0
    %5283 = vmatprep.subr.mxu0 0.0
    %5284 = vmatpush1.msra.mxu0 0.0
    %5285 = vmatprep.subr.mxu0 0.0
    %5286 = vmatpush1.msra.mxu0 0.0
    %5287 = vmatprep.subr.mxu0 0.0
    %5288 = vmatpush1.msra.mxu0 0.0
    %5289 = vmatprep.subr.mxu0 0.0
    %5290 = vmatpush1.msra.mxu0 0.0
    %5291 = vmatprep.subr.mxu0 0.0
    %5292 = vmatpush1.msra.mxu0 0.0
    %5293 = vmatprep.subr.mxu0 0.0
    %5294 = vmatpush1.msra.mxu0 0.0
    %5295 = vmatprep.subr.mxu0 0.0
    %5296 = vmatpush1.msra.mxu0 0.0
    %5297 = vmatprep.subr.mxu0 0.0
    %5298 = vmatpush1.msra.mxu0 0.0
    %5299 = vmatprep.subr.mxu0 0.0
    %5300 = vmatpush1.msra.mxu0 0.0
    %5301 = vmatprep.subr.mxu0 0.0
    %5302 = vmatpush1.msra.mxu0 0.0
    %5303 = vmatprep.subr.mxu0 0.0
    %5304 = vmatpush1.msra.mxu0 0.0
    %5305 = vmatprep.subr.mxu0 0.0
    %5306 = vmatpush1.msra.mxu0 0.0
    %5307 = vmatprep.subr.mxu0 0.0
    %5308 = vmatpush1.msra.mxu0 0.0
    %5309 = vmatprep.subr.mxu0 0.0
    %5310 = vmatpush1.msra.mxu0 0.0
    %5311 = vmatprep.subr.mxu0 0.0
    %5312 = vmatpush1.msra.mxu0 0.0
    %5313 = vmatprep.subr.mxu0 0.0
    %5314 = vmatpush1.msra.mxu0 0.0
    %5315 = vmatprep.subr.mxu0 0.0
    %5316 = vmatpush1.msra.mxu0 0.0
    %5317 = vmatprep.subr.mxu0 0.0
    %5318 = vmatpush1.msra.mxu0 0.0
    %5319 = vmatprep.subr.mxu0 0.0
    %5320 = vmatpush1.msra.mxu0 0.0
    %5321 = vmatprep.subr.mxu0 0.0
    %5322 = vmatpush1.msra.mxu0 0.0
    %5323 = vmatprep.subr.mxu0 0.0
    %5324 = vmatpush1.msra.mxu0 0.0
    %5325 = vmatprep.subr.mxu0 0.0
    %5326 = vmatpush1.msra.mxu0 0.0
    %5327 = vmatprep.subr.mxu0 0.0
    %5328 = vmatpush1.msra.mxu0 0.0
    %5329 = vmatprep.subr.mxu0 0.0
    %5330 = vmatpush1.msra.mxu0 0.0
    %5331 = vmatprep.subr.mxu0 0.0
    %5332 = vmatpush1.msra.mxu0 0.0
    %5333 = vmatprep.mubr.f32.mxu0 0.0
    %5334 = vmatmul.mubr.f32.gmra.mrb[0].mxu0 %v5264
    %v5335 = vpop.f32.mrb[0].mxu0
    %v5336 = vadd.f32 %v5261, %v5335
    %v5337 = vpop.f32.mrb[0].mxu0
    %5338 = vmatprep.mubr.f32.mxu0 0.0
    %5339 = vmatmul.mubr.f32.gmra.mrb[0].mxu0 %v5267
    %v5340 = vpop.f32.mrb[0].mxu0
    %v5341 = vadd.f32 %v5261, %v5340
    %v5342 = vpop.f32.mrb[0].mxu0
    %5343 = vdwg.mxu0
    %v5344 = vadd.f32 %v3766, %v5336
    %v5345 = vadd.f32 %v3767, %v5341
    %s5346 = scalar_lea.vmem %s5, 2
    %v5347 = vld [vmem:[%s5346] sm:$0x1]
    %s5348 = scalar_lea.vmem %s6, 2
    %v5349 = vld [vmem:[%s5348] sm:$0x1]
    %v5350 = vsel %vm64, %v5344, 0.0
    %5351 = vadd.xlane.f32.xlu0 %v5350
    %v5352 = vpop.xlane.xlu0 %5351
    %v5353 = vsel %vm64, %v5345, 0.0
    %5354 = vadd.xlane.f32.xlu0 %v5353
    %v5355 = vpop.xlane.xlu0 %5354
    %v5356 = vmul.f32 %v5352, %v1639
    %v5357 = vmul.f32 %v5355, %v1639
    %v5358 = vsub.f32 %v5344, %v5356
    %v5359 = vsub.f32 %v5345, %v5357
    %v5360 = vmul.f32 %v5358, %v5358
    %v5361 = vmul.f32 %v5359, %v5359
    %v5362 = vsel %vm64, %v5360, 0.0
    %5363 = vadd.xlane.f32.xlu0 %v5362
    %v5364 = vpop.xlane.xlu0 %5363
    %v5365 = vsel %vm64, %v5361, 0.0
    %5366 = vadd.xlane.f32.xlu0 %v5365
    %v5367 = vpop.xlane.xlu0 %5366
    %v5368 = vmul.f32 %v5364, %v1639
    %v5369 = vmul.f32 %v5367, %v1639
    %v5370 = vadd.f32 %v5368, 1e-05
    %v5371 = vadd.f32 %v5369, 1e-05
    %v5372 = vrsqrt.pop %v5370
    %v5373 = vrsqrt.pop %v5371
    %v5374 = vmul.f32 %v5358, %v5372
    %v5375 = vmul.f32 %v5359, %v5373
    %v5377 = vlaneseq
    %v5378 = vshrl.u32 %v5377, 7
    %v5379 = vsub.s32 0, %v5378
    %v5380 = vrot.slane %v5347, %v5379
    %v5382 = vmul.f32 %v5374, %v5380
    %v5383 = vmul.f32 %v5375, %v5380
    %v5385 = vlaneseq
    %v5386 = vshrl.u32 %v5385, 7
    %v5387 = vsub.s32 0, %v5386
    %v5388 = vrot.slane %v5349, %v5387
    %v5390 = vadd.f32 %v5382, %v5388
    %v5391 = vadd.f32 %v5383, %v5388
    %s5392 = scalar_lea.vmem %s7, 64
    %v5393 = vld [vmem:[%s5392] sm:$0xff]
    %v5394 = vld [vmem:[%s5392 + $0x8] sm:$0xff]
    %v5395 = vld [vmem:[%s5392 + $0x10] sm:$0xff]
    %v5396 = vld [vmem:[%s5392 + $0x18] sm:$0xff]
    %s5397 = scalar_lea.vmem %s8, 2
    %v5398 = vld [vmem:[%s5397] sm:$0x1]
    %v5400 = vlaneseq
    %v5401 = vshrl.u32 %v5400, 7
    %v5402 = vsub.s32 0, %v5401
    %v5403 = vrot.slane %v5398, %v5402
    %v5406 = vsel %vm64, %v5390, 0
    %v5409 = vsel %vm64, %v5391, 0
    %5411 = vmatprep.subr.mxu0 0.0
    %5412 = vmatpush1.msra.mxu0 %v5393
    %5413 = vmatprep.subr.mxu0 0.0
    %5414 = vmatpush1.msra.mxu0 %v5394
    %5415 = vmatprep.subr.mxu0 0.0
    %5416 = vmatpush1.msra.mxu0 %v5395
    %5417 = vmatprep.subr.mxu0 0.0
    %5418 = vmatpush1.msra.mxu0 %v5396
    %5419 = vmatprep.subr.mxu0 0.0
    %5420 = vmatpush1.msra.mxu0 0.0
    %5421 = vmatprep.subr.mxu0 0.0
    %5422 = vmatpush1.msra.mxu0 0.0
    %5423 = vmatprep.subr.mxu0 0.0
    %5424 = vmatpush1.msra.mxu0 0.0
    %5425 = vmatprep.subr.mxu0 0.0
    %5426 = vmatpush1.msra.mxu0 0.0
    %5427 = vmatprep.subr.mxu0 0.0
    %5428 = vmatpush1.msra.mxu0 0.0
    %5429 = vmatprep.subr.mxu0 0.0
    %5430 = vmatpush1.msra.mxu0 0.0
    %5431 = vmatprep.subr.mxu0 0.0
    %5432 = vmatpush1.msra.mxu0 0.0
    %5433 = vmatprep.subr.mxu0 0.0
    %5434 = vmatpush1.msra.mxu0 0.0
    %5435 = vmatprep.subr.mxu0 0.0
    %5436 = vmatpush1.msra.mxu0 0.0
    %5437 = vmatprep.subr.mxu0 0.0
    %5438 = vmatpush1.msra.mxu0 0.0
    %5439 = vmatprep.subr.mxu0 0.0
    %5440 = vmatpush1.msra.mxu0 0.0
    %5441 = vmatprep.subr.mxu0 0.0
    %5442 = vmatpush1.msra.mxu0 0.0
    %5443 = vmatprep.subr.mxu0 0.0
    %5444 = vmatpush1.msra.mxu0 0.0
    %5445 = vmatprep.subr.mxu0 0.0
    %5446 = vmatpush1.msra.mxu0 0.0
    %5447 = vmatprep.subr.mxu0 0.0
    %5448 = vmatpush1.msra.mxu0 0.0
    %5449 = vmatprep.subr.mxu0 0.0
    %5450 = vmatpush1.msra.mxu0 0.0
    %5451 = vmatprep.subr.mxu0 0.0
    %5452 = vmatpush1.msra.mxu0 0.0
    %5453 = vmatprep.subr.mxu0 0.0
    %5454 = vmatpush1.msra.mxu0 0.0
    %5455 = vmatprep.subr.mxu0 0.0
    %5456 = vmatpush1.msra.mxu0 0.0
    %5457 = vmatprep.subr.mxu0 0.0
    %5458 = vmatpush1.msra.mxu0 0.0
    %5459 = vmatprep.subr.mxu0 0.0
    %5460 = vmatpush1.msra.mxu0 0.0
    %5461 = vmatprep.subr.mxu0 0.0
    %5462 = vmatpush1.msra.mxu0 0.0
    %5463 = vmatprep.subr.mxu0 0.0
    %5464 = vmatpush1.msra.mxu0 0.0
    %5465 = vmatprep.subr.mxu0 0.0
    %5466 = vmatpush1.msra.mxu0 0.0
    %5467 = vmatprep.subr.mxu0 0.0
    %5468 = vmatpush1.msra.mxu0 0.0
    %5469 = vmatprep.subr.mxu0 0.0
    %5470 = vmatpush1.msra.mxu0 0.0
    %5471 = vmatprep.subr.mxu0 0.0
    %5472 = vmatpush1.msra.mxu0 0.0
    %5473 = vmatprep.subr.mxu0 0.0
    %5474 = vmatpush1.msra.mxu0 0.0
    %5475 = vmatprep.mubr.f32.mxu0 0.0
    %5476 = vmatmul.mubr.f32.gmra.mrb[0].mxu0 %v5406
    %v5477 = vpop.f32.mrb[0].mxu0
    %v5478 = vadd.f32 %v5403, %v5477
    %v5479 = vpop.f32.mrb[0].mxu0
    %5480 = vmatprep.mubr.f32.mxu0 0.0
    %5481 = vmatmul.mubr.f32.gmra.mrb[0].mxu0 %v5409
    %v5482 = vpop.f32.mrb[0].mxu0
    %v5483 = vadd.f32 %v5403, %v5482
    %v5484 = vpop.f32.mrb[0].mxu0
    %5485 = vdwg.mxu0
    %v5486 = vmul.f32 %v5478, 0.5
    %v5487 = vmul.f32 %v5483, 0.5
    %v5488 = vmul.f32 %v5478, 0.70710677
    %v5489 = vmul.f32 %v5483, 0.70710677
    %v5490 = verf.f32.pop %v5488
    %v5491 = verf.f32.pop %v5489
    %v5492 = vadd.f32 %v5490, 1.0
    %v5493 = vadd.f32 %v5491, 1.0
    %v5494 = vmul.f32 %v5486, %v5492
    %v5495 = vmul.f32 %v5487, %v5493
    %s5496 = scalar_lea.vmem %s9, 256
    %v5497 = vld [vmem:[%s5496] sm:$0xff]
    %v5498 = vld [vmem:[%s5496 + $0x8] sm:$0xff]
    %v5499 = vld [vmem:[%s5496 + $0x10] sm:$0xff]
    %v5500 = vld [vmem:[%s5496 + $0x18] sm:$0xff]
    %v5501 = vld [vmem:[%s5496 + $0x20] sm:$0xff]
    %v5502 = vld [vmem:[%s5496 + $0x28] sm:$0xff]
    %v5503 = vld [vmem:[%s5496 + $0x30] sm:$0xff]
    %v5504 = vld [vmem:[%s5496 + $0x38] sm:$0xff]
    %v5505 = vld [vmem:[%s5496 + $0x40] sm:$0xff]
    %v5506 = vld [vmem:[%s5496 + $0x48] sm:$0xff]
    %v5507 = vld [vmem:[%s5496 + $0x50] sm:$0xff]
    %v5508 = vld [vmem:[%s5496 + $0x58] sm:$0xff]
    %v5509 = vld [vmem:[%s5496 + $0x60] sm:$0xff]
    %v5510 = vld [vmem:[%s5496 + $0x68] sm:$0xff]
    %v5511 = vld [vmem:[%s5496 + $0x70] sm:$0xff]
    %v5512 = vld [vmem:[%s5496 + $0x78] sm:$0xff]
    %s5513 = scalar_lea.vmem %s10, 2
    %v5514 = vld [vmem:[%s5513] sm:$0x1]
    %v5516 = vlaneseq
    %v5517 = vshrl.u32 %v5516, 7
    %v5518 = vsub.s32 0, %v5517
    %v5519 = vrot.slane %v5514, %v5518
    %5521 = vmatprep.subr.mxu0 0.0
    %5522 = vmatpush1.msra.mxu0 %v5497
    %5523 = vmatprep.subr.mxu0 0.0
    %5524 = vmatpush1.msra.mxu0 %v5498
    %5525 = vmatprep.subr.mxu0 0.0
    %5526 = vmatpush1.msra.mxu0 %v5499
    %5527 = vmatprep.subr.mxu0 0.0
    %5528 = vmatpush1.msra.mxu0 %v5500
    %5529 = vmatprep.subr.mxu0 0.0
    %5530 = vmatpush1.msra.mxu0 %v5501
    %5531 = vmatprep.subr.mxu0 0.0
    %5532 = vmatpush1.msra.mxu0 %v5502
    %5533 = vmatprep.subr.mxu0 0.0
    %5534 = vmatpush1.msra.mxu0 %v5503
    %5535 = vmatprep.subr.mxu0 0.0
    %5536 = vmatpush1.msra.mxu0 %v5504
    %5537 = vmatprep.subr.mxu0 0.0
    %5538 = vmatpush1.msra.mxu0 %v5505
    %5539 = vmatprep.subr.mxu0 0.0
    %5540 = vmatpush1.msra.mxu0 %v5506
    %5541 = vmatprep.subr.mxu0 0.0
    %5542 = vmatpush1.msra.mxu0 %v5507
    %5543 = vmatprep.subr.mxu0 0.0
    %5544 = vmatpush1.msra.mxu0 %v5508
    %5545 = vmatprep.subr.mxu0 0.0
    %5546 = vmatpush1.msra.mxu0 %v5509
    %5547 = vmatprep.subr.mxu0 0.0
    %5548 = vmatpush1.msra.mxu0 %v5510
    %5549 = vmatprep.subr.mxu0 0.0
    %5550 = vmatpush1.msra.mxu0 %v5511
    %5551 = vmatprep.subr.mxu0 0.0
    %5552 = vmatpush1.msra.mxu0 %v5512
    %5553 = vmatprep.subr.mxu0 0.0
    %5554 = vmatpush1.msra.mxu0 0.0
    %5555 = vmatprep.subr.mxu0 0.0
    %5556 = vmatpush1.msra.mxu0 0.0
    %5557 = vmatprep.subr.mxu0 0.0
    %5558 = vmatpush1.msra.mxu0 0.0
    %5559 = vmatprep.subr.mxu0 0.0
    %5560 = vmatpush1.msra.mxu0 0.0
    %5561 = vmatprep.subr.mxu0 0.0
    %5562 = vmatpush1.msra.mxu0 0.0
    %5563 = vmatprep.subr.mxu0 0.0
    %5564 = vmatpush1.msra.mxu0 0.0
    %5565 = vmatprep.subr.mxu0 0.0
    %5566 = vmatpush1.msra.mxu0 0.0
    %5567 = vmatprep.subr.mxu0 0.0
    %5568 = vmatpush1.msra.mxu0 0.0
    %5569 = vmatprep.subr.mxu0 0.0
    %5570 = vmatpush1.msra.mxu0 0.0
    %5571 = vmatprep.subr.mxu0 0.0
    %5572 = vmatpush1.msra.mxu0 0.0
    %5573 = vmatprep.subr.mxu0 0.0
    %5574 = vmatpush1.msra.mxu0 0.0
    %5575 = vmatprep.subr.mxu0 0.0
    %5576 = vmatpush1.msra.mxu0 0.0
    %5577 = vmatprep.subr.mxu0 0.0
    %5578 = vmatpush1.msra.mxu0 0.0
    %5579 = vmatprep.subr.mxu0 0.0
    %5580 = vmatpush1.msra.mxu0 0.0
    %5581 = vmatprep.subr.mxu0 0.0
    %5582 = vmatpush1.msra.mxu0 0.0
    %5583 = vmatprep.subr.mxu0 0.0
    %5584 = vmatpush1.msra.mxu0 0.0
    %5585 = vmatprep.mubr.f32.mxu0 0.0
    %5586 = vmatmul.mubr.f32.gmra.mrb[0].mxu0 %v5494
    %v5587 = vpop.f32.mrb[0].mxu0
    %v5588 = vadd.f32 %v5519, %v5587
    %v5589 = vpop.f32.mrb[0].mxu0
    %5590 = vmatprep.mubr.f32.mxu0 0.0
    %5591 = vmatmul.mubr.f32.gmra.mrb[0].mxu0 %v5495
    %v5592 = vpop.f32.mrb[0].mxu0
    %v5593 = vadd.f32 %v5519, %v5592
    %v5594 = vpop.f32.mrb[0].mxu0
    %5595 = vdwg.mxu0
    %v5596 = vadd.f32 %v5390, %v5588
    %v5597 = vadd.f32 %v5391, %v5593
    %v5598 = vsel %vm64, %v5596, 0.0
    %5599 = vadd.xlane.f32.xlu0 %v5598
    %v5600 = vpop.xlane.xlu0 %5599
    %v5601 = vsel %vm64, %v5597, 0.0
    %5602 = vadd.xlane.f32.xlu0 %v5601
    %v5603 = vpop.xlane.xlu0 %5602
    %v5604 = vmul.f32 %v5600, %v1639
    %v5605 = vmul.f32 %v5603, %v1639
    %v5606 = vsub.f32 %v5596, %v5604
    %v5607 = vsub.f32 %v5597, %v5605
    %v5608 = vmul.f32 %v5606, %v5606
    %v5609 = vmul.f32 %v5607, %v5607
    %v5610 = vsel %vm64, %v5608, 0.0
    %5611 = vadd.xlane.f32.xlu0 %v5610
    %v5612 = vpop.xlane.xlu0 %5611
    %v5613 = vsel %vm64, %v5609, 0.0
    %5614 = vadd.xlane.f32.xlu0 %v5613
    %v5615 = vpop.xlane.xlu0 %5614
    %v5616 = vmul.f32 %v5612, %v1639
    %v5617 = vmul.f32 %v5615, %v1639
    %v5618 = vadd.f32 %v5616, 1e-05
    %v5619 = vadd.f32 %v5617, 1e-05
    %v5620 = vrsqrt.pop %v5618
    %v5621 = vrsqrt.pop %v5619
    %v5622 = vmul.f32 %v5606, %v5620
    %v5623 = vmul.f32 %v5607, %v5621
    %v5624 = vmul.f32 %v5622, %v5380
    %v5625 = vmul.f32 %v5623, %v5380
    %v5626 = vadd.f32 %v5624, %v5388
    %v5627 = vadd.f32 %v5625, %v5388
    %s5628 = scalar_lea.vmem %s1, 96
    %v5629 = vld [vmem:[%s5628] sm:$0xff]
    %v5630 = vld [vmem:[%s5628 + $0x8] sm:$0xff]
    %v5631 = vld [vmem:[%s5628 + $0x10] sm:$0xff]
    %v5632 = vld [vmem:[%s5628 + $0x18] sm:$0xff]
    %s5633 = scalar_lea.vmem %s2, 3
    %v5634 = vld [vmem:[%s5633] sm:$0x1]
    %v5636 = vlaneseq
    %v5637 = vshrl.u32 %v5636, 7
    %v5638 = vsub.s32 0, %v5637
    %v5639 = vrot.slane %v5634, %v5638
    %v5642 = vsel %vm64, %v5626, 0
    %v5645 = vsel %vm64, %v5627, 0
    %5647 = vmatprep.subr.mxu0 0.0
    %5648 = vmatpush1.msra.mxu0 %v5629
    %5649 = vmatprep.subr.mxu0 0.0
    %5650 = vmatpush1.msra.mxu0 %v5630
    %5651 = vmatprep.subr.mxu0 0.0
    %5652 = vmatpush1.msra.mxu0 %v5631
    %5653 = vmatprep.subr.mxu0 0.0
    %5654 = vmatpush1.msra.mxu0 %v5632
    %5655 = vmatprep.subr.mxu0 0.0
    %5656 = vmatpush1.msra.mxu0 0.0
    %5657 = vmatprep.subr.mxu0 0.0
    %5658 = vmatpush1.msra.mxu0 0.0
    %5659 = vmatprep.subr.mxu0 0.0
    %5660 = vmatpush1.msra.mxu0 0.0
    %5661 = vmatprep.subr.mxu0 0.0
    %5662 = vmatpush1.msra.mxu0 0.0
    %5663 = vmatprep.subr.mxu0 0.0
    %5664 = vmatpush1.msra.mxu0 0.0
    %5665 = vmatprep.subr.mxu0 0.0
    %5666 = vmatpush1.msra.mxu0 0.0
    %5667 = vmatprep.subr.mxu0 0.0
    %5668 = vmatpush1.msra.mxu0 0.0
    %5669 = vmatprep.subr.mxu0 0.0
    %5670 = vmatpush1.msra.mxu0 0.0
    %5671 = vmatprep.subr.mxu0 0.0
    %5672 = vmatpush1.msra.mxu0 0.0
    %5673 = vmatprep.subr.mxu0 0.0
    %5674 = vmatpush1.msra.mxu0 0.0
    %5675 = vmatprep.subr.mxu0 0.0
    %5676 = vmatpush1.msra.mxu0 0.0
    %5677 = vmatprep.subr.mxu0 0.0
    %5678 = vmatpush1.msra.mxu0 0.0
    %5679 = vmatprep.subr.mxu0 0.0
    %5680 = vmatpush1.msra.mxu0 0.0
    %5681 = vmatprep.subr.mxu0 0.0
    %5682 = vmatpush1.msra.mxu0 0.0
    %5683 = vmatprep.subr.mxu0 0.0
    %5684 = vmatpush1.msra.mxu0 0.0
    %5685 = vmatprep.subr.mxu0 0.0
    %5686 = vmatpush1.msra.mxu0 0.0
    %5687 = vmatprep.subr.mxu0 0.0
    %5688 = vmatpush1.msra.mxu0 0.0
    %5689 = vmatprep.subr.mxu0 0.0
    %5690 = vmatpush1.msra.mxu0 0.0
    %5691 = vmatprep.subr.mxu0 0.0
    %5692 = vmatpush1.msra.mxu0 0.0
    %5693 = vmatprep.subr.mxu0 0.0
    %5694 = vmatpush1.msra.mxu0 0.0
    %5695 = vmatprep.subr.mxu0 0.0
    %5696 = vmatpush1.msra.mxu0 0.0
    %5697 = vmatprep.subr.mxu0 0.0
    %5698 = vmatpush1.msra.mxu0 0.0
    %5699 = vmatprep.subr.mxu0 0.0
    %5700 = vmatpush1.msra.mxu0 0.0
    %5701 = vmatprep.subr.mxu0 0.0
    %5702 = vmatpush1.msra.mxu0 0.0
    %5703 = vmatprep.subr.mxu0 0.0
    %5704 = vmatpush1.msra.mxu0 0.0
    %5705 = vmatprep.subr.mxu0 0.0
    %5706 = vmatpush1.msra.mxu0 0.0
    %5707 = vmatprep.subr.mxu0 0.0
    %5708 = vmatpush1.msra.mxu0 0.0
    %5709 = vmatprep.subr.mxu0 0.0
    %5710 = vmatpush1.msra.mxu0 0.0
    %5711 = vmatprep.mubr.f32.mxu0 0.0
    %5712 = vmatmul.mubr.f32.gmra.mrb[0].mxu0 %v5642
    %v5713 = vpop.f32.mrb[0].mxu0
    %v5714 = vadd.f32 %v5639, %v5713
    %v5715 = vpop.f32.mrb[0].mxu0
    %5716 = vmatprep.mubr.f32.mxu0 0.0
    %5717 = vmatmul.mubr.f32.gmra.mrb[0].mxu0 %v5645
    %v5718 = vpop.f32.mrb[0].mxu0
    %v5719 = vadd.f32 %v5639, %v5718
    %v5720 = vpop.f32.mrb[0].mxu0
    %5721 = vdwg.mxu0
    %5723 = vrot.lane.b32.xlu0 %v5714, 120
    %v5724 = vpop.permute.xlu0 %5723
    %5725 = vrot.lane.b32.xlu0 %v5714, 112
    %v5726 = vpop.permute.xlu0 %5725
    %5727 = vrot.lane.b32.xlu0 %v5714, 104
    %v5728 = vpop.permute.xlu0 %5727
    %5730 = vrot.lane.b32.xlu0 %v5719, 120
    %v5731 = vpop.permute.xlu0 %5730
    %5732 = vrot.lane.b32.xlu0 %v5719, 112
    %v5733 = vpop.permute.xlu0 %5732
    %5734 = vrot.lane.b32.xlu0 %v5719, 104
    %v5735 = vpop.permute.xlu0 %5734
    %5736 = vrot.lane.b32.xlu0 %v5714, 96
    %v5737 = vpop.permute.xlu0 %5736
    %v5738 = vsel %vm162, %v5714, 0
    %v5740 = vsel %vm162, %v5737, 0
    %5742 = vmatprep.subr.mxu0 0.0
    %5743 = vmatpush1.xpose.msra.mxu0 %v5740
    %5744 = vmatprep.subr.mxu0 0.0
    %5745 = vmatpush1.xpose.msra.mxu0 0.0
    %5746 = vmatprep.subr.mxu0 0.0
    %5747 = vmatpush1.xpose.msra.mxu0 0.0
    %5748 = vmatprep.subr.mxu0 0.0
    %5749 = vmatpush1.xpose.msra.mxu0 0.0
    %5750 = vmatprep.subr.mxu0 0.0
    %5751 = vmatpush1.xpose.msra.mxu0 0.0
    %5752 = vmatprep.subr.mxu0 0.0
    %5753 = vmatpush1.xpose.msra.mxu0 0.0
    %5754 = vmatprep.subr.mxu0 0.0
    %5755 = vmatpush1.xpose.msra.mxu0 0.0
    %5756 = vmatprep.subr.mxu0 0.0
    %5757 = vmatpush1.xpose.msra.mxu0 0.0
    %5758 = vmatprep.subr.mxu0 0.0
    %5759 = vmatpush1.xpose.msra.mxu0 0.0
    %5760 = vmatprep.subr.mxu0 0.0
    %5761 = vmatpush1.xpose.msra.mxu0 0.0
    %5762 = vmatprep.subr.mxu0 0.0
    %5763 = vmatpush1.xpose.msra.mxu0 0.0
    %5764 = vmatprep.subr.mxu0 0.0
    %5765 = vmatpush1.xpose.msra.mxu0 0.0
    %5766 = vmatprep.subr.mxu0 0.0
    %5767 = vmatpush1.xpose.msra.mxu0 0.0
    %5768 = vmatprep.subr.mxu0 0.0
    %5769 = vmatpush1.xpose.msra.mxu0 0.0
    %5770 = vmatprep.subr.mxu0 0.0
    %5771 = vmatpush1.xpose.msra.mxu0 0.0
    %5772 = vmatprep.subr.mxu0 0.0
    %5773 = vmatpush1.xpose.msra.mxu0 0.0
    %5774 = vmatprep.subr.mxu0 0.0
    %5775 = vmatpush1.xpose.msra.mxu0 0.0
    %5776 = vmatprep.subr.mxu0 0.0
    %5777 = vmatpush1.xpose.msra.mxu0 0.0
    %5778 = vmatprep.subr.mxu0 0.0
    %5779 = vmatpush1.xpose.msra.mxu0 0.0
    %5780 = vmatprep.subr.mxu0 0.0
    %5781 = vmatpush1.xpose.msra.mxu0 0.0
    %5782 = vmatprep.subr.mxu0 0.0
    %5783 = vmatpush1.xpose.msra.mxu0 0.0
    %5784 = vmatprep.subr.mxu0 0.0
    %5785 = vmatpush1.xpose.msra.mxu0 0.0
    %5786 = vmatprep.subr.mxu0 0.0
    %5787 = vmatpush1.xpose.msra.mxu0 0.0
    %5788 = vmatprep.subr.mxu0 0.0
    %5789 = vmatpush1.xpose.msra.mxu0 0.0
    %5790 = vmatprep.subr.mxu0 0.0
    %5791 = vmatpush1.xpose.msra.mxu0 0.0
    %5792 = vmatprep.subr.mxu0 0.0
    %5793 = vmatpush1.xpose.msra.mxu0 0.0
    %5794 = vmatprep.subr.mxu0 0.0
    %5795 = vmatpush1.xpose.msra.mxu0 0.0
    %5796 = vmatprep.subr.mxu0 0.0
    %5797 = vmatpush1.xpose.msra.mxu0 0.0
    %5798 = vmatprep.subr.mxu0 0.0
    %5799 = vmatpush1.xpose.msra.mxu0 0.0
    %5800 = vmatprep.subr.mxu0 0.0
    %5801 = vmatpush1.xpose.msra.mxu0 0.0
    %5802 = vmatprep.subr.mxu0 0.0
    %5803 = vmatpush1.xpose.msra.mxu0 0.0
    %5804 = vmatprep.subr.mxu0 0.0
    %5805 = vmatpush1.xpose.msra.mxu0 0.0
    %5806 = vmatprep.mubr.f32.mxu0 0.0
    %5807 = vmatmul.mubr.f32.gmra.mrb[0].mxu0 %v5738
    %v5808 = vpop.f32.mrb[0].mxu0
    %v5809 = vadd.f32 0.0, %v5808
    %v5810 = vpop.f32.mrb[0].mxu0
    %5811 = vdwg.mxu0
    %5812 = vrot.lane.b32.xlu0 %v5724, 96
    %v5813 = vpop.permute.xlu0 %5812
    %v5814 = vsel %vm162, %v5724, 0
    %v5816 = vsel %vm162, %v5813, 0
    %5818 = vmatprep.subr.mxu0 0.0
    %5819 = vmatpush1.xpose.msra.mxu0 %v5816
    %5820 = vmatprep.subr.mxu0 0.0
    %5821 = vmatpush1.xpose.msra.mxu0 0.0
    %5822 = vmatprep.subr.mxu0 0.0
    %5823 = vmatpush1.xpose.msra.mxu0 0.0
    %5824 = vmatprep.subr.mxu0 0.0
    %5825 = vmatpush1.xpose.msra.mxu0 0.0
    %5826 = vmatprep.subr.mxu0 0.0
    %5827 = vmatpush1.xpose.msra.mxu0 0.0
    %5828 = vmatprep.subr.mxu0 0.0
    %5829 = vmatpush1.xpose.msra.mxu0 0.0
    %5830 = vmatprep.subr.mxu0 0.0
    %5831 = vmatpush1.xpose.msra.mxu0 0.0
    %5832 = vmatprep.subr.mxu0 0.0
    %5833 = vmatpush1.xpose.msra.mxu0 0.0
    %5834 = vmatprep.subr.mxu0 0.0
    %5835 = vmatpush1.xpose.msra.mxu0 0.0
    %5836 = vmatprep.subr.mxu0 0.0
    %5837 = vmatpush1.xpose.msra.mxu0 0.0
    %5838 = vmatprep.subr.mxu0 0.0
    %5839 = vmatpush1.xpose.msra.mxu0 0.0
    %5840 = vmatprep.subr.mxu0 0.0
    %5841 = vmatpush1.xpose.msra.mxu0 0.0
    %5842 = vmatprep.subr.mxu0 0.0
    %5843 = vmatpush1.xpose.msra.mxu0 0.0
    %5844 = vmatprep.subr.mxu0 0.0
    %5845 = vmatpush1.xpose.msra.mxu0 0.0
    %5846 = vmatprep.subr.mxu0 0.0
    %5847 = vmatpush1.xpose.msra.mxu0 0.0
    %5848 = vmatprep.subr.mxu0 0.0
    %5849 = vmatpush1.xpose.msra.mxu0 0.0
    %5850 = vmatprep.subr.mxu0 0.0
    %5851 = vmatpush1.xpose.msra.mxu0 0.0
    %5852 = vmatprep.subr.mxu0 0.0
    %5853 = vmatpush1.xpose.msra.mxu0 0.0
    %5854 = vmatprep.subr.mxu0 0.0
    %5855 = vmatpush1.xpose.msra.mxu0 0.0
    %5856 = vmatprep.subr.mxu0 0.0
    %5857 = vmatpush1.xpose.msra.mxu0 0.0
    %5858 = vmatprep.subr.mxu0 0.0
    %5859 = vmatpush1.xpose.msra.mxu0 0.0
    %5860 = vmatprep.subr.mxu0 0.0
    %5861 = vmatpush1.xpose.msra.mxu0 0.0
    %5862 = vmatprep.subr.mxu0 0.0
    %5863 = vmatpush1.xpose.msra.mxu0 0.0
    %5864 = vmatprep.subr.mxu0 0.0
    %5865 = vmatpush1.xpose.msra.mxu0 0.0
    %5866 = vmatprep.subr.mxu0 0.0
    %5867 = vmatpush1.xpose.msra.mxu0 0.0
    %5868 = vmatprep.subr.mxu0 0.0
    %5869 = vmatpush1.xpose.msra.mxu0 0.0
    %5870 = vmatprep.subr.mxu0 0.0
    %5871 = vmatpush1.xpose.msra.mxu0 0.0
    %5872 = vmatprep.subr.mxu0 0.0
    %5873 = vmatpush1.xpose.msra.mxu0 0.0
    %5874 = vmatprep.subr.mxu0 0.0
    %5875 = vmatpush1.xpose.msra.mxu0 0.0
    %5876 = vmatprep.subr.mxu0 0.0
    %5877 = vmatpush1.xpose.msra.mxu0 0.0
    %5878 = vmatprep.subr.mxu0 0.0
    %5879 = vmatpush1.xpose.msra.mxu0 0.0
    %5880 = vmatprep.subr.mxu0 0.0
    %5881 = vmatpush1.xpose.msra.mxu0 0.0
    %5882 = vmatprep.mubr.f32.mxu0 0.0
    %5883 = vmatmul.mubr.f32.gmra.mrb[0].mxu0 %v5814
    %v5884 = vpop.f32.mrb[0].mxu0
    %v5885 = vadd.f32 0.0, %v5884
    %v5886 = vpop.f32.mrb[0].mxu0
    %5887 = vdwg.mxu0
    %5888 = vrot.lane.b32.xlu0 %v5726, 96
    %v5889 = vpop.permute.xlu0 %5888
    %v5890 = vsel %vm162, %v5726, 0
    %v5892 = vsel %vm162, %v5889, 0
    %5894 = vmatprep.subr.mxu0 0.0
    %5895 = vmatpush1.xpose.msra.mxu0 %v5892
    %5896 = vmatprep.subr.mxu0 0.0
    %5897 = vmatpush1.xpose.msra.mxu0 0.0
    %5898 = vmatprep.subr.mxu0 0.0
    %5899 = vmatpush1.xpose.msra.mxu0 0.0
    %5900 = vmatprep.subr.mxu0 0.0
    %5901 = vmatpush1.xpose.msra.mxu0 0.0
    %5902 = vmatprep.subr.mxu0 0.0
    %5903 = vmatpush1.xpose.msra.mxu0 0.0
    %5904 = vmatprep.subr.mxu0 0.0
    %5905 = vmatpush1.xpose.msra.mxu0 0.0
    %5906 = vmatprep.subr.mxu0 0.0
    %5907 = vmatpush1.xpose.msra.mxu0 0.0
    %5908 = vmatprep.subr.mxu0 0.0
    %5909 = vmatpush1.xpose.msra.mxu0 0.0
    %5910 = vmatprep.subr.mxu0 0.0
    %5911 = vmatpush1.xpose.msra.mxu0 0.0
    %5912 = vmatprep.subr.mxu0 0.0
    %5913 = vmatpush1.xpose.msra.mxu0 0.0
    %5914 = vmatprep.subr.mxu0 0.0
    %5915 = vmatpush1.xpose.msra.mxu0 0.0
    %5916 = vmatprep.subr.mxu0 0.0
    %5917 = vmatpush1.xpose.msra.mxu0 0.0
    %5918 = vmatprep.subr.mxu0 0.0
    %5919 = vmatpush1.xpose.msra.mxu0 0.0
    %5920 = vmatprep.subr.mxu0 0.0
    %5921 = vmatpush1.xpose.msra.mxu0 0.0
    %5922 = vmatprep.subr.mxu0 0.0
    %5923 = vmatpush1.xpose.msra.mxu0 0.0
    %5924 = vmatprep.subr.mxu0 0.0
    %5925 = vmatpush1.xpose.msra.mxu0 0.0
    %5926 = vmatprep.subr.mxu0 0.0
    %5927 = vmatpush1.xpose.msra.mxu0 0.0
    %5928 = vmatprep.subr.mxu0 0.0
    %5929 = vmatpush1.xpose.msra.mxu0 0.0
    %5930 = vmatprep.subr.mxu0 0.0
    %5931 = vmatpush1.xpose.msra.mxu0 0.0
    %5932 = vmatprep.subr.mxu0 0.0
    %5933 = vmatpush1.xpose.msra.mxu0 0.0
    %5934 = vmatprep.subr.mxu0 0.0
    %5935 = vmatpush1.xpose.msra.mxu0 0.0
    %5936 = vmatprep.subr.mxu0 0.0
    %5937 = vmatpush1.xpose.msra.mxu0 0.0
    %5938 = vmatprep.subr.mxu0 0.0
    %5939 = vmatpush1.xpose.msra.mxu0 0.0
    %5940 = vmatprep.subr.mxu0 0.0
    %5941 = vmatpush1.xpose.msra.mxu0 0.0
    %5942 = vmatprep.subr.mxu0 0.0
    %5943 = vmatpush1.xpose.msra.mxu0 0.0
    %5944 = vmatprep.subr.mxu0 0.0
    %5945 = vmatpush1.xpose.msra.mxu0 0.0
    %5946 = vmatprep.subr.mxu0 0.0
    %5947 = vmatpush1.xpose.msra.mxu0 0.0
    %5948 = vmatprep.subr.mxu0 0.0
    %5949 = vmatpush1.xpose.msra.mxu0 0.0
    %5950 = vmatprep.subr.mxu0 0.0
    %5951 = vmatpush1.xpose.msra.mxu0 0.0
    %5952 = vmatprep.subr.mxu0 0.0
    %5953 = vmatpush1.xpose.msra.mxu0 0.0
    %5954 = vmatprep.subr.mxu0 0.0
    %5955 = vmatpush1.xpose.msra.mxu0 0.0
    %5956 = vmatprep.subr.mxu0 0.0
    %5957 = vmatpush1.xpose.msra.mxu0 0.0
    %5958 = vmatprep.mubr.f32.mxu0 0.0
    %5959 = vmatmul.mubr.f32.gmra.mrb[0].mxu0 %v5890
    %v5960 = vpop.f32.mrb[0].mxu0
    %v5961 = vadd.f32 0.0, %v5960
    %v5962 = vpop.f32.mrb[0].mxu0
    %5963 = vdwg.mxu0
    %5964 = vrot.lane.b32.xlu0 %v5728, 96
    %v5965 = vpop.permute.xlu0 %5964
    %v5966 = vsel %vm162, %v5728, 0
    %v5968 = vsel %vm162, %v5965, 0
    %5970 = vmatprep.subr.mxu0 0.0
    %5971 = vmatpush1.xpose.msra.mxu0 %v5968
    %5972 = vmatprep.subr.mxu0 0.0
    %5973 = vmatpush1.xpose.msra.mxu0 0.0
    %5974 = vmatprep.subr.mxu0 0.0
    %5975 = vmatpush1.xpose.msra.mxu0 0.0
    %5976 = vmatprep.subr.mxu0 0.0
    %5977 = vmatpush1.xpose.msra.mxu0 0.0
    %5978 = vmatprep.subr.mxu0 0.0
    %5979 = vmatpush1.xpose.msra.mxu0 0.0
    %5980 = vmatprep.subr.mxu0 0.0
    %5981 = vmatpush1.xpose.msra.mxu0 0.0
    %5982 = vmatprep.subr.mxu0 0.0
    %5983 = vmatpush1.xpose.msra.mxu0 0.0
    %5984 = vmatprep.subr.mxu0 0.0
    %5985 = vmatpush1.xpose.msra.mxu0 0.0
    %5986 = vmatprep.subr.mxu0 0.0
    %5987 = vmatpush1.xpose.msra.mxu0 0.0
    %5988 = vmatprep.subr.mxu0 0.0
    %5989 = vmatpush1.xpose.msra.mxu0 0.0
    %5990 = vmatprep.subr.mxu0 0.0
    %5991 = vmatpush1.xpose.msra.mxu0 0.0
    %5992 = vmatprep.subr.mxu0 0.0
    %5993 = vmatpush1.xpose.msra.mxu0 0.0
    %5994 = vmatprep.subr.mxu0 0.0
    %5995 = vmatpush1.xpose.msra.mxu0 0.0
    %5996 = vmatprep.subr.mxu0 0.0
    %5997 = vmatpush1.xpose.msra.mxu0 0.0
    %5998 = vmatprep.subr.mxu0 0.0
    %5999 = vmatpush1.xpose.msra.mxu0 0.0
    %6000 = vmatprep.subr.mxu0 0.0
    %6001 = vmatpush1.xpose.msra.mxu0 0.0
    %6002 = vmatprep.subr.mxu0 0.0
    %6003 = vmatpush1.xpose.msra.mxu0 0.0
    %6004 = vmatprep.subr.mxu0 0.0
    %6005 = vmatpush1.xpose.msra.mxu0 0.0
    %6006 = vmatprep.subr.mxu0 0.0
    %6007 = vmatpush1.xpose.msra.mxu0 0.0
    %6008 = vmatprep.subr.mxu0 0.0
    %6009 = vmatpush1.xpose.msra.mxu0 0.0
    %6010 = vmatprep.subr.mxu0 0.0
    %6011 = vmatpush1.xpose.msra.mxu0 0.0
    %6012 = vmatprep.subr.mxu0 0.0
    %6013 = vmatpush1.xpose.msra.mxu0 0.0
    %6014 = vmatprep.subr.mxu0 0.0
    %6015 = vmatpush1.xpose.msra.mxu0 0.0
    %6016 = vmatprep.subr.mxu0 0.0
    %6017 = vmatpush1.xpose.msra.mxu0 0.0
    %6018 = vmatprep.subr.mxu0 0.0
    %6019 = vmatpush1.xpose.msra.mxu0 0.0
    %6020 = vmatprep.subr.mxu0 0.0
    %6021 = vmatpush1.xpose.msra.mxu0 0.0
    %6022 = vmatprep.subr.mxu0 0.0
    %6023 = vmatpush1.xpose.msra.mxu0 0.0
    %6024 = vmatprep.subr.mxu0 0.0
    %6025 = vmatpush1.xpose.msra.mxu0 0.0
    %6026 = vmatprep.subr.mxu0 0.0
    %6027 = vmatpush1.xpose.msra.mxu0 0.0
    %6028 = vmatprep.subr.mxu0 0.0
    %6029 = vmatpush1.xpose.msra.mxu0 0.0
    %6030 = vmatprep.subr.mxu0 0.0
    %6031 = vmatpush1.xpose.msra.mxu0 0.0
    %6032 = vmatprep.subr.mxu0 0.0
    %6033 = vmatpush1.xpose.msra.mxu0 0.0
    %6034 = vmatprep.mubr.f32.mxu0 0.0
    %6035 = vmatmul.mubr.f32.gmra.mrb[0].mxu0 %v5966
    %v6036 = vpop.f32.mrb[0].mxu0
    %v6037 = vadd.f32 0.0, %v6036
    %v6038 = vpop.f32.mrb[0].mxu0
    %6039 = vdwg.mxu0
    %6040 = vrot.lane.b32.xlu0 %v5719, 96
    %v6041 = vpop.permute.xlu0 %6040
    %v6042 = vsel %vm162, %v5719, 0
    %v6044 = vsel %vm162, %v6041, 0
    %6046 = vmatprep.subr.mxu0 0.0
    %6047 = vmatpush1.xpose.msra.mxu0 %v6044
    %6048 = vmatprep.subr.mxu0 0.0
    %6049 = vmatpush1.xpose.msra.mxu0 0.0
    %6050 = vmatprep.subr.mxu0 0.0
    %6051 = vmatpush1.xpose.msra.mxu0 0.0
    %6052 = vmatprep.subr.mxu0 0.0
    %6053 = vmatpush1.xpose.msra.mxu0 0.0
    %6054 = vmatprep.subr.mxu0 0.0
    %6055 = vmatpush1.xpose.msra.mxu0 0.0
    %6056 = vmatprep.subr.mxu0 0.0
    %6057 = vmatpush1.xpose.msra.mxu0 0.0
    %6058 = vmatprep.subr.mxu0 0.0
    %6059 = vmatpush1.xpose.msra.mxu0 0.0
    %6060 = vmatprep.subr.mxu0 0.0
    %6061 = vmatpush1.xpose.msra.mxu0 0.0
    %6062 = vmatprep.subr.mxu0 0.0
    %6063 = vmatpush1.xpose.msra.mxu0 0.0
    %6064 = vmatprep.subr.mxu0 0.0
    %6065 = vmatpush1.xpose.msra.mxu0 0.0
    %6066 = vmatprep.subr.mxu0 0.0
    %6067 = vmatpush1.xpose.msra.mxu0 0.0
    %6068 = vmatprep.subr.mxu0 0.0
    %6069 = vmatpush1.xpose.msra.mxu0 0.0
    %6070 = vmatprep.subr.mxu0 0.0
    %6071 = vmatpush1.xpose.msra.mxu0 0.0
    %6072 = vmatprep.subr.mxu0 0.0
    %6073 = vmatpush1.xpose.msra.mxu0 0.0
    %6074 = vmatprep.subr.mxu0 0.0
    %6075 = vmatpush1.xpose.msra.mxu0 0.0
    %6076 = vmatprep.subr.mxu0 0.0
    %6077 = vmatpush1.xpose.msra.mxu0 0.0
    %6078 = vmatprep.subr.mxu0 0.0
    %6079 = vmatpush1.xpose.msra.mxu0 0.0
    %6080 = vmatprep.subr.mxu0 0.0
    %6081 = vmatpush1.xpose.msra.mxu0 0.0
    %6082 = vmatprep.subr.mxu0 0.0
    %6083 = vmatpush1.xpose.msra.mxu0 0.0
    %6084 = vmatprep.subr.mxu0 0.0
    %6085 = vmatpush1.xpose.msra.mxu0 0.0
    %6086 = vmatprep.subr.mxu0 0.0
    %6087 = vmatpush1.xpose.msra.mxu0 0.0
    %6088 = vmatprep.subr.mxu0 0.0
    %6089 = vmatpush1.xpose.msra.mxu0 0.0
    %6090 = vmatprep.subr.mxu0 0.0
    %6091 = vmatpush1.xpose.msra.mxu0 0.0
    %6092 = vmatprep.subr.mxu0 0.0
    %6093 = vmatpush1.xpose.msra.mxu0 0.0
    %6094 = vmatprep.subr.mxu0 0.0
    %6095 = vmatpush1.xpose.msra.mxu0 0.0
    %6096 = vmatprep.subr.mxu0 0.0
    %6097 = vmatpush1.xpose.msra.mxu0 0.0
    %6098 = vmatprep.subr.mxu0 0.0
    %6099 = vmatpush1.xpose.msra.mxu0 0.0
    %6100 = vmatprep.subr.mxu0 0.0
    %6101 = vmatpush1.xpose.msra.mxu0 0.0
    %6102 = vmatprep.subr.mxu0 0.0
    %6103 = vmatpush1.xpose.msra.mxu0 0.0
    %6104 = vmatprep.subr.mxu0 0.0
    %6105 = vmatpush1.xpose.msra.mxu0 0.0
    %6106 = vmatprep.subr.mxu0 0.0
    %6107 = vmatpush1.xpose.msra.mxu0 0.0
    %6108 = vmatprep.subr.mxu0 0.0
    %6109 = vmatpush1.xpose.msra.mxu0 0.0
    %6110 = vmatprep.mubr.f32.mxu0 0.0
    %6111 = vmatmul.mubr.f32.gmra.mrb[0].mxu0 %v6042
    %v6112 = vpop.f32.mrb[0].mxu0
    %v6113 = vadd.f32 0.0, %v6112
    %v6114 = vpop.f32.mrb[0].mxu0
    %6115 = vdwg.mxu0
    %6116 = vrot.lane.b32.xlu0 %v5731, 96
    %v6117 = vpop.permute.xlu0 %6116
    %v6118 = vsel %vm162, %v5731, 0
    %v6120 = vsel %vm162, %v6117, 0
    %6122 = vmatprep.subr.mxu0 0.0
    %6123 = vmatpush1.xpose.msra.mxu0 %v6120
    %6124 = vmatprep.subr.mxu0 0.0
    %6125 = vmatpush1.xpose.msra.mxu0 0.0
    %6126 = vmatprep.subr.mxu0 0.0
    %6127 = vmatpush1.xpose.msra.mxu0 0.0
    %6128 = vmatprep.subr.mxu0 0.0
    %6129 = vmatpush1.xpose.msra.mxu0 0.0
    %6130 = vmatprep.subr.mxu0 0.0
    %6131 = vmatpush1.xpose.msra.mxu0 0.0
    %6132 = vmatprep.subr.mxu0 0.0
    %6133 = vmatpush1.xpose.msra.mxu0 0.0
    %6134 = vmatprep.subr.mxu0 0.0
    %6135 = vmatpush1.xpose.msra.mxu0 0.0
    %6136 = vmatprep.subr.mxu0 0.0
    %6137 = vmatpush1.xpose.msra.mxu0 0.0
    %6138 = vmatprep.subr.mxu0 0.0
    %6139 = vmatpush1.xpose.msra.mxu0 0.0
    %6140 = vmatprep.subr.mxu0 0.0
    %6141 = vmatpush1.xpose.msra.mxu0 0.0
    %6142 = vmatprep.subr.mxu0 0.0
    %6143 = vmatpush1.xpose.msra.mxu0 0.0
    %6144 = vmatprep.subr.mxu0 0.0
    %6145 = vmatpush1.xpose.msra.mxu0 0.0
    %6146 = vmatprep.subr.mxu0 0.0
    %6147 = vmatpush1.xpose.msra.mxu0 0.0
    %6148 = vmatprep.subr.mxu0 0.0
    %6149 = vmatpush1.xpose.msra.mxu0 0.0
    %6150 = vmatprep.subr.mxu0 0.0
    %6151 = vmatpush1.xpose.msra.mxu0 0.0
    %6152 = vmatprep.subr.mxu0 0.0
    %6153 = vmatpush1.xpose.msra.mxu0 0.0
    %6154 = vmatprep.subr.mxu0 0.0
    %6155 = vmatpush1.xpose.msra.mxu0 0.0
    %6156 = vmatprep.subr.mxu0 0.0
    %6157 = vmatpush1.xpose.msra.mxu0 0.0
    %6158 = vmatprep.subr.mxu0 0.0
    %6159 = vmatpush1.xpose.msra.mxu0 0.0
    %6160 = vmatprep.subr.mxu0 0.0
    %6161 = vmatpush1.xpose.msra.mxu0 0.0
    %6162 = vmatprep.subr.mxu0 0.0
    %6163 = vmatpush1.xpose.msra.mxu0 0.0
    %6164 = vmatprep.subr.mxu0 0.0
    %6165 = vmatpush1.xpose.msra.mxu0 0.0
    %6166 = vmatprep.subr.mxu0 0.0
    %6167 = vmatpush1.xpose.msra.mxu0 0.0
    %6168 = vmatprep.subr.mxu0 0.0
    %6169 = vmatpush1.xpose.msra.mxu0 0.0
    %6170 = vmatprep.subr.mxu0 0.0
    %6171 = vmatpush1.xpose.msra.mxu0 0.0
    %6172 = vmatprep.subr.mxu0 0.0
    %6173 = vmatpush1.xpose.msra.mxu0 0.0
    %6174 = vmatprep.subr.mxu0 0.0
    %6175 = vmatpush1.xpose.msra.mxu0 0.0
    %6176 = vmatprep.subr.mxu0 0.0
    %6177 = vmatpush1.xpose.msra.mxu0 0.0
    %6178 = vmatprep.subr.mxu0 0.0
    %6179 = vmatpush1.xpose.msra.mxu0 0.0
    %6180 = vmatprep.subr.mxu0 0.0
    %6181 = vmatpush1.xpose.msra.mxu0 0.0
    %6182 = vmatprep.subr.mxu0 0.0
    %6183 = vmatpush1.xpose.msra.mxu0 0.0
    %6184 = vmatprep.subr.mxu0 0.0
    %6185 = vmatpush1.xpose.msra.mxu0 0.0
    %6186 = vmatprep.mubr.f32.mxu0 0.0
    %6187 = vmatmul.mubr.f32.gmra.mrb[0].mxu0 %v6118
    %v6188 = vpop.f32.mrb[0].mxu0
    %v6189 = vadd.f32 0.0, %v6188
    %v6190 = vpop.f32.mrb[0].mxu0
    %6191 = vdwg.mxu0
    %6192 = vrot.lane.b32.xlu0 %v5733, 96
    %v6193 = vpop.permute.xlu0 %6192
    %v6194 = vsel %vm162, %v5733, 0
    %v6196 = vsel %vm162, %v6193, 0
    %6198 = vmatprep.subr.mxu0 0.0
    %6199 = vmatpush1.xpose.msra.mxu0 %v6196
    %6200 = vmatprep.subr.mxu0 0.0
    %6201 = vmatpush1.xpose.msra.mxu0 0.0
    %6202 = vmatprep.subr.mxu0 0.0
    %6203 = vmatpush1.xpose.msra.mxu0 0.0
    %6204 = vmatprep.subr.mxu0 0.0
    %6205 = vmatpush1.xpose.msra.mxu0 0.0
    %6206 = vmatprep.subr.mxu0 0.0
    %6207 = vmatpush1.xpose.msra.mxu0 0.0
    %6208 = vmatprep.subr.mxu0 0.0
    %6209 = vmatpush1.xpose.msra.mxu0 0.0
    %6210 = vmatprep.subr.mxu0 0.0
    %6211 = vmatpush1.xpose.msra.mxu0 0.0
    %6212 = vmatprep.subr.mxu0 0.0
    %6213 = vmatpush1.xpose.msra.mxu0 0.0
    %6214 = vmatprep.subr.mxu0 0.0
    %6215 = vmatpush1.xpose.msra.mxu0 0.0
    %6216 = vmatprep.subr.mxu0 0.0
    %6217 = vmatpush1.xpose.msra.mxu0 0.0
    %6218 = vmatprep.subr.mxu0 0.0
    %6219 = vmatpush1.xpose.msra.mxu0 0.0
    %6220 = vmatprep.subr.mxu0 0.0
    %6221 = vmatpush1.xpose.msra.mxu0 0.0
    %6222 = vmatprep.subr.mxu0 0.0
    %6223 = vmatpush1.xpose.msra.mxu0 0.0
    %6224 = vmatprep.subr.mxu0 0.0
    %6225 = vmatpush1.xpose.msra.mxu0 0.0
    %6226 = vmatprep.subr.mxu0 0.0
    %6227 = vmatpush1.xpose.msra.mxu0 0.0
    %6228 = vmatprep.subr.mxu0 0.0
    %6229 = vmatpush1.xpose.msra.mxu0 0.0
    %6230 = vmatprep.subr.mxu0 0.0
    %6231 = vmatpush1.xpose.msra.mxu0 0.0
    %6232 = vmatprep.subr.mxu0 0.0
    %6233 = vmatpush1.xpose.msra.mxu0 0.0
    %6234 = vmatprep.subr.mxu0 0.0
    %6235 = vmatpush1.xpose.msra.mxu0 0.0
    %6236 = vmatprep.subr.mxu0 0.0
    %6237 = vmatpush1.xpose.msra.mxu0 0.0
    %6238 = vmatprep.subr.mxu0 0.0
    %6239 = vmatpush1.xpose.msra.mxu0 0.0
    %6240 = vmatprep.subr.mxu0 0.0
    %6241 = vmatpush1.xpose.msra.mxu0 0.0
    %6242 = vmatprep.subr.mxu0 0.0
    %6243 = vmatpush1.xpose.msra.mxu0 0.0
    %6244 = vmatprep.subr.mxu0 0.0
    %6245 = vmatpush1.xpose.msra.mxu0 0.0
    %6246 = vmatprep.subr.mxu0 0.0
    %6247 = vmatpush1.xpose.msra.mxu0 0.0
    %6248 = vmatprep.subr.mxu0 0.0
    %6249 = vmatpush1.xpose.msra.mxu0 0.0
    %6250 = vmatprep.subr.mxu0 0.0
    %6251 = vmatpush1.xpose.msra.mxu0 0.0
    %6252 = vmatprep.subr.mxu0 0.0
    %6253 = vmatpush1.xpose.msra.mxu0 0.0
    %6254 = vmatprep.subr.mxu0 0.0
    %6255 = vmatpush1.xpose.msra.mxu0 0.0
    %6256 = vmatprep.subr.mxu0 0.0
    %6257 = vmatpush1.xpose.msra.mxu0 0.0
    %6258 = vmatprep.subr.mxu0 0.0
    %6259 = vmatpush1.xpose.msra.mxu0 0.0
    %6260 = vmatprep.subr.mxu0 0.0
    %6261 = vmatpush1.xpose.msra.mxu0 0.0
    %6262 = vmatprep.mubr.f32.mxu0 0.0
    %6263 = vmatmul.mubr.f32.gmra.mrb[0].mxu0 %v6194
    %v6264 = vpop.f32.mrb[0].mxu0
    %v6265 = vadd.f32 0.0, %v6264
    %v6266 = vpop.f32.mrb[0].mxu0
    %6267 = vdwg.mxu0
    %6268 = vrot.lane.b32.xlu0 %v5735, 96
    %v6269 = vpop.permute.xlu0 %6268
    %v6270 = vsel %vm162, %v5735, 0
    %v6272 = vsel %vm162, %v6269, 0
    %6274 = vmatprep.subr.mxu0 0.0
    %6275 = vmatpush1.xpose.msra.mxu0 %v6272
    %6276 = vmatprep.subr.mxu0 0.0
    %6277 = vmatpush1.xpose.msra.mxu0 0.0
    %6278 = vmatprep.subr.mxu0 0.0
    %6279 = vmatpush1.xpose.msra.mxu0 0.0
    %6280 = vmatprep.subr.mxu0 0.0
    %6281 = vmatpush1.xpose.msra.mxu0 0.0
    %6282 = vmatprep.subr.mxu0 0.0
    %6283 = vmatpush1.xpose.msra.mxu0 0.0
    %6284 = vmatprep.subr.mxu0 0.0
    %6285 = vmatpush1.xpose.msra.mxu0 0.0
    %6286 = vmatprep.subr.mxu0 0.0
    %6287 = vmatpush1.xpose.msra.mxu0 0.0
    %6288 = vmatprep.subr.mxu0 0.0
    %6289 = vmatpush1.xpose.msra.mxu0 0.0
    %6290 = vmatprep.subr.mxu0 0.0
    %6291 = vmatpush1.xpose.msra.mxu0 0.0
    %6292 = vmatprep.subr.mxu0 0.0
    %6293 = vmatpush1.xpose.msra.mxu0 0.0
    %6294 = vmatprep.subr.mxu0 0.0
    %6295 = vmatpush1.xpose.msra.mxu0 0.0
    %6296 = vmatprep.subr.mxu0 0.0
    %6297 = vmatpush1.xpose.msra.mxu0 0.0
    %6298 = vmatprep.subr.mxu0 0.0
    %6299 = vmatpush1.xpose.msra.mxu0 0.0
    %6300 = vmatprep.subr.mxu0 0.0
    %6301 = vmatpush1.xpose.msra.mxu0 0.0
    %6302 = vmatprep.subr.mxu0 0.0
    %6303 = vmatpush1.xpose.msra.mxu0 0.0
    %6304 = vmatprep.subr.mxu0 0.0
    %6305 = vmatpush1.xpose.msra.mxu0 0.0
    %6306 = vmatprep.subr.mxu0 0.0
    %6307 = vmatpush1.xpose.msra.mxu0 0.0
    %6308 = vmatprep.subr.mxu0 0.0
    %6309 = vmatpush1.xpose.msra.mxu0 0.0
    %6310 = vmatprep.subr.mxu0 0.0
    %6311 = vmatpush1.xpose.msra.mxu0 0.0
    %6312 = vmatprep.subr.mxu0 0.0
    %6313 = vmatpush1.xpose.msra.mxu0 0.0
    %6314 = vmatprep.subr.mxu0 0.0
    %6315 = vmatpush1.xpose.msra.mxu0 0.0
    %6316 = vmatprep.subr.mxu0 0.0
    %6317 = vmatpush1.xpose.msra.mxu0 0.0
    %6318 = vmatprep.subr.mxu0 0.0
    %6319 = vmatpush1.xpose.msra.mxu0 0.0
    %6320 = vmatprep.subr.mxu0 0.0
    %6321 = vmatpush1.xpose.msra.mxu0 0.0
    %6322 = vmatprep.subr.mxu0 0.0
    %6323 = vmatpush1.xpose.msra.mxu0 0.0
    %6324 = vmatprep.subr.mxu0 0.0
    %6325 = vmatpush1.xpose.msra.mxu0 0.0
    %6326 = vmatprep.subr.mxu0 0.0
    %6327 = vmatpush1.xpose.msra.mxu0 0.0
    %6328 = vmatprep.subr.mxu0 0.0
    %6329 = vmatpush1.xpose.msra.mxu0 0.0
    %6330 = vmatprep.subr.mxu0 0.0
    %6331 = vmatpush1.xpose.msra.mxu0 0.0
    %6332 = vmatprep.subr.mxu0 0.0
    %6333 = vmatpush1.xpose.msra.mxu0 0.0
    %6334 = vmatprep.subr.mxu0 0.0
    %6335 = vmatpush1.xpose.msra.mxu0 0.0
    %6336 = vmatprep.subr.mxu0 0.0
    %6337 = vmatpush1.xpose.msra.mxu0 0.0
    %6338 = vmatprep.mubr.f32.mxu0 0.0
    %6339 = vmatmul.mubr.f32.gmra.mrb[0].mxu0 %v6270
    %v6340 = vpop.f32.mrb[0].mxu0
    %v6341 = vadd.f32 0.0, %v6340
    %v6342 = vpop.f32.mrb[0].mxu0
    %6343 = vdwg.mxu0
    %v6344 = vmul.f32 %v5809, 0.35355338
    %v6345 = vmul.f32 %v5885, 0.35355338
    %v6346 = vmul.f32 %v5961, 0.35355338
    %v6347 = vmul.f32 %v6037, 0.35355338
    %v6348 = vmul.f32 %v6113, 0.35355338
    %v6349 = vmul.f32 %v6189, 0.35355338
    %v6350 = vmul.f32 %v6265, 0.35355338
    %v6351 = vmul.f32 %v6341, 0.35355338
    %v6352 = vadd.f32 %v6344, %v52
    %v6353 = vadd.f32 %v6345, %v52
    %v6354 = vadd.f32 %v6346, %v52
    %v6355 = vadd.f32 %v6347, %v52
    %v6356 = vadd.f32 %v6348, %v52
    %v6357 = vadd.f32 %v6349, %v52
    %v6358 = vadd.f32 %v6350, %v52
    %v6359 = vadd.f32 %v6351, %v52
    %v6360 = vsel %vm162, %v6352, -inf
    %6361 = vmax.xlane.f32.xlu0 %v6360
    %v6362 = vpop.xlane.xlu0 %6361
    %v6363 = vsel %vm162, %v6353, -inf
    %6364 = vmax.xlane.f32.xlu0 %v6363
    %v6365 = vpop.xlane.xlu0 %6364
    %v6366 = vsel %vm162, %v6354, -inf
    %6367 = vmax.xlane.f32.xlu0 %v6366
    %v6368 = vpop.xlane.xlu0 %6367
    %v6369 = vsel %vm162, %v6355, -inf
    %6370 = vmax.xlane.f32.xlu0 %v6369
    %v6371 = vpop.xlane.xlu0 %6370
    %v6372 = vsel %vm162, %v6356, -inf
    %6373 = vmax.xlane.f32.xlu0 %v6372
    %v6374 = vpop.xlane.xlu0 %6373
    %v6375 = vsel %vm162, %v6357, -inf
    %6376 = vmax.xlane.f32.xlu0 %v6375
    %v6377 = vpop.xlane.xlu0 %6376
    %v6378 = vsel %vm162, %v6358, -inf
    %6379 = vmax.xlane.f32.xlu0 %v6378
    %v6380 = vpop.xlane.xlu0 %6379
    %v6381 = vsel %vm162, %v6359, -inf
    %6382 = vmax.xlane.f32.xlu0 %v6381
    %v6383 = vpop.xlane.xlu0 %6382
    %v6384 = vsub.f32 %v6352, %v6362
    %v6385 = vsub.f32 %v6353, %v6365
    %v6386 = vsub.f32 %v6354, %v6368
    %v6387 = vsub.f32 %v6355, %v6371
    %v6388 = vsub.f32 %v6356, %v6374
    %v6389 = vsub.f32 %v6357, %v6377
    %v6390 = vsub.f32 %v6358, %v6380
    %v6391 = vsub.f32 %v6359, %v6383
    %v6392 = vmul.f32 %v6384, 1.442695
    %v6393 = vpow.pop %v6392
    %v6394 = vmul.f32 %v6385, 1.442695
    %v6395 = vpow.pop %v6394
    %v6396 = vmul.f32 %v6386, 1.442695
    %v6397 = vpow.pop %v6396
    %v6398 = vmul.f32 %v6387, 1.442695
    %v6399 = vpow.pop %v6398
    %v6400 = vmul.f32 %v6388, 1.442695
    %v6401 = vpow.pop %v6400
    %v6402 = vmul.f32 %v6389, 1.442695
    %v6403 = vpow.pop %v6402
    %v6404 = vmul.f32 %v6390, 1.442695
    %v6405 = vpow.pop %v6404
    %v6406 = vmul.f32 %v6391, 1.442695
    %v6407 = vpow.pop %v6406
    %v6408 = vsel %vm162, %v6393, 0.0
    %6409 = vadd.xlane.f32.xlu0 %v6408
    %v6410 = vpop.xlane.xlu0 %6409
    %v6411 = vsel %vm162, %v6395, 0.0
    %6412 = vadd.xlane.f32.xlu0 %v6411
    %v6413 = vpop.xlane.xlu0 %6412
    %v6414 = vsel %vm162, %v6397, 0.0
    %6415 = vadd.xlane.f32.xlu0 %v6414
    %v6416 = vpop.xlane.xlu0 %6415
    %v6417 = vsel %vm162, %v6399, 0.0
    %6418 = vadd.xlane.f32.xlu0 %v6417
    %v6419 = vpop.xlane.xlu0 %6418
    %v6420 = vsel %vm162, %v6401, 0.0
    %6421 = vadd.xlane.f32.xlu0 %v6420
    %v6422 = vpop.xlane.xlu0 %6421
    %v6423 = vsel %vm162, %v6403, 0.0
    %6424 = vadd.xlane.f32.xlu0 %v6423
    %v6425 = vpop.xlane.xlu0 %6424
    %v6426 = vsel %vm162, %v6405, 0.0
    %6427 = vadd.xlane.f32.xlu0 %v6426
    %v6428 = vpop.xlane.xlu0 %6427
    %v6429 = vsel %vm162, %v6407, 0.0
    %6430 = vadd.xlane.f32.xlu0 %v6429
    %v6431 = vpop.xlane.xlu0 %6430
    %v6432 = vrcp.pop %v6410
    %v6433 = vrcp.pop %v6413
    %v6434 = vrcp.pop %v6416
    %v6435 = vrcp.pop %v6419
    %v6436 = vrcp.pop %v6422
    %v6437 = vrcp.pop %v6425
    %v6438 = vrcp.pop %v6428
    %v6439 = vrcp.pop %v6431
    %v6440 = vmul.f32 %v6410, %v6432
    %v6441 = vmul.f32 %v6413, %v6433
    %v6442 = vmul.f32 %v6416, %v6434
    %v6443 = vmul.f32 %v6419, %v6435
    %v6444 = vmul.f32 %v6422, %v6436
    %v6445 = vmul.f32 %v6425, %v6437
    %v6446 = vmul.f32 %v6428, %v6438
    %v6447 = vmul.f32 %v6431, %v6439
    %v6448 = vsub.f32 2.0, %v6440
    %v6449 = vsub.f32 2.0, %v6441
    %v6450 = vsub.f32 2.0, %v6442
    %v6451 = vsub.f32 2.0, %v6443
    %v6452 = vsub.f32 2.0, %v6444
    %v6453 = vsub.f32 2.0, %v6445
    %v6454 = vsub.f32 2.0, %v6446
    %v6455 = vsub.f32 2.0, %v6447
    %v6456 = vmul.f32 %v6432, %v6448
    %v6457 = vmul.f32 %v6433, %v6449
    %v6458 = vmul.f32 %v6434, %v6450
    %v6459 = vmul.f32 %v6435, %v6451
    %v6460 = vmul.f32 %v6436, %v6452
    %v6461 = vmul.f32 %v6437, %v6453
    %v6462 = vmul.f32 %v6438, %v6454
    %v6463 = vmul.f32 %v6439, %v6455
    %v6464 = vmul.f32 %v6393, %v6456
    %v6465 = vmul.f32 %v6395, %v6457
    %v6466 = vmul.f32 %v6397, %v6458
    %v6467 = vmul.f32 %v6399, %v6459
    %v6468 = vmul.f32 %v6401, %v6460
    %v6469 = vmul.f32 %v6403, %v6461
    %v6470 = vmul.f32 %v6405, %v6462
    %v6471 = vmul.f32 %v6407, %v6463
    %6472 = vrot.lane.b32.xlu0 %v5714, 64
    %v6473 = vpop.permute.xlu0 %6472
    %v6476 = vsel %vm162, %v6464, 0
    %6478 = vmatprep.subr.mxu0 0.0
    %6479 = vmatpush1.msra.mxu0 %v6473
    %6480 = vmatprep.subr.mxu0 0.0
    %6481 = vmatpush1.msra.mxu0 0.0
    %6482 = vmatprep.subr.mxu0 0.0
    %6483 = vmatpush1.msra.mxu0 0.0
    %6484 = vmatprep.subr.mxu0 0.0
    %6485 = vmatpush1.msra.mxu0 0.0
    %6486 = vmatprep.subr.mxu0 0.0
    %6487 = vmatpush1.msra.mxu0 0.0
    %6488 = vmatprep.subr.mxu0 0.0
    %6489 = vmatpush1.msra.mxu0 0.0
    %6490 = vmatprep.subr.mxu0 0.0
    %6491 = vmatpush1.msra.mxu0 0.0
    %6492 = vmatprep.subr.mxu0 0.0
    %6493 = vmatpush1.msra.mxu0 0.0
    %6494 = vmatprep.subr.mxu0 0.0
    %6495 = vmatpush1.msra.mxu0 0.0
    %6496 = vmatprep.subr.mxu0 0.0
    %6497 = vmatpush1.msra.mxu0 0.0
    %6498 = vmatprep.subr.mxu0 0.0
    %6499 = vmatpush1.msra.mxu0 0.0
    %6500 = vmatprep.subr.mxu0 0.0
    %6501 = vmatpush1.msra.mxu0 0.0
    %6502 = vmatprep.subr.mxu0 0.0
    %6503 = vmatpush1.msra.mxu0 0.0
    %6504 = vmatprep.subr.mxu0 0.0
    %6505 = vmatpush1.msra.mxu0 0.0
    %6506 = vmatprep.subr.mxu0 0.0
    %6507 = vmatpush1.msra.mxu0 0.0
    %6508 = vmatprep.subr.mxu0 0.0
    %6509 = vmatpush1.msra.mxu0 0.0
    %6510 = vmatprep.subr.mxu0 0.0
    %6511 = vmatpush1.msra.mxu0 0.0
    %6512 = vmatprep.subr.mxu0 0.0
    %6513 = vmatpush1.msra.mxu0 0.0
    %6514 = vmatprep.subr.mxu0 0.0
    %6515 = vmatpush1.msra.mxu0 0.0
    %6516 = vmatprep.subr.mxu0 0.0
    %6517 = vmatpush1.msra.mxu0 0.0
    %6518 = vmatprep.subr.mxu0 0.0
    %6519 = vmatpush1.msra.mxu0 0.0
    %6520 = vmatprep.subr.mxu0 0.0
    %6521 = vmatpush1.msra.mxu0 0.0
    %6522 = vmatprep.subr.mxu0 0.0
    %6523 = vmatpush1.msra.mxu0 0.0
    %6524 = vmatprep.subr.mxu0 0.0
    %6525 = vmatpush1.msra.mxu0 0.0
    %6526 = vmatprep.subr.mxu0 0.0
    %6527 = vmatpush1.msra.mxu0 0.0
    %6528 = vmatprep.subr.mxu0 0.0
    %6529 = vmatpush1.msra.mxu0 0.0
    %6530 = vmatprep.subr.mxu0 0.0
    %6531 = vmatpush1.msra.mxu0 0.0
    %6532 = vmatprep.subr.mxu0 0.0
    %6533 = vmatpush1.msra.mxu0 0.0
    %6534 = vmatprep.subr.mxu0 0.0
    %6535 = vmatpush1.msra.mxu0 0.0
    %6536 = vmatprep.subr.mxu0 0.0
    %6537 = vmatpush1.msra.mxu0 0.0
    %6538 = vmatprep.subr.mxu0 0.0
    %6539 = vmatpush1.msra.mxu0 0.0
    %6540 = vmatprep.subr.mxu0 0.0
    %6541 = vmatpush1.msra.mxu0 0.0
    %6542 = vmatprep.mubr.f32.mxu0 0.0
    %6543 = vmatmul.mubr.f32.gmra.mrb[0].mxu0 %v6476
    %v6544 = vpop.f32.mrb[0].mxu0
    %v6545 = vadd.f32 0.0, %v6544
    %v6546 = vpop.f32.mrb[0].mxu0
    %6547 = vdwg.mxu0
    %6548 = vrot.lane.b32.xlu0 %v5724, 64
    %v6549 = vpop.permute.xlu0 %6548
    %v6552 = vsel %vm162, %v6465, 0
    %6554 = vmatprep.subr.mxu0 0.0
    %6555 = vmatpush1.msra.mxu0 %v6549
    %6556 = vmatprep.subr.mxu0 0.0
    %6557 = vmatpush1.msra.mxu0 0.0
    %6558 = vmatprep.subr.mxu0 0.0
    %6559 = vmatpush1.msra.mxu0 0.0
    %6560 = vmatprep.subr.mxu0 0.0
    %6561 = vmatpush1.msra.mxu0 0.0
    %6562 = vmatprep.subr.mxu0 0.0
    %6563 = vmatpush1.msra.mxu0 0.0
    %6564 = vmatprep.subr.mxu0 0.0
    %6565 = vmatpush1.msra.mxu0 0.0
    %6566 = vmatprep.subr.mxu0 0.0
    %6567 = vmatpush1.msra.mxu0 0.0
    %6568 = vmatprep.subr.mxu0 0.0
    %6569 = vmatpush1.msra.mxu0 0.0
    %6570 = vmatprep.subr.mxu0 0.0
    %6571 = vmatpush1.msra.mxu0 0.0
    %6572 = vmatprep.subr.mxu0 0.0
    %6573 = vmatpush1.msra.mxu0 0.0
    %6574 = vmatprep.subr.mxu0 0.0
    %6575 = vmatpush1.msra.mxu0 0.0
    %6576 = vmatprep.subr.mxu0 0.0
    %6577 = vmatpush1.msra.mxu0 0.0
    %6578 = vmatprep.subr.mxu0 0.0
    %6579 = vmatpush1.msra.mxu0 0.0
    %6580 = vmatprep.subr.mxu0 0.0
    %6581 = vmatpush1.msra.mxu0 0.0
    %6582 = vmatprep.subr.mxu0 0.0
    %6583 = vmatpush1.msra.mxu0 0.0
    %6584 = vmatprep.subr.mxu0 0.0
    %6585 = vmatpush1.msra.mxu0 0.0
    %6586 = vmatprep.subr.mxu0 0.0
    %6587 = vmatpush1.msra.mxu0 0.0
    %6588 = vmatprep.subr.mxu0 0.0
    %6589 = vmatpush1.msra.mxu0 0.0
    %6590 = vmatprep.subr.mxu0 0.0
    %6591 = vmatpush1.msra.mxu0 0.0
    %6592 = vmatprep.subr.mxu0 0.0
    %6593 = vmatpush1.msra.mxu0 0.0
    %6594 = vmatprep.subr.mxu0 0.0
    %6595 = vmatpush1.msra.mxu0 0.0
    %6596 = vmatprep.subr.mxu0 0.0
    %6597 = vmatpush1.msra.mxu0 0.0
    %6598 = vmatprep.subr.mxu0 0.0
    %6599 = vmatpush1.msra.mxu0 0.0
    %6600 = vmatprep.subr.mxu0 0.0
    %6601 = vmatpush1.msra.mxu0 0.0
    %6602 = vmatprep.subr.mxu0 0.0
    %6603 = vmatpush1.msra.mxu0 0.0
    %6604 = vmatprep.subr.mxu0 0.0
    %6605 = vmatpush1.msra.mxu0 0.0
    %6606 = vmatprep.subr.mxu0 0.0
    %6607 = vmatpush1.msra.mxu0 0.0
    %6608 = vmatprep.subr.mxu0 0.0
    %6609 = vmatpush1.msra.mxu0 0.0
    %6610 = vmatprep.subr.mxu0 0.0
    %6611 = vmatpush1.msra.mxu0 0.0
    %6612 = vmatprep.subr.mxu0 0.0
    %6613 = vmatpush1.msra.mxu0 0.0
    %6614 = vmatprep.subr.mxu0 0.0
    %6615 = vmatpush1.msra.mxu0 0.0
    %6616 = vmatprep.subr.mxu0 0.0
    %6617 = vmatpush1.msra.mxu0 0.0
    %6618 = vmatprep.mubr.f32.mxu0 0.0
    %6619 = vmatmul.mubr.f32.gmra.mrb[0].mxu0 %v6552
    %v6620 = vpop.f32.mrb[0].mxu0
    %v6621 = vadd.f32 0.0, %v6620
    %v6622 = vpop.f32.mrb[0].mxu0
    %6623 = vdwg.mxu0
    %6624 = vrot.lane.b32.xlu0 %v5726, 64
    %v6625 = vpop.permute.xlu0 %6624
    %v6628 = vsel %vm162, %v6466, 0
    %6630 = vmatprep.subr.mxu0 0.0
    %6631 = vmatpush1.msra.mxu0 %v6625
    %6632 = vmatprep.subr.mxu0 0.0
    %6633 = vmatpush1.msra.mxu0 0.0
    %6634 = vmatprep.subr.mxu0 0.0
    %6635 = vmatpush1.msra.mxu0 0.0
    %6636 = vmatprep.subr.mxu0 0.0
    %6637 = vmatpush1.msra.mxu0 0.0
    %6638 = vmatprep.subr.mxu0 0.0
    %6639 = vmatpush1.msra.mxu0 0.0
    %6640 = vmatprep.subr.mxu0 0.0
    %6641 = vmatpush1.msra.mxu0 0.0
    %6642 = vmatprep.subr.mxu0 0.0
    %6643 = vmatpush1.msra.mxu0 0.0
    %6644 = vmatprep.subr.mxu0 0.0
    %6645 = vmatpush1.msra.mxu0 0.0
    %6646 = vmatprep.subr.mxu0 0.0
    %6647 = vmatpush1.msra.mxu0 0.0
    %6648 = vmatprep.subr.mxu0 0.0
    %6649 = vmatpush1.msra.mxu0 0.0
    %6650 = vmatprep.subr.mxu0 0.0
    %6651 = vmatpush1.msra.mxu0 0.0
    %6652 = vmatprep.subr.mxu0 0.0
    %6653 = vmatpush1.msra.mxu0 0.0
    %6654 = vmatprep.subr.mxu0 0.0
    %6655 = vmatpush1.msra.mxu0 0.0
    %6656 = vmatprep.subr.mxu0 0.0
    %6657 = vmatpush1.msra.mxu0 0.0
    %6658 = vmatprep.subr.mxu0 0.0
    %6659 = vmatpush1.msra.mxu0 0.0
    %6660 = vmatprep.subr.mxu0 0.0
    %6661 = vmatpush1.msra.mxu0 0.0
    %6662 = vmatprep.subr.mxu0 0.0
    %6663 = vmatpush1.msra.mxu0 0.0
    %6664 = vmatprep.subr.mxu0 0.0
    %6665 = vmatpush1.msra.mxu0 0.0
    %6666 = vmatprep.subr.mxu0 0.0
    %6667 = vmatpush1.msra.mxu0 0.0
    %6668 = vmatprep.subr.mxu0 0.0
    %6669 = vmatpush1.msra.mxu0 0.0
    %6670 = vmatprep.subr.mxu0 0.0
    %6671 = vmatpush1.msra.mxu0 0.0
    %6672 = vmatprep.subr.mxu0 0.0
    %6673 = vmatpush1.msra.mxu0 0.0
    %6674 = vmatprep.subr.mxu0 0.0
    %6675 = vmatpush1.msra.mxu0 0.0
    %6676 = vmatprep.subr.mxu0 0.0
    %6677 = vmatpush1.msra.mxu0 0.0
    %6678 = vmatprep.subr.mxu0 0.0
    %6679 = vmatpush1.msra.mxu0 0.0
    %6680 = vmatprep.subr.mxu0 0.0
    %6681 = vmatpush1.msra.mxu0 0.0
    %6682 = vmatprep.subr.mxu0 0.0
    %6683 = vmatpush1.msra.mxu0 0.0
    %6684 = vmatprep.subr.mxu0 0.0
    %6685 = vmatpush1.msra.mxu0 0.0
    %6686 = vmatprep.subr.mxu0 0.0
    %6687 = vmatpush1.msra.mxu0 0.0
    %6688 = vmatprep.subr.mxu0 0.0
    %6689 = vmatpush1.msra.mxu0 0.0
    %6690 = vmatprep.subr.mxu0 0.0
    %6691 = vmatpush1.msra.mxu0 0.0
    %6692 = vmatprep.subr.mxu0 0.0
    %6693 = vmatpush1.msra.mxu0 0.0
    %6694 = vmatprep.mubr.f32.mxu0 0.0
    %6695 = vmatmul.mubr.f32.gmra.mrb[0].mxu0 %v6628
    %v6696 = vpop.f32.mrb[0].mxu0
    %v6697 = vadd.f32 0.0, %v6696
    %v6698 = vpop.f32.mrb[0].mxu0
    %6699 = vdwg.mxu0
    %6700 = vrot.lane.b32.xlu0 %v5728, 64
    %v6701 = vpop.permute.xlu0 %6700
    %v6704 = vsel %vm162, %v6467, 0
    %6706 = vmatprep.subr.mxu0 0.0
    %6707 = vmatpush1.msra.mxu0 %v6701
    %6708 = vmatprep.subr.mxu0 0.0
    %6709 = vmatpush1.msra.mxu0 0.0
    %6710 = vmatprep.subr.mxu0 0.0
    %6711 = vmatpush1.msra.mxu0 0.0
    %6712 = vmatprep.subr.mxu0 0.0
    %6713 = vmatpush1.msra.mxu0 0.0
    %6714 = vmatprep.subr.mxu0 0.0
    %6715 = vmatpush1.msra.mxu0 0.0
    %6716 = vmatprep.subr.mxu0 0.0
    %6717 = vmatpush1.msra.mxu0 0.0
    %6718 = vmatprep.subr.mxu0 0.0
    %6719 = vmatpush1.msra.mxu0 0.0
    %6720 = vmatprep.subr.mxu0 0.0
    %6721 = vmatpush1.msra.mxu0 0.0
    %6722 = vmatprep.subr.mxu0 0.0
    %6723 = vmatpush1.msra.mxu0 0.0
    %6724 = vmatprep.subr.mxu0 0.0
    %6725 = vmatpush1.msra.mxu0 0.0
    %6726 = vmatprep.subr.mxu0 0.0
    %6727 = vmatpush1.msra.mxu0 0.0
    %6728 = vmatprep.subr.mxu0 0.0
    %6729 = vmatpush1.msra.mxu0 0.0
    %6730 = vmatprep.subr.mxu0 0.0
    %6731 = vmatpush1.msra.mxu0 0.0
    %6732 = vmatprep.subr.mxu0 0.0
    %6733 = vmatpush1.msra.mxu0 0.0
    %6734 = vmatprep.subr.mxu0 0.0
    %6735 = vmatpush1.msra.mxu0 0.0
    %6736 = vmatprep.subr.mxu0 0.0
    %6737 = vmatpush1.msra.mxu0 0.0
    %6738 = vmatprep.subr.mxu0 0.0
    %6739 = vmatpush1.msra.mxu0 0.0
    %6740 = vmatprep.subr.mxu0 0.0
    %6741 = vmatpush1.msra.mxu0 0.0
    %6742 = vmatprep.subr.mxu0 0.0
    %6743 = vmatpush1.msra.mxu0 0.0
    %6744 = vmatprep.subr.mxu0 0.0
    %6745 = vmatpush1.msra.mxu0 0.0
    %6746 = vmatprep.subr.mxu0 0.0
    %6747 = vmatpush1.msra.mxu0 0.0
    %6748 = vmatprep.subr.mxu0 0.0
    %6749 = vmatpush1.msra.mxu0 0.0
    %6750 = vmatprep.subr.mxu0 0.0
    %6751 = vmatpush1.msra.mxu0 0.0
    %6752 = vmatprep.subr.mxu0 0.0
    %6753 = vmatpush1.msra.mxu0 0.0
    %6754 = vmatprep.subr.mxu0 0.0
    %6755 = vmatpush1.msra.mxu0 0.0
    %6756 = vmatprep.subr.mxu0 0.0
    %6757 = vmatpush1.msra.mxu0 0.0
    %6758 = vmatprep.subr.mxu0 0.0
    %6759 = vmatpush1.msra.mxu0 0.0
    %6760 = vmatprep.subr.mxu0 0.0
    %6761 = vmatpush1.msra.mxu0 0.0
    %6762 = vmatprep.subr.mxu0 0.0
    %6763 = vmatpush1.msra.mxu0 0.0
    %6764 = vmatprep.subr.mxu0 0.0
    %6765 = vmatpush1.msra.mxu0 0.0
    %6766 = vmatprep.subr.mxu0 0.0
    %6767 = vmatpush1.msra.mxu0 0.0
    %6768 = vmatprep.subr.mxu0 0.0
    %6769 = vmatpush1.msra.mxu0 0.0
    %6770 = vmatprep.mubr.f32.mxu0 0.0
    %6771 = vmatmul.mubr.f32.gmra.mrb[0].mxu0 %v6704
    %v6772 = vpop.f32.mrb[0].mxu0
    %v6773 = vadd.f32 0.0, %v6772
    %v6774 = vpop.f32.mrb[0].mxu0
    %6775 = vdwg.mxu0
    %6776 = vrot.lane.b32.xlu0 %v5719, 64
    %v6777 = vpop.permute.xlu0 %6776
    %v6780 = vsel %vm162, %v6468, 0
    %6782 = vmatprep.subr.mxu0 0.0
    %6783 = vmatpush1.msra.mxu0 %v6777
    %6784 = vmatprep.subr.mxu0 0.0
    %6785 = vmatpush1.msra.mxu0 0.0
    %6786 = vmatprep.subr.mxu0 0.0
    %6787 = vmatpush1.msra.mxu0 0.0
    %6788 = vmatprep.subr.mxu0 0.0
    %6789 = vmatpush1.msra.mxu0 0.0
    %6790 = vmatprep.subr.mxu0 0.0
    %6791 = vmatpush1.msra.mxu0 0.0
    %6792 = vmatprep.subr.mxu0 0.0
    %6793 = vmatpush1.msra.mxu0 0.0
    %6794 = vmatprep.subr.mxu0 0.0
    %6795 = vmatpush1.msra.mxu0 0.0
    %6796 = vmatprep.subr.mxu0 0.0
    %6797 = vmatpush1.msra.mxu0 0.0
    %6798 = vmatprep.subr.mxu0 0.0
    %6799 = vmatpush1.msra.mxu0 0.0
    %6800 = vmatprep.subr.mxu0 0.0
    %6801 = vmatpush1.msra.mxu0 0.0
    %6802 = vmatprep.subr.mxu0 0.0
    %6803 = vmatpush1.msra.mxu0 0.0
    %6804 = vmatprep.subr.mxu0 0.0
    %6805 = vmatpush1.msra.mxu0 0.0
    %6806 = vmatprep.subr.mxu0 0.0
    %6807 = vmatpush1.msra.mxu0 0.0
    %6808 = vmatprep.subr.mxu0 0.0
    %6809 = vmatpush1.msra.mxu0 0.0
    %6810 = vmatprep.subr.mxu0 0.0
    %6811 = vmatpush1.msra.mxu0 0.0
    %6812 = vmatprep.subr.mxu0 0.0
    %6813 = vmatpush1.msra.mxu0 0.0
    %6814 = vmatprep.subr.mxu0 0.0
    %6815 = vmatpush1.msra.mxu0 0.0
    %6816 = vmatprep.subr.mxu0 0.0
    %6817 = vmatpush1.msra.mxu0 0.0
    %6818 = vmatprep.subr.mxu0 0.0
    %6819 = vmatpush1.msra.mxu0 0.0
    %6820 = vmatprep.subr.mxu0 0.0
    %6821 = vmatpush1.msra.mxu0 0.0
    %6822 = vmatprep.subr.mxu0 0.0
    %6823 = vmatpush1.msra.mxu0 0.0
    %6824 = vmatprep.subr.mxu0 0.0
    %6825 = vmatpush1.msra.mxu0 0.0
    %6826 = vmatprep.subr.mxu0 0.0
    %6827 = vmatpush1.msra.mxu0 0.0
    %6828 = vmatprep.subr.mxu0 0.0
    %6829 = vmatpush1.msra.mxu0 0.0
    %6830 = vmatprep.subr.mxu0 0.0
    %6831 = vmatpush1.msra.mxu0 0.0
    %6832 = vmatprep.subr.mxu0 0.0
    %6833 = vmatpush1.msra.mxu0 0.0
    %6834 = vmatprep.subr.mxu0 0.0
    %6835 = vmatpush1.msra.mxu0 0.0
    %6836 = vmatprep.subr.mxu0 0.0
    %6837 = vmatpush1.msra.mxu0 0.0
    %6838 = vmatprep.subr.mxu0 0.0
    %6839 = vmatpush1.msra.mxu0 0.0
    %6840 = vmatprep.subr.mxu0 0.0
    %6841 = vmatpush1.msra.mxu0 0.0
    %6842 = vmatprep.subr.mxu0 0.0
    %6843 = vmatpush1.msra.mxu0 0.0
    %6844 = vmatprep.subr.mxu0 0.0
    %6845 = vmatpush1.msra.mxu0 0.0
    %6846 = vmatprep.mubr.f32.mxu0 0.0
    %6847 = vmatmul.mubr.f32.gmra.mrb[0].mxu0 %v6780
    %v6848 = vpop.f32.mrb[0].mxu0
    %v6849 = vadd.f32 0.0, %v6848
    %v6850 = vpop.f32.mrb[0].mxu0
    %6851 = vdwg.mxu0
    %6852 = vrot.lane.b32.xlu0 %v5731, 64
    %v6853 = vpop.permute.xlu0 %6852
    %v6856 = vsel %vm162, %v6469, 0
    %6858 = vmatprep.subr.mxu0 0.0
    %6859 = vmatpush1.msra.mxu0 %v6853
    %6860 = vmatprep.subr.mxu0 0.0
    %6861 = vmatpush1.msra.mxu0 0.0
    %6862 = vmatprep.subr.mxu0 0.0
    %6863 = vmatpush1.msra.mxu0 0.0
    %6864 = vmatprep.subr.mxu0 0.0
    %6865 = vmatpush1.msra.mxu0 0.0
    %6866 = vmatprep.subr.mxu0 0.0
    %6867 = vmatpush1.msra.mxu0 0.0
    %6868 = vmatprep.subr.mxu0 0.0
    %6869 = vmatpush1.msra.mxu0 0.0
    %6870 = vmatprep.subr.mxu0 0.0
    %6871 = vmatpush1.msra.mxu0 0.0
    %6872 = vmatprep.subr.mxu0 0.0
    %6873 = vmatpush1.msra.mxu0 0.0
    %6874 = vmatprep.subr.mxu0 0.0
    %6875 = vmatpush1.msra.mxu0 0.0
    %6876 = vmatprep.subr.mxu0 0.0
    %6877 = vmatpush1.msra.mxu0 0.0
    %6878 = vmatprep.subr.mxu0 0.0
    %6879 = vmatpush1.msra.mxu0 0.0
    %6880 = vmatprep.subr.mxu0 0.0
    %6881 = vmatpush1.msra.mxu0 0.0
    %6882 = vmatprep.subr.mxu0 0.0
    %6883 = vmatpush1.msra.mxu0 0.0
    %6884 = vmatprep.subr.mxu0 0.0
    %6885 = vmatpush1.msra.mxu0 0.0
    %6886 = vmatprep.subr.mxu0 0.0
    %6887 = vmatpush1.msra.mxu0 0.0
    %6888 = vmatprep.subr.mxu0 0.0
    %6889 = vmatpush1.msra.mxu0 0.0
    %6890 = vmatprep.subr.mxu0 0.0
    %6891 = vmatpush1.msra.mxu0 0.0
    %6892 = vmatprep.subr.mxu0 0.0
    %6893 = vmatpush1.msra.mxu0 0.0
    %6894 = vmatprep.subr.mxu0 0.0
    %6895 = vmatpush1.msra.mxu0 0.0
    %6896 = vmatprep.subr.mxu0 0.0
    %6897 = vmatpush1.msra.mxu0 0.0
    %6898 = vmatprep.subr.mxu0 0.0
    %6899 = vmatpush1.msra.mxu0 0.0
    %6900 = vmatprep.subr.mxu0 0.0
    %6901 = vmatpush1.msra.mxu0 0.0
    %6902 = vmatprep.subr.mxu0 0.0
    %6903 = vmatpush1.msra.mxu0 0.0
    %6904 = vmatprep.subr.mxu0 0.0
    %6905 = vmatpush1.msra.mxu0 0.0
    %6906 = vmatprep.subr.mxu0 0.0
    %6907 = vmatpush1.msra.mxu0 0.0
    %6908 = vmatprep.subr.mxu0 0.0
    %6909 = vmatpush1.msra.mxu0 0.0
    %6910 = vmatprep.subr.mxu0 0.0
    %6911 = vmatpush1.msra.mxu0 0.0
    %6912 = vmatprep.subr.mxu0 0.0
    %6913 = vmatpush1.msra.mxu0 0.0
    %6914 = vmatprep.subr.mxu0 0.0
    %6915 = vmatpush1.msra.mxu0 0.0
    %6916 = vmatprep.subr.mxu0 0.0
    %6917 = vmatpush1.msra.mxu0 0.0
    %6918 = vmatprep.subr.mxu0 0.0
    %6919 = vmatpush1.msra.mxu0 0.0
    %6920 = vmatprep.subr.mxu0 0.0
    %6921 = vmatpush1.msra.mxu0 0.0
    %6922 = vmatprep.mubr.f32.mxu0 0.0
    %6923 = vmatmul.mubr.f32.gmra.mrb[0].mxu0 %v6856
    %v6924 = vpop.f32.mrb[0].mxu0
    %v6925 = vadd.f32 0.0, %v6924
    %v6926 = vpop.f32.mrb[0].mxu0
    %6927 = vdwg.mxu0
    %6928 = vrot.lane.b32.xlu0 %v5733, 64
    %v6929 = vpop.permute.xlu0 %6928
    %v6932 = vsel %vm162, %v6470, 0
    %6934 = vmatprep.subr.mxu0 0.0
    %6935 = vmatpush1.msra.mxu0 %v6929
    %6936 = vmatprep.subr.mxu0 0.0
    %6937 = vmatpush1.msra.mxu0 0.0
    %6938 = vmatprep.subr.mxu0 0.0
    %6939 = vmatpush1.msra.mxu0 0.0
    %6940 = vmatprep.subr.mxu0 0.0
    %6941 = vmatpush1.msra.mxu0 0.0
    %6942 = vmatprep.subr.mxu0 0.0
    %6943 = vmatpush1.msra.mxu0 0.0
    %6944 = vmatprep.subr.mxu0 0.0
    %6945 = vmatpush1.msra.mxu0 0.0
    %6946 = vmatprep.subr.mxu0 0.0
    %6947 = vmatpush1.msra.mxu0 0.0
    %6948 = vmatprep.subr.mxu0 0.0
    %6949 = vmatpush1.msra.mxu0 0.0
    %6950 = vmatprep.subr.mxu0 0.0
    %6951 = vmatpush1.msra.mxu0 0.0
    %6952 = vmatprep.subr.mxu0 0.0
    %6953 = vmatpush1.msra.mxu0 0.0
    %6954 = vmatprep.subr.mxu0 0.0
    %6955 = vmatpush1.msra.mxu0 0.0
    %6956 = vmatprep.subr.mxu0 0.0
    %6957 = vmatpush1.msra.mxu0 0.0
    %6958 = vmatprep.subr.mxu0 0.0
    %6959 = vmatpush1.msra.mxu0 0.0
    %6960 = vmatprep.subr.mxu0 0.0
    %6961 = vmatpush1.msra.mxu0 0.0
    %6962 = vmatprep.subr.mxu0 0.0
    %6963 = vmatpush1.msra.mxu0 0.0
    %6964 = vmatprep.subr.mxu0 0.0
    %6965 = vmatpush1.msra.mxu0 0.0
    %6966 = vmatprep.subr.mxu0 0.0
    %6967 = vmatpush1.msra.mxu0 0.0
    %6968 = vmatprep.subr.mxu0 0.0
    %6969 = vmatpush1.msra.mxu0 0.0
    %6970 = vmatprep.subr.mxu0 0.0
    %6971 = vmatpush1.msra.mxu0 0.0
    %6972 = vmatprep.subr.mxu0 0.0
    %6973 = vmatpush1.msra.mxu0 0.0
    %6974 = vmatprep.subr.mxu0 0.0
    %6975 = vmatpush1.msra.mxu0 0.0
    %6976 = vmatprep.subr.mxu0 0.0
    %6977 = vmatpush1.msra.mxu0 0.0
    %6978 = vmatprep.subr.mxu0 0.0
    %6979 = vmatpush1.msra.mxu0 0.0
    %6980 = vmatprep.subr.mxu0 0.0
    %6981 = vmatpush1.msra.mxu0 0.0
    %6982 = vmatprep.subr.mxu0 0.0
    %6983 = vmatpush1.msra.mxu0 0.0
    %6984 = vmatprep.subr.mxu0 0.0
    %6985 = vmatpush1.msra.mxu0 0.0
    %6986 = vmatprep.subr.mxu0 0.0
    %6987 = vmatpush1.msra.mxu0 0.0
    %6988 = vmatprep.subr.mxu0 0.0
    %6989 = vmatpush1.msra.mxu0 0.0
    %6990 = vmatprep.subr.mxu0 0.0
    %6991 = vmatpush1.msra.mxu0 0.0
    %6992 = vmatprep.subr.mxu0 0.0
    %6993 = vmatpush1.msra.mxu0 0.0
    %6994 = vmatprep.subr.mxu0 0.0
    %6995 = vmatpush1.msra.mxu0 0.0
    %6996 = vmatprep.subr.mxu0 0.0
    %6997 = vmatpush1.msra.mxu0 0.0
    %6998 = vmatprep.mubr.f32.mxu0 0.0
    %6999 = vmatmul.mubr.f32.gmra.mrb[0].mxu0 %v6932
    %v7000 = vpop.f32.mrb[0].mxu0
    %v7001 = vadd.f32 0.0, %v7000
    %v7002 = vpop.f32.mrb[0].mxu0
    %7003 = vdwg.mxu0
    %7004 = vrot.lane.b32.xlu0 %v5735, 64
    %v7005 = vpop.permute.xlu0 %7004
    %v7008 = vsel %vm162, %v6471, 0
    %7010 = vmatprep.subr.mxu0 0.0
    %7011 = vmatpush1.msra.mxu0 %v7005
    %7012 = vmatprep.subr.mxu0 0.0
    %7013 = vmatpush1.msra.mxu0 0.0
    %7014 = vmatprep.subr.mxu0 0.0
    %7015 = vmatpush1.msra.mxu0 0.0
    %7016 = vmatprep.subr.mxu0 0.0
    %7017 = vmatpush1.msra.mxu0 0.0
    %7018 = vmatprep.subr.mxu0 0.0
    %7019 = vmatpush1.msra.mxu0 0.0
    %7020 = vmatprep.subr.mxu0 0.0
    %7021 = vmatpush1.msra.mxu0 0.0
    %7022 = vmatprep.subr.mxu0 0.0
    %7023 = vmatpush1.msra.mxu0 0.0
    %7024 = vmatprep.subr.mxu0 0.0
    %7025 = vmatpush1.msra.mxu0 0.0
    %7026 = vmatprep.subr.mxu0 0.0
    %7027 = vmatpush1.msra.mxu0 0.0
    %7028 = vmatprep.subr.mxu0 0.0
    %7029 = vmatpush1.msra.mxu0 0.0
    %7030 = vmatprep.subr.mxu0 0.0
    %7031 = vmatpush1.msra.mxu0 0.0
    %7032 = vmatprep.subr.mxu0 0.0
    %7033 = vmatpush1.msra.mxu0 0.0
    %7034 = vmatprep.subr.mxu0 0.0
    %7035 = vmatpush1.msra.mxu0 0.0
    %7036 = vmatprep.subr.mxu0 0.0
    %7037 = vmatpush1.msra.mxu0 0.0
    %7038 = vmatprep.subr.mxu0 0.0
    %7039 = vmatpush1.msra.mxu0 0.0
    %7040 = vmatprep.subr.mxu0 0.0
    %7041 = vmatpush1.msra.mxu0 0.0
    %7042 = vmatprep.subr.mxu0 0.0
    %7043 = vmatpush1.msra.mxu0 0.0
    %7044 = vmatprep.subr.mxu0 0.0
    %7045 = vmatpush1.msra.mxu0 0.0
    %7046 = vmatprep.subr.mxu0 0.0
    %7047 = vmatpush1.msra.mxu0 0.0
    %7048 = vmatprep.subr.mxu0 0.0
    %7049 = vmatpush1.msra.mxu0 0.0
    %7050 = vmatprep.subr.mxu0 0.0
    %7051 = vmatpush1.msra.mxu0 0.0
    %7052 = vmatprep.subr.mxu0 0.0
    %7053 = vmatpush1.msra.mxu0 0.0
    %7054 = vmatprep.subr.mxu0 0.0
    %7055 = vmatpush1.msra.mxu0 0.0
    %7056 = vmatprep.subr.mxu0 0.0
    %7057 = vmatpush1.msra.mxu0 0.0
    %7058 = vmatprep.subr.mxu0 0.0
    %7059 = vmatpush1.msra.mxu0 0.0
    %7060 = vmatprep.subr.mxu0 0.0
    %7061 = vmatpush1.msra.mxu0 0.0
    %7062 = vmatprep.subr.mxu0 0.0
    %7063 = vmatpush1.msra.mxu0 0.0
    %7064 = vmatprep.subr.mxu0 0.0
    %7065 = vmatpush1.msra.mxu0 0.0
    %7066 = vmatprep.subr.mxu0 0.0
    %7067 = vmatpush1.msra.mxu0 0.0
    %7068 = vmatprep.subr.mxu0 0.0
    %7069 = vmatpush1.msra.mxu0 0.0
    %7070 = vmatprep.subr.mxu0 0.0
    %7071 = vmatpush1.msra.mxu0 0.0
    %7072 = vmatprep.subr.mxu0 0.0
    %7073 = vmatpush1.msra.mxu0 0.0
    %7074 = vmatprep.mubr.f32.mxu0 0.0
    %7075 = vmatmul.mubr.f32.gmra.mrb[0].mxu0 %v7008
    %v7076 = vpop.f32.mrb[0].mxu0
    %v7077 = vadd.f32 0.0, %v7076
    %v7078 = vpop.f32.mrb[0].mxu0
    %7079 = vdwg.mxu0
    %7081 = vrot.lane.b32.xlu0 %v6621, 8
    %v7082 = vpop.permute.xlu0 %7081
    %7085 = vrot.lane.b32.xlu0 %v6697, 16
    %v7086 = vpop.permute.xlu0 %7085
    %7089 = vrot.lane.b32.xlu0 %v6773, 24
    %v7090 = vpop.permute.xlu0 %7089
    %v7092 = vsel %vm162, %v6545, %v7082
    %v7093 = vsel %vm1518, %v7092, %v7086
    %v7094 = vsel %vm1520, %v7093, %v7090
    %7096 = vrot.lane.b32.xlu0 %v6925, 8
    %v7097 = vpop.permute.xlu0 %7096
    %7100 = vrot.lane.b32.xlu0 %v7001, 16
    %v7101 = vpop.permute.xlu0 %7100
    %7104 = vrot.lane.b32.xlu0 %v7077, 24
    %v7105 = vpop.permute.xlu0 %7104
    %v7107 = vsel %vm162, %v6849, %v7097
    %v7108 = vsel %vm1518, %v7107, %v7101
    %v7109 = vsel %vm1520, %v7108, %v7105
    %s7110 = scalar_lea.vmem %s3, 96
    %v7111 = vld [vmem:[%s7110] sm:$0xff]
    %v7112 = vld [vmem:[%s7110 + $0x8] sm:$0xff]
    %v7113 = vld [vmem:[%s7110 + $0x10] sm:$0xff]
    %v7114 = vld [vmem:[%s7110 + $0x18] sm:$0xff]
    %s7115 = scalar_lea.vmem %s4, 3
    %v7116 = vld [vmem:[%s7115] sm:$0x1]
    %v7118 = vlaneseq
    %v7119 = vshrl.u32 %v7118, 7
    %v7120 = vsub.s32 0, %v7119
    %v7121 = vrot.slane %v7116, %v7120
    %v7124 = vsel %vm64, %v7094, 0
    %v7127 = vsel %vm64, %v7109, 0
    %7129 = vmatprep.subr.mxu0 0.0
    %7130 = vmatpush1.msra.mxu0 %v7111
    %7131 = vmatprep.subr.mxu0 0.0
    %7132 = vmatpush1.msra.mxu0 %v7112
    %7133 = vmatprep.subr.mxu0 0.0
    %7134 = vmatpush1.msra.mxu0 %v7113
    %7135 = vmatprep.subr.mxu0 0.0
    %7136 = vmatpush1.msra.mxu0 %v7114
    %7137 = vmatprep.subr.mxu0 0.0
    %7138 = vmatpush1.msra.mxu0 0.0
    %7139 = vmatprep.subr.mxu0 0.0
    %7140 = vmatpush1.msra.mxu0 0.0
    %7141 = vmatprep.subr.mxu0 0.0
    %7142 = vmatpush1.msra.mxu0 0.0
    %7143 = vmatprep.subr.mxu0 0.0
    %7144 = vmatpush1.msra.mxu0 0.0
    %7145 = vmatprep.subr.mxu0 0.0
    %7146 = vmatpush1.msra.mxu0 0.0
    %7147 = vmatprep.subr.mxu0 0.0
    %7148 = vmatpush1.msra.mxu0 0.0
    %7149 = vmatprep.subr.mxu0 0.0
    %7150 = vmatpush1.msra.mxu0 0.0
    %7151 = vmatprep.subr.mxu0 0.0
    %7152 = vmatpush1.msra.mxu0 0.0
    %7153 = vmatprep.subr.mxu0 0.0
    %7154 = vmatpush1.msra.mxu0 0.0
    %7155 = vmatprep.subr.mxu0 0.0
    %7156 = vmatpush1.msra.mxu0 0.0
    %7157 = vmatprep.subr.mxu0 0.0
    %7158 = vmatpush1.msra.mxu0 0.0
    %7159 = vmatprep.subr.mxu0 0.0
    %7160 = vmatpush1.msra.mxu0 0.0
    %7161 = vmatprep.subr.mxu0 0.0
    %7162 = vmatpush1.msra.mxu0 0.0
    %7163 = vmatprep.subr.mxu0 0.0
    %7164 = vmatpush1.msra.mxu0 0.0
    %7165 = vmatprep.subr.mxu0 0.0
    %7166 = vmatpush1.msra.mxu0 0.0
    %7167 = vmatprep.subr.mxu0 0.0
    %7168 = vmatpush1.msra.mxu0 0.0
    %7169 = vmatprep.subr.mxu0 0.0
    %7170 = vmatpush1.msra.mxu0 0.0
    %7171 = vmatprep.subr.mxu0 0.0
    %7172 = vmatpush1.msra.mxu0 0.0
    %7173 = vmatprep.subr.mxu0 0.0
    %7174 = vmatpush1.msra.mxu0 0.0
    %7175 = vmatprep.subr.mxu0 0.0
    %7176 = vmatpush1.msra.mxu0 0.0
    %7177 = vmatprep.subr.mxu0 0.0
    %7178 = vmatpush1.msra.mxu0 0.0
    %7179 = vmatprep.subr.mxu0 0.0
    %7180 = vmatpush1.msra.mxu0 0.0
    %7181 = vmatprep.subr.mxu0 0.0
    %7182 = vmatpush1.msra.mxu0 0.0
    %7183 = vmatprep.subr.mxu0 0.0
    %7184 = vmatpush1.msra.mxu0 0.0
    %7185 = vmatprep.subr.mxu0 0.0
    %7186 = vmatpush1.msra.mxu0 0.0
    %7187 = vmatprep.subr.mxu0 0.0
    %7188 = vmatpush1.msra.mxu0 0.0
    %7189 = vmatprep.subr.mxu0 0.0
    %7190 = vmatpush1.msra.mxu0 0.0
    %7191 = vmatprep.subr.mxu0 0.0
    %7192 = vmatpush1.msra.mxu0 0.0
    %7193 = vmatprep.mubr.f32.mxu0 0.0
    %7194 = vmatmul.mubr.f32.gmra.mrb[0].mxu0 %v7124
    %v7195 = vpop.f32.mrb[0].mxu0
    %v7196 = vadd.f32 %v7121, %v7195
    %v7197 = vpop.f32.mrb[0].mxu0
    %7198 = vmatprep.mubr.f32.mxu0 0.0
    %7199 = vmatmul.mubr.f32.gmra.mrb[0].mxu0 %v7127
    %v7200 = vpop.f32.mrb[0].mxu0
    %v7201 = vadd.f32 %v7121, %v7200
    %v7202 = vpop.f32.mrb[0].mxu0
    %7203 = vdwg.mxu0
    %v7204 = vadd.f32 %v5626, %v7196
    %v7205 = vadd.f32 %v5627, %v7201
    %s7206 = scalar_lea.vmem %s5, 3
    %v7207 = vld [vmem:[%s7206] sm:$0x1]
    %s7208 = scalar_lea.vmem %s6, 3
    %v7209 = vld [vmem:[%s7208] sm:$0x1]
    %v7210 = vsel %vm64, %v7204, 0.0
    %7211 = vadd.xlane.f32.xlu0 %v7210
    %v7212 = vpop.xlane.xlu0 %7211
    %v7213 = vsel %vm64, %v7205, 0.0
    %7214 = vadd.xlane.f32.xlu0 %v7213
    %v7215 = vpop.xlane.xlu0 %7214
    %v7216 = vmul.f32 %v7212, %v1639
    %v7217 = vmul.f32 %v7215, %v1639
    %v7218 = vsub.f32 %v7204, %v7216
    %v7219 = vsub.f32 %v7205, %v7217
    %v7220 = vmul.f32 %v7218, %v7218
    %v7221 = vmul.f32 %v7219, %v7219
    %v7222 = vsel %vm64, %v7220, 0.0
    %7223 = vadd.xlane.f32.xlu0 %v7222
    %v7224 = vpop.xlane.xlu0 %7223
    %v7225 = vsel %vm64, %v7221, 0.0
    %7226 = vadd.xlane.f32.xlu0 %v7225
    %v7227 = vpop.xlane.xlu0 %7226
    %v7228 = vmul.f32 %v7224, %v1639
    %v7229 = vmul.f32 %v7227, %v1639
    %v7230 = vadd.f32 %v7228, 1e-05
    %v7231 = vadd.f32 %v7229, 1e-05
    %v7232 = vrsqrt.pop %v7230
    %v7233 = vrsqrt.pop %v7231
    %v7234 = vmul.f32 %v7218, %v7232
    %v7235 = vmul.f32 %v7219, %v7233
    %v7237 = vlaneseq
    %v7238 = vshrl.u32 %v7237, 7
    %v7239 = vsub.s32 0, %v7238
    %v7240 = vrot.slane %v7207, %v7239
    %v7242 = vmul.f32 %v7234, %v7240
    %v7243 = vmul.f32 %v7235, %v7240
    %v7245 = vlaneseq
    %v7246 = vshrl.u32 %v7245, 7
    %v7247 = vsub.s32 0, %v7246
    %v7248 = vrot.slane %v7209, %v7247
    %v7250 = vadd.f32 %v7242, %v7248
    %v7251 = vadd.f32 %v7243, %v7248
    %s7252 = scalar_lea.vmem %s7, 96
    %v7253 = vld [vmem:[%s7252] sm:$0xff]
    %v7254 = vld [vmem:[%s7252 + $0x8] sm:$0xff]
    %v7255 = vld [vmem:[%s7252 + $0x10] sm:$0xff]
    %v7256 = vld [vmem:[%s7252 + $0x18] sm:$0xff]
    %s7257 = scalar_lea.vmem %s8, 3
    %v7258 = vld [vmem:[%s7257] sm:$0x1]
    %v7260 = vlaneseq
    %v7261 = vshrl.u32 %v7260, 7
    %v7262 = vsub.s32 0, %v7261
    %v7263 = vrot.slane %v7258, %v7262
    %v7266 = vsel %vm64, %v7250, 0
    %v7269 = vsel %vm64, %v7251, 0
    %7271 = vmatprep.subr.mxu0 0.0
    %7272 = vmatpush1.msra.mxu0 %v7253
    %7273 = vmatprep.subr.mxu0 0.0
    %7274 = vmatpush1.msra.mxu0 %v7254
    %7275 = vmatprep.subr.mxu0 0.0
    %7276 = vmatpush1.msra.mxu0 %v7255
    %7277 = vmatprep.subr.mxu0 0.0
    %7278 = vmatpush1.msra.mxu0 %v7256
    %7279 = vmatprep.subr.mxu0 0.0
    %7280 = vmatpush1.msra.mxu0 0.0
    %7281 = vmatprep.subr.mxu0 0.0
    %7282 = vmatpush1.msra.mxu0 0.0
    %7283 = vmatprep.subr.mxu0 0.0
    %7284 = vmatpush1.msra.mxu0 0.0
    %7285 = vmatprep.subr.mxu0 0.0
    %7286 = vmatpush1.msra.mxu0 0.0
    %7287 = vmatprep.subr.mxu0 0.0
    %7288 = vmatpush1.msra.mxu0 0.0
    %7289 = vmatprep.subr.mxu0 0.0
    %7290 = vmatpush1.msra.mxu0 0.0
    %7291 = vmatprep.subr.mxu0 0.0
    %7292 = vmatpush1.msra.mxu0 0.0
    %7293 = vmatprep.subr.mxu0 0.0
    %7294 = vmatpush1.msra.mxu0 0.0
    %7295 = vmatprep.subr.mxu0 0.0
    %7296 = vmatpush1.msra.mxu0 0.0
    %7297 = vmatprep.subr.mxu0 0.0
    %7298 = vmatpush1.msra.mxu0 0.0
    %7299 = vmatprep.subr.mxu0 0.0
    %7300 = vmatpush1.msra.mxu0 0.0
    %7301 = vmatprep.subr.mxu0 0.0
    %7302 = vmatpush1.msra.mxu0 0.0
    %7303 = vmatprep.subr.mxu0 0.0
    %7304 = vmatpush1.msra.mxu0 0.0
    %7305 = vmatprep.subr.mxu0 0.0
    %7306 = vmatpush1.msra.mxu0 0.0
    %7307 = vmatprep.subr.mxu0 0.0
    %7308 = vmatpush1.msra.mxu0 0.0
    %7309 = vmatprep.subr.mxu0 0.0
    %7310 = vmatpush1.msra.mxu0 0.0
    %7311 = vmatprep.subr.mxu0 0.0
    %7312 = vmatpush1.msra.mxu0 0.0
    %7313 = vmatprep.subr.mxu0 0.0
    %7314 = vmatpush1.msra.mxu0 0.0
    %7315 = vmatprep.subr.mxu0 0.0
    %7316 = vmatpush1.msra.mxu0 0.0
    %7317 = vmatprep.subr.mxu0 0.0
    %7318 = vmatpush1.msra.mxu0 0.0
    %7319 = vmatprep.subr.mxu0 0.0
    %7320 = vmatpush1.msra.mxu0 0.0
    %7321 = vmatprep.subr.mxu0 0.0
    %7322 = vmatpush1.msra.mxu0 0.0
    %7323 = vmatprep.subr.mxu0 0.0
    %7324 = vmatpush1.msra.mxu0 0.0
    %7325 = vmatprep.subr.mxu0 0.0
    %7326 = vmatpush1.msra.mxu0 0.0
    %7327 = vmatprep.subr.mxu0 0.0
    %7328 = vmatpush1.msra.mxu0 0.0
    %7329 = vmatprep.subr.mxu0 0.0
    %7330 = vmatpush1.msra.mxu0 0.0
    %7331 = vmatprep.subr.mxu0 0.0
    %7332 = vmatpush1.msra.mxu0 0.0
    %7333 = vmatprep.subr.mxu0 0.0
    %7334 = vmatpush1.msra.mxu0 0.0
    %7335 = vmatprep.mubr.f32.mxu0 0.0
    %7336 = vmatmul.mubr.f32.gmra.mrb[0].mxu0 %v7266
    %v7337 = vpop.f32.mrb[0].mxu0
    %v7338 = vadd.f32 %v7263, %v7337
    %v7339 = vpop.f32.mrb[0].mxu0
    %7340 = vmatprep.mubr.f32.mxu0 0.0
    %7341 = vmatmul.mubr.f32.gmra.mrb[0].mxu0 %v7269
    %v7342 = vpop.f32.mrb[0].mxu0
    %v7343 = vadd.f32 %v7263, %v7342
    %v7344 = vpop.f32.mrb[0].mxu0
    %7345 = vdwg.mxu0
    %v7346 = vmul.f32 %v7338, 0.5
    %v7347 = vmul.f32 %v7343, 0.5
    %v7348 = vmul.f32 %v7338, 0.70710677
    %v7349 = vmul.f32 %v7343, 0.70710677
    %v7350 = verf.f32.pop %v7348
    %v7351 = verf.f32.pop %v7349
    %v7352 = vadd.f32 %v7350, 1.0
    %v7353 = vadd.f32 %v7351, 1.0
    %v7354 = vmul.f32 %v7346, %v7352
    %v7355 = vmul.f32 %v7347, %v7353
    %s7356 = scalar_lea.vmem %s9, 384
    %v7357 = vld [vmem:[%s7356] sm:$0xff]
    %v7358 = vld [vmem:[%s7356 + $0x8] sm:$0xff]
    %v7359 = vld [vmem:[%s7356 + $0x10] sm:$0xff]
    %v7360 = vld [vmem:[%s7356 + $0x18] sm:$0xff]
    %v7361 = vld [vmem:[%s7356 + $0x20] sm:$0xff]
    %v7362 = vld [vmem:[%s7356 + $0x28] sm:$0xff]
    %v7363 = vld [vmem:[%s7356 + $0x30] sm:$0xff]
    %v7364 = vld [vmem:[%s7356 + $0x38] sm:$0xff]
    %v7365 = vld [vmem:[%s7356 + $0x40] sm:$0xff]
    %v7366 = vld [vmem:[%s7356 + $0x48] sm:$0xff]
    %v7367 = vld [vmem:[%s7356 + $0x50] sm:$0xff]
    %v7368 = vld [vmem:[%s7356 + $0x58] sm:$0xff]
    %v7369 = vld [vmem:[%s7356 + $0x60] sm:$0xff]
    %v7370 = vld [vmem:[%s7356 + $0x68] sm:$0xff]
    %v7371 = vld [vmem:[%s7356 + $0x70] sm:$0xff]
    %v7372 = vld [vmem:[%s7356 + $0x78] sm:$0xff]
    %s7373 = scalar_lea.vmem %s10, 3
    %v7374 = vld [vmem:[%s7373] sm:$0x1]
    %v7376 = vlaneseq
    %v7377 = vshrl.u32 %v7376, 7
    %v7378 = vsub.s32 0, %v7377
    %v7379 = vrot.slane %v7374, %v7378
    %7381 = vmatprep.subr.mxu0 0.0
    %7382 = vmatpush1.msra.mxu0 %v7357
    %7383 = vmatprep.subr.mxu0 0.0
    %7384 = vmatpush1.msra.mxu0 %v7358
    %7385 = vmatprep.subr.mxu0 0.0
    %7386 = vmatpush1.msra.mxu0 %v7359
    %7387 = vmatprep.subr.mxu0 0.0
    %7388 = vmatpush1.msra.mxu0 %v7360
    %7389 = vmatprep.subr.mxu0 0.0
    %7390 = vmatpush1.msra.mxu0 %v7361
    %7391 = vmatprep.subr.mxu0 0.0
    %7392 = vmatpush1.msra.mxu0 %v7362
    %7393 = vmatprep.subr.mxu0 0.0
    %7394 = vmatpush1.msra.mxu0 %v7363
    %7395 = vmatprep.subr.mxu0 0.0
    %7396 = vmatpush1.msra.mxu0 %v7364
    %7397 = vmatprep.subr.mxu0 0.0
    %7398 = vmatpush1.msra.mxu0 %v7365
    %7399 = vmatprep.subr.mxu0 0.0
    %7400 = vmatpush1.msra.mxu0 %v7366
    %7401 = vmatprep.subr.mxu0 0.0
    %7402 = vmatpush1.msra.mxu0 %v7367
    %7403 = vmatprep.subr.mxu0 0.0
    %7404 = vmatpush1.msra.mxu0 %v7368
    %7405 = vmatprep.subr.mxu0 0.0
    %7406 = vmatpush1.msra.mxu0 %v7369
    %7407 = vmatprep.subr.mxu0 0.0
    %7408 = vmatpush1.msra.mxu0 %v7370
    %7409 = vmatprep.subr.mxu0 0.0
    %7410 = vmatpush1.msra.mxu0 %v7371
    %7411 = vmatprep.subr.mxu0 0.0
    %7412 = vmatpush1.msra.mxu0 %v7372
    %7413 = vmatprep.subr.mxu0 0.0
    %7414 = vmatpush1.msra.mxu0 0.0
    %7415 = vmatprep.subr.mxu0 0.0
    %7416 = vmatpush1.msra.mxu0 0.0
    %7417 = vmatprep.subr.mxu0 0.0
    %7418 = vmatpush1.msra.mxu0 0.0
    %7419 = vmatprep.subr.mxu0 0.0
    %7420 = vmatpush1.msra.mxu0 0.0
    %7421 = vmatprep.subr.mxu0 0.0
    %7422 = vmatpush1.msra.mxu0 0.0
    %7423 = vmatprep.subr.mxu0 0.0
    %7424 = vmatpush1.msra.mxu0 0.0
    %7425 = vmatprep.subr.mxu0 0.0
    %7426 = vmatpush1.msra.mxu0 0.0
    %7427 = vmatprep.subr.mxu0 0.0
    %7428 = vmatpush1.msra.mxu0 0.0
    %7429 = vmatprep.subr.mxu0 0.0
    %7430 = vmatpush1.msra.mxu0 0.0
    %7431 = vmatprep.subr.mxu0 0.0
    %7432 = vmatpush1.msra.mxu0 0.0
    %7433 = vmatprep.subr.mxu0 0.0
    %7434 = vmatpush1.msra.mxu0 0.0
    %7435 = vmatprep.subr.mxu0 0.0
    %7436 = vmatpush1.msra.mxu0 0.0
    %7437 = vmatprep.subr.mxu0 0.0
    %7438 = vmatpush1.msra.mxu0 0.0
    %7439 = vmatprep.subr.mxu0 0.0
    %7440 = vmatpush1.msra.mxu0 0.0
    %7441 = vmatprep.subr.mxu0 0.0
    %7442 = vmatpush1.msra.mxu0 0.0
    %7443 = vmatprep.subr.mxu0 0.0
    %7444 = vmatpush1.msra.mxu0 0.0
    %7445 = vmatprep.mubr.f32.mxu0 0.0
    %7446 = vmatmul.mubr.f32.gmra.mrb[0].mxu0 %v7354
    %v7447 = vpop.f32.mrb[0].mxu0
    %v7448 = vadd.f32 %v7379, %v7447
    %v7449 = vpop.f32.mrb[0].mxu0
    %7450 = vmatprep.mubr.f32.mxu0 0.0
    %7451 = vmatmul.mubr.f32.gmra.mrb[0].mxu0 %v7355
    %v7452 = vpop.f32.mrb[0].mxu0
    %v7453 = vadd.f32 %v7379, %v7452
    %v7454 = vpop.f32.mrb[0].mxu0
    %7455 = vdwg.mxu0
    %v7456 = vadd.f32 %v7250, %v7448
    %v7457 = vadd.f32 %v7251, %v7453
    %v7458 = vsel %vm64, %v7456, 0.0
    %7459 = vadd.xlane.f32.xlu0 %v7458
    %v7460 = vpop.xlane.xlu0 %7459
    %v7461 = vsel %vm64, %v7457, 0.0
    %7462 = vadd.xlane.f32.xlu0 %v7461
    %v7463 = vpop.xlane.xlu0 %7462
    %v7464 = vmul.f32 %v7460, %v1639
    %v7465 = vmul.f32 %v7463, %v1639
    %v7466 = vsub.f32 %v7456, %v7464
    %v7467 = vsub.f32 %v7457, %v7465
    %v7468 = vmul.f32 %v7466, %v7466
    %v7469 = vmul.f32 %v7467, %v7467
    %v7470 = vsel %vm64, %v7468, 0.0
    %7471 = vadd.xlane.f32.xlu0 %v7470
    %v7472 = vpop.xlane.xlu0 %7471
    %v7473 = vsel %vm64, %v7469, 0.0
    %7474 = vadd.xlane.f32.xlu0 %v7473
    %v7475 = vpop.xlane.xlu0 %7474
    %v7476 = vmul.f32 %v7472, %v1639
    %v7477 = vmul.f32 %v7475, %v1639
    %v7478 = vadd.f32 %v7476, 1e-05
    %v7479 = vadd.f32 %v7477, 1e-05
    %v7480 = vrsqrt.pop %v7478
    %v7481 = vrsqrt.pop %v7479
    %v7482 = vmul.f32 %v7466, %v7480
    %v7483 = vmul.f32 %v7467, %v7481
    %v7484 = vmul.f32 %v7482, %v7240
    %v7485 = vmul.f32 %v7483, %v7240
    %v7486 = vadd.f32 %v7484, %v7248
    %v7487 = vadd.f32 %v7485, %v7248
    %s7488 = scalar_lea.vmem %s1, 128
    %v7489 = vld [vmem:[%s7488] sm:$0xff]
    %v7490 = vld [vmem:[%s7488 + $0x8] sm:$0xff]
    %v7491 = vld [vmem:[%s7488 + $0x10] sm:$0xff]
    %v7492 = vld [vmem:[%s7488 + $0x18] sm:$0xff]
    %s7493 = scalar_lea.vmem %s2, 4
    %v7494 = vld [vmem:[%s7493] sm:$0x1]
    %v7496 = vlaneseq
    %v7497 = vshrl.u32 %v7496, 7
    %v7498 = vsub.s32 0, %v7497
    %v7499 = vrot.slane %v7494, %v7498
    %v7502 = vsel %vm64, %v7486, 0
    %v7505 = vsel %vm64, %v7487, 0
    %7507 = vmatprep.subr.mxu0 0.0
    %7508 = vmatpush1.msra.mxu0 %v7489
    %7509 = vmatprep.subr.mxu0 0.0
    %7510 = vmatpush1.msra.mxu0 %v7490
    %7511 = vmatprep.subr.mxu0 0.0
    %7512 = vmatpush1.msra.mxu0 %v7491
    %7513 = vmatprep.subr.mxu0 0.0
    %7514 = vmatpush1.msra.mxu0 %v7492
    %7515 = vmatprep.subr.mxu0 0.0
    %7516 = vmatpush1.msra.mxu0 0.0
    %7517 = vmatprep.subr.mxu0 0.0
    %7518 = vmatpush1.msra.mxu0 0.0
    %7519 = vmatprep.subr.mxu0 0.0
    %7520 = vmatpush1.msra.mxu0 0.0
    %7521 = vmatprep.subr.mxu0 0.0
    %7522 = vmatpush1.msra.mxu0 0.0
    %7523 = vmatprep.subr.mxu0 0.0
    %7524 = vmatpush1.msra.mxu0 0.0
    %7525 = vmatprep.subr.mxu0 0.0
    %7526 = vmatpush1.msra.mxu0 0.0
    %7527 = vmatprep.subr.mxu0 0.0
    %7528 = vmatpush1.msra.mxu0 0.0
    %7529 = vmatprep.subr.mxu0 0.0
    %7530 = vmatpush1.msra.mxu0 0.0
    %7531 = vmatprep.subr.mxu0 0.0
    %7532 = vmatpush1.msra.mxu0 0.0
    %7533 = vmatprep.subr.mxu0 0.0
    %7534 = vmatpush1.msra.mxu0 0.0
    %7535 = vmatprep.subr.mxu0 0.0
    %7536 = vmatpush1.msra.mxu0 0.0
    %7537 = vmatprep.subr.mxu0 0.0
    %7538 = vmatpush1.msra.mxu0 0.0
    %7539 = vmatprep.subr.mxu0 0.0
    %7540 = vmatpush1.msra.mxu0 0.0
    %7541 = vmatprep.subr.mxu0 0.0
    %7542 = vmatpush1.msra.mxu0 0.0
    %7543 = vmatprep.subr.mxu0 0.0
    %7544 = vmatpush1.msra.mxu0 0.0
    %7545 = vmatprep.subr.mxu0 0.0
    %7546 = vmatpush1.msra.mxu0 0.0
    %7547 = vmatprep.subr.mxu0 0.0
    %7548 = vmatpush1.msra.mxu0 0.0
    %7549 = vmatprep.subr.mxu0 0.0
    %7550 = vmatpush1.msra.mxu0 0.0
    %7551 = vmatprep.subr.mxu0 0.0
    %7552 = vmatpush1.msra.mxu0 0.0
    %7553 = vmatprep.subr.mxu0 0.0
    %7554 = vmatpush1.msra.mxu0 0.0
    %7555 = vmatprep.subr.mxu0 0.0
    %7556 = vmatpush1.msra.mxu0 0.0
    %7557 = vmatprep.subr.mxu0 0.0
    %7558 = vmatpush1.msra.mxu0 0.0
    %7559 = vmatprep.subr.mxu0 0.0
    %7560 = vmatpush1.msra.mxu0 0.0
    %7561 = vmatprep.subr.mxu0 0.0
    %7562 = vmatpush1.msra.mxu0 0.0
    %7563 = vmatprep.subr.mxu0 0.0
    %7564 = vmatpush1.msra.mxu0 0.0
    %7565 = vmatprep.subr.mxu0 0.0
    %7566 = vmatpush1.msra.mxu0 0.0
    %7567 = vmatprep.subr.mxu0 0.0
    %7568 = vmatpush1.msra.mxu0 0.0
    %7569 = vmatprep.subr.mxu0 0.0
    %7570 = vmatpush1.msra.mxu0 0.0
    %7571 = vmatprep.mubr.f32.mxu0 0.0
    %7572 = vmatmul.mubr.f32.gmra.mrb[0].mxu0 %v7502
    %v7573 = vpop.f32.mrb[0].mxu0
    %v7574 = vadd.f32 %v7499, %v7573
    %v7575 = vpop.f32.mrb[0].mxu0
    %7576 = vmatprep.mubr.f32.mxu0 0.0
    %7577 = vmatmul.mubr.f32.gmra.mrb[0].mxu0 %v7505
    %v7578 = vpop.f32.mrb[0].mxu0
    %v7579 = vadd.f32 %v7499, %v7578
    %v7580 = vpop.f32.mrb[0].mxu0
    %7581 = vdwg.mxu0
    %7583 = vrot.lane.b32.xlu0 %v7574, 120
    %v7584 = vpop.permute.xlu0 %7583
    %7585 = vrot.lane.b32.xlu0 %v7574, 112
    %v7586 = vpop.permute.xlu0 %7585
    %7587 = vrot.lane.b32.xlu0 %v7574, 104
    %v7588 = vpop.permute.xlu0 %7587
    %7590 = vrot.lane.b32.xlu0 %v7579, 120
    %v7591 = vpop.permute.xlu0 %7590
    %7592 = vrot.lane.b32.xlu0 %v7579, 112
    %v7593 = vpop.permute.xlu0 %7592
    %7594 = vrot.lane.b32.xlu0 %v7579, 104
    %v7595 = vpop.permute.xlu0 %7594
    %7596 = vrot.lane.b32.xlu0 %v7574, 96
    %v7597 = vpop.permute.xlu0 %7596
    %v7598 = vsel %vm162, %v7574, 0
    %v7600 = vsel %vm162, %v7597, 0
    %7602 = vmatprep.subr.mxu0 0.0
    %7603 = vmatpush1.xpose.msra.mxu0 %v7600
    %7604 = vmatprep.subr.mxu0 0.0
    %7605 = vmatpush1.xpose.msra.mxu0 0.0
    %7606 = vmatprep.subr.mxu0 0.0
    %7607 = vmatpush1.xpose.msra.mxu0 0.0
    %7608 = vmatprep.subr.mxu0 0.0
    %7609 = vmatpush1.xpose.msra.mxu0 0.0
    %7610 = vmatprep.subr.mxu0 0.0
    %7611 = vmatpush1.xpose.msra.mxu0 0.0
    %7612 = vmatprep.subr.mxu0 0.0
    %7613 = vmatpush1.xpose.msra.mxu0 0.0
    %7614 = vmatprep.subr.mxu0 0.0
    %7615 = vmatpush1.xpose.msra.mxu0 0.0
    %7616 = vmatprep.subr.mxu0 0.0
    %7617 = vmatpush1.xpose.msra.mxu0 0.0
    %7618 = vmatprep.subr.mxu0 0.0
    %7619 = vmatpush1.xpose.msra.mxu0 0.0
    %7620 = vmatprep.subr.mxu0 0.0
    %7621 = vmatpush1.xpose.msra.mxu0 0.0
    %7622 = vmatprep.subr.mxu0 0.0
    %7623 = vmatpush1.xpose.msra.mxu0 0.0
    %7624 = vmatprep.subr.mxu0 0.0
    %7625 = vmatpush1.xpose.msra.mxu0 0.0
    %7626 = vmatprep.subr.mxu0 0.0
    %7627 = vmatpush1.xpose.msra.mxu0 0.0
    %7628 = vmatprep.subr.mxu0 0.0
    %7629 = vmatpush1.xpose.msra.mxu0 0.0
    %7630 = vmatprep.subr.mxu0 0.0
    %7631 = vmatpush1.xpose.msra.mxu0 0.0
    %7632 = vmatprep.subr.mxu0 0.0
    %7633 = vmatpush1.xpose.msra.mxu0 0.0
    %7634 = vmatprep.subr.mxu0 0.0
    %7635 = vmatpush1.xpose.msra.mxu0 0.0
    %7636 = vmatprep.subr.mxu0 0.0
    %7637 = vmatpush1.xpose.msra.mxu0 0.0
    %7638 = vmatprep.subr.mxu0 0.0
    %7639 = vmatpush1.xpose.msra.mxu0 0.0
    %7640 = vmatprep.subr.mxu0 0.0
    %7641 = vmatpush1.xpose.msra.mxu0 0.0
    %7642 = vmatprep.subr.mxu0 0.0
    %7643 = vmatpush1.xpose.msra.mxu0 0.0
    %7644 = vmatprep.subr.mxu0 0.0
    %7645 = vmatpush1.xpose.msra.mxu0 0.0
    %7646 = vmatprep.subr.mxu0 0.0
    %7647 = vmatpush1.xpose.msra.mxu0 0.0
    %7648 = vmatprep.subr.mxu0 0.0
    %7649 = vmatpush1.xpose.msra.mxu0 0.0
    %7650 = vmatprep.subr.mxu0 0.0
    %7651 = vmatpush1.xpose.msra.mxu0 0.0
    %7652 = vmatprep.subr.mxu0 0.0
    %7653 = vmatpush1.xpose.msra.mxu0 0.0
    %7654 = vmatprep.subr.mxu0 0.0
    %7655 = vmatpush1.xpose.msra.mxu0 0.0
    %7656 = vmatprep.subr.mxu0 0.0
    %7657 = vmatpush1.xpose.msra.mxu0 0.0
    %7658 = vmatprep.subr.mxu0 0.0
    %7659 = vmatpush1.xpose.msra.mxu0 0.0
    %7660 = vmatprep.subr.mxu0 0.0
    %7661 = vmatpush1.xpose.msra.mxu0 0.0
    %7662 = vmatprep.subr.mxu0 0.0
    %7663 = vmatpush1.xpose.msra.mxu0 0.0
    %7664 = vmatprep.subr.mxu0 0.0
    %7665 = vmatpush1.xpose.msra.mxu0 0.0
    %7666 = vmatprep.mubr.f32.mxu0 0.0
    %7667 = vmatmul.mubr.f32.gmra.mrb[0].mxu0 %v7598
    %v7668 = vpop.f32.mrb[0].mxu0
    %v7669 = vadd.f32 0.0, %v7668
    %v7670 = vpop.f32.mrb[0].mxu0
    %7671 = vdwg.mxu0
    %7672 = vrot.lane.b32.xlu0 %v7584, 96
    %v7673 = vpop.permute.xlu0 %7672
    %v7674 = vsel %vm162, %v7584, 0
    %v7676 = vsel %vm162, %v7673, 0
    %7678 = vmatprep.subr.mxu0 0.0
    %7679 = vmatpush1.xpose.msra.mxu0 %v7676
    %7680 = vmatprep.subr.mxu0 0.0
    %7681 = vmatpush1.xpose.msra.mxu0 0.0
    %7682 = vmatprep.subr.mxu0 0.0
    %7683 = vmatpush1.xpose.msra.mxu0 0.0
    %7684 = vmatprep.subr.mxu0 0.0
    %7685 = vmatpush1.xpose.msra.mxu0 0.0
    %7686 = vmatprep.subr.mxu0 0.0
    %7687 = vmatpush1.xpose.msra.mxu0 0.0
    %7688 = vmatprep.subr.mxu0 0.0
    %7689 = vmatpush1.xpose.msra.mxu0 0.0
    %7690 = vmatprep.subr.mxu0 0.0
    %7691 = vmatpush1.xpose.msra.mxu0 0.0
    %7692 = vmatprep.subr.mxu0 0.0
    %7693 = vmatpush1.xpose.msra.mxu0 0.0
    %7694 = vmatprep.subr.mxu0 0.0
    %7695 = vmatpush1.xpose.msra.mxu0 0.0
    %7696 = vmatprep.subr.mxu0 0.0
    %7697 = vmatpush1.xpose.msra.mxu0 0.0
    %7698 = vmatprep.subr.mxu0 0.0
    %7699 = vmatpush1.xpose.msra.mxu0 0.0
    %7700 = vmatprep.subr.mxu0 0.0
    %7701 = vmatpush1.xpose.msra.mxu0 0.0
    %7702 = vmatprep.subr.mxu0 0.0
    %7703 = vmatpush1.xpose.msra.mxu0 0.0
    %7704 = vmatprep.subr.mxu0 0.0
    %7705 = vmatpush1.xpose.msra.mxu0 0.0
    %7706 = vmatprep.subr.mxu0 0.0
    %7707 = vmatpush1.xpose.msra.mxu0 0.0
    %7708 = vmatprep.subr.mxu0 0.0
    %7709 = vmatpush1.xpose.msra.mxu0 0.0
    %7710 = vmatprep.subr.mxu0 0.0
    %7711 = vmatpush1.xpose.msra.mxu0 0.0
    %7712 = vmatprep.subr.mxu0 0.0
    %7713 = vmatpush1.xpose.msra.mxu0 0.0
    %7714 = vmatprep.subr.mxu0 0.0
    %7715 = vmatpush1.xpose.msra.mxu0 0.0
    %7716 = vmatprep.subr.mxu0 0.0
    %7717 = vmatpush1.xpose.msra.mxu0 0.0
    %7718 = vmatprep.subr.mxu0 0.0
    %7719 = vmatpush1.xpose.msra.mxu0 0.0
    %7720 = vmatprep.subr.mxu0 0.0
    %7721 = vmatpush1.xpose.msra.mxu0 0.0
    %7722 = vmatprep.subr.mxu0 0.0
    %7723 = vmatpush1.xpose.msra.mxu0 0.0
    %7724 = vmatprep.subr.mxu0 0.0
    %7725 = vmatpush1.xpose.msra.mxu0 0.0
    %7726 = vmatprep.subr.mxu0 0.0
    %7727 = vmatpush1.xpose.msra.mxu0 0.0
    %7728 = vmatprep.subr.mxu0 0.0
    %7729 = vmatpush1.xpose.msra.mxu0 0.0
    %7730 = vmatprep.subr.mxu0 0.0
    %7731 = vmatpush1.xpose.msra.mxu0 0.0
    %7732 = vmatprep.subr.mxu0 0.0
    %7733 = vmatpush1.xpose.msra.mxu0 0.0
    %7734 = vmatprep.subr.mxu0 0.0
    %7735 = vmatpush1.xpose.msra.mxu0 0.0
    %7736 = vmatprep.subr.mxu0 0.0
    %7737 = vmatpush1.xpose.msra.mxu0 0.0
    %7738 = vmatprep.subr.mxu0 0.0
    %7739 = vmatpush1.xpose.msra.mxu0 0.0
    %7740 = vmatprep.subr.mxu0 0.0
    %7741 = vmatpush1.xpose.msra.mxu0 0.0
    %7742 = vmatprep.mubr.f32.mxu0 0.0
    %7743 = vmatmul.mubr.f32.gmra.mrb[0].mxu0 %v7674
    %v7744 = vpop.f32.mrb[0].mxu0
    %v7745 = vadd.f32 0.0, %v7744
    %v7746 = vpop.f32.mrb[0].mxu0
    %7747 = vdwg.mxu0
    %7748 = vrot.lane.b32.xlu0 %v7586, 96
    %v7749 = vpop.permute.xlu0 %7748
    %v7750 = vsel %vm162, %v7586, 0
    %v7752 = vsel %vm162, %v7749, 0
    %7754 = vmatprep.subr.mxu0 0.0
    %7755 = vmatpush1.xpose.msra.mxu0 %v7752
    %7756 = vmatprep.subr.mxu0 0.0
    %7757 = vmatpush1.xpose.msra.mxu0 0.0
    %7758 = vmatprep.subr.mxu0 0.0
    %7759 = vmatpush1.xpose.msra.mxu0 0.0
    %7760 = vmatprep.subr.mxu0 0.0
    %7761 = vmatpush1.xpose.msra.mxu0 0.0
    %7762 = vmatprep.subr.mxu0 0.0
    %7763 = vmatpush1.xpose.msra.mxu0 0.0
    %7764 = vmatprep.subr.mxu0 0.0
    %7765 = vmatpush1.xpose.msra.mxu0 0.0
    %7766 = vmatprep.subr.mxu0 0.0
    %7767 = vmatpush1.xpose.msra.mxu0 0.0
    %7768 = vmatprep.subr.mxu0 0.0
    %7769 = vmatpush1.xpose.msra.mxu0 0.0
    %7770 = vmatprep.subr.mxu0 0.0
    %7771 = vmatpush1.xpose.msra.mxu0 0.0
    %7772 = vmatprep.subr.mxu0 0.0
    %7773 = vmatpush1.xpose.msra.mxu0 0.0
    %7774 = vmatprep.subr.mxu0 0.0
    %7775 = vmatpush1.xpose.msra.mxu0 0.0
    %7776 = vmatprep.subr.mxu0 0.0
    %7777 = vmatpush1.xpose.msra.mxu0 0.0
    %7778 = vmatprep.subr.mxu0 0.0
    %7779 = vmatpush1.xpose.msra.mxu0 0.0
    %7780 = vmatprep.subr.mxu0 0.0
    %7781 = vmatpush1.xpose.msra.mxu0 0.0
    %7782 = vmatprep.subr.mxu0 0.0
    %7783 = vmatpush1.xpose.msra.mxu0 0.0
    %7784 = vmatprep.subr.mxu0 0.0
    %7785 = vmatpush1.xpose.msra.mxu0 0.0
    %7786 = vmatprep.subr.mxu0 0.0
    %7787 = vmatpush1.xpose.msra.mxu0 0.0
    %7788 = vmatprep.subr.mxu0 0.0
    %7789 = vmatpush1.xpose.msra.mxu0 0.0
    %7790 = vmatprep.subr.mxu0 0.0
    %7791 = vmatpush1.xpose.msra.mxu0 0.0
    %7792 = vmatprep.subr.mxu0 0.0
    %7793 = vmatpush1.xpose.msra.mxu0 0.0
    %7794 = vmatprep.subr.mxu0 0.0
    %7795 = vmatpush1.xpose.msra.mxu0 0.0
    %7796 = vmatprep.subr.mxu0 0.0
    %7797 = vmatpush1.xpose.msra.mxu0 0.0
    %7798 = vmatprep.subr.mxu0 0.0
    %7799 = vmatpush1.xpose.msra.mxu0 0.0
    %7800 = vmatprep.subr.mxu0 0.0
    %7801 = vmatpush1.xpose.msra.mxu0 0.0
    %7802 = vmatprep.subr.mxu0 0.0
    %7803 = vmatpush1.xpose.msra.mxu0 0.0
    %7804 = vmatprep.subr.mxu0 0.0
    %7805 = vmatpush1.xpose.msra.mxu0 0.0
    %7806 = vmatprep.subr.mxu0 0.0
    %7807 = vmatpush1.xpose.msra.mxu0 0.0
    %7808 = vmatprep.subr.mxu0 0.0
    %7809 = vmatpush1.xpose.msra.mxu0 0.0
    %7810 = vmatprep.subr.mxu0 0.0
    %7811 = vmatpush1.xpose.msra.mxu0 0.0
    %7812 = vmatprep.subr.mxu0 0.0
    %7813 = vmatpush1.xpose.msra.mxu0 0.0
    %7814 = vmatprep.subr.mxu0 0.0
    %7815 = vmatpush1.xpose.msra.mxu0 0.0
    %7816 = vmatprep.subr.mxu0 0.0
    %7817 = vmatpush1.xpose.msra.mxu0 0.0
    %7818 = vmatprep.mubr.f32.mxu0 0.0
    %7819 = vmatmul.mubr.f32.gmra.mrb[0].mxu0 %v7750
    %v7820 = vpop.f32.mrb[0].mxu0
    %v7821 = vadd.f32 0.0, %v7820
    %v7822 = vpop.f32.mrb[0].mxu0
    %7823 = vdwg.mxu0
    %7824 = vrot.lane.b32.xlu0 %v7588, 96
    %v7825 = vpop.permute.xlu0 %7824
    %v7826 = vsel %vm162, %v7588, 0
    %v7828 = vsel %vm162, %v7825, 0
    %7830 = vmatprep.subr.mxu0 0.0
    %7831 = vmatpush1.xpose.msra.mxu0 %v7828
    %7832 = vmatprep.subr.mxu0 0.0
    %7833 = vmatpush1.xpose.msra.mxu0 0.0
    %7834 = vmatprep.subr.mxu0 0.0
    %7835 = vmatpush1.xpose.msra.mxu0 0.0
    %7836 = vmatprep.subr.mxu0 0.0
    %7837 = vmatpush1.xpose.msra.mxu0 0.0
    %7838 = vmatprep.subr.mxu0 0.0
    %7839 = vmatpush1.xpose.msra.mxu0 0.0
    %7840 = vmatprep.subr.mxu0 0.0
    %7841 = vmatpush1.xpose.msra.mxu0 0.0
    %7842 = vmatprep.subr.mxu0 0.0
    %7843 = vmatpush1.xpose.msra.mxu0 0.0
    %7844 = vmatprep.subr.mxu0 0.0
    %7845 = vmatpush1.xpose.msra.mxu0 0.0
    %7846 = vmatprep.subr.mxu0 0.0
    %7847 = vmatpush1.xpose.msra.mxu0 0.0
    %7848 = vmatprep.subr.mxu0 0.0
    %7849 = vmatpush1.xpose.msra.mxu0 0.0
    %7850 = vmatprep.subr.mxu0 0.0
    %7851 = vmatpush1.xpose.msra.mxu0 0.0
    %7852 = vmatprep.subr.mxu0 0.0
    %7853 = vmatpush1.xpose.msra.mxu0 0.0
    %7854 = vmatprep.subr.mxu0 0.0
    %7855 = vmatpush1.xpose.msra.mxu0 0.0
    %7856 = vmatprep.subr.mxu0 0.0
    %7857 = vmatpush1.xpose.msra.mxu0 0.0
    %7858 = vmatprep.subr.mxu0 0.0
    %7859 = vmatpush1.xpose.msra.mxu0 0.0
    %7860 = vmatprep.subr.mxu0 0.0
    %7861 = vmatpush1.xpose.msra.mxu0 0.0
    %7862 = vmatprep.subr.mxu0 0.0
    %7863 = vmatpush1.xpose.msra.mxu0 0.0
    %7864 = vmatprep.subr.mxu0 0.0
    %7865 = vmatpush1.xpose.msra.mxu0 0.0
    %7866 = vmatprep.subr.mxu0 0.0
    %7867 = vmatpush1.xpose.msra.mxu0 0.0
    %7868 = vmatprep.subr.mxu0 0.0
    %7869 = vmatpush1.xpose.msra.mxu0 0.0
    %7870 = vmatprep.subr.mxu0 0.0
    %7871 = vmatpush1.xpose.msra.mxu0 0.0
    %7872 = vmatprep.subr.mxu0 0.0
    %7873 = vmatpush1.xpose.msra.mxu0 0.0
    %7874 = vmatprep.subr.mxu0 0.0
    %7875 = vmatpush1.xpose.msra.mxu0 0.0
    %7876 = vmatprep.subr.mxu0 0.0
    %7877 = vmatpush1.xpose.msra.mxu0 0.0
    %7878 = vmatprep.subr.mxu0 0.0
    %7879 = vmatpush1.xpose.msra.mxu0 0.0
    %7880 = vmatprep.subr.mxu0 0.0
    %7881 = vmatpush1.xpose.msra.mxu0 0.0
    %7882 = vmatprep.subr.mxu0 0.0
    %7883 = vmatpush1.xpose.msra.mxu0 0.0
    %7884 = vmatprep.subr.mxu0 0.0
    %7885 = vmatpush1.xpose.msra.mxu0 0.0
    %7886 = vmatprep.subr.mxu0 0.0
    %7887 = vmatpush1.xpose.msra.mxu0 0.0
    %7888 = vmatprep.subr.mxu0 0.0
    %7889 = vmatpush1.xpose.msra.mxu0 0.0
    %7890 = vmatprep.subr.mxu0 0.0
    %7891 = vmatpush1.xpose.msra.mxu0 0.0
    %7892 = vmatprep.subr.mxu0 0.0
    %7893 = vmatpush1.xpose.msra.mxu0 0.0
    %7894 = vmatprep.mubr.f32.mxu0 0.0
    %7895 = vmatmul.mubr.f32.gmra.mrb[0].mxu0 %v7826
    %v7896 = vpop.f32.mrb[0].mxu0
    %v7897 = vadd.f32 0.0, %v7896
    %v7898 = vpop.f32.mrb[0].mxu0
    %7899 = vdwg.mxu0
    %7900 = vrot.lane.b32.xlu0 %v7579, 96
    %v7901 = vpop.permute.xlu0 %7900
    %v7902 = vsel %vm162, %v7579, 0
    %v7904 = vsel %vm162, %v7901, 0
    %7906 = vmatprep.subr.mxu0 0.0
    %7907 = vmatpush1.xpose.msra.mxu0 %v7904
    %7908 = vmatprep.subr.mxu0 0.0
    %7909 = vmatpush1.xpose.msra.mxu0 0.0
    %7910 = vmatprep.subr.mxu0 0.0
    %7911 = vmatpush1.xpose.msra.mxu0 0.0
    %7912 = vmatprep.subr.mxu0 0.0
    %7913 = vmatpush1.xpose.msra.mxu0 0.0
    %7914 = vmatprep.subr.mxu0 0.0
    %7915 = vmatpush1.xpose.msra.mxu0 0.0
    %7916 = vmatprep.subr.mxu0 0.0
    %7917 = vmatpush1.xpose.msra.mxu0 0.0
    %7918 = vmatprep.subr.mxu0 0.0
    %7919 = vmatpush1.xpose.msra.mxu0 0.0
    %7920 = vmatprep.subr.mxu0 0.0
    %7921 = vmatpush1.xpose.msra.mxu0 0.0
    %7922 = vmatprep.subr.mxu0 0.0
    %7923 = vmatpush1.xpose.msra.mxu0 0.0
    %7924 = vmatprep.subr.mxu0 0.0
    %7925 = vmatpush1.xpose.msra.mxu0 0.0
    %7926 = vmatprep.subr.mxu0 0.0
    %7927 = vmatpush1.xpose.msra.mxu0 0.0
    %7928 = vmatprep.subr.mxu0 0.0
    %7929 = vmatpush1.xpose.msra.mxu0 0.0
    %7930 = vmatprep.subr.mxu0 0.0
    %7931 = vmatpush1.xpose.msra.mxu0 0.0
    %7932 = vmatprep.subr.mxu0 0.0
    %7933 = vmatpush1.xpose.msra.mxu0 0.0
    %7934 = vmatprep.subr.mxu0 0.0
    %7935 = vmatpush1.xpose.msra.mxu0 0.0
    %7936 = vmatprep.subr.mxu0 0.0
    %7937 = vmatpush1.xpose.msra.mxu0 0.0
    %7938 = vmatprep.subr.mxu0 0.0
    %7939 = vmatpush1.xpose.msra.mxu0 0.0
    %7940 = vmatprep.subr.mxu0 0.0
    %7941 = vmatpush1.xpose.msra.mxu0 0.0
    %7942 = vmatprep.subr.mxu0 0.0
    %7943 = vmatpush1.xpose.msra.mxu0 0.0
    %7944 = vmatprep.subr.mxu0 0.0
    %7945 = vmatpush1.xpose.msra.mxu0 0.0
    %7946 = vmatprep.subr.mxu0 0.0
    %7947 = vmatpush1.xpose.msra.mxu0 0.0
    %7948 = vmatprep.subr.mxu0 0.0
    %7949 = vmatpush1.xpose.msra.mxu0 0.0
    %7950 = vmatprep.subr.mxu0 0.0
    %7951 = vmatpush1.xpose.msra.mxu0 0.0
    %7952 = vmatprep.subr.mxu0 0.0
    %7953 = vmatpush1.xpose.msra.mxu0 0.0
    %7954 = vmatprep.subr.mxu0 0.0
    %7955 = vmatpush1.xpose.msra.mxu0 0.0
    %7956 = vmatprep.subr.mxu0 0.0
    %7957 = vmatpush1.xpose.msra.mxu0 0.0
    %7958 = vmatprep.subr.mxu0 0.0
    %7959 = vmatpush1.xpose.msra.mxu0 0.0
    %7960 = vmatprep.subr.mxu0 0.0
    %7961 = vmatpush1.xpose.msra.mxu0 0.0
    %7962 = vmatprep.subr.mxu0 0.0
    %7963 = vmatpush1.xpose.msra.mxu0 0.0
    %7964 = vmatprep.subr.mxu0 0.0
    %7965 = vmatpush1.xpose.msra.mxu0 0.0
    %7966 = vmatprep.subr.mxu0 0.0
    %7967 = vmatpush1.xpose.msra.mxu0 0.0
    %7968 = vmatprep.subr.mxu0 0.0
    %7969 = vmatpush1.xpose.msra.mxu0 0.0
    %7970 = vmatprep.mubr.f32.mxu0 0.0
    %7971 = vmatmul.mubr.f32.gmra.mrb[0].mxu0 %v7902
    %v7972 = vpop.f32.mrb[0].mxu0
    %v7973 = vadd.f32 0.0, %v7972
    %v7974 = vpop.f32.mrb[0].mxu0
    %7975 = vdwg.mxu0
    %7976 = vrot.lane.b32.xlu0 %v7591, 96
    %v7977 = vpop.permute.xlu0 %7976
    %v7978 = vsel %vm162, %v7591, 0
    %v7980 = vsel %vm162, %v7977, 0
    %7982 = vmatprep.subr.mxu0 0.0
    %7983 = vmatpush1.xpose.msra.mxu0 %v7980
    %7984 = vmatprep.subr.mxu0 0.0
    %7985 = vmatpush1.xpose.msra.mxu0 0.0
    %7986 = vmatprep.subr.mxu0 0.0
    %7987 = vmatpush1.xpose.msra.mxu0 0.0
    %7988 = vmatprep.subr.mxu0 0.0
    %7989 = vmatpush1.xpose.msra.mxu0 0.0
    %7990 = vmatprep.subr.mxu0 0.0
    %7991 = vmatpush1.xpose.msra.mxu0 0.0
    %7992 = vmatprep.subr.mxu0 0.0
    %7993 = vmatpush1.xpose.msra.mxu0 0.0
    %7994 = vmatprep.subr.mxu0 0.0
    %7995 = vmatpush1.xpose.msra.mxu0 0.0
    %7996 = vmatprep.subr.mxu0 0.0
    %7997 = vmatpush1.xpose.msra.mxu0 0.0
    %7998 = vmatprep.subr.mxu0 0.0
    %7999 = vmatpush1.xpose.msra.mxu0 0.0
    %8000 = vmatprep.subr.mxu0 0.0
    %8001 = vmatpush1.xpose.msra.mxu0 0.0
    %8002 = vmatprep.subr.mxu0 0.0
    %8003 = vmatpush1.xpose.msra.mxu0 0.0
    %8004 = vmatprep.subr.mxu0 0.0
    %8005 = vmatpush1.xpose.msra.mxu0 0.0
    %8006 = vmatprep.subr.mxu0 0.0
    %8007 = vmatpush1.xpose.msra.mxu0 0.0
    %8008 = vmatprep.subr.mxu0 0.0
    %8009 = vmatpush1.xpose.msra.mxu0 0.0
    %8010 = vmatprep.subr.mxu0 0.0
    %8011 = vmatpush1.xpose.msra.mxu0 0.0
    %8012 = vmatprep.subr.mxu0 0.0
    %8013 = vmatpush1.xpose.msra.mxu0 0.0
    %8014 = vmatprep.subr.mxu0 0.0
    %8015 = vmatpush1.xpose.msra.mxu0 0.0
    %8016 = vmatprep.subr.mxu0 0.0
    %8017 = vmatpush1.xpose.msra.mxu0 0.0
    %8018 = vmatprep.subr.mxu0 0.0
    %8019 = vmatpush1.xpose.msra.mxu0 0.0
    %8020 = vmatprep.subr.mxu0 0.0
    %8021 = vmatpush1.xpose.msra.mxu0 0.0
    %8022 = vmatprep.subr.mxu0 0.0
    %8023 = vmatpush1.xpose.msra.mxu0 0.0
    %8024 = vmatprep.subr.mxu0 0.0
    %8025 = vmatpush1.xpose.msra.mxu0 0.0
    %8026 = vmatprep.subr.mxu0 0.0
    %8027 = vmatpush1.xpose.msra.mxu0 0.0
    %8028 = vmatprep.subr.mxu0 0.0
    %8029 = vmatpush1.xpose.msra.mxu0 0.0
    %8030 = vmatprep.subr.mxu0 0.0
    %8031 = vmatpush1.xpose.msra.mxu0 0.0
    %8032 = vmatprep.subr.mxu0 0.0
    %8033 = vmatpush1.xpose.msra.mxu0 0.0
    %8034 = vmatprep.subr.mxu0 0.0
    %8035 = vmatpush1.xpose.msra.mxu0 0.0
    %8036 = vmatprep.subr.mxu0 0.0
    %8037 = vmatpush1.xpose.msra.mxu0 0.0
    %8038 = vmatprep.subr.mxu0 0.0
    %8039 = vmatpush1.xpose.msra.mxu0 0.0
    %8040 = vmatprep.subr.mxu0 0.0
    %8041 = vmatpush1.xpose.msra.mxu0 0.0
    %8042 = vmatprep.subr.mxu0 0.0
    %8043 = vmatpush1.xpose.msra.mxu0 0.0
    %8044 = vmatprep.subr.mxu0 0.0
    %8045 = vmatpush1.xpose.msra.mxu0 0.0
    %8046 = vmatprep.mubr.f32.mxu0 0.0
    %8047 = vmatmul.mubr.f32.gmra.mrb[0].mxu0 %v7978
    %v8048 = vpop.f32.mrb[0].mxu0
    %v8049 = vadd.f32 0.0, %v8048
    %v8050 = vpop.f32.mrb[0].mxu0
    %8051 = vdwg.mxu0
    %8052 = vrot.lane.b32.xlu0 %v7593, 96
    %v8053 = vpop.permute.xlu0 %8052
    %v8054 = vsel %vm162, %v7593, 0
    %v8056 = vsel %vm162, %v8053, 0
    %8058 = vmatprep.subr.mxu0 0.0
    %8059 = vmatpush1.xpose.msra.mxu0 %v8056
    %8060 = vmatprep.subr.mxu0 0.0
    %8061 = vmatpush1.xpose.msra.mxu0 0.0
    %8062 = vmatprep.subr.mxu0 0.0
    %8063 = vmatpush1.xpose.msra.mxu0 0.0
    %8064 = vmatprep.subr.mxu0 0.0
    %8065 = vmatpush1.xpose.msra.mxu0 0.0
    %8066 = vmatprep.subr.mxu0 0.0
    %8067 = vmatpush1.xpose.msra.mxu0 0.0
    %8068 = vmatprep.subr.mxu0 0.0
    %8069 = vmatpush1.xpose.msra.mxu0 0.0
    %8070 = vmatprep.subr.mxu0 0.0
    %8071 = vmatpush1.xpose.msra.mxu0 0.0
    %8072 = vmatprep.subr.mxu0 0.0
    %8073 = vmatpush1.xpose.msra.mxu0 0.0
    %8074 = vmatprep.subr.mxu0 0.0
    %8075 = vmatpush1.xpose.msra.mxu0 0.0
    %8076 = vmatprep.subr.mxu0 0.0
    %8077 = vmatpush1.xpose.msra.mxu0 0.0
    %8078 = vmatprep.subr.mxu0 0.0
    %8079 = vmatpush1.xpose.msra.mxu0 0.0
    %8080 = vmatprep.subr.mxu0 0.0
    %8081 = vmatpush1.xpose.msra.mxu0 0.0
    %8082 = vmatprep.subr.mxu0 0.0
    %8083 = vmatpush1.xpose.msra.mxu0 0.0
    %8084 = vmatprep.subr.mxu0 0.0
    %8085 = vmatpush1.xpose.msra.mxu0 0.0
    %8086 = vmatprep.subr.mxu0 0.0
    %8087 = vmatpush1.xpose.msra.mxu0 0.0
    %8088 = vmatprep.subr.mxu0 0.0
    %8089 = vmatpush1.xpose.msra.mxu0 0.0
    %8090 = vmatprep.subr.mxu0 0.0
    %8091 = vmatpush1.xpose.msra.mxu0 0.0
    %8092 = vmatprep.subr.mxu0 0.0
    %8093 = vmatpush1.xpose.msra.mxu0 0.0
    %8094 = vmatprep.subr.mxu0 0.0
    %8095 = vmatpush1.xpose.msra.mxu0 0.0
    %8096 = vmatprep.subr.mxu0 0.0
    %8097 = vmatpush1.xpose.msra.mxu0 0.0
    %8098 = vmatprep.subr.mxu0 0.0
    %8099 = vmatpush1.xpose.msra.mxu0 0.0
    %8100 = vmatprep.subr.mxu0 0.0
    %8101 = vmatpush1.xpose.msra.mxu0 0.0
    %8102 = vmatprep.subr.mxu0 0.0
    %8103 = vmatpush1.xpose.msra.mxu0 0.0
    %8104 = vmatprep.subr.mxu0 0.0
    %8105 = vmatpush1.xpose.msra.mxu0 0.0
    %8106 = vmatprep.subr.mxu0 0.0
    %8107 = vmatpush1.xpose.msra.mxu0 0.0
    %8108 = vmatprep.subr.mxu0 0.0
    %8109 = vmatpush1.xpose.msra.mxu0 0.0
    %8110 = vmatprep.subr.mxu0 0.0
    %8111 = vmatpush1.xpose.msra.mxu0 0.0
    %8112 = vmatprep.subr.mxu0 0.0
    %8113 = vmatpush1.xpose.msra.mxu0 0.0
    %8114 = vmatprep.subr.mxu0 0.0
    %8115 = vmatpush1.xpose.msra.mxu0 0.0
    %8116 = vmatprep.subr.mxu0 0.0
    %8117 = vmatpush1.xpose.msra.mxu0 0.0
    %8118 = vmatprep.subr.mxu0 0.0
    %8119 = vmatpush1.xpose.msra.mxu0 0.0
    %8120 = vmatprep.subr.mxu0 0.0
    %8121 = vmatpush1.xpose.msra.mxu0 0.0
    %8122 = vmatprep.mubr.f32.mxu0 0.0
    %8123 = vmatmul.mubr.f32.gmra.mrb[0].mxu0 %v8054
    %v8124 = vpop.f32.mrb[0].mxu0
    %v8125 = vadd.f32 0.0, %v8124
    %v8126 = vpop.f32.mrb[0].mxu0
    %8127 = vdwg.mxu0
    %8128 = vrot.lane.b32.xlu0 %v7595, 96
    %v8129 = vpop.permute.xlu0 %8128
    %v8130 = vsel %vm162, %v7595, 0
    %v8132 = vsel %vm162, %v8129, 0
    %8134 = vmatprep.subr.mxu0 0.0
    %8135 = vmatpush1.xpose.msra.mxu0 %v8132
    %8136 = vmatprep.subr.mxu0 0.0
    %8137 = vmatpush1.xpose.msra.mxu0 0.0
    %8138 = vmatprep.subr.mxu0 0.0
    %8139 = vmatpush1.xpose.msra.mxu0 0.0
    %8140 = vmatprep.subr.mxu0 0.0
    %8141 = vmatpush1.xpose.msra.mxu0 0.0
    %8142 = vmatprep.subr.mxu0 0.0
    %8143 = vmatpush1.xpose.msra.mxu0 0.0
    %8144 = vmatprep.subr.mxu0 0.0
    %8145 = vmatpush1.xpose.msra.mxu0 0.0
    %8146 = vmatprep.subr.mxu0 0.0
    %8147 = vmatpush1.xpose.msra.mxu0 0.0
    %8148 = vmatprep.subr.mxu0 0.0
    %8149 = vmatpush1.xpose.msra.mxu0 0.0
    %8150 = vmatprep.subr.mxu0 0.0
    %8151 = vmatpush1.xpose.msra.mxu0 0.0
    %8152 = vmatprep.subr.mxu0 0.0
    %8153 = vmatpush1.xpose.msra.mxu0 0.0
    %8154 = vmatprep.subr.mxu0 0.0
    %8155 = vmatpush1.xpose.msra.mxu0 0.0
    %8156 = vmatprep.subr.mxu0 0.0
    %8157 = vmatpush1.xpose.msra.mxu0 0.0
    %8158 = vmatprep.subr.mxu0 0.0
    %8159 = vmatpush1.xpose.msra.mxu0 0.0
    %8160 = vmatprep.subr.mxu0 0.0
    %8161 = vmatpush1.xpose.msra.mxu0 0.0
    %8162 = vmatprep.subr.mxu0 0.0
    %8163 = vmatpush1.xpose.msra.mxu0 0.0
    %8164 = vmatprep.subr.mxu0 0.0
    %8165 = vmatpush1.xpose.msra.mxu0 0.0
    %8166 = vmatprep.subr.mxu0 0.0
    %8167 = vmatpush1.xpose.msra.mxu0 0.0
    %8168 = vmatprep.subr.mxu0 0.0
    %8169 = vmatpush1.xpose.msra.mxu0 0.0
    %8170 = vmatprep.subr.mxu0 0.0
    %8171 = vmatpush1.xpose.msra.mxu0 0.0
    %8172 = vmatprep.subr.mxu0 0.0
    %8173 = vmatpush1.xpose.msra.mxu0 0.0
    %8174 = vmatprep.subr.mxu0 0.0
    %8175 = vmatpush1.xpose.msra.mxu0 0.0
    %8176 = vmatprep.subr.mxu0 0.0
    %8177 = vmatpush1.xpose.msra.mxu0 0.0
    %8178 = vmatprep.subr.mxu0 0.0
    %8179 = vmatpush1.xpose.msra.mxu0 0.0
    %8180 = vmatprep.subr.mxu0 0.0
    %8181 = vmatpush1.xpose.msra.mxu0 0.0
    %8182 = vmatprep.subr.mxu0 0.0
    %8183 = vmatpush1.xpose.msra.mxu0 0.0
    %8184 = vmatprep.subr.mxu0 0.0
    %8185 = vmatpush1.xpose.msra.mxu0 0.0
    %8186 = vmatprep.subr.mxu0 0.0
    %8187 = vmatpush1.xpose.msra.mxu0 0.0
    %8188 = vmatprep.subr.mxu0 0.0
    %8189 = vmatpush1.xpose.msra.mxu0 0.0
    %8190 = vmatprep.subr.mxu0 0.0
    %8191 = vmatpush1.xpose.msra.mxu0 0.0
    %8192 = vmatprep.subr.mxu0 0.0
    %8193 = vmatpush1.xpose.msra.mxu0 0.0
    %8194 = vmatprep.subr.mxu0 0.0
    %8195 = vmatpush1.xpose.msra.mxu0 0.0
    %8196 = vmatprep.subr.mxu0 0.0
    %8197 = vmatpush1.xpose.msra.mxu0 0.0
    %8198 = vmatprep.mubr.f32.mxu0 0.0
    %8199 = vmatmul.mubr.f32.gmra.mrb[0].mxu0 %v8130
    %v8200 = vpop.f32.mrb[0].mxu0
    %v8201 = vadd.f32 0.0, %v8200
    %v8202 = vpop.f32.mrb[0].mxu0
    %8203 = vdwg.mxu0
    %v8204 = vmul.f32 %v7669, 0.35355338
    %v8205 = vmul.f32 %v7745, 0.35355338
    %v8206 = vmul.f32 %v7821, 0.35355338
    %v8207 = vmul.f32 %v7897, 0.35355338
    %v8208 = vmul.f32 %v7973, 0.35355338
    %v8209 = vmul.f32 %v8049, 0.35355338
    %v8210 = vmul.f32 %v8125, 0.35355338
    %v8211 = vmul.f32 %v8201, 0.35355338
    %v8212 = vadd.f32 %v8204, %v52
    %v8213 = vadd.f32 %v8205, %v52
    %v8214 = vadd.f32 %v8206, %v52
    %v8215 = vadd.f32 %v8207, %v52
    %v8216 = vadd.f32 %v8208, %v52
    %v8217 = vadd.f32 %v8209, %v52
    %v8218 = vadd.f32 %v8210, %v52
    %v8219 = vadd.f32 %v8211, %v52
    %v8220 = vsel %vm162, %v8212, -inf
    %8221 = vmax.xlane.f32.xlu0 %v8220
    %v8222 = vpop.xlane.xlu0 %8221
    %v8223 = vsel %vm162, %v8213, -inf
    %8224 = vmax.xlane.f32.xlu0 %v8223
    %v8225 = vpop.xlane.xlu0 %8224
    %v8226 = vsel %vm162, %v8214, -inf
    %8227 = vmax.xlane.f32.xlu0 %v8226
    %v8228 = vpop.xlane.xlu0 %8227
    %v8229 = vsel %vm162, %v8215, -inf
    %8230 = vmax.xlane.f32.xlu0 %v8229
    %v8231 = vpop.xlane.xlu0 %8230
    %v8232 = vsel %vm162, %v8216, -inf
    %8233 = vmax.xlane.f32.xlu0 %v8232
    %v8234 = vpop.xlane.xlu0 %8233
    %v8235 = vsel %vm162, %v8217, -inf
    %8236 = vmax.xlane.f32.xlu0 %v8235
    %v8237 = vpop.xlane.xlu0 %8236
    %v8238 = vsel %vm162, %v8218, -inf
    %8239 = vmax.xlane.f32.xlu0 %v8238
    %v8240 = vpop.xlane.xlu0 %8239
    %v8241 = vsel %vm162, %v8219, -inf
    %8242 = vmax.xlane.f32.xlu0 %v8241
    %v8243 = vpop.xlane.xlu0 %8242
    %v8244 = vsub.f32 %v8212, %v8222
    %v8245 = vsub.f32 %v8213, %v8225
    %v8246 = vsub.f32 %v8214, %v8228
    %v8247 = vsub.f32 %v8215, %v8231
    %v8248 = vsub.f32 %v8216, %v8234
    %v8249 = vsub.f32 %v8217, %v8237
    %v8250 = vsub.f32 %v8218, %v8240
    %v8251 = vsub.f32 %v8219, %v8243
    %v8252 = vmul.f32 %v8244, 1.442695
    %v8253 = vpow.pop %v8252
    %v8254 = vmul.f32 %v8245, 1.442695
    %v8255 = vpow.pop %v8254
    %v8256 = vmul.f32 %v8246, 1.442695
    %v8257 = vpow.pop %v8256
    %v8258 = vmul.f32 %v8247, 1.442695
    %v8259 = vpow.pop %v8258
    %v8260 = vmul.f32 %v8248, 1.442695
    %v8261 = vpow.pop %v8260
    %v8262 = vmul.f32 %v8249, 1.442695
    %v8263 = vpow.pop %v8262
    %v8264 = vmul.f32 %v8250, 1.442695
    %v8265 = vpow.pop %v8264
    %v8266 = vmul.f32 %v8251, 1.442695
    %v8267 = vpow.pop %v8266
    %v8268 = vsel %vm162, %v8253, 0.0
    %8269 = vadd.xlane.f32.xlu0 %v8268
    %v8270 = vpop.xlane.xlu0 %8269
    %v8271 = vsel %vm162, %v8255, 0.0
    %8272 = vadd.xlane.f32.xlu0 %v8271
    %v8273 = vpop.xlane.xlu0 %8272
    %v8274 = vsel %vm162, %v8257, 0.0
    %8275 = vadd.xlane.f32.xlu0 %v8274
    %v8276 = vpop.xlane.xlu0 %8275
    %v8277 = vsel %vm162, %v8259, 0.0
    %8278 = vadd.xlane.f32.xlu0 %v8277
    %v8279 = vpop.xlane.xlu0 %8278
    %v8280 = vsel %vm162, %v8261, 0.0
    %8281 = vadd.xlane.f32.xlu0 %v8280
    %v8282 = vpop.xlane.xlu0 %8281
    %v8283 = vsel %vm162, %v8263, 0.0
    %8284 = vadd.xlane.f32.xlu0 %v8283
    %v8285 = vpop.xlane.xlu0 %8284
    %v8286 = vsel %vm162, %v8265, 0.0
    %8287 = vadd.xlane.f32.xlu0 %v8286
    %v8288 = vpop.xlane.xlu0 %8287
    %v8289 = vsel %vm162, %v8267, 0.0
    %8290 = vadd.xlane.f32.xlu0 %v8289
    %v8291 = vpop.xlane.xlu0 %8290
    %v8292 = vrcp.pop %v8270
    %v8293 = vrcp.pop %v8273
    %v8294 = vrcp.pop %v8276
    %v8295 = vrcp.pop %v8279
    %v8296 = vrcp.pop %v8282
    %v8297 = vrcp.pop %v8285
    %v8298 = vrcp.pop %v8288
    %v8299 = vrcp.pop %v8291
    %v8300 = vmul.f32 %v8270, %v8292
    %v8301 = vmul.f32 %v8273, %v8293
    %v8302 = vmul.f32 %v8276, %v8294
    %v8303 = vmul.f32 %v8279, %v8295
    %v8304 = vmul.f32 %v8282, %v8296
    %v8305 = vmul.f32 %v8285, %v8297
    %v8306 = vmul.f32 %v8288, %v8298
    %v8307 = vmul.f32 %v8291, %v8299
    %v8308 = vsub.f32 2.0, %v8300
    %v8309 = vsub.f32 2.0, %v8301
    %v8310 = vsub.f32 2.0, %v8302
    %v8311 = vsub.f32 2.0, %v8303
    %v8312 = vsub.f32 2.0, %v8304
    %v8313 = vsub.f32 2.0, %v8305
    %v8314 = vsub.f32 2.0, %v8306
    %v8315 = vsub.f32 2.0, %v8307
    %v8316 = vmul.f32 %v8292, %v8308
    %v8317 = vmul.f32 %v8293, %v8309
    %v8318 = vmul.f32 %v8294, %v8310
    %v8319 = vmul.f32 %v8295, %v8311
    %v8320 = vmul.f32 %v8296, %v8312
    %v8321 = vmul.f32 %v8297, %v8313
    %v8322 = vmul.f32 %v8298, %v8314
    %v8323 = vmul.f32 %v8299, %v8315
    %v8324 = vmul.f32 %v8253, %v8316
    %v8325 = vmul.f32 %v8255, %v8317
    %v8326 = vmul.f32 %v8257, %v8318
    %v8327 = vmul.f32 %v8259, %v8319
    %v8328 = vmul.f32 %v8261, %v8320
    %v8329 = vmul.f32 %v8263, %v8321
    %v8330 = vmul.f32 %v8265, %v8322
    %v8331 = vmul.f32 %v8267, %v8323
    %8332 = vrot.lane.b32.xlu0 %v7574, 64
    %v8333 = vpop.permute.xlu0 %8332
    %v8336 = vsel %vm162, %v8324, 0
    %8338 = vmatprep.subr.mxu0 0.0
    %8339 = vmatpush1.msra.mxu0 %v8333
    %8340 = vmatprep.subr.mxu0 0.0
    %8341 = vmatpush1.msra.mxu0 0.0
    %8342 = vmatprep.subr.mxu0 0.0
    %8343 = vmatpush1.msra.mxu0 0.0
    %8344 = vmatprep.subr.mxu0 0.0
    %8345 = vmatpush1.msra.mxu0 0.0
    %8346 = vmatprep.subr.mxu0 0.0
    %8347 = vmatpush1.msra.mxu0 0.0
    %8348 = vmatprep.subr.mxu0 0.0
    %8349 = vmatpush1.msra.mxu0 0.0
    %8350 = vmatprep.subr.mxu0 0.0
    %8351 = vmatpush1.msra.mxu0 0.0
    %8352 = vmatprep.subr.mxu0 0.0
    %8353 = vmatpush1.msra.mxu0 0.0
    %8354 = vmatprep.subr.mxu0 0.0
    %8355 = vmatpush1.msra.mxu0 0.0
    %8356 = vmatprep.subr.mxu0 0.0
    %8357 = vmatpush1.msra.mxu0 0.0
    %8358 = vmatprep.subr.mxu0 0.0
    %8359 = vmatpush1.msra.mxu0 0.0
    %8360 = vmatprep.subr.mxu0 0.0
    %8361 = vmatpush1.msra.mxu0 0.0
    %8362 = vmatprep.subr.mxu0 0.0
    %8363 = vmatpush1.msra.mxu0 0.0
    %8364 = vmatprep.subr.mxu0 0.0
    %8365 = vmatpush1.msra.mxu0 0.0
    %8366 = vmatprep.subr.mxu0 0.0
    %8367 = vmatpush1.msra.mxu0 0.0
    %8368 = vmatprep.subr.mxu0 0.0
    %8369 = vmatpush1.msra.mxu0 0.0
    %8370 = vmatprep.subr.mxu0 0.0
    %8371 = vmatpush1.msra.mxu0 0.0
    %8372 = vmatprep.subr.mxu0 0.0
    %8373 = vmatpush1.msra.mxu0 0.0
    %8374 = vmatprep.subr.mxu0 0.0
    %8375 = vmatpush1.msra.mxu0 0.0
    %8376 = vmatprep.subr.mxu0 0.0
    %8377 = vmatpush1.msra.mxu0 0.0
    %8378 = vmatprep.subr.mxu0 0.0
    %8379 = vmatpush1.msra.mxu0 0.0
    %8380 = vmatprep.subr.mxu0 0.0
    %8381 = vmatpush1.msra.mxu0 0.0
    %8382 = vmatprep.subr.mxu0 0.0
    %8383 = vmatpush1.msra.mxu0 0.0
    %8384 = vmatprep.subr.mxu0 0.0
    %8385 = vmatpush1.msra.mxu0 0.0
    %8386 = vmatprep.subr.mxu0 0.0
    %8387 = vmatpush1.msra.mxu0 0.0
    %8388 = vmatprep.subr.mxu0 0.0
    %8389 = vmatpush1.msra.mxu0 0.0
    %8390 = vmatprep.subr.mxu0 0.0
    %8391 = vmatpush1.msra.mxu0 0.0
    %8392 = vmatprep.subr.mxu0 0.0
    %8393 = vmatpush1.msra.mxu0 0.0
    %8394 = vmatprep.subr.mxu0 0.0
    %8395 = vmatpush1.msra.mxu0 0.0
    %8396 = vmatprep.subr.mxu0 0.0
    %8397 = vmatpush1.msra.mxu0 0.0
    %8398 = vmatprep.subr.mxu0 0.0
    %8399 = vmatpush1.msra.mxu0 0.0
    %8400 = vmatprep.subr.mxu0 0.0
    %8401 = vmatpush1.msra.mxu0 0.0
    %8402 = vmatprep.mubr.f32.mxu0 0.0
    %8403 = vmatmul.mubr.f32.gmra.mrb[0].mxu0 %v8336
    %v8404 = vpop.f32.mrb[0].mxu0
    %v8405 = vadd.f32 0.0, %v8404
    %v8406 = vpop.f32.mrb[0].mxu0
    %8407 = vdwg.mxu0
    %8408 = vrot.lane.b32.xlu0 %v7584, 64
    %v8409 = vpop.permute.xlu0 %8408
    %v8412 = vsel %vm162, %v8325, 0
    %8414 = vmatprep.subr.mxu0 0.0
    %8415 = vmatpush1.msra.mxu0 %v8409
    %8416 = vmatprep.subr.mxu0 0.0
    %8417 = vmatpush1.msra.mxu0 0.0
    %8418 = vmatprep.subr.mxu0 0.0
    %8419 = vmatpush1.msra.mxu0 0.0
    %8420 = vmatprep.subr.mxu0 0.0
    %8421 = vmatpush1.msra.mxu0 0.0
    %8422 = vmatprep.subr.mxu0 0.0
    %8423 = vmatpush1.msra.mxu0 0.0
    %8424 = vmatprep.subr.mxu0 0.0
    %8425 = vmatpush1.msra.mxu0 0.0
    %8426 = vmatprep.subr.mxu0 0.0
    %8427 = vmatpush1.msra.mxu0 0.0
    %8428 = vmatprep.subr.mxu0 0.0
    %8429 = vmatpush1.msra.mxu0 0.0
    %8430 = vmatprep.subr.mxu0 0.0
    %8431 = vmatpush1.msra.mxu0 0.0
    %8432 = vmatprep.subr.mxu0 0.0
    %8433 = vmatpush1.msra.mxu0 0.0
    %8434 = vmatprep.subr.mxu0 0.0
    %8435 = vmatpush1.msra.mxu0 0.0
    %8436 = vmatprep.subr.mxu0 0.0
    %8437 = vmatpush1.msra.mxu0 0.0
    %8438 = vmatprep.subr.mxu0 0.0
    %8439 = vmatpush1.msra.mxu0 0.0
    %8440 = vmatprep.subr.mxu0 0.0
    %8441 = vmatpush1.msra.mxu0 0.0
    %8442 = vmatprep.subr.mxu0 0.0
    %8443 = vmatpush1.msra.mxu0 0.0
    %8444 = vmatprep.subr.mxu0 0.0
    %8445 = vmatpush1.msra.mxu0 0.0
    %8446 = vmatprep.subr.mxu0 0.0
    %8447 = vmatpush1.msra.mxu0 0.0
    %8448 = vmatprep.subr.mxu0 0.0
    %8449 = vmatpush1.msra.mxu0 0.0
    %8450 = vmatprep.subr.mxu0 0.0
    %8451 = vmatpush1.msra.mxu0 0.0
    %8452 = vmatprep.subr.mxu0 0.0
    %8453 = vmatpush1.msra.mxu0 0.0
    %8454 = vmatprep.subr.mxu0 0.0
    %8455 = vmatpush1.msra.mxu0 0.0
    %8456 = vmatprep.subr.mxu0 0.0
    %8457 = vmatpush1.msra.mxu0 0.0
    %8458 = vmatprep.subr.mxu0 0.0
    %8459 = vmatpush1.msra.mxu0 0.0
    %8460 = vmatprep.subr.mxu0 0.0
    %8461 = vmatpush1.msra.mxu0 0.0
    %8462 = vmatprep.subr.mxu0 0.0
    %8463 = vmatpush1.msra.mxu0 0.0
    %8464 = vmatprep.subr.mxu0 0.0
    %8465 = vmatpush1.msra.mxu0 0.0
    %8466 = vmatprep.subr.mxu0 0.0
    %8467 = vmatpush1.msra.mxu0 0.0
    %8468 = vmatprep.subr.mxu0 0.0
    %8469 = vmatpush1.msra.mxu0 0.0
    %8470 = vmatprep.subr.mxu0 0.0
    %8471 = vmatpush1.msra.mxu0 0.0
    %8472 = vmatprep.subr.mxu0 0.0
    %8473 = vmatpush1.msra.mxu0 0.0
    %8474 = vmatprep.subr.mxu0 0.0
    %8475 = vmatpush1.msra.mxu0 0.0
    %8476 = vmatprep.subr.mxu0 0.0
    %8477 = vmatpush1.msra.mxu0 0.0
    %8478 = vmatprep.mubr.f32.mxu0 0.0
    %8479 = vmatmul.mubr.f32.gmra.mrb[0].mxu0 %v8412
    %v8480 = vpop.f32.mrb[0].mxu0
    %v8481 = vadd.f32 0.0, %v8480
    %v8482 = vpop.f32.mrb[0].mxu0
    %8483 = vdwg.mxu0
    %8484 = vrot.lane.b32.xlu0 %v7586, 64
    %v8485 = vpop.permute.xlu0 %8484
    %v8488 = vsel %vm162, %v8326, 0
    %8490 = vmatprep.subr.mxu0 0.0
    %8491 = vmatpush1.msra.mxu0 %v8485
    %8492 = vmatprep.subr.mxu0 0.0
    %8493 = vmatpush1.msra.mxu0 0.0
    %8494 = vmatprep.subr.mxu0 0.0
    %8495 = vmatpush1.msra.mxu0 0.0
    %8496 = vmatprep.subr.mxu0 0.0
    %8497 = vmatpush1.msra.mxu0 0.0
    %8498 = vmatprep.subr.mxu0 0.0
    %8499 = vmatpush1.msra.mxu0 0.0
    %8500 = vmatprep.subr.mxu0 0.0
    %8501 = vmatpush1.msra.mxu0 0.0
    %8502 = vmatprep.subr.mxu0 0.0
    %8503 = vmatpush1.msra.mxu0 0.0
    %8504 = vmatprep.subr.mxu0 0.0
    %8505 = vmatpush1.msra.mxu0 0.0
    %8506 = vmatprep.subr.mxu0 0.0
    %8507 = vmatpush1.msra.mxu0 0.0
    %8508 = vmatprep.subr.mxu0 0.0
    %8509 = vmatpush1.msra.mxu0 0.0
    %8510 = vmatprep.subr.mxu0 0.0
    %8511 = vmatpush1.msra.mxu0 0.0
    %8512 = vmatprep.subr.mxu0 0.0
    %8513 = vmatpush1.msra.mxu0 0.0
    %8514 = vmatprep.subr.mxu0 0.0
    %8515 = vmatpush1.msra.mxu0 0.0
    %8516 = vmatprep.subr.mxu0 0.0
    %8517 = vmatpush1.msra.mxu0 0.0
    %8518 = vmatprep.subr.mxu0 0.0
    %8519 = vmatpush1.msra.mxu0 0.0
    %8520 = vmatprep.subr.mxu0 0.0
    %8521 = vmatpush1.msra.mxu0 0.0
    %8522 = vmatprep.subr.mxu0 0.0
    %8523 = vmatpush1.msra.mxu0 0.0
    %8524 = vmatprep.subr.mxu0 0.0
    %8525 = vmatpush1.msra.mxu0 0.0
    %8526 = vmatprep.subr.mxu0 0.0
    %8527 = vmatpush1.msra.mxu0 0.0
    %8528 = vmatprep.subr.mxu0 0.0
    %8529 = vmatpush1.msra.mxu0 0.0
    %8530 = vmatprep.subr.mxu0 0.0
    %8531 = vmatpush1.msra.mxu0 0.0
    %8532 = vmatprep.subr.mxu0 0.0
    %8533 = vmatpush1.msra.mxu0 0.0
    %8534 = vmatprep.subr.mxu0 0.0
    %8535 = vmatpush1.msra.mxu0 0.0
    %8536 = vmatprep.subr.mxu0 0.0
    %8537 = vmatpush1.msra.mxu0 0.0
    %8538 = vmatprep.subr.mxu0 0.0
    %8539 = vmatpush1.msra.mxu0 0.0
    %8540 = vmatprep.subr.mxu0 0.0
    %8541 = vmatpush1.msra.mxu0 0.0
    %8542 = vmatprep.subr.mxu0 0.0
    %8543 = vmatpush1.msra.mxu0 0.0
    %8544 = vmatprep.subr.mxu0 0.0
    %8545 = vmatpush1.msra.mxu0 0.0
    %8546 = vmatprep.subr.mxu0 0.0
    %8547 = vmatpush1.msra.mxu0 0.0
    %8548 = vmatprep.subr.mxu0 0.0
    %8549 = vmatpush1.msra.mxu0 0.0
    %8550 = vmatprep.subr.mxu0 0.0
    %8551 = vmatpush1.msra.mxu0 0.0
    %8552 = vmatprep.subr.mxu0 0.0
    %8553 = vmatpush1.msra.mxu0 0.0
    %8554 = vmatprep.mubr.f32.mxu0 0.0
    %8555 = vmatmul.mubr.f32.gmra.mrb[0].mxu0 %v8488
    %v8556 = vpop.f32.mrb[0].mxu0
    %v8557 = vadd.f32 0.0, %v8556
    %v8558 = vpop.f32.mrb[0].mxu0
    %8559 = vdwg.mxu0
    %8560 = vrot.lane.b32.xlu0 %v7588, 64
    %v8561 = vpop.permute.xlu0 %8560
    %v8564 = vsel %vm162, %v8327, 0
    %8566 = vmatprep.subr.mxu0 0.0
    %8567 = vmatpush1.msra.mxu0 %v8561
    %8568 = vmatprep.subr.mxu0 0.0
    %8569 = vmatpush1.msra.mxu0 0.0
    %8570 = vmatprep.subr.mxu0 0.0
    %8571 = vmatpush1.msra.mxu0 0.0
    %8572 = vmatprep.subr.mxu0 0.0
    %8573 = vmatpush1.msra.mxu0 0.0
    %8574 = vmatprep.subr.mxu0 0.0
    %8575 = vmatpush1.msra.mxu0 0.0
    %8576 = vmatprep.subr.mxu0 0.0
    %8577 = vmatpush1.msra.mxu0 0.0
    %8578 = vmatprep.subr.mxu0 0.0
    %8579 = vmatpush1.msra.mxu0 0.0
    %8580 = vmatprep.subr.mxu0 0.0
    %8581 = vmatpush1.msra.mxu0 0.0
    %8582 = vmatprep.subr.mxu0 0.0
    %8583 = vmatpush1.msra.mxu0 0.0
    %8584 = vmatprep.subr.mxu0 0.0
    %8585 = vmatpush1.msra.mxu0 0.0
    %8586 = vmatprep.subr.mxu0 0.0
    %8587 = vmatpush1.msra.mxu0 0.0
    %8588 = vmatprep.subr.mxu0 0.0
    %8589 = vmatpush1.msra.mxu0 0.0
    %8590 = vmatprep.subr.mxu0 0.0
    %8591 = vmatpush1.msra.mxu0 0.0
    %8592 = vmatprep.subr.mxu0 0.0
    %8593 = vmatpush1.msra.mxu0 0.0
    %8594 = vmatprep.subr.mxu0 0.0
    %8595 = vmatpush1.msra.mxu0 0.0
    %8596 = vmatprep.subr.mxu0 0.0
    %8597 = vmatpush1.msra.mxu0 0.0
    %8598 = vmatprep.subr.mxu0 0.0
    %8599 = vmatpush1.msra.mxu0 0.0
    %8600 = vmatprep.subr.mxu0 0.0
    %8601 = vmatpush1.msra.mxu0 0.0
    %8602 = vmatprep.subr.mxu0 0.0
    %8603 = vmatpush1.msra.mxu0 0.0
    %8604 = vmatprep.subr.mxu0 0.0
    %8605 = vmatpush1.msra.mxu0 0.0
    %8606 = vmatprep.subr.mxu0 0.0
    %8607 = vmatpush1.msra.mxu0 0.0
    %8608 = vmatprep.subr.mxu0 0.0
    %8609 = vmatpush1.msra.mxu0 0.0
    %8610 = vmatprep.subr.mxu0 0.0
    %8611 = vmatpush1.msra.mxu0 0.0
    %8612 = vmatprep.subr.mxu0 0.0
    %8613 = vmatpush1.msra.mxu0 0.0
    %8614 = vmatprep.subr.mxu0 0.0
    %8615 = vmatpush1.msra.mxu0 0.0
    %8616 = vmatprep.subr.mxu0 0.0
    %8617 = vmatpush1.msra.mxu0 0.0
    %8618 = vmatprep.subr.mxu0 0.0
    %8619 = vmatpush1.msra.mxu0 0.0
    %8620 = vmatprep.subr.mxu0 0.0
    %8621 = vmatpush1.msra.mxu0 0.0
    %8622 = vmatprep.subr.mxu0 0.0
    %8623 = vmatpush1.msra.mxu0 0.0
    %8624 = vmatprep.subr.mxu0 0.0
    %8625 = vmatpush1.msra.mxu0 0.0
    %8626 = vmatprep.subr.mxu0 0.0
    %8627 = vmatpush1.msra.mxu0 0.0
    %8628 = vmatprep.subr.mxu0 0.0
    %8629 = vmatpush1.msra.mxu0 0.0
    %8630 = vmatprep.mubr.f32.mxu0 0.0
    %8631 = vmatmul.mubr.f32.gmra.mrb[0].mxu0 %v8564
    %v8632 = vpop.f32.mrb[0].mxu0
    %v8633 = vadd.f32 0.0, %v8632
    %v8634 = vpop.f32.mrb[0].mxu0
    %8635 = vdwg.mxu0
    %8636 = vrot.lane.b32.xlu0 %v7579, 64
    %v8637 = vpop.permute.xlu0 %8636
    %v8640 = vsel %vm162, %v8328, 0
    %8642 = vmatprep.subr.mxu0 0.0
    %8643 = vmatpush1.msra.mxu0 %v8637
    %8644 = vmatprep.subr.mxu0 0.0
    %8645 = vmatpush1.msra.mxu0 0.0
    %8646 = vmatprep.subr.mxu0 0.0
    %8647 = vmatpush1.msra.mxu0 0.0
    %8648 = vmatprep.subr.mxu0 0.0
    %8649 = vmatpush1.msra.mxu0 0.0
    %8650 = vmatprep.subr.mxu0 0.0
    %8651 = vmatpush1.msra.mxu0 0.0
    %8652 = vmatprep.subr.mxu0 0.0
    %8653 = vmatpush1.msra.mxu0 0.0
    %8654 = vmatprep.subr.mxu0 0.0
    %8655 = vmatpush1.msra.mxu0 0.0
    %8656 = vmatprep.subr.mxu0 0.0
    %8657 = vmatpush1.msra.mxu0 0.0
    %8658 = vmatprep.subr.mxu0 0.0
    %8659 = vmatpush1.msra.mxu0 0.0
    %8660 = vmatprep.subr.mxu0 0.0
    %8661 = vmatpush1.msra.mxu0 0.0
    %8662 = vmatprep.subr.mxu0 0.0
    %8663 = vmatpush1.msra.mxu0 0.0
    %8664 = vmatprep.subr.mxu0 0.0
    %8665 = vmatpush1.msra.mxu0 0.0
    %8666 = vmatprep.subr.mxu0 0.0
    %8667 = vmatpush1.msra.mxu0 0.0
    %8668 = vmatprep.subr.mxu0 0.0
    %8669 = vmatpush1.msra.mxu0 0.0
    %8670 = vmatprep.subr.mxu0 0.0
    %8671 = vmatpush1.msra.mxu0 0.0
    %8672 = vmatprep.subr.mxu0 0.0
    %8673 = vmatpush1.msra.mxu0 0.0
    %8674 = vmatprep.subr.mxu0 0.0
    %8675 = vmatpush1.msra.mxu0 0.0
    %8676 = vmatprep.subr.mxu0 0.0
    %8677 = vmatpush1.msra.mxu0 0.0
    %8678 = vmatprep.subr.mxu0 0.0
    %8679 = vmatpush1.msra.mxu0 0.0
    %8680 = vmatprep.subr.mxu0 0.0
    %8681 = vmatpush1.msra.mxu0 0.0
    %8682 = vmatprep.subr.mxu0 0.0
    %8683 = vmatpush1.msra.mxu0 0.0
    %8684 = vmatprep.subr.mxu0 0.0
    %8685 = vmatpush1.msra.mxu0 0.0
    %8686 = vmatprep.subr.mxu0 0.0
    %8687 = vmatpush1.msra.mxu0 0.0
    %8688 = vmatprep.subr.mxu0 0.0
    %8689 = vmatpush1.msra.mxu0 0.0
    %8690 = vmatprep.subr.mxu0 0.0
    %8691 = vmatpush1.msra.mxu0 0.0
    %8692 = vmatprep.subr.mxu0 0.0
    %8693 = vmatpush1.msra.mxu0 0.0
    %8694 = vmatprep.subr.mxu0 0.0
    %8695 = vmatpush1.msra.mxu0 0.0
    %8696 = vmatprep.subr.mxu0 0.0
    %8697 = vmatpush1.msra.mxu0 0.0
    %8698 = vmatprep.subr.mxu0 0.0
    %8699 = vmatpush1.msra.mxu0 0.0
    %8700 = vmatprep.subr.mxu0 0.0
    %8701 = vmatpush1.msra.mxu0 0.0
    %8702 = vmatprep.subr.mxu0 0.0
    %8703 = vmatpush1.msra.mxu0 0.0
    %8704 = vmatprep.subr.mxu0 0.0
    %8705 = vmatpush1.msra.mxu0 0.0
    %8706 = vmatprep.mubr.f32.mxu0 0.0
    %8707 = vmatmul.mubr.f32.gmra.mrb[0].mxu0 %v8640
    %v8708 = vpop.f32.mrb[0].mxu0
    %v8709 = vadd.f32 0.0, %v8708
    %v8710 = vpop.f32.mrb[0].mxu0
    %8711 = vdwg.mxu0
    %8712 = vrot.lane.b32.xlu0 %v7591, 64
    %v8713 = vpop.permute.xlu0 %8712
    %v8716 = vsel %vm162, %v8329, 0
    %8718 = vmatprep.subr.mxu0 0.0
    %8719 = vmatpush1.msra.mxu0 %v8713
    %8720 = vmatprep.subr.mxu0 0.0
    %8721 = vmatpush1.msra.mxu0 0.0
    %8722 = vmatprep.subr.mxu0 0.0
    %8723 = vmatpush1.msra.mxu0 0.0
    %8724 = vmatprep.subr.mxu0 0.0
    %8725 = vmatpush1.msra.mxu0 0.0
    %8726 = vmatprep.subr.mxu0 0.0
    %8727 = vmatpush1.msra.mxu0 0.0
    %8728 = vmatprep.subr.mxu0 0.0
    %8729 = vmatpush1.msra.mxu0 0.0
    %8730 = vmatprep.subr.mxu0 0.0
    %8731 = vmatpush1.msra.mxu0 0.0
    %8732 = vmatprep.subr.mxu0 0.0
    %8733 = vmatpush1.msra.mxu0 0.0
    %8734 = vmatprep.subr.mxu0 0.0
    %8735 = vmatpush1.msra.mxu0 0.0
    %8736 = vmatprep.subr.mxu0 0.0
    %8737 = vmatpush1.msra.mxu0 0.0
    %8738 = vmatprep.subr.mxu0 0.0
    %8739 = vmatpush1.msra.mxu0 0.0
    %8740 = vmatprep.subr.mxu0 0.0
    %8741 = vmatpush1.msra.mxu0 0.0
    %8742 = vmatprep.subr.mxu0 0.0
    %8743 = vmatpush1.msra.mxu0 0.0
    %8744 = vmatprep.subr.mxu0 0.0
    %8745 = vmatpush1.msra.mxu0 0.0
    %8746 = vmatprep.subr.mxu0 0.0
    %8747 = vmatpush1.msra.mxu0 0.0
    %8748 = vmatprep.subr.mxu0 0.0
    %8749 = vmatpush1.msra.mxu0 0.0
    %8750 = vmatprep.subr.mxu0 0.0
    %8751 = vmatpush1.msra.mxu0 0.0
    %8752 = vmatprep.subr.mxu0 0.0
    %8753 = vmatpush1.msra.mxu0 0.0
    %8754 = vmatprep.subr.mxu0 0.0
    %8755 = vmatpush1.msra.mxu0 0.0
    %8756 = vmatprep.subr.mxu0 0.0
    %8757 = vmatpush1.msra.mxu0 0.0
    %8758 = vmatprep.subr.mxu0 0.0
    %8759 = vmatpush1.msra.mxu0 0.0
    %8760 = vmatprep.subr.mxu0 0.0
    %8761 = vmatpush1.msra.mxu0 0.0
    %8762 = vmatprep.subr.mxu0 0.0
    %8763 = vmatpush1.msra.mxu0 0.0
    %8764 = vmatprep.subr.mxu0 0.0
    %8765 = vmatpush1.msra.mxu0 0.0
    %8766 = vmatprep.subr.mxu0 0.0
    %8767 = vmatpush1.msra.mxu0 0.0
    %8768 = vmatprep.subr.mxu0 0.0
    %8769 = vmatpush1.msra.mxu0 0.0
    %8770 = vmatprep.subr.mxu0 0.0
    %8771 = vmatpush1.msra.mxu0 0.0
    %8772 = vmatprep.subr.mxu0 0.0
    %8773 = vmatpush1.msra.mxu0 0.0
    %8774 = vmatprep.subr.mxu0 0.0
    %8775 = vmatpush1.msra.mxu0 0.0
    %8776 = vmatprep.subr.mxu0 0.0
    %8777 = vmatpush1.msra.mxu0 0.0
    %8778 = vmatprep.subr.mxu0 0.0
    %8779 = vmatpush1.msra.mxu0 0.0
    %8780 = vmatprep.subr.mxu0 0.0
    %8781 = vmatpush1.msra.mxu0 0.0
    %8782 = vmatprep.mubr.f32.mxu0 0.0
    %8783 = vmatmul.mubr.f32.gmra.mrb[0].mxu0 %v8716
    %v8784 = vpop.f32.mrb[0].mxu0
    %v8785 = vadd.f32 0.0, %v8784
    %v8786 = vpop.f32.mrb[0].mxu0
    %8787 = vdwg.mxu0
    %8788 = vrot.lane.b32.xlu0 %v7593, 64
    %v8789 = vpop.permute.xlu0 %8788
    %v8792 = vsel %vm162, %v8330, 0
    %8794 = vmatprep.subr.mxu0 0.0
    %8795 = vmatpush1.msra.mxu0 %v8789
    %8796 = vmatprep.subr.mxu0 0.0
    %8797 = vmatpush1.msra.mxu0 0.0
    %8798 = vmatprep.subr.mxu0 0.0
    %8799 = vmatpush1.msra.mxu0 0.0
    %8800 = vmatprep.subr.mxu0 0.0
    %8801 = vmatpush1.msra.mxu0 0.0
    %8802 = vmatprep.subr.mxu0 0.0
    %8803 = vmatpush1.msra.mxu0 0.0
    %8804 = vmatprep.subr.mxu0 0.0
    %8805 = vmatpush1.msra.mxu0 0.0
    %8806 = vmatprep.subr.mxu0 0.0
    %8807 = vmatpush1.msra.mxu0 0.0
    %8808 = vmatprep.subr.mxu0 0.0
    %8809 = vmatpush1.msra.mxu0 0.0
    %8810 = vmatprep.subr.mxu0 0.0
    %8811 = vmatpush1.msra.mxu0 0.0
    %8812 = vmatprep.subr.mxu0 0.0
    %8813 = vmatpush1.msra.mxu0 0.0
    %8814 = vmatprep.subr.mxu0 0.0
    %8815 = vmatpush1.msra.mxu0 0.0
    %8816 = vmatprep.subr.mxu0 0.0
    %8817 = vmatpush1.msra.mxu0 0.0
    %8818 = vmatprep.subr.mxu0 0.0
    %8819 = vmatpush1.msra.mxu0 0.0
    %8820 = vmatprep.subr.mxu0 0.0
    %8821 = vmatpush1.msra.mxu0 0.0
    %8822 = vmatprep.subr.mxu0 0.0
    %8823 = vmatpush1.msra.mxu0 0.0
    %8824 = vmatprep.subr.mxu0 0.0
    %8825 = vmatpush1.msra.mxu0 0.0
    %8826 = vmatprep.subr.mxu0 0.0
    %8827 = vmatpush1.msra.mxu0 0.0
    %8828 = vmatprep.subr.mxu0 0.0
    %8829 = vmatpush1.msra.mxu0 0.0
    %8830 = vmatprep.subr.mxu0 0.0
    %8831 = vmatpush1.msra.mxu0 0.0
    %8832 = vmatprep.subr.mxu0 0.0
    %8833 = vmatpush1.msra.mxu0 0.0
    %8834 = vmatprep.subr.mxu0 0.0
    %8835 = vmatpush1.msra.mxu0 0.0
    %8836 = vmatprep.subr.mxu0 0.0
    %8837 = vmatpush1.msra.mxu0 0.0
    %8838 = vmatprep.subr.mxu0 0.0
    %8839 = vmatpush1.msra.mxu0 0.0
    %8840 = vmatprep.subr.mxu0 0.0
    %8841 = vmatpush1.msra.mxu0 0.0
    %8842 = vmatprep.subr.mxu0 0.0
    %8843 = vmatpush1.msra.mxu0 0.0
    %8844 = vmatprep.subr.mxu0 0.0
    %8845 = vmatpush1.msra.mxu0 0.0
    %8846 = vmatprep.subr.mxu0 0.0
    %8847 = vmatpush1.msra.mxu0 0.0
    %8848 = vmatprep.subr.mxu0 0.0
    %8849 = vmatpush1.msra.mxu0 0.0
    %8850 = vmatprep.subr.mxu0 0.0
    %8851 = vmatpush1.msra.mxu0 0.0
    %8852 = vmatprep.subr.mxu0 0.0
    %8853 = vmatpush1.msra.mxu0 0.0
    %8854 = vmatprep.subr.mxu0 0.0
    %8855 = vmatpush1.msra.mxu0 0.0
    %8856 = vmatprep.subr.mxu0 0.0
    %8857 = vmatpush1.msra.mxu0 0.0
    %8858 = vmatprep.mubr.f32.mxu0 0.0
    %8859 = vmatmul.mubr.f32.gmra.mrb[0].mxu0 %v8792
    %v8860 = vpop.f32.mrb[0].mxu0
    %v8861 = vadd.f32 0.0, %v8860
    %v8862 = vpop.f32.mrb[0].mxu0
    %8863 = vdwg.mxu0
    %8864 = vrot.lane.b32.xlu0 %v7595, 64
    %v8865 = vpop.permute.xlu0 %8864
    %v8868 = vsel %vm162, %v8331, 0
    %8870 = vmatprep.subr.mxu0 0.0
    %8871 = vmatpush1.msra.mxu0 %v8865
    %8872 = vmatprep.subr.mxu0 0.0
    %8873 = vmatpush1.msra.mxu0 0.0
    %8874 = vmatprep.subr.mxu0 0.0
    %8875 = vmatpush1.msra.mxu0 0.0
    %8876 = vmatprep.subr.mxu0 0.0
    %8877 = vmatpush1.msra.mxu0 0.0
    %8878 = vmatprep.subr.mxu0 0.0
    %8879 = vmatpush1.msra.mxu0 0.0
    %8880 = vmatprep.subr.mxu0 0.0
    %8881 = vmatpush1.msra.mxu0 0.0
    %8882 = vmatprep.subr.mxu0 0.0
    %8883 = vmatpush1.msra.mxu0 0.0
    %8884 = vmatprep.subr.mxu0 0.0
    %8885 = vmatpush1.msra.mxu0 0.0
    %8886 = vmatprep.subr.mxu0 0.0
    %8887 = vmatpush1.msra.mxu0 0.0
    %8888 = vmatprep.subr.mxu0 0.0
    %8889 = vmatpush1.msra.mxu0 0.0
    %8890 = vmatprep.subr.mxu0 0.0
    %8891 = vmatpush1.msra.mxu0 0.0
    %8892 = vmatprep.subr.mxu0 0.0
    %8893 = vmatpush1.msra.mxu0 0.0
    %8894 = vmatprep.subr.mxu0 0.0
    %8895 = vmatpush1.msra.mxu0 0.0
    %8896 = vmatprep.subr.mxu0 0.0
    %8897 = vmatpush1.msra.mxu0 0.0
    %8898 = vmatprep.subr.mxu0 0.0
    %8899 = vmatpush1.msra.mxu0 0.0
    %8900 = vmatprep.subr.mxu0 0.0
    %8901 = vmatpush1.msra.mxu0 0.0
    %8902 = vmatprep.subr.mxu0 0.0
    %8903 = vmatpush1.msra.mxu0 0.0
    %8904 = vmatprep.subr.mxu0 0.0
    %8905 = vmatpush1.msra.mxu0 0.0
    %8906 = vmatprep.subr.mxu0 0.0
    %8907 = vmatpush1.msra.mxu0 0.0
    %8908 = vmatprep.subr.mxu0 0.0
    %8909 = vmatpush1.msra.mxu0 0.0
    %8910 = vmatprep.subr.mxu0 0.0
    %8911 = vmatpush1.msra.mxu0 0.0
    %8912 = vmatprep.subr.mxu0 0.0
    %8913 = vmatpush1.msra.mxu0 0.0
    %8914 = vmatprep.subr.mxu0 0.0
    %8915 = vmatpush1.msra.mxu0 0.0
    %8916 = vmatprep.subr.mxu0 0.0
    %8917 = vmatpush1.msra.mxu0 0.0
    %8918 = vmatprep.subr.mxu0 0.0
    %8919 = vmatpush1.msra.mxu0 0.0
    %8920 = vmatprep.subr.mxu0 0.0
    %8921 = vmatpush1.msra.mxu0 0.0
    %8922 = vmatprep.subr.mxu0 0.0
    %8923 = vmatpush1.msra.mxu0 0.0
    %8924 = vmatprep.subr.mxu0 0.0
    %8925 = vmatpush1.msra.mxu0 0.0
    %8926 = vmatprep.subr.mxu0 0.0
    %8927 = vmatpush1.msra.mxu0 0.0
    %8928 = vmatprep.subr.mxu0 0.0
    %8929 = vmatpush1.msra.mxu0 0.0
    %8930 = vmatprep.subr.mxu0 0.0
    %8931 = vmatpush1.msra.mxu0 0.0
    %8932 = vmatprep.subr.mxu0 0.0
    %8933 = vmatpush1.msra.mxu0 0.0
    %8934 = vmatprep.mubr.f32.mxu0 0.0
    %8935 = vmatmul.mubr.f32.gmra.mrb[0].mxu0 %v8868
    %v8936 = vpop.f32.mrb[0].mxu0
    %v8937 = vadd.f32 0.0, %v8936
    %v8938 = vpop.f32.mrb[0].mxu0
    %8939 = vdwg.mxu0
    %8941 = vrot.lane.b32.xlu0 %v8481, 8
    %v8942 = vpop.permute.xlu0 %8941
    %8945 = vrot.lane.b32.xlu0 %v8557, 16
    %v8946 = vpop.permute.xlu0 %8945
    %8949 = vrot.lane.b32.xlu0 %v8633, 24
    %v8950 = vpop.permute.xlu0 %8949
    %v8952 = vsel %vm162, %v8405, %v8942
    %v8953 = vsel %vm1518, %v8952, %v8946
    %v8954 = vsel %vm1520, %v8953, %v8950
    %8956 = vrot.lane.b32.xlu0 %v8785, 8
    %v8957 = vpop.permute.xlu0 %8956
    %8960 = vrot.lane.b32.xlu0 %v8861, 16
    %v8961 = vpop.permute.xlu0 %8960
    %8964 = vrot.lane.b32.xlu0 %v8937, 24
    %v8965 = vpop.permute.xlu0 %8964
    %v8967 = vsel %vm162, %v8709, %v8957
    %v8968 = vsel %vm1518, %v8967, %v8961
    %v8969 = vsel %vm1520, %v8968, %v8965
    %s8970 = scalar_lea.vmem %s3, 128
    %v8971 = vld [vmem:[%s8970] sm:$0xff]
    %v8972 = vld [vmem:[%s8970 + $0x8] sm:$0xff]
    %v8973 = vld [vmem:[%s8970 + $0x10] sm:$0xff]
    %v8974 = vld [vmem:[%s8970 + $0x18] sm:$0xff]
    %s8975 = scalar_lea.vmem %s4, 4
    %v8976 = vld [vmem:[%s8975] sm:$0x1]
    %v8978 = vlaneseq
    %v8979 = vshrl.u32 %v8978, 7
    %v8980 = vsub.s32 0, %v8979
    %v8981 = vrot.slane %v8976, %v8980
    %v8984 = vsel %vm64, %v8954, 0
    %v8987 = vsel %vm64, %v8969, 0
    %8989 = vmatprep.subr.mxu0 0.0
    %8990 = vmatpush1.msra.mxu0 %v8971
    %8991 = vmatprep.subr.mxu0 0.0
    %8992 = vmatpush1.msra.mxu0 %v8972
    %8993 = vmatprep.subr.mxu0 0.0
    %8994 = vmatpush1.msra.mxu0 %v8973
    %8995 = vmatprep.subr.mxu0 0.0
    %8996 = vmatpush1.msra.mxu0 %v8974
    %8997 = vmatprep.subr.mxu0 0.0
    %8998 = vmatpush1.msra.mxu0 0.0
    %8999 = vmatprep.subr.mxu0 0.0
    %9000 = vmatpush1.msra.mxu0 0.0
    %9001 = vmatprep.subr.mxu0 0.0
    %9002 = vmatpush1.msra.mxu0 0.0
    %9003 = vmatprep.subr.mxu0 0.0
    %9004 = vmatpush1.msra.mxu0 0.0
    %9005 = vmatprep.subr.mxu0 0.0
    %9006 = vmatpush1.msra.mxu0 0.0
    %9007 = vmatprep.subr.mxu0 0.0
    %9008 = vmatpush1.msra.mxu0 0.0
    %9009 = vmatprep.subr.mxu0 0.0
    %9010 = vmatpush1.msra.mxu0 0.0
    %9011 = vmatprep.subr.mxu0 0.0
    %9012 = vmatpush1.msra.mxu0 0.0
    %9013 = vmatprep.subr.mxu0 0.0
    %9014 = vmatpush1.msra.mxu0 0.0
    %9015 = vmatprep.subr.mxu0 0.0
    %9016 = vmatpush1.msra.mxu0 0.0
    %9017 = vmatprep.subr.mxu0 0.0
    %9018 = vmatpush1.msra.mxu0 0.0
    %9019 = vmatprep.subr.mxu0 0.0
    %9020 = vmatpush1.msra.mxu0 0.0
    %9021 = vmatprep.subr.mxu0 0.0
    %9022 = vmatpush1.msra.mxu0 0.0
    %9023 = vmatprep.subr.mxu0 0.0
    %9024 = vmatpush1.msra.mxu0 0.0
    %9025 = vmatprep.subr.mxu0 0.0
    %9026 = vmatpush1.msra.mxu0 0.0
    %9027 = vmatprep.subr.mxu0 0.0
    %9028 = vmatpush1.msra.mxu0 0.0
    %9029 = vmatprep.subr.mxu0 0.0
    %9030 = vmatpush1.msra.mxu0 0.0
    %9031 = vmatprep.subr.mxu0 0.0
    %9032 = vmatpush1.msra.mxu0 0.0
    %9033 = vmatprep.subr.mxu0 0.0
    %9034 = vmatpush1.msra.mxu0 0.0
    %9035 = vmatprep.subr.mxu0 0.0
    %9036 = vmatpush1.msra.mxu0 0.0
    %9037 = vmatprep.subr.mxu0 0.0
    %9038 = vmatpush1.msra.mxu0 0.0
    %9039 = vmatprep.subr.mxu0 0.0
    %9040 = vmatpush1.msra.mxu0 0.0
    %9041 = vmatprep.subr.mxu0 0.0
    %9042 = vmatpush1.msra.mxu0 0.0
    %9043 = vmatprep.subr.mxu0 0.0
    %9044 = vmatpush1.msra.mxu0 0.0
    %9045 = vmatprep.subr.mxu0 0.0
    %9046 = vmatpush1.msra.mxu0 0.0
    %9047 = vmatprep.subr.mxu0 0.0
    %9048 = vmatpush1.msra.mxu0 0.0
    %9049 = vmatprep.subr.mxu0 0.0
    %9050 = vmatpush1.msra.mxu0 0.0
    %9051 = vmatprep.subr.mxu0 0.0
    %9052 = vmatpush1.msra.mxu0 0.0
    %9053 = vmatprep.mubr.f32.mxu0 0.0
    %9054 = vmatmul.mubr.f32.gmra.mrb[0].mxu0 %v8984
    %v9055 = vpop.f32.mrb[0].mxu0
    %v9056 = vadd.f32 %v8981, %v9055
    %v9057 = vpop.f32.mrb[0].mxu0
    %9058 = vmatprep.mubr.f32.mxu0 0.0
    %9059 = vmatmul.mubr.f32.gmra.mrb[0].mxu0 %v8987
    %v9060 = vpop.f32.mrb[0].mxu0
    %v9061 = vadd.f32 %v8981, %v9060
    %v9062 = vpop.f32.mrb[0].mxu0
    %9063 = vdwg.mxu0
    %v9064 = vadd.f32 %v7486, %v9056
    %v9065 = vadd.f32 %v7487, %v9061
    %s9066 = scalar_lea.vmem %s5, 4
    %v9067 = vld [vmem:[%s9066] sm:$0x1]
    %s9068 = scalar_lea.vmem %s6, 4
    %v9069 = vld [vmem:[%s9068] sm:$0x1]
    %v9070 = vsel %vm64, %v9064, 0.0
    %9071 = vadd.xlane.f32.xlu0 %v9070
    %v9072 = vpop.xlane.xlu0 %9071
    %v9073 = vsel %vm64, %v9065, 0.0
    %9074 = vadd.xlane.f32.xlu0 %v9073
    %v9075 = vpop.xlane.xlu0 %9074
    %v9076 = vmul.f32 %v9072, %v1639
    %v9077 = vmul.f32 %v9075, %v1639
    %v9078 = vsub.f32 %v9064, %v9076
    %v9079 = vsub.f32 %v9065, %v9077
    %v9080 = vmul.f32 %v9078, %v9078
    %v9081 = vmul.f32 %v9079, %v9079
    %v9082 = vsel %vm64, %v9080, 0.0
    %9083 = vadd.xlane.f32.xlu0 %v9082
    %v9084 = vpop.xlane.xlu0 %9083
    %v9085 = vsel %vm64, %v9081, 0.0
    %9086 = vadd.xlane.f32.xlu0 %v9085
    %v9087 = vpop.xlane.xlu0 %9086
    %v9088 = vmul.f32 %v9084, %v1639
    %v9089 = vmul.f32 %v9087, %v1639
    %v9090 = vadd.f32 %v9088, 1e-05
    %v9091 = vadd.f32 %v9089, 1e-05
    %v9092 = vrsqrt.pop %v9090
    %v9093 = vrsqrt.pop %v9091
    %v9094 = vmul.f32 %v9078, %v9092
    %v9095 = vmul.f32 %v9079, %v9093
    %v9097 = vlaneseq
    %v9098 = vshrl.u32 %v9097, 7
    %v9099 = vsub.s32 0, %v9098
    %v9100 = vrot.slane %v9067, %v9099
    %v9102 = vmul.f32 %v9094, %v9100
    %v9103 = vmul.f32 %v9095, %v9100
    %v9105 = vlaneseq
    %v9106 = vshrl.u32 %v9105, 7
    %v9107 = vsub.s32 0, %v9106
    %v9108 = vrot.slane %v9069, %v9107
    %v9110 = vadd.f32 %v9102, %v9108
    %v9111 = vadd.f32 %v9103, %v9108
    %s9112 = scalar_lea.vmem %s7, 128
    %v9113 = vld [vmem:[%s9112] sm:$0xff]
    %v9114 = vld [vmem:[%s9112 + $0x8] sm:$0xff]
    %v9115 = vld [vmem:[%s9112 + $0x10] sm:$0xff]
    %v9116 = vld [vmem:[%s9112 + $0x18] sm:$0xff]
    %s9117 = scalar_lea.vmem %s8, 4
    %v9118 = vld [vmem:[%s9117] sm:$0x1]
    %v9120 = vlaneseq
    %v9121 = vshrl.u32 %v9120, 7
    %v9122 = vsub.s32 0, %v9121
    %v9123 = vrot.slane %v9118, %v9122
    %v9126 = vsel %vm64, %v9110, 0
    %v9129 = vsel %vm64, %v9111, 0
    %9131 = vmatprep.subr.mxu0 0.0
    %9132 = vmatpush1.msra.mxu0 %v9113
    %9133 = vmatprep.subr.mxu0 0.0
    %9134 = vmatpush1.msra.mxu0 %v9114
    %9135 = vmatprep.subr.mxu0 0.0
    %9136 = vmatpush1.msra.mxu0 %v9115
    %9137 = vmatprep.subr.mxu0 0.0
    %9138 = vmatpush1.msra.mxu0 %v9116
    %9139 = vmatprep.subr.mxu0 0.0
    %9140 = vmatpush1.msra.mxu0 0.0
    %9141 = vmatprep.subr.mxu0 0.0
    %9142 = vmatpush1.msra.mxu0 0.0
    %9143 = vmatprep.subr.mxu0 0.0
    %9144 = vmatpush1.msra.mxu0 0.0
    %9145 = vmatprep.subr.mxu0 0.0
    %9146 = vmatpush1.msra.mxu0 0.0
    %9147 = vmatprep.subr.mxu0 0.0
    %9148 = vmatpush1.msra.mxu0 0.0
    %9149 = vmatprep.subr.mxu0 0.0
    %9150 = vmatpush1.msra.mxu0 0.0
    %9151 = vmatprep.subr.mxu0 0.0
    %9152 = vmatpush1.msra.mxu0 0.0
    %9153 = vmatprep.subr.mxu0 0.0
    %9154 = vmatpush1.msra.mxu0 0.0
    %9155 = vmatprep.subr.mxu0 0.0
    %9156 = vmatpush1.msra.mxu0 0.0
    %9157 = vmatprep.subr.mxu0 0.0
    %9158 = vmatpush1.msra.mxu0 0.0
    %9159 = vmatprep.subr.mxu0 0.0
    %9160 = vmatpush1.msra.mxu0 0.0
    %9161 = vmatprep.subr.mxu0 0.0
    %9162 = vmatpush1.msra.mxu0 0.0
    %9163 = vmatprep.subr.mxu0 0.0
    %9164 = vmatpush1.msra.mxu0 0.0
    %9165 = vmatprep.subr.mxu0 0.0
    %9166 = vmatpush1.msra.mxu0 0.0
    %9167 = vmatprep.subr.mxu0 0.0
    %9168 = vmatpush1.msra.mxu0 0.0
    %9169 = vmatprep.subr.mxu0 0.0
    %9170 = vmatpush1.msra.mxu0 0.0
    %9171 = vmatprep.subr.mxu0 0.0
    %9172 = vmatpush1.msra.mxu0 0.0
    %9173 = vmatprep.subr.mxu0 0.0
    %9174 = vmatpush1.msra.mxu0 0.0
    %9175 = vmatprep.subr.mxu0 0.0
    %9176 = vmatpush1.msra.mxu0 0.0
    %9177 = vmatprep.subr.mxu0 0.0
    %9178 = vmatpush1.msra.mxu0 0.0
    %9179 = vmatprep.subr.mxu0 0.0
    %9180 = vmatpush1.msra.mxu0 0.0
    %9181 = vmatprep.subr.mxu0 0.0
    %9182 = vmatpush1.msra.mxu0 0.0
    %9183 = vmatprep.subr.mxu0 0.0
    %9184 = vmatpush1.msra.mxu0 0.0
    %9185 = vmatprep.subr.mxu0 0.0
    %9186 = vmatpush1.msra.mxu0 0.0
    %9187 = vmatprep.subr.mxu0 0.0
    %9188 = vmatpush1.msra.mxu0 0.0
    %9189 = vmatprep.subr.mxu0 0.0
    %9190 = vmatpush1.msra.mxu0 0.0
    %9191 = vmatprep.subr.mxu0 0.0
    %9192 = vmatpush1.msra.mxu0 0.0
    %9193 = vmatprep.subr.mxu0 0.0
    %9194 = vmatpush1.msra.mxu0 0.0
    %9195 = vmatprep.mubr.f32.mxu0 0.0
    %9196 = vmatmul.mubr.f32.gmra.mrb[0].mxu0 %v9126
    %v9197 = vpop.f32.mrb[0].mxu0
    %v9198 = vadd.f32 %v9123, %v9197
    %v9199 = vpop.f32.mrb[0].mxu0
    %9200 = vmatprep.mubr.f32.mxu0 0.0
    %9201 = vmatmul.mubr.f32.gmra.mrb[0].mxu0 %v9129
    %v9202 = vpop.f32.mrb[0].mxu0
    %v9203 = vadd.f32 %v9123, %v9202
    %v9204 = vpop.f32.mrb[0].mxu0
    %9205 = vdwg.mxu0
    %v9206 = vmul.f32 %v9198, 0.5
    %v9207 = vmul.f32 %v9203, 0.5
    %v9208 = vmul.f32 %v9198, 0.70710677
    %v9209 = vmul.f32 %v9203, 0.70710677
    %v9210 = verf.f32.pop %v9208
    %v9211 = verf.f32.pop %v9209
    %v9212 = vadd.f32 %v9210, 1.0
    %v9213 = vadd.f32 %v9211, 1.0
    %v9214 = vmul.f32 %v9206, %v9212
    %v9215 = vmul.f32 %v9207, %v9213
    %s9216 = scalar_lea.vmem %s9, 512
    %v9217 = vld [vmem:[%s9216] sm:$0xff]
    %v9218 = vld [vmem:[%s9216 + $0x8] sm:$0xff]
    %v9219 = vld [vmem:[%s9216 + $0x10] sm:$0xff]
    %v9220 = vld [vmem:[%s9216 + $0x18] sm:$0xff]
    %v9221 = vld [vmem:[%s9216 + $0x20] sm:$0xff]
    %v9222 = vld [vmem:[%s9216 + $0x28] sm:$0xff]
    %v9223 = vld [vmem:[%s9216 + $0x30] sm:$0xff]
    %v9224 = vld [vmem:[%s9216 + $0x38] sm:$0xff]
    %v9225 = vld [vmem:[%s9216 + $0x40] sm:$0xff]
    %v9226 = vld [vmem:[%s9216 + $0x48] sm:$0xff]
    %v9227 = vld [vmem:[%s9216 + $0x50] sm:$0xff]
    %v9228 = vld [vmem:[%s9216 + $0x58] sm:$0xff]
    %v9229 = vld [vmem:[%s9216 + $0x60] sm:$0xff]
    %v9230 = vld [vmem:[%s9216 + $0x68] sm:$0xff]
    %v9231 = vld [vmem:[%s9216 + $0x70] sm:$0xff]
    %v9232 = vld [vmem:[%s9216 + $0x78] sm:$0xff]
    %s9233 = scalar_lea.vmem %s10, 4
    %v9234 = vld [vmem:[%s9233] sm:$0x1]
    %v9236 = vlaneseq
    %v9237 = vshrl.u32 %v9236, 7
    %v9238 = vsub.s32 0, %v9237
    %v9239 = vrot.slane %v9234, %v9238
    %9241 = vmatprep.subr.mxu0 0.0
    %9242 = vmatpush1.msra.mxu0 %v9217
    %9243 = vmatprep.subr.mxu0 0.0
    %9244 = vmatpush1.msra.mxu0 %v9218
    %9245 = vmatprep.subr.mxu0 0.0
    %9246 = vmatpush1.msra.mxu0 %v9219
    %9247 = vmatprep.subr.mxu0 0.0
    %9248 = vmatpush1.msra.mxu0 %v9220
    %9249 = vmatprep.subr.mxu0 0.0
    %9250 = vmatpush1.msra.mxu0 %v9221
    %9251 = vmatprep.subr.mxu0 0.0
    %9252 = vmatpush1.msra.mxu0 %v9222
    %9253 = vmatprep.subr.mxu0 0.0
    %9254 = vmatpush1.msra.mxu0 %v9223
    %9255 = vmatprep.subr.mxu0 0.0
    %9256 = vmatpush1.msra.mxu0 %v9224
    %9257 = vmatprep.subr.mxu0 0.0
    %9258 = vmatpush1.msra.mxu0 %v9225
    %9259 = vmatprep.subr.mxu0 0.0
    %9260 = vmatpush1.msra.mxu0 %v9226
    %9261 = vmatprep.subr.mxu0 0.0
    %9262 = vmatpush1.msra.mxu0 %v9227
    %9263 = vmatprep.subr.mxu0 0.0
    %9264 = vmatpush1.msra.mxu0 %v9228
    %9265 = vmatprep.subr.mxu0 0.0
    %9266 = vmatpush1.msra.mxu0 %v9229
    %9267 = vmatprep.subr.mxu0 0.0
    %9268 = vmatpush1.msra.mxu0 %v9230
    %9269 = vmatprep.subr.mxu0 0.0
    %9270 = vmatpush1.msra.mxu0 %v9231
    %9271 = vmatprep.subr.mxu0 0.0
    %9272 = vmatpush1.msra.mxu0 %v9232
    %9273 = vmatprep.subr.mxu0 0.0
    %9274 = vmatpush1.msra.mxu0 0.0
    %9275 = vmatprep.subr.mxu0 0.0
    %9276 = vmatpush1.msra.mxu0 0.0
    %9277 = vmatprep.subr.mxu0 0.0
    %9278 = vmatpush1.msra.mxu0 0.0
    %9279 = vmatprep.subr.mxu0 0.0
    %9280 = vmatpush1.msra.mxu0 0.0
    %9281 = vmatprep.subr.mxu0 0.0
    %9282 = vmatpush1.msra.mxu0 0.0
    %9283 = vmatprep.subr.mxu0 0.0
    %9284 = vmatpush1.msra.mxu0 0.0
    %9285 = vmatprep.subr.mxu0 0.0
    %9286 = vmatpush1.msra.mxu0 0.0
    %9287 = vmatprep.subr.mxu0 0.0
    %9288 = vmatpush1.msra.mxu0 0.0
    %9289 = vmatprep.subr.mxu0 0.0
    %9290 = vmatpush1.msra.mxu0 0.0
    %9291 = vmatprep.subr.mxu0 0.0
    %9292 = vmatpush1.msra.mxu0 0.0
    %9293 = vmatprep.subr.mxu0 0.0
    %9294 = vmatpush1.msra.mxu0 0.0
    %9295 = vmatprep.subr.mxu0 0.0
    %9296 = vmatpush1.msra.mxu0 0.0
    %9297 = vmatprep.subr.mxu0 0.0
    %9298 = vmatpush1.msra.mxu0 0.0
    %9299 = vmatprep.subr.mxu0 0.0
    %9300 = vmatpush1.msra.mxu0 0.0
    %9301 = vmatprep.subr.mxu0 0.0
    %9302 = vmatpush1.msra.mxu0 0.0
    %9303 = vmatprep.subr.mxu0 0.0
    %9304 = vmatpush1.msra.mxu0 0.0
    %9305 = vmatprep.mubr.f32.mxu0 0.0
    %9306 = vmatmul.mubr.f32.gmra.mrb[0].mxu0 %v9214
    %v9307 = vpop.f32.mrb[0].mxu0
    %v9308 = vadd.f32 %v9239, %v9307
    %v9309 = vpop.f32.mrb[0].mxu0
    %9310 = vmatprep.mubr.f32.mxu0 0.0
    %9311 = vmatmul.mubr.f32.gmra.mrb[0].mxu0 %v9215
    %v9312 = vpop.f32.mrb[0].mxu0
    %v9313 = vadd.f32 %v9239, %v9312
    %v9314 = vpop.f32.mrb[0].mxu0
    %9315 = vdwg.mxu0
    %v9316 = vadd.f32 %v9110, %v9308
    %v9317 = vadd.f32 %v9111, %v9313
    %v9318 = vsel %vm64, %v9316, 0.0
    %9319 = vadd.xlane.f32.xlu0 %v9318
    %v9320 = vpop.xlane.xlu0 %9319
    %v9321 = vsel %vm64, %v9317, 0.0
    %9322 = vadd.xlane.f32.xlu0 %v9321
    %v9323 = vpop.xlane.xlu0 %9322
    %v9324 = vmul.f32 %v9320, %v1639
    %v9325 = vmul.f32 %v9323, %v1639
    %v9326 = vsub.f32 %v9316, %v9324
    %v9327 = vsub.f32 %v9317, %v9325
    %v9328 = vmul.f32 %v9326, %v9326
    %v9329 = vmul.f32 %v9327, %v9327
    %v9330 = vsel %vm64, %v9328, 0.0
    %9331 = vadd.xlane.f32.xlu0 %v9330
    %v9332 = vpop.xlane.xlu0 %9331
    %v9333 = vsel %vm64, %v9329, 0.0
    %9334 = vadd.xlane.f32.xlu0 %v9333
    %v9335 = vpop.xlane.xlu0 %9334
    %v9336 = vmul.f32 %v9332, %v1639
    %v9337 = vmul.f32 %v9335, %v1639
    %v9338 = vadd.f32 %v9336, 1e-05
    %v9339 = vadd.f32 %v9337, 1e-05
    %v9340 = vrsqrt.pop %v9338
    %v9341 = vrsqrt.pop %v9339
    %v9342 = vmul.f32 %v9326, %v9340
    %v9343 = vmul.f32 %v9327, %v9341
    %v9344 = vmul.f32 %v9342, %v9100
    %v9345 = vmul.f32 %v9343, %v9100
    %v9346 = vadd.f32 %v9344, %v9108
    %v9347 = vadd.f32 %v9345, %v9108
    %v9348 = vld [vmem:[%s11] sm:$0xff]
    %v9349 = vld [vmem:[%s11 + $0x8] sm:$0xff]
    %v9350 = vld [vmem:[%s11 + $0x10] sm:$0xff]
    %v9351 = vld [vmem:[%s11 + $0x18] sm:$0xff]
    %v9352 = vld [vmem:[%s12] sm:$0x1]
    %v9354 = vlaneseq
    %v9355 = vshrl.u32 %v9354, 7
    %v9356 = vsub.s32 0, %v9355
    %v9357 = vrot.slane %v9352, %v9356
    %v9360 = vsel %vm64, %v9346, 0
    %v9363 = vsel %vm64, %v9347, 0
    %9365 = vmatprep.subr.mxu0 0.0
    %9366 = vmatpush1.msra.mxu0 %v9348
    %9367 = vmatprep.subr.mxu0 0.0
    %9368 = vmatpush1.msra.mxu0 %v9349
    %9369 = vmatprep.subr.mxu0 0.0
    %9370 = vmatpush1.msra.mxu0 %v9350
    %9371 = vmatprep.subr.mxu0 0.0
    %9372 = vmatpush1.msra.mxu0 %v9351
    %9373 = vmatprep.subr.mxu0 0.0
    %9374 = vmatpush1.msra.mxu0 0.0
    %9375 = vmatprep.subr.mxu0 0.0
    %9376 = vmatpush1.msra.mxu0 0.0
    %9377 = vmatprep.subr.mxu0 0.0
    %9378 = vmatpush1.msra.mxu0 0.0
    %9379 = vmatprep.subr.mxu0 0.0
    %9380 = vmatpush1.msra.mxu0 0.0
    %9381 = vmatprep.subr.mxu0 0.0
    %9382 = vmatpush1.msra.mxu0 0.0
    %9383 = vmatprep.subr.mxu0 0.0
    %9384 = vmatpush1.msra.mxu0 0.0
    %9385 = vmatprep.subr.mxu0 0.0
    %9386 = vmatpush1.msra.mxu0 0.0
    %9387 = vmatprep.subr.mxu0 0.0
    %9388 = vmatpush1.msra.mxu0 0.0
    %9389 = vmatprep.subr.mxu0 0.0
    %9390 = vmatpush1.msra.mxu0 0.0
    %9391 = vmatprep.subr.mxu0 0.0
    %9392 = vmatpush1.msra.mxu0 0.0
    %9393 = vmatprep.subr.mxu0 0.0
    %9394 = vmatpush1.msra.mxu0 0.0
    %9395 = vmatprep.subr.mxu0 0.0
    %9396 = vmatpush1.msra.mxu0 0.0
    %9397 = vmatprep.subr.mxu0 0.0
    %9398 = vmatpush1.msra.mxu0 0.0
    %9399 = vmatprep.subr.mxu0 0.0
    %9400 = vmatpush1.msra.mxu0 0.0
    %9401 = vmatprep.subr.mxu0 0.0
    %9402 = vmatpush1.msra.mxu0 0.0
    %9403 = vmatprep.subr.mxu0 0.0
    %9404 = vmatpush1.msra.mxu0 0.0
    %9405 = vmatprep.subr.mxu0 0.0
    %9406 = vmatpush1.msra.mxu0 0.0
    %9407 = vmatprep.subr.mxu0 0.0
    %9408 = vmatpush1.msra.mxu0 0.0
    %9409 = vmatprep.subr.mxu0 0.0
    %9410 = vmatpush1.msra.mxu0 0.0
    %9411 = vmatprep.subr.mxu0 0.0
    %9412 = vmatpush1.msra.mxu0 0.0
    %9413 = vmatprep.subr.mxu0 0.0
    %9414 = vmatpush1.msra.mxu0 0.0
    %9415 = vmatprep.subr.mxu0 0.0
    %9416 = vmatpush1.msra.mxu0 0.0
    %9417 = vmatprep.subr.mxu0 0.0
    %9418 = vmatpush1.msra.mxu0 0.0
    %9419 = vmatprep.subr.mxu0 0.0
    %9420 = vmatpush1.msra.mxu0 0.0
    %9421 = vmatprep.subr.mxu0 0.0
    %9422 = vmatpush1.msra.mxu0 0.0
    %9423 = vmatprep.subr.mxu0 0.0
    %9424 = vmatpush1.msra.mxu0 0.0
    %9425 = vmatprep.subr.mxu0 0.0
    %9426 = vmatpush1.msra.mxu0 0.0
    %9427 = vmatprep.subr.mxu0 0.0
    %9428 = vmatpush1.msra.mxu0 0.0
    %9429 = vmatprep.mubr.f32.mxu0 0.0
    %9430 = vmatmul.mubr.f32.gmra.mrb[0].mxu0 %v9360
    %v9431 = vpop.f32.mrb[0].mxu0
    %v9432 = vadd.f32 %v9357, %v9431
    %v9433 = vpop.f32.mrb[0].mxu0
    %9434 = vmatprep.mubr.f32.mxu0 0.0
    %9435 = vmatmul.mubr.f32.gmra.mrb[0].mxu0 %v9363
    %v9436 = vpop.f32.mrb[0].mxu0
    %v9437 = vadd.f32 %v9357, %v9436
    %v9438 = vpop.f32.mrb[0].mxu0
    %9439 = vdwg.mxu0
    %v9440 = vsel %vm64, %v9432, -inf
    %9441 = vmax.xlane.f32.xlu0 %v9440
    %v9442 = vpop.xlane.xlu0 %9441
    %v9443 = vsel %vm64, %v9437, -inf
    %9444 = vmax.xlane.f32.xlu0 %v9443
    %v9445 = vpop.xlane.xlu0 %9444
    %v9446 = vsub.f32 %v9432, %v9442
    %v9447 = vsub.f32 %v9437, %v9445
    %v9448 = vmul.f32 %v9446, 1.442695
    %v9449 = vpow.pop %v9448
    %v9450 = vmul.f32 %v9447, 1.442695
    %v9451 = vpow.pop %v9450
    %v9452 = vsel %vm64, %v9449, 0.0
    %9453 = vadd.xlane.f32.xlu0 %v9452
    %v9454 = vpop.xlane.xlu0 %9453
    %v9455 = vsel %vm64, %v9451, 0.0
    %9456 = vadd.xlane.f32.xlu0 %v9455
    %v9457 = vpop.xlane.xlu0 %9456
    %v9458 = vrcp.pop %v9454
    %v9459 = vrcp.pop %v9457
    %v9460 = vmul.f32 %v9454, %v9458
    %v9461 = vmul.f32 %v9457, %v9459
    %v9462 = vsub.f32 2.0, %v9460
    %v9463 = vsub.f32 2.0, %v9461
    %v9464 = vmul.f32 %v9458, %v9462
    %v9465 = vmul.f32 %v9459, %v9463
    %v9466 = vmul.f32 %v9449, %v9464
    %v9467 = vmul.f32 %v9451, %v9465
    %9468 = vst.msk [vmem:[#allocation2] sm:$0xff] %vm64, %v9466
    %9469 = vst.msk [vmem:[#allocation2 + $0x8] sm:$0xff] %vm64, %v9467
    // Predicated region
    $region54: #{decoder_forward.1} parent=1 // pred_check
      _
    $region55: #{decoder_forward.1} parent=1 // pred_check_branch
      %9471 = sbr.rel (0) target = $region57
    $region56: #{decoder_forward.1} parent=1 // pred_region
      %s9473 = ssub.s32 256, 256
      %9474 = vsyncadd [#allocation3], %s9473
      %s9475 = sshll.u32 [#allocation2], 4
      %s9476 = int_to_ptr.vmem [resolvable:$true] %s9475
      %9481 = dma.vmem_to_hbm [thread:$0]  %s9476, 256, %s13, [#allocation3], 128, 128, 8
    $region57: #{decoder_forward.1} parent=1 // pred_fallthru
      _
    // Predicated region
    $region58: #{decoder_forward.1} parent=1 // pred_check
      _
    $region59: #{decoder_forward.1} parent=1 // pred_check_branch
      %9483 = sbr.rel (0) target = $region61
    $region60: #{decoder_forward.1} parent=1 // pred_region
      %9484 = dma.done [#allocation3], 256
    $region61: #{decoder_forward.1} parent=1 // pred_fallthru
      _
    %9485 = vsyncpa [#allocation3], 1

</llo_original>
